<compile_context>
chip_gen: v7x
topology: tpu7x:2x2x1
jax: 0.10.0
libtpu: 0.0.40
codegen_flags: <defaults>
</compile_context>

<pallas_src>
import functools
import math

import jax
import jax.numpy as jnp
from jax.experimental import pallas as pl
from jax.experimental.pallas import tpu as pltpu

EPS = 1e-5          # LayerNorm eps
DW_KERNEL = 7       # ConvNeXt depthwise kernel size ("same" padding = 3)
HALO = 16           # overlap-save halo rows per side (>= 3 * num_layers, mult of 8)

assert HALO % 8 == 0, "HALO must stay sublane-aligned"


# ---------------------------------------------------------------------------
# in-kernel helpers (operate on (rows, C) tiles living in VMEM, f32)
# ---------------------------------------------------------------------------
def _layer_norm(x, gamma, beta):
    # one-pass LN over channels: the two reductions are independent so they
    # overlap on the XLUs.  var is clamped at 0 (one-pass form can cancel).
    m = jnp.mean(x, axis=-1, keepdims=True)
    m2 = jnp.mean(x * x, axis=-1, keepdims=True)
    var = jnp.maximum(m2 - m * m, 0.0)
    return (x - m) * jax.lax.rsqrt(var + EPS) * gamma + beta


def _gelu_tanh(x):
    c = math.sqrt(2.0 / math.pi)
    return 0.5 * x * (1.0 + jnp.tanh(c * (x + 0.044715 * x * x * x)))


# ---------------------------------------------------------------------------
# kernel: one grid step == one (batch row, haloed time tile)
# ---------------------------------------------------------------------------
def duration_disc_kernel(win_ref, mask_ref,
                         w_in, b_in, in_g, in_b,
                         dw_w, dw_b, ln_g, ln_b,
                         pw1_w, pw1_b, pw2_w, pw2_b,
                         out_g, out_b, wo, bo,
                         o_ref,
                         *, num_layers, tile_t, halo, t_valid):
    W = tile_t + 2 * halo
    j = pl.program_id(1)

    fw = win_ref[0, 0]                                    # (W, CIN_pad)

    # sequence-validity mask: window rows whose global time index lies outside
    # [0, T) behave as the depthwise conv's zero padding.  Only tiles whose
    # window actually crosses a sequence boundary need it.
    g0 = j * tile_t - halo
    gt = jax.lax.broadcasted_iota(jnp.int32, (W, 1), 0) + g0
    vmask = jnp.logical_and(gt >= 0, gt < t_valid).astype(jnp.float32)
    is_boundary = jnp.logical_or(j == 0, (j + 1) * tile_t + halo > t_valid)

    # --- fused input 1x1 convs (text | spk | duration), bf16 in / f32 acc ----
    x = jnp.dot(fw.astype(jnp.bfloat16), w_in[...],
                preferred_element_type=jnp.float32) + b_in[...]
    x = _layer_norm(x, in_g[...], in_b[...])

    # --- ConvNeXt mid layers (statically unrolled, small L) -------------------
    for l in range(num_layers):
        # zero the out-of-sequence rows only on boundary tiles
        xm = jax.lax.cond(is_boundary, lambda v: v * vmask, lambda v: v, x)
        dwl = dw_w[l]                                     # (K, C)
        acc = xm * dwl[3:4, :]                            # center tap (d = 0)
        for k in range(DW_KERNEL):
            if k == 3:
                continue
            # want shifted[r] = xm[r + (k - 3)]  ->  jnp.roll-style shift = 3 - k
            acc = acc + pltpu.roll(xm, shift=(3 - k) % W, axis=0) * dwl[k:k + 1, :]
        h = acc + dw_b[l]
        h = _layer_norm(h, ln_g[l], ln_b[l])
        h = jnp.dot(h.astype(jnp.bfloat16), pw1_w[l],
                    preferred_element_type=jnp.float32) + pw1_b[l]
        h = _gelu_tanh(h)
        h = jnp.dot(h.astype(jnp.bfloat16), pw2_w[l],
                    preferred_element_type=jnp.float32) + pw2_b[l]
        x = x + h

    # --- drop the halo, mask, output norm, 1-channel projection ---------------
    xc = x[halo:halo + tile_t, :]                         # aligned static slice
    m = mask_ref[0]                                       # (tile_t, 1)
    xc = xc * m
    xc = _layer_norm(xc, out_g[...], out_b[...])
    # Cx1 projection as VPU multiply + lane reduce (no N=1 MXU matmul).
    y = jnp.sum(xc * wo[...], axis=-1, keepdims=True) + bo[...]   # (tile_t, 1)
    y = y * m
    o_ref[0] = y.astype(o_ref.dtype)


# ---------------------------------------------------------------------------
# wrapper
# ---------------------------------------------------------------------------
def duration_discriminator(text_encoded, text_mask, log_duration, spk, params,
                           num_layers, time_tile=None):
    B, T, Cc = text_encoded.shape
    Cs = spk.shape[2]
    C = params["wt"].shape[1]
    assert 3 * num_layers <= HALO, "grow HALO for deeper ConvNeXt stacks"

    # --- time-tile selection: biggest tile that keeps >= 4 grid steps ---------
    # (per-step overhead + halo recompute shrink with tile size; >= 4 steps
    #  keeps both v7x TensorCores busy with prefetch/writeback overlap)
    if time_tile is None:
        t_ceil = -(-T // 128) * 128           # never pad a short seq past 1 tile
        time_tile = min(2048, t_ceil)
        for cand in (2048, 1024, 512, 256, 128):
            if cand <= t_ceil and B * (-(-T // cand)) >= 4:
                time_tile = cand
                break
    assert time_tile % 128 == 0
    NT = -(-T // time_tile)
    T_pad = NT * time_tile
    W = time_tile + 2 * HALO

    # --- fuse the three input 1x1 convs; pad CIN to a clean multiple of 64 ----
    featd = jnp.concatenate([text_encoded, spk, log_duration], axis=-1)  # (B,T,CIN)
    CIN = Cc + Cs + 1
    CIN_pad = -(-CIN // 64) * 64
    w_in = jnp.concatenate([params["wt"], params["ws"], params["wd"]], axis=0)
    w_in = jnp.pad(w_in, ((0, CIN_pad - CIN), (0, 0))).astype(jnp.bfloat16)  # (CIN_pad, C)
    b_in = params["bt"] + params["bs"] + params["bd"]                        # (1, C)

    # --- pre-materialize haloed, zero-padded time windows (one DMA per step) --
    featd = jnp.pad(featd,
                    ((0, 0), (HALO, T_pad - T + HALO), (0, CIN_pad - CIN)))
    windows = jnp.stack(
        [featd[:, j * time_tile: j * time_tile + W, :] for j in range(NT)],
        axis=1)                                                   # (B, NT, W, CIN_pad)

    mask_in = text_mask
    if T_pad != T:
        mask_in = jnp.pad(text_mask, ((0, 0), (0, T_pad - T), (0, 0)))

    # --- weights (matmul weights in bf16, everything else f32) ----------------
    wvals = [
        w_in, b_in,
        params["in_g"], params["in_b"],
        params["dw_w"], params["dw_b"],
        params["ln_g"], params["ln_b"],
        params["pw1_w"].astype(jnp.bfloat16), params["pw1_b"],
        params["pw2_w"].astype(jnp.bfloat16), params["pw2_b"],
        params["out_g"], params["out_b"],
        jnp.reshape(params["wo"], (1, C)), params["bo"],
    ]

    in_specs = [
        pl.BlockSpec((1, 1, W, CIN_pad), lambda b, j: (b, j, 0, 0)),
        pl.BlockSpec((1, time_tile, 1), lambda b, j: (b, j, 0)),
    ] + [
        pl.BlockSpec(w.shape, lambda b, j, _n=w.ndim: (0,) * _n) for w in wvals
    ]

    kern = functools.partial(duration_disc_kernel, num_layers=num_layers,
                             tile_t=time_tile, halo=HALO, t_valid=T)

    out = pl.pallas_call(
        kern,
        out_shape=jax.ShapeDtypeStruct((B, T_pad, 1), jnp.float32),
        grid_spec=pltpu.PrefetchScalarGridSpec(
            num_scalar_prefetch=0,
            grid=(B, NT),
            in_specs=in_specs,
            out_specs=pl.BlockSpec((1, time_tile, 1), lambda b, j: (b, j, 0)),
        ),
        compiler_params=pltpu.CompilerParams(
            dimension_semantics=("parallel", "parallel"),
            vmem_limit_bytes=32 * 1024 * 1024),
    )(windows, mask_in, *wvals)

    return out[:, :T, :]


# ---------------------------------------------------------------------------
# deterministic parameter construction (synthetic, no checkpoint)
# ---------------------------------------------------------------------------
def make_params(key, content_ch, spk_ch, internal_ch, hidden_ch, num_layers):
    ks = iter(jax.random.split(key, 32))

    def nrm(shape, scale):
        return jax.random.normal(next(ks), shape, jnp.float32) * scale

    C, H, K, L = internal_ch, hidden_ch, DW_KERNEL, num_layers
    return {
        "wt": nrm((content_ch, C), 1.0 / math.sqrt(content_ch)),
        "bt": nrm((1, C), 0.02),
        "wd": nrm((1, C), 1.0),
        "bd": nrm((1, C), 0.02),
        "ws": nrm((spk_ch, C), 1.0 / math.sqrt(spk_ch)),
        "bs": nrm((1, C), 0.02),
        "in_g": jnp.ones((1, C), jnp.float32),
        "in_b": jnp.zeros((1, C), jnp.float32),
        "dw_w": nrm((L, K, C), 1.0 / math.sqrt(K)),
        "dw_b": nrm((L, 1, C), 0.02),
        "ln_g": jnp.ones((L, 1, C), jnp.float32),
        "ln_b": jnp.zeros((L, 1, C), jnp.float32),
        "pw1_w": nrm((L, C, H), 1.0 / math.sqrt(C)),
        "pw1_b": nrm((L, 1, H), 0.02),
        "pw2_w": nrm((L, H, C), 1.0 / math.sqrt(H)),
        "pw2_b": nrm((L, 1, C), 0.02),
        "out_g": jnp.ones((1, C), jnp.float32),
        "out_b": jnp.zeros((1, C), jnp.float32),
        "wo": nrm((C, 1), 1.0 / math.sqrt(C)),
        "bo": nrm((1, 1), 0.02),
    }


# ---------------------------------------------------------------------------
# pure-JAX reference: module-faithful math, same bf16-in / f32-acc matmul
# policy as the kernel so the check is tight.
# ---------------------------------------------------------------------------
def reference(text, dur, spk, mask, p, num_layers):
    def mm(a, b):
        return jnp.dot(a.astype(jnp.bfloat16), b.astype(jnp.bfloat16),
                       preferred_element_type=jnp.float32)

    def ln(x, g, b):
        mu = x.mean(-1, keepdims=True)
        v = ((x - mu) ** 2).mean(-1, keepdims=True)
        return (x - mu) / jnp.sqrt(v + EPS) * g + b

    x = (mm(text, p["wt"]) + p["bt"] + mm(dur, p["wd"]) + p["bd"]
         + mm(spk, p["ws"]) + p["bs"])
    x = ln(x, p["in_g"], p["in_b"])
    pad = DW_KERNEL // 2
    for l in range(num_layers):
        res = x
        xp = jnp.pad(x, ((0, 0), (pad, pad), (0, 0)))
        h = sum(xp[:, k:k + x.shape[1], :] * p["dw_w"][l, k][None, None, :]
                for k in range(DW_KERNEL)) + p["dw_b"][l]
        h = ln(h, p["ln_g"][l], p["ln_b"][l])
        h = mm(h, p["pw1_w"][l]) + p["pw1_b"][l]
        h = _gelu_tanh(h)
        h = mm(h, p["pw2_w"][l]) + p["pw2_b"][l]
        x = res + h
    x = x * mask
    x = ln(x, p["out_g"], p["out_b"])
    return (jnp.einsum("btc,co->bto", x, p["wo"]) + p["bo"]) * mask


# ---------------------------------------------------------------------------
if __name__ == "__main__":
    # small shapes consistent with the module (scaled-down channel counts);
    # T=380 exercises multi-tile time tiling (2 tiles of 256) + halo windows +
    # the pad-to-tile path while staying tiny.
    B, T = 2, 380
    CONTENT_CH, SPK_CH, INTERNAL_CH, HIDDEN_CH, NUM_LAYERS = 32, 16, 32, 64, 3

    key = jax.random.PRNGKey(0)
    k_in, k_par = jax.random.split(key)
    k1, k2, k3 = jax.random.split(k_in, 3)

    text_encoded = jax.random.normal(k1, (B, T, CONTENT_CH), jnp.float32)
    log_duration = jax.random.normal(k2, (B, T, 1), jnp.float32)
    spk = jax.random.normal(k3, (B, T, SPK_CH), jnp.float32)
    lengths = jnp.array([T, 250])
    text_mask = (jnp.arange(T)[None, :] < lengths[:, None]
                 ).astype(jnp.float32)[..., None]                    # (B, T, 1)

    params = make_params(k_par, CONTENT_CH, SPK_CH, INTERNAL_CH, HIDDEN_CH,
                         NUM_LAYERS)

    out = duration_discriminator(text_encoded, text_mask, log_duration, spk,
                                 params, NUM_LAYERS)
    out = jax.block_until_ready(out)

    ref = reference(text_encoded, log_duration, spk, text_mask, params,
                    NUM_LAYERS)
    assert out.shape == (B, T, 1)
    assert jnp.allclose(out, ref, rtol=1e-2, atol=1e-2), (
        float(jnp.max(jnp.abs(out - ref))))

    print("KERNEL_OK")
</pallas_src>

<mosaic_0001>
module attributes {stable_mosaic.version = 11 : i64} {
  func.func @duration_disc_kernel(%arg0: i32, %arg1: i32, %arg2: memref<1x1x288x64xf32, #tpu.memory_space<vmem>>, %arg3: memref<1x256x1xf32, #tpu.memory_space<vmem>>, %arg4: memref<64x32xbf16, #tpu.memory_space<vmem>>, %arg5: memref<1x32xf32, #tpu.memory_space<vmem>>, %arg6: memref<1x32xf32, #tpu.memory_space<vmem>>, %arg7: memref<1x32xf32, #tpu.memory_space<vmem>>, %arg8: memref<3x7x32xf32, #tpu.memory_space<vmem>>, %arg9: memref<3x1x32xf32, #tpu.memory_space<vmem>>, %arg10: memref<3x1x32xf32, #tpu.memory_space<vmem>>, %arg11: memref<3x1x32xf32, #tpu.memory_space<vmem>>, %arg12: memref<3x32x64xbf16, #tpu.memory_space<vmem>>, %arg13: memref<3x1x64xf32, #tpu.memory_space<vmem>>, %arg14: memref<3x64x32xbf16, #tpu.memory_space<vmem>>, %arg15: memref<3x1x32xf32, #tpu.memory_space<vmem>>, %arg16: memref<1x32xf32, #tpu.memory_space<vmem>>, %arg17: memref<1x32xf32, #tpu.memory_space<vmem>>, %arg18: memref<1x32xf32, #tpu.memory_space<vmem>>, %arg19: memref<1x1xf32, #tpu.memory_space<vmem>>, %arg20: memref<1x256x1xf32, #tpu.memory_space<vmem>>) attributes {dimension_semantics = [#tpu.dimension_semantics<parallel>, #tpu.dimension_semantics<parallel>], iteration_bounds = array<i64: 2, 2>, scalar_prefetch = 0 : i64, scratch_operands = 0 : i64, tpu.core_type = #tpu.core_type<tc>, window_params = [{transform_indices = @transform_0, window_bounds = array<i64: 1, 1, 288, 64>}, {transform_indices = @transform_1, window_bounds = array<i64: 1, 256, 1>}, {pipeline_mode = #tpu.pipeline_mode<synchronous>, transform_indices = @transform_2, window_bounds = array<i64: 64, 32>}, {pipeline_mode = #tpu.pipeline_mode<synchronous>, transform_indices = @transform_3, window_bounds = array<i64: 1, 32>}, {pipeline_mode = #tpu.pipeline_mode<synchronous>, transform_indices = @transform_4, window_bounds = array<i64: 1, 32>}, {pipeline_mode = #tpu.pipeline_mode<synchronous>, transform_indices = @transform_5, window_bounds = array<i64: 1, 32>}, {pipeline_mode = #tpu.pipeline_mode<synchronous>, transform_indices = @transform_6, window_bounds = array<i64: 3, 7, 32>}, {pipeline_mode = #tpu.pipeline_mode<synchronous>, transform_indices = @transform_7, window_bounds = array<i64: 3, 1, 32>}, {pipeline_mode = #tpu.pipeline_mode<synchronous>, transform_indices = @transform_8, window_bounds = array<i64: 3, 1, 32>}, {pipeline_mode = #tpu.pipeline_mode<synchronous>, transform_indices = @transform_9, window_bounds = array<i64: 3, 1, 32>}, {pipeline_mode = #tpu.pipeline_mode<synchronous>, transform_indices = @transform_10, window_bounds = array<i64: 3, 32, 64>}, {pipeline_mode = #tpu.pipeline_mode<synchronous>, transform_indices = @transform_11, window_bounds = array<i64: 3, 1, 64>}, {pipeline_mode = #tpu.pipeline_mode<synchronous>, transform_indices = @transform_12, window_bounds = array<i64: 3, 64, 32>}, {pipeline_mode = #tpu.pipeline_mode<synchronous>, transform_indices = @transform_13, window_bounds = array<i64: 3, 1, 32>}, {pipeline_mode = #tpu.pipeline_mode<synchronous>, transform_indices = @transform_14, window_bounds = array<i64: 1, 32>}, {pipeline_mode = #tpu.pipeline_mode<synchronous>, transform_indices = @transform_15, window_bounds = array<i64: 1, 32>}, {pipeline_mode = #tpu.pipeline_mode<synchronous>, transform_indices = @transform_16, window_bounds = array<i64: 1, 32>}, {pipeline_mode = #tpu.pipeline_mode<synchronous>, transform_indices = @transform_17, window_bounds = array<i64: 1, 1>}, {transform_indices = @transform_18, window_bounds = array<i64: 1, 256, 1>}]} {
    %c0 = arith.constant 0 : index
    %c0_0 = arith.constant 0 : index
    %c0_1 = arith.constant 0 : index
    %c0_2 = arith.constant 0 : index
    %0 = vector.load %arg2[%c0, %c0_0, %c0_1, %c0_2] : memref<1x1x288x64xf32, #tpu.memory_space<vmem>>, vector<1x1x288x64xf32>
    %1 = vector.shape_cast %0 : vector<1x1x288x64xf32> to vector<288x64xf32>
    %c256_i32 = arith.constant 256 : i32
    %2 = arith.muli %arg1, %c256_i32 : i32
    %c16_i32 = arith.constant 16 : i32
    %3 = arith.subi %2, %c16_i32 : i32
    %4 = tpu.iota {dimensions = array<i32: 0>} : vector<288x1xi32>
    %5 = vector.broadcast %3 : i32 to vector<288x1xi32>
    %6 = arith.addi %4, %5 : vector<288x1xi32>
    %c0_i32 = arith.constant 0 : i32
    %7 = vector.broadcast %c0_i32 : i32 to vector<288x1xi32>
    %8 = arith.cmpi sge, %6, %7 : vector<288x1xi32>
    %c380_i32 = arith.constant 380 : i32
    %9 = vector.broadcast %c380_i32 : i32 to vector<288x1xi32>
    %10 = arith.cmpi slt, %6, %9 : vector<288x1xi32>
    %11 = arith.andi %8, %10 : vector<288x1xi1>
    %12 = arith.extui %11 : vector<288x1xi1> to vector<288x1xi32>
    %13 = arith.sitofp %12 : vector<288x1xi32> to vector<288x1xf32>
    %c0_i32_3 = arith.constant 0 : i32
    %14 = arith.cmpi eq, %arg1, %c0_i32_3 : i32
    %c1_i32 = arith.constant 1 : i32
    %15 = arith.addi %arg1, %c1_i32 : i32
    %c256_i32_4 = arith.constant 256 : i32
    %16 = arith.muli %15, %c256_i32_4 : i32
    %c16_i32_5 = arith.constant 16 : i32
    %17 = arith.addi %16, %c16_i32_5 : i32
    %c380_i32_6 = arith.constant 380 : i32
    %18 = arith.cmpi sgt, %17, %c380_i32_6 : i32
    %19 = arith.ori %14, %18 : i1
    %20 = arith.truncf %1 : vector<288x64xf32> to vector<288x64xbf16>
    %c0_7 = arith.constant 0 : index
    %c0_8 = arith.constant 0 : index
    %21 = vector.load %arg4[%c0_7, %c0_8] : memref<64x32xbf16, #tpu.memory_space<vmem>>, vector<64x32xbf16>
    %cst = arith.constant dense<0.000000e+00> : vector<288x32xf32>
    %22 = tpu.matmul %20, %21, %cst {dimension_numbers = #tpu.dot_dimension_numbers<[1], [0], [0], [1], [0, 0, 1, 1], [], []>} : vector<288x64xbf16>, vector<64x32xbf16>, vector<288x32xf32> -> vector<288x32xf32>
    %c0_9 = arith.constant 0 : index
    %c0_10 = arith.constant 0 : index
    %23 = vector.load %arg5[%c0_9, %c0_10] : memref<1x32xf32, #tpu.memory_space<vmem>>, vector<1x32xf32>
    %24 = vector.broadcast %23 : vector<1x32xf32> to vector<288x32xf32>
    %25 = arith.addf %22, %24 : vector<288x32xf32>
    %c0_11 = arith.constant 0 : index
    %c0_12 = arith.constant 0 : index
    %26 = vector.load %arg6[%c0_11, %c0_12] : memref<1x32xf32, #tpu.memory_space<vmem>>, vector<1x32xf32>
    %c0_13 = arith.constant 0 : index
    %c0_14 = arith.constant 0 : index
    %27 = vector.load %arg7[%c0_13, %c0_14] : memref<1x32xf32, #tpu.memory_space<vmem>>, vector<1x32xf32>
    %cst_15 = arith.constant dense<0.000000e+00> : vector<288xf32>
    %28 = vector.multi_reduction <add>, %25, %cst_15 [1] : vector<288x32xf32> to vector<288xf32>
    %29 = vector.shape_cast %28 : vector<288xf32> to vector<288x1xf32>
    %cst_16 = arith.constant 3.200000e+01 : f32
    %30 = vector.broadcast %cst_16 : f32 to vector<288x1xf32>
    %31 = arith.divf %29, %30 : vector<288x1xf32>
    %32 = arith.mulf %25, %25 : vector<288x32xf32>
    %cst_17 = arith.constant dense<0.000000e+00> : vector<288xf32>
    %33 = vector.multi_reduction <add>, %32, %cst_17 [1] : vector<288x32xf32> to vector<288xf32>
    %34 = vector.shape_cast %33 : vector<288xf32> to vector<288x1xf32>
    %cst_18 = arith.constant 3.200000e+01 : f32
    %35 = vector.broadcast %cst_18 : f32 to vector<288x1xf32>
    %36 = arith.divf %34, %35 : vector<288x1xf32>
    %37 = arith.mulf %31, %31 : vector<288x1xf32>
    %38 = arith.subf %36, %37 : vector<288x1xf32>
    %cst_19 = arith.constant 0.000000e+00 : f32
    %39 = vector.broadcast %cst_19 : f32 to vector<288x1xf32>
    %40 = arith.maximumf %38, %39 : vector<288x1xf32>
    %41 = vector.broadcast %31 : vector<288x1xf32> to vector<288x32xf32>
    %42 = arith.subf %25, %41 : vector<288x32xf32>
    %cst_20 = arith.constant 9.99999974E-6 : f32
    %43 = vector.broadcast %cst_20 : f32 to vector<288x1xf32>
    %44 = arith.addf %40, %43 : vector<288x1xf32>
    %45 = math.rsqrt %44 : vector<288x1xf32>
    %46 = vector.broadcast %45 : vector<288x1xf32> to vector<288x32xf32>
    %47 = arith.mulf %42, %46 : vector<288x32xf32>
    %48 = vector.broadcast %26 : vector<1x32xf32> to vector<288x32xf32>
    %49 = arith.mulf %47, %48 : vector<288x32xf32>
    %50 = vector.broadcast %27 : vector<1x32xf32> to vector<288x32xf32>
    %51 = arith.addf %49, %50 : vector<288x32xf32>
    %52 = arith.extui %19 : i1 to i32
    %c0_i32_21 = arith.constant 0 : i32
    %53 = arith.cmpi ne, %52, %c0_i32_21 : i32
    %54 = scf.if %53 -> (vector<288x32xf32>) {
      %395 = vector.broadcast %13 : vector<288x1xf32> to vector<288x32xf32>
      %396 = arith.mulf %51, %395 : vector<288x32xf32>
      scf.yield %396 : vector<288x32xf32>
    } else {
      scf.yield %51 : vector<288x32xf32>
    }
    %c0_22 = arith.constant 0 : index
    %c0_23 = arith.constant 0 : index
    %c0_24 = arith.constant 0 : index
    %55 = vector.load %arg8[%c0_22, %c0_23, %c0_24] : memref<3x7x32xf32, #tpu.memory_space<vmem>>, vector<1x7x32xf32>
    %56 = vector.shape_cast %55 : vector<1x7x32xf32> to vector<7x32xf32>
    %57 = vector.extract_strided_slice %56 {offsets = [3, 0], sizes = [1, 32], strides = [1, 1]} : vector<7x32xf32> to vector<1x32xf32>
    %58 = vector.broadcast %57 : vector<1x32xf32> to vector<288x32xf32>
    %59 = arith.mulf %54, %58 : vector<288x32xf32>
    %c3_i32 = arith.constant 3 : i32
    %60 = tpu.dynamic_rotate %54 by %c3_i32 dim 0 : vector<288x32xf32>, i32 -> vector<288x32xf32>
    %61 = vector.extract_strided_slice %56 {offsets = [0, 0], sizes = [1, 32], strides = [1, 1]} : vector<7x32xf32> to vector<1x32xf32>
    %62 = vector.broadcast %61 : vector<1x32xf32> to vector<288x32xf32>
    %63 = arith.mulf %60, %62 : vector<288x32xf32>
    %64 = arith.addf %59, %63 : vector<288x32xf32>
    %c2_i32 = arith.constant 2 : i32
    %65 = tpu.dynamic_rotate %54 by %c2_i32 dim 0 : vector<288x32xf32>, i32 -> vector<288x32xf32>
    %66 = vector.extract_strided_slice %56 {offsets = [1, 0], sizes = [1, 32], strides = [1, 1]} : vector<7x32xf32> to vector<1x32xf32>
    %67 = vector.broadcast %66 : vector<1x32xf32> to vector<288x32xf32>
    %68 = arith.mulf %65, %67 : vector<288x32xf32>
    %69 = arith.addf %64, %68 : vector<288x32xf32>
    %c1_i32_25 = arith.constant 1 : i32
    %70 = tpu.dynamic_rotate %54 by %c1_i32_25 dim 0 : vector<288x32xf32>, i32 -> vector<288x32xf32>
    %71 = vector.extract_strided_slice %56 {offsets = [2, 0], sizes = [1, 32], strides = [1, 1]} : vector<7x32xf32> to vector<1x32xf32>
    %72 = vector.broadcast %71 : vector<1x32xf32> to vector<288x32xf32>
    %73 = arith.mulf %70, %72 : vector<288x32xf32>
    %74 = arith.addf %69, %73 : vector<288x32xf32>
    %c287_i32 = arith.constant 287 : i32
    %75 = tpu.dynamic_rotate %54 by %c287_i32 dim 0 : vector<288x32xf32>, i32 -> vector<288x32xf32>
    %76 = vector.extract_strided_slice %56 {offsets = [4, 0], sizes = [1, 32], strides = [1, 1]} : vector<7x32xf32> to vector<1x32xf32>
    %77 = vector.broadcast %76 : vector<1x32xf32> to vector<288x32xf32>
    %78 = arith.mulf %75, %77 : vector<288x32xf32>
    %79 = arith.addf %74, %78 : vector<288x32xf32>
    %c286_i32 = arith.constant 286 : i32
    %80 = tpu.dynamic_rotate %54 by %c286_i32 dim 0 : vector<288x32xf32>, i32 -> vector<288x32xf32>
    %81 = vector.extract_strided_slice %56 {offsets = [5, 0], sizes = [1, 32], strides = [1, 1]} : vector<7x32xf32> to vector<1x32xf32>
    %82 = vector.broadcast %81 : vector<1x32xf32> to vector<288x32xf32>
    %83 = arith.mulf %80, %82 : vector<288x32xf32>
    %84 = arith.addf %79, %83 : vector<288x32xf32>
    %c285_i32 = arith.constant 285 : i32
    %85 = tpu.dynamic_rotate %54 by %c285_i32 dim 0 : vector<288x32xf32>, i32 -> vector<288x32xf32>
    %86 = vector.extract_strided_slice %56 {offsets = [6, 0], sizes = [1, 32], strides = [1, 1]} : vector<7x32xf32> to vector<1x32xf32>
    %87 = vector.broadcast %86 : vector<1x32xf32> to vector<288x32xf32>
    %88 = arith.mulf %85, %87 : vector<288x32xf32>
    %89 = arith.addf %84, %88 : vector<288x32xf32>
    %c0_26 = arith.constant 0 : index
    %c0_27 = arith.constant 0 : index
    %c0_28 = arith.constant 0 : index
    %90 = vector.load %arg9[%c0_26, %c0_27, %c0_28] : memref<3x1x32xf32, #tpu.memory_space<vmem>>, vector<1x1x32xf32>
    %91 = vector.shape_cast %90 : vector<1x1x32xf32> to vector<1x32xf32>
    %92 = vector.broadcast %91 : vector<1x32xf32> to vector<288x32xf32>
    %93 = arith.addf %89, %92 : vector<288x32xf32>
    %c0_29 = arith.constant 0 : index
    %c0_30 = arith.constant 0 : index
    %c0_31 = arith.constant 0 : index
    %94 = vector.load %arg10[%c0_29, %c0_30, %c0_31] : memref<3x1x32xf32, #tpu.memory_space<vmem>>, vector<1x1x32xf32>
    %95 = vector.shape_cast %94 : vector<1x1x32xf32> to vector<1x32xf32>
    %c0_32 = arith.constant 0 : index
    %c0_33 = arith.constant 0 : index
    %c0_34 = arith.constant 0 : index
    %96 = vector.load %arg11[%c0_32, %c0_33, %c0_34] : memref<3x1x32xf32, #tpu.memory_space<vmem>>, vector<1x1x32xf32>
    %97 = vector.shape_cast %96 : vector<1x1x32xf32> to vector<1x32xf32>
    %cst_35 = arith.constant dense<0.000000e+00> : vector<288xf32>
    %98 = vector.multi_reduction <add>, %93, %cst_35 [1] : vector<288x32xf32> to vector<288xf32>
    %99 = vector.shape_cast %98 : vector<288xf32> to vector<288x1xf32>
    %cst_36 = arith.constant 3.200000e+01 : f32
    %100 = vector.broadcast %cst_36 : f32 to vector<288x1xf32>
    %101 = arith.divf %99, %100 : vector<288x1xf32>
    %102 = arith.mulf %93, %93 : vector<288x32xf32>
    %cst_37 = arith.constant dense<0.000000e+00> : vector<288xf32>
    %103 = vector.multi_reduction <add>, %102, %cst_37 [1] : vector<288x32xf32> to vector<288xf32>
    %104 = vector.shape_cast %103 : vector<288xf32> to vector<288x1xf32>
    %cst_38 = arith.constant 3.200000e+01 : f32
    %105 = vector.broadcast %cst_38 : f32 to vector<288x1xf32>
    %106 = arith.divf %104, %105 : vector<288x1xf32>
    %107 = arith.mulf %101, %101 : vector<288x1xf32>
    %108 = arith.subf %106, %107 : vector<288x1xf32>
    %cst_39 = arith.constant 0.000000e+00 : f32
    %109 = vector.broadcast %cst_39 : f32 to vector<288x1xf32>
    %110 = arith.maximumf %108, %109 : vector<288x1xf32>
    %111 = vector.broadcast %101 : vector<288x1xf32> to vector<288x32xf32>
    %112 = arith.subf %93, %111 : vector<288x32xf32>
    %cst_40 = arith.constant 9.99999974E-6 : f32
    %113 = vector.broadcast %cst_40 : f32 to vector<288x1xf32>
    %114 = arith.addf %110, %113 : vector<288x1xf32>
    %115 = math.rsqrt %114 : vector<288x1xf32>
    %116 = vector.broadcast %115 : vector<288x1xf32> to vector<288x32xf32>
    %117 = arith.mulf %112, %116 : vector<288x32xf32>
    %118 = vector.broadcast %95 : vector<1x32xf32> to vector<288x32xf32>
    %119 = arith.mulf %117, %118 : vector<288x32xf32>
    %120 = vector.broadcast %97 : vector<1x32xf32> to vector<288x32xf32>
    %121 = arith.addf %119, %120 : vector<288x32xf32>
    %122 = arith.truncf %121 : vector<288x32xf32> to vector<288x32xbf16>
    %c0_41 = arith.constant 0 : index
    %c0_42 = arith.constant 0 : index
    %c0_43 = arith.constant 0 : index
    %123 = vector.load %arg12[%c0_41, %c0_42, %c0_43] : memref<3x32x64xbf16, #tpu.memory_space<vmem>>, vector<1x32x64xbf16>
    %124 = vector.shape_cast %123 : vector<1x32x64xbf16> to vector<32x64xbf16>
    %cst_44 = arith.constant dense<0.000000e+00> : vector<288x64xf32>
    %125 = tpu.matmul %122, %124, %cst_44 {dimension_numbers = #tpu.dot_dimension_numbers<[1], [0], [0], [1], [0, 0, 1, 1], [], []>} : vector<288x32xbf16>, vector<32x64xbf16>, vector<288x64xf32> -> vector<288x64xf32>
    %c0_45 = arith.constant 0 : index
    %c0_46 = arith.constant 0 : index
    %c0_47 = arith.constant 0 : index
    %126 = vector.load %arg13[%c0_45, %c0_46, %c0_47] : memref<3x1x64xf32, #tpu.memory_space<vmem>>, vector<1x1x64xf32>
    %127 = vector.shape_cast %126 : vector<1x1x64xf32> to vector<1x64xf32>
    %128 = vector.broadcast %127 : vector<1x64xf32> to vector<288x64xf32>
    %129 = arith.addf %125, %128 : vector<288x64xf32>
    %cst_48 = arith.constant 5.000000e-01 : f32
    %130 = vector.broadcast %cst_48 : f32 to vector<288x64xf32>
    %131 = arith.mulf %130, %129 : vector<288x64xf32>
    %cst_49 = arith.constant 4.471500e-02 : f32
    %132 = vector.broadcast %cst_49 : f32 to vector<288x64xf32>
    %133 = arith.mulf %132, %129 : vector<288x64xf32>
    %134 = arith.mulf %133, %129 : vector<288x64xf32>
    %135 = arith.mulf %134, %129 : vector<288x64xf32>
    %136 = arith.addf %129, %135 : vector<288x64xf32>
    %cst_50 = arith.constant 0.797884583 : f32
    %137 = vector.broadcast %cst_50 : f32 to vector<288x64xf32>
    %138 = arith.mulf %137, %136 : vector<288x64xf32>
    %139 = math.tanh %138 : vector<288x64xf32>
    %cst_51 = arith.constant 1.000000e+00 : f32
    %140 = vector.broadcast %cst_51 : f32 to vector<288x64xf32>
    %141 = arith.addf %140, %139 : vector<288x64xf32>
    %142 = arith.mulf %131, %141 : vector<288x64xf32>
    %143 = arith.truncf %142 : vector<288x64xf32> to vector<288x64xbf16>
    %c0_52 = arith.constant 0 : index
    %c0_53 = arith.constant 0 : index
    %c0_54 = arith.constant 0 : index
    %144 = vector.load %arg14[%c0_52, %c0_53, %c0_54] : memref<3x64x32xbf16, #tpu.memory_space<vmem>>, vector<1x64x32xbf16>
    %145 = vector.shape_cast %144 : vector<1x64x32xbf16> to vector<64x32xbf16>
    %cst_55 = arith.constant dense<0.000000e+00> : vector<288x32xf32>
    %146 = tpu.matmul %143, %145, %cst_55 {dimension_numbers = #tpu.dot_dimension_numbers<[1], [0], [0], [1], [0, 0, 1, 1], [], []>} : vector<288x64xbf16>, vector<64x32xbf16>, vector<288x32xf32> -> vector<288x32xf32>
    %c0_56 = arith.constant 0 : index
    %c0_57 = arith.constant 0 : index
    %c0_58 = arith.constant 0 : index
    %147 = vector.load %arg15[%c0_56, %c0_57, %c0_58] : memref<3x1x32xf32, #tpu.memory_space<vmem>>, vector<1x1x32xf32>
    %148 = vector.shape_cast %147 : vector<1x1x32xf32> to vector<1x32xf32>
    %149 = vector.broadcast %148 : vector<1x32xf32> to vector<288x32xf32>
    %150 = arith.addf %146, %149 : vector<288x32xf32>
    %151 = arith.addf %51, %150 : vector<288x32xf32>
    %152 = arith.extui %19 : i1 to i32
    %c0_i32_59 = arith.constant 0 : i32
    %153 = arith.cmpi ne, %152, %c0_i32_59 : i32
    %154 = scf.if %153 -> (vector<288x32xf32>) {
      %395 = vector.broadcast %13 : vector<288x1xf32> to vector<288x32xf32>
      %396 = arith.mulf %151, %395 : vector<288x32xf32>
      scf.yield %396 : vector<288x32xf32>
    } else {
      scf.yield %151 : vector<288x32xf32>
    }
    %c1 = arith.constant 1 : index
    %c0_60 = arith.constant 0 : index
    %c0_61 = arith.constant 0 : index
    %155 = vector.load %arg8[%c1, %c0_60, %c0_61] : memref<3x7x32xf32, #tpu.memory_space<vmem>>, vector<1x7x32xf32>
    %156 = vector.shape_cast %155 : vector<1x7x32xf32> to vector<7x32xf32>
    %157 = vector.extract_strided_slice %156 {offsets = [3, 0], sizes = [1, 32], strides = [1, 1]} : vector<7x32xf32> to vector<1x32xf32>
    %158 = vector.broadcast %157 : vector<1x32xf32> to vector<288x32xf32>
    %159 = arith.mulf %154, %158 : vector<288x32xf32>
    %c3_i32_62 = arith.constant 3 : i32
    %160 = tpu.dynamic_rotate %154 by %c3_i32_62 dim 0 : vector<288x32xf32>, i32 -> vector<288x32xf32>
    %161 = vector.extract_strided_slice %156 {offsets = [0, 0], sizes = [1, 32], strides = [1, 1]} : vector<7x32xf32> to vector<1x32xf32>
    %162 = vector.broadcast %161 : vector<1x32xf32> to vector<288x32xf32>
    %163 = arith.mulf %160, %162 : vector<288x32xf32>
    %164 = arith.addf %159, %163 : vector<288x32xf32>
    %c2_i32_63 = arith.constant 2 : i32
    %165 = tpu.dynamic_rotate %154 by %c2_i32_63 dim 0 : vector<288x32xf32>, i32 -> vector<288x32xf32>
    %166 = vector.extract_strided_slice %156 {offsets = [1, 0], sizes = [1, 32], strides = [1, 1]} : vector<7x32xf32> to vector<1x32xf32>
    %167 = vector.broadcast %166 : vector<1x32xf32> to vector<288x32xf32>
    %168 = arith.mulf %165, %167 : vector<288x32xf32>
    %169 = arith.addf %164, %168 : vector<288x32xf32>
    %c1_i32_64 = arith.constant 1 : i32
    %170 = tpu.dynamic_rotate %154 by %c1_i32_64 dim 0 : vector<288x32xf32>, i32 -> vector<288x32xf32>
    %171 = vector.extract_strided_slice %156 {offsets = [2, 0], sizes = [1, 32], strides = [1, 1]} : vector<7x32xf32> to vector<1x32xf32>
    %172 = vector.broadcast %171 : vector<1x32xf32> to vector<288x32xf32>
    %173 = arith.mulf %170, %172 : vector<288x32xf32>
    %174 = arith.addf %169, %173 : vector<288x32xf32>
    %c287_i32_65 = arith.constant 287 : i32
    %175 = tpu.dynamic_rotate %154 by %c287_i32_65 dim 0 : vector<288x32xf32>, i32 -> vector<288x32xf32>
    %176 = vector.extract_strided_slice %156 {offsets = [4, 0], sizes = [1, 32], strides = [1, 1]} : vector<7x32xf32> to vector<1x32xf32>
    %177 = vector.broadcast %176 : vector<1x32xf32> to vector<288x32xf32>
    %178 = arith.mulf %175, %177 : vector<288x32xf32>
    %179 = arith.addf %174, %178 : vector<288x32xf32>
    %c286_i32_66 = arith.constant 286 : i32
    %180 = tpu.dynamic_rotate %154 by %c286_i32_66 dim 0 : vector<288x32xf32>, i32 -> vector<288x32xf32>
    %181 = vector.extract_strided_slice %156 {offsets = [5, 0], sizes = [1, 32], strides = [1, 1]} : vector<7x32xf32> to vector<1x32xf32>
    %182 = vector.broadcast %181 : vector<1x32xf32> to vector<288x32xf32>
    %183 = arith.mulf %180, %182 : vector<288x32xf32>
    %184 = arith.addf %179, %183 : vector<288x32xf32>
    %c285_i32_67 = arith.constant 285 : i32
    %185 = tpu.dynamic_rotate %154 by %c285_i32_67 dim 0 : vector<288x32xf32>, i32 -> vector<288x32xf32>
    %186 = vector.extract_strided_slice %156 {offsets = [6, 0], sizes = [1, 32], strides = [1, 1]} : vector<7x32xf32> to vector<1x32xf32>
    %187 = vector.broadcast %186 : vector<1x32xf32> to vector<288x32xf32>
    %188 = arith.mulf %185, %187 : vector<288x32xf32>
    %189 = arith.addf %184, %188 : vector<288x32xf32>
    %c1_68 = arith.constant 1 : index
    %c0_69 = arith.constant 0 : index
    %c0_70 = arith.constant 0 : index
    %190 = vector.load %arg9[%c1_68, %c0_69, %c0_70] : memref<3x1x32xf32, #tpu.memory_space<vmem>>, vector<1x1x32xf32>
    %191 = vector.shape_cast %190 : vector<1x1x32xf32> to vector<1x32xf32>
    %192 = vector.broadcast %191 : vector<1x32xf32> to vector<288x32xf32>
    %193 = arith.addf %189, %192 : vector<288x32xf32>
    %c1_71 = arith.constant 1 : index
    %c0_72 = arith.constant 0 : index
    %c0_73 = arith.constant 0 : index
    %194 = vector.load %arg10[%c1_71, %c0_72, %c0_73] : memref<3x1x32xf32, #tpu.memory_space<vmem>>, vector<1x1x32xf32>
    %195 = vector.shape_cast %194 : vector<1x1x32xf32> to vector<1x32xf32>
    %c1_74 = arith.constant 1 : index
    %c0_75 = arith.constant 0 : index
    %c0_76 = arith.constant 0 : index
    %196 = vector.load %arg11[%c1_74, %c0_75, %c0_76] : memref<3x1x32xf32, #tpu.memory_space<vmem>>, vector<1x1x32xf32>
    %197 = vector.shape_cast %196 : vector<1x1x32xf32> to vector<1x32xf32>
    %cst_77 = arith.constant dense<0.000000e+00> : vector<288xf32>
    %198 = vector.multi_reduction <add>, %193, %cst_77 [1] : vector<288x32xf32> to vector<288xf32>
    %199 = vector.shape_cast %198 : vector<288xf32> to vector<288x1xf32>
    %cst_78 = arith.constant 3.200000e+01 : f32
    %200 = vector.broadcast %cst_78 : f32 to vector<288x1xf32>
    %201 = arith.divf %199, %200 : vector<288x1xf32>
    %202 = arith.mulf %193, %193 : vector<288x32xf32>
    %cst_79 = arith.constant dense<0.000000e+00> : vector<288xf32>
    %203 = vector.multi_reduction <add>, %202, %cst_79 [1] : vector<288x32xf32> to vector<288xf32>
    %204 = vector.shape_cast %203 : vector<288xf32> to vector<288x1xf32>
    %cst_80 = arith.constant 3.200000e+01 : f32
    %205 = vector.broadcast %cst_80 : f32 to vector<288x1xf32>
    %206 = arith.divf %204, %205 : vector<288x1xf32>
    %207 = arith.mulf %201, %201 : vector<288x1xf32>
    %208 = arith.subf %206, %207 : vector<288x1xf32>
    %cst_81 = arith.constant 0.000000e+00 : f32
    %209 = vector.broadcast %cst_81 : f32 to vector<288x1xf32>
    %210 = arith.maximumf %208, %209 : vector<288x1xf32>
    %211 = vector.broadcast %201 : vector<288x1xf32> to vector<288x32xf32>
    %212 = arith.subf %193, %211 : vector<288x32xf32>
    %cst_82 = arith.constant 9.99999974E-6 : f32
    %213 = vector.broadcast %cst_82 : f32 to vector<288x1xf32>
    %214 = arith.addf %210, %213 : vector<288x1xf32>
    %215 = math.rsqrt %214 : vector<288x1xf32>
    %216 = vector.broadcast %215 : vector<288x1xf32> to vector<288x32xf32>
    %217 = arith.mulf %212, %216 : vector<288x32xf32>
    %218 = vector.broadcast %195 : vector<1x32xf32> to vector<288x32xf32>
    %219 = arith.mulf %217, %218 : vector<288x32xf32>
    %220 = vector.broadcast %197 : vector<1x32xf32> to vector<288x32xf32>
    %221 = arith.addf %219, %220 : vector<288x32xf32>
    %222 = arith.truncf %221 : vector<288x32xf32> to vector<288x32xbf16>
    %c1_83 = arith.constant 1 : index
    %c0_84 = arith.constant 0 : index
    %c0_85 = arith.constant 0 : index
    %223 = vector.load %arg12[%c1_83, %c0_84, %c0_85] : memref<3x32x64xbf16, #tpu.memory_space<vmem>>, vector<1x32x64xbf16>
    %224 = vector.shape_cast %223 : vector<1x32x64xbf16> to vector<32x64xbf16>
    %cst_86 = arith.constant dense<0.000000e+00> : vector<288x64xf32>
    %225 = tpu.matmul %222, %224, %cst_86 {dimension_numbers = #tpu.dot_dimension_numbers<[1], [0], [0], [1], [0, 0, 1, 1], [], []>} : vector<288x32xbf16>, vector<32x64xbf16>, vector<288x64xf32> -> vector<288x64xf32>
    %c1_87 = arith.constant 1 : index
    %c0_88 = arith.constant 0 : index
    %c0_89 = arith.constant 0 : index
    %226 = vector.load %arg13[%c1_87, %c0_88, %c0_89] : memref<3x1x64xf32, #tpu.memory_space<vmem>>, vector<1x1x64xf32>
    %227 = vector.shape_cast %226 : vector<1x1x64xf32> to vector<1x64xf32>
    %228 = vector.broadcast %227 : vector<1x64xf32> to vector<288x64xf32>
    %229 = arith.addf %225, %228 : vector<288x64xf32>
    %cst_90 = arith.constant 5.000000e-01 : f32
    %230 = vector.broadcast %cst_90 : f32 to vector<288x64xf32>
    %231 = arith.mulf %230, %229 : vector<288x64xf32>
    %cst_91 = arith.constant 4.471500e-02 : f32
    %232 = vector.broadcast %cst_91 : f32 to vector<288x64xf32>
    %233 = arith.mulf %232, %229 : vector<288x64xf32>
    %234 = arith.mulf %233, %229 : vector<288x64xf32>
    %235 = arith.mulf %234, %229 : vector<288x64xf32>
    %236 = arith.addf %229, %235 : vector<288x64xf32>
    %cst_92 = arith.constant 0.797884583 : f32
    %237 = vector.broadcast %cst_92 : f32 to vector<288x64xf32>
    %238 = arith.mulf %237, %236 : vector<288x64xf32>
    %239 = math.tanh %238 : vector<288x64xf32>
    %cst_93 = arith.constant 1.000000e+00 : f32
    %240 = vector.broadcast %cst_93 : f32 to vector<288x64xf32>
    %241 = arith.addf %240, %239 : vector<288x64xf32>
    %242 = arith.mulf %231, %241 : vector<288x64xf32>
    %243 = arith.truncf %242 : vector<288x64xf32> to vector<288x64xbf16>
    %c1_94 = arith.constant 1 : index
    %c0_95 = arith.constant 0 : index
    %c0_96 = arith.constant 0 : index
    %244 = vector.load %arg14[%c1_94, %c0_95, %c0_96] : memref<3x64x32xbf16, #tpu.memory_space<vmem>>, vector<1x64x32xbf16>
    %245 = vector.shape_cast %244 : vector<1x64x32xbf16> to vector<64x32xbf16>
    %cst_97 = arith.constant dense<0.000000e+00> : vector<288x32xf32>
    %246 = tpu.matmul %243, %245, %cst_97 {dimension_numbers = #tpu.dot_dimension_numbers<[1], [0], [0], [1], [0, 0, 1, 1], [], []>} : vector<288x64xbf16>, vector<64x32xbf16>, vector<288x32xf32> -> vector<288x32xf32>
    %c1_98 = arith.constant 1 : index
    %c0_99 = arith.constant 0 : index
    %c0_100 = arith.constant 0 : index
    %247 = vector.load %arg15[%c1_98, %c0_99, %c0_100] : memref<3x1x32xf32, #tpu.memory_space<vmem>>, vector<1x1x32xf32>
    %248 = vector.shape_cast %247 : vector<1x1x32xf32> to vector<1x32xf32>
    %249 = vector.broadcast %248 : vector<1x32xf32> to vector<288x32xf32>
    %250 = arith.addf %246, %249 : vector<288x32xf32>
    %251 = arith.addf %151, %250 : vector<288x32xf32>
    %252 = arith.extui %19 : i1 to i32
    %c0_i32_101 = arith.constant 0 : i32
    %253 = arith.cmpi ne, %252, %c0_i32_101 : i32
    %254 = scf.if %253 -> (vector<288x32xf32>) {
      %395 = vector.broadcast %13 : vector<288x1xf32> to vector<288x32xf32>
      %396 = arith.mulf %251, %395 : vector<288x32xf32>
      scf.yield %396 : vector<288x32xf32>
    } else {
      scf.yield %251 : vector<288x32xf32>
    }
    %c2 = arith.constant 2 : index
    %c0_102 = arith.constant 0 : index
    %c0_103 = arith.constant 0 : index
    %255 = vector.load %arg8[%c2, %c0_102, %c0_103] : memref<3x7x32xf32, #tpu.memory_space<vmem>>, vector<1x7x32xf32>
    %256 = vector.shape_cast %255 : vector<1x7x32xf32> to vector<7x32xf32>
    %257 = vector.extract_strided_slice %256 {offsets = [3, 0], sizes = [1, 32], strides = [1, 1]} : vector<7x32xf32> to vector<1x32xf32>
    %258 = vector.broadcast %257 : vector<1x32xf32> to vector<288x32xf32>
    %259 = arith.mulf %254, %258 : vector<288x32xf32>
    %c3_i32_104 = arith.constant 3 : i32
    %260 = tpu.dynamic_rotate %254 by %c3_i32_104 dim 0 : vector<288x32xf32>, i32 -> vector<288x32xf32>
    %261 = vector.extract_strided_slice %256 {offsets = [0, 0], sizes = [1, 32], strides = [1, 1]} : vector<7x32xf32> to vector<1x32xf32>
    %262 = vector.broadcast %261 : vector<1x32xf32> to vector<288x32xf32>
    %263 = arith.mulf %260, %262 : vector<288x32xf32>
    %264 = arith.addf %259, %263 : vector<288x32xf32>
    %c2_i32_105 = arith.constant 2 : i32
    %265 = tpu.dynamic_rotate %254 by %c2_i32_105 dim 0 : vector<288x32xf32>, i32 -> vector<288x32xf32>
    %266 = vector.extract_strided_slice %256 {offsets = [1, 0], sizes = [1, 32], strides = [1, 1]} : vector<7x32xf32> to vector<1x32xf32>
    %267 = vector.broadcast %266 : vector<1x32xf32> to vector<288x32xf32>
    %268 = arith.mulf %265, %267 : vector<288x32xf32>
    %269 = arith.addf %264, %268 : vector<288x32xf32>
    %c1_i32_106 = arith.constant 1 : i32
    %270 = tpu.dynamic_rotate %254 by %c1_i32_106 dim 0 : vector<288x32xf32>, i32 -> vector<288x32xf32>
    %271 = vector.extract_strided_slice %256 {offsets = [2, 0], sizes = [1, 32], strides = [1, 1]} : vector<7x32xf32> to vector<1x32xf32>
    %272 = vector.broadcast %271 : vector<1x32xf32> to vector<288x32xf32>
    %273 = arith.mulf %270, %272 : vector<288x32xf32>
    %274 = arith.addf %269, %273 : vector<288x32xf32>
    %c287_i32_107 = arith.constant 287 : i32
    %275 = tpu.dynamic_rotate %254 by %c287_i32_107 dim 0 : vector<288x32xf32>, i32 -> vector<288x32xf32>
    %276 = vector.extract_strided_slice %256 {offsets = [4, 0], sizes = [1, 32], strides = [1, 1]} : vector<7x32xf32> to vector<1x32xf32>
    %277 = vector.broadcast %276 : vector<1x32xf32> to vector<288x32xf32>
    %278 = arith.mulf %275, %277 : vector<288x32xf32>
    %279 = arith.addf %274, %278 : vector<288x32xf32>
    %c286_i32_108 = arith.constant 286 : i32
    %280 = tpu.dynamic_rotate %254 by %c286_i32_108 dim 0 : vector<288x32xf32>, i32 -> vector<288x32xf32>
    %281 = vector.extract_strided_slice %256 {offsets = [5, 0], sizes = [1, 32], strides = [1, 1]} : vector<7x32xf32> to vector<1x32xf32>
    %282 = vector.broadcast %281 : vector<1x32xf32> to vector<288x32xf32>
    %283 = arith.mulf %280, %282 : vector<288x32xf32>
    %284 = arith.addf %279, %283 : vector<288x32xf32>
    %c285_i32_109 = arith.constant 285 : i32
    %285 = tpu.dynamic_rotate %254 by %c285_i32_109 dim 0 : vector<288x32xf32>, i32 -> vector<288x32xf32>
    %286 = vector.extract_strided_slice %256 {offsets = [6, 0], sizes = [1, 32], strides = [1, 1]} : vector<7x32xf32> to vector<1x32xf32>
    %287 = vector.broadcast %286 : vector<1x32xf32> to vector<288x32xf32>
    %288 = arith.mulf %285, %287 : vector<288x32xf32>
    %289 = arith.addf %284, %288 : vector<288x32xf32>
    %c2_110 = arith.constant 2 : index
    %c0_111 = arith.constant 0 : index
    %c0_112 = arith.constant 0 : index
    %290 = vector.load %arg9[%c2_110, %c0_111, %c0_112] : memref<3x1x32xf32, #tpu.memory_space<vmem>>, vector<1x1x32xf32>
    %291 = vector.shape_cast %290 : vector<1x1x32xf32> to vector<1x32xf32>
    %292 = vector.broadcast %291 : vector<1x32xf32> to vector<288x32xf32>
    %293 = arith.addf %289, %292 : vector<288x32xf32>
    %c2_113 = arith.constant 2 : index
    %c0_114 = arith.constant 0 : index
    %c0_115 = arith.constant 0 : index
    %294 = vector.load %arg10[%c2_113, %c0_114, %c0_115] : memref<3x1x32xf32, #tpu.memory_space<vmem>>, vector<1x1x32xf32>
    %295 = vector.shape_cast %294 : vector<1x1x32xf32> to vector<1x32xf32>
    %c2_116 = arith.constant 2 : index
    %c0_117 = arith.constant 0 : index
    %c0_118 = arith.constant 0 : index
    %296 = vector.load %arg11[%c2_116, %c0_117, %c0_118] : memref<3x1x32xf32, #tpu.memory_space<vmem>>, vector<1x1x32xf32>
    %297 = vector.shape_cast %296 : vector<1x1x32xf32> to vector<1x32xf32>
    %cst_119 = arith.constant dense<0.000000e+00> : vector<288xf32>
    %298 = vector.multi_reduction <add>, %293, %cst_119 [1] : vector<288x32xf32> to vector<288xf32>
    %299 = vector.shape_cast %298 : vector<288xf32> to vector<288x1xf32>
    %cst_120 = arith.constant 3.200000e+01 : f32
    %300 = vector.broadcast %cst_120 : f32 to vector<288x1xf32>
    %301 = arith.divf %299, %300 : vector<288x1xf32>
    %302 = arith.mulf %293, %293 : vector<288x32xf32>
    %cst_121 = arith.constant dense<0.000000e+00> : vector<288xf32>
    %303 = vector.multi_reduction <add>, %302, %cst_121 [1] : vector<288x32xf32> to vector<288xf32>
    %304 = vector.shape_cast %303 : vector<288xf32> to vector<288x1xf32>
    %cst_122 = arith.constant 3.200000e+01 : f32
    %305 = vector.broadcast %cst_122 : f32 to vector<288x1xf32>
    %306 = arith.divf %304, %305 : vector<288x1xf32>
    %307 = arith.mulf %301, %301 : vector<288x1xf32>
    %308 = arith.subf %306, %307 : vector<288x1xf32>
    %cst_123 = arith.constant 0.000000e+00 : f32
    %309 = vector.broadcast %cst_123 : f32 to vector<288x1xf32>
    %310 = arith.maximumf %308, %309 : vector<288x1xf32>
    %311 = vector.broadcast %301 : vector<288x1xf32> to vector<288x32xf32>
    %312 = arith.subf %293, %311 : vector<288x32xf32>
    %cst_124 = arith.constant 9.99999974E-6 : f32
    %313 = vector.broadcast %cst_124 : f32 to vector<288x1xf32>
    %314 = arith.addf %310, %313 : vector<288x1xf32>
    %315 = math.rsqrt %314 : vector<288x1xf32>
    %316 = vector.broadcast %315 : vector<288x1xf32> to vector<288x32xf32>
    %317 = arith.mulf %312, %316 : vector<288x32xf32>
    %318 = vector.broadcast %295 : vector<1x32xf32> to vector<288x32xf32>
    %319 = arith.mulf %317, %318 : vector<288x32xf32>
    %320 = vector.broadcast %297 : vector<1x32xf32> to vector<288x32xf32>
    %321 = arith.addf %319, %320 : vector<288x32xf32>
    %322 = arith.truncf %321 : vector<288x32xf32> to vector<288x32xbf16>
    %c2_125 = arith.constant 2 : index
    %c0_126 = arith.constant 0 : index
    %c0_127 = arith.constant 0 : index
    %323 = vector.load %arg12[%c2_125, %c0_126, %c0_127] : memref<3x32x64xbf16, #tpu.memory_space<vmem>>, vector<1x32x64xbf16>
    %324 = vector.shape_cast %323 : vector<1x32x64xbf16> to vector<32x64xbf16>
    %cst_128 = arith.constant dense<0.000000e+00> : vector<288x64xf32>
    %325 = tpu.matmul %322, %324, %cst_128 {dimension_numbers = #tpu.dot_dimension_numbers<[1], [0], [0], [1], [0, 0, 1, 1], [], []>} : vector<288x32xbf16>, vector<32x64xbf16>, vector<288x64xf32> -> vector<288x64xf32>
    %c2_129 = arith.constant 2 : index
    %c0_130 = arith.constant 0 : index
    %c0_131 = arith.constant 0 : index
    %326 = vector.load %arg13[%c2_129, %c0_130, %c0_131] : memref<3x1x64xf32, #tpu.memory_space<vmem>>, vector<1x1x64xf32>
    %327 = vector.shape_cast %326 : vector<1x1x64xf32> to vector<1x64xf32>
    %328 = vector.broadcast %327 : vector<1x64xf32> to vector<288x64xf32>
    %329 = arith.addf %325, %328 : vector<288x64xf32>
    %cst_132 = arith.constant 5.000000e-01 : f32
    %330 = vector.broadcast %cst_132 : f32 to vector<288x64xf32>
    %331 = arith.mulf %330, %329 : vector<288x64xf32>
    %cst_133 = arith.constant 4.471500e-02 : f32
    %332 = vector.broadcast %cst_133 : f32 to vector<288x64xf32>
    %333 = arith.mulf %332, %329 : vector<288x64xf32>
    %334 = arith.mulf %333, %329 : vector<288x64xf32>
    %335 = arith.mulf %334, %329 : vector<288x64xf32>
    %336 = arith.addf %329, %335 : vector<288x64xf32>
    %cst_134 = arith.constant 0.797884583 : f32
    %337 = vector.broadcast %cst_134 : f32 to vector<288x64xf32>
    %338 = arith.mulf %337, %336 : vector<288x64xf32>
    %339 = math.tanh %338 : vector<288x64xf32>
    %cst_135 = arith.constant 1.000000e+00 : f32
    %340 = vector.broadcast %cst_135 : f32 to vector<288x64xf32>
    %341 = arith.addf %340, %339 : vector<288x64xf32>
    %342 = arith.mulf %331, %341 : vector<288x64xf32>
    %343 = arith.truncf %342 : vector<288x64xf32> to vector<288x64xbf16>
    %c2_136 = arith.constant 2 : index
    %c0_137 = arith.constant 0 : index
    %c0_138 = arith.constant 0 : index
    %344 = vector.load %arg14[%c2_136, %c0_137, %c0_138] : memref<3x64x32xbf16, #tpu.memory_space<vmem>>, vector<1x64x32xbf16>
    %345 = vector.shape_cast %344 : vector<1x64x32xbf16> to vector<64x32xbf16>
    %cst_139 = arith.constant dense<0.000000e+00> : vector<288x32xf32>
    %346 = tpu.matmul %343, %345, %cst_139 {dimension_numbers = #tpu.dot_dimension_numbers<[1], [0], [0], [1], [0, 0, 1, 1], [], []>} : vector<288x64xbf16>, vector<64x32xbf16>, vector<288x32xf32> -> vector<288x32xf32>
    %c2_140 = arith.constant 2 : index
    %c0_141 = arith.constant 0 : index
    %c0_142 = arith.constant 0 : index
    %347 = vector.load %arg15[%c2_140, %c0_141, %c0_142] : memref<3x1x32xf32, #tpu.memory_space<vmem>>, vector<1x1x32xf32>
    %348 = vector.shape_cast %347 : vector<1x1x32xf32> to vector<1x32xf32>
    %349 = vector.broadcast %348 : vector<1x32xf32> to vector<288x32xf32>
    %350 = arith.addf %346, %349 : vector<288x32xf32>
    %351 = arith.addf %251, %350 : vector<288x32xf32>
    %352 = vector.extract_strided_slice %351 {offsets = [16, 0], sizes = [256, 32], strides = [1, 1]} : vector<288x32xf32> to vector<256x32xf32>
    %c0_143 = arith.constant 0 : index
    %c0_144 = arith.constant 0 : index
    %c0_145 = arith.constant 0 : index
    %353 = vector.load %arg3[%c0_143, %c0_144, %c0_145] : memref<1x256x1xf32, #tpu.memory_space<vmem>>, vector<1x256x1xf32>
    %354 = vector.shape_cast %353 : vector<1x256x1xf32> to vector<256x1xf32>
    %355 = vector.broadcast %354 : vector<256x1xf32> to vector<256x32xf32>
    %356 = arith.mulf %352, %355 : vector<256x32xf32>
    %c0_146 = arith.constant 0 : index
    %c0_147 = arith.constant 0 : index
    %357 = vector.load %arg16[%c0_146, %c0_147] : memref<1x32xf32, #tpu.memory_space<vmem>>, vector<1x32xf32>
    %c0_148 = arith.constant 0 : index
    %c0_149 = arith.constant 0 : index
    %358 = vector.load %arg17[%c0_148, %c0_149] : memref<1x32xf32, #tpu.memory_space<vmem>>, vector<1x32xf32>
    %cst_150 = arith.constant dense<0.000000e+00> : vector<256xf32>
    %359 = vector.multi_reduction <add>, %356, %cst_150 [1] : vector<256x32xf32> to vector<256xf32>
    %360 = vector.shape_cast %359 : vector<256xf32> to vector<256x1xf32>
    %cst_151 = arith.constant 3.200000e+01 : f32
    %361 = vector.broadcast %cst_151 : f32 to vector<256x1xf32>
    %362 = arith.divf %360, %361 : vector<256x1xf32>
    %363 = arith.mulf %356, %356 : vector<256x32xf32>
    %cst_152 = arith.constant dense<0.000000e+00> : vector<256xf32>
    %364 = vector.multi_reduction <add>, %363, %cst_152 [1] : vector<256x32xf32> to vector<256xf32>
    %365 = vector.shape_cast %364 : vector<256xf32> to vector<256x1xf32>
    %cst_153 = arith.constant 3.200000e+01 : f32
    %366 = vector.broadcast %cst_153 : f32 to vector<256x1xf32>
    %367 = arith.divf %365, %366 : vector<256x1xf32>
    %368 = arith.mulf %362, %362 : vector<256x1xf32>
    %369 = arith.subf %367, %368 : vector<256x1xf32>
    %cst_154 = arith.constant 0.000000e+00 : f32
    %370 = vector.broadcast %cst_154 : f32 to vector<256x1xf32>
    %371 = arith.maximumf %369, %370 : vector<256x1xf32>
    %372 = vector.broadcast %362 : vector<256x1xf32> to vector<256x32xf32>
    %373 = arith.subf %356, %372 : vector<256x32xf32>
    %cst_155 = arith.constant 9.99999974E-6 : f32
    %374 = vector.broadcast %cst_155 : f32 to vector<256x1xf32>
    %375 = arith.addf %371, %374 : vector<256x1xf32>
    %376 = math.rsqrt %375 : vector<256x1xf32>
    %377 = vector.broadcast %376 : vector<256x1xf32> to vector<256x32xf32>
    %378 = arith.mulf %373, %377 : vector<256x32xf32>
    %379 = vector.broadcast %357 : vector<1x32xf32> to vector<256x32xf32>
    %380 = arith.mulf %378, %379 : vector<256x32xf32>
    %381 = vector.broadcast %358 : vector<1x32xf32> to vector<256x32xf32>
    %382 = arith.addf %380, %381 : vector<256x32xf32>
    %c0_156 = arith.constant 0 : index
    %c0_157 = arith.constant 0 : index
    %383 = vector.load %arg18[%c0_156, %c0_157] : memref<1x32xf32, #tpu.memory_space<vmem>>, vector<1x32xf32>
    %384 = vector.broadcast %383 : vector<1x32xf32> to vector<256x32xf32>
    %385 = arith.mulf %382, %384 : vector<256x32xf32>
    %cst_158 = arith.constant dense<0.000000e+00> : vector<256xf32>
    %386 = vector.multi_reduction <add>, %385, %cst_158 [1] : vector<256x32xf32> to vector<256xf32>
    %387 = vector.shape_cast %386 : vector<256xf32> to vector<256x1xf32>
    %c0_159 = arith.constant 0 : index
    %c0_160 = arith.constant 0 : index
    %388 = vector.load %arg19[%c0_159, %c0_160] : memref<1x1xf32, #tpu.memory_space<vmem>>, vector<1x1xf32>
    %389 = vector.broadcast %388 : vector<1x1xf32> to vector<256x1xf32>
    %390 = arith.addf %387, %389 : vector<256x1xf32>
    %391 = arith.mulf %390, %354 : vector<256x1xf32>
    %c0_161 = arith.constant 0 : index
    %c0_162 = arith.constant 0 : index
    %c0_163 = arith.constant 0 : index
    %392 = vector.load %arg20[%c0_161, %c0_162, %c0_163] : memref<1x256x1xf32, #tpu.memory_space<vmem>>, vector<1x256x1xf32>
    %393 = vector.shape_cast %392 : vector<1x256x1xf32> to vector<256x1xf32>
    %394 = vector.shape_cast %391 : vector<256x1xf32> to vector<1x256x1xf32>
    tpu.vector_store %arg20[%c0_161, %c0_162, %c0_163], %394 {strides = array<i32>} : memref<1x256x1xf32, #tpu.memory_space<vmem>>, vector<1x256x1xf32>,
    return
  }
  func.func @transform_0(%arg0: i32, %arg1: i32) -> (i32, i32, i32, i32) {
    %c0_i32 = arith.constant 0 : i32
    %c0_i32_0 = arith.constant 0 : i32
    %c0_i32_1 = arith.constant 0 : i32
    return %arg0, %arg1, %c0_i32, %c0_i32_0 : i32, i32, i32, i32
  }
  func.func @transform_1(%arg0: i32, %arg1: i32) -> (i32, i32, i32) {
    %c0_i32 = arith.constant 0 : i32
    %c0_i32_0 = arith.constant 0 : i32
    return %arg0, %arg1, %c0_i32 : i32, i32, i32
  }
  func.func @transform_2(%arg0: i32, %arg1: i32) -> (i32, i32) {
    %c0_i32 = arith.constant 0 : i32
    %c0_i32_0 = arith.constant 0 : i32
    %c0_i32_1 = arith.constant 0 : i32
    return %c0_i32, %c0_i32_0 : i32, i32
  }
  func.func @transform_3(%arg0: i32, %arg1: i32) -> (i32, i32) {
    %c0_i32 = arith.constant 0 : i32
    %c0_i32_0 = arith.constant 0 : i32
    %c0_i32_1 = arith.constant 0 : i32
    return %c0_i32, %c0_i32_0 : i32, i32
  }
  func.func @transform_4(%arg0: i32, %arg1: i32) -> (i32, i32) {
    %c0_i32 = arith.constant 0 : i32
    %c0_i32_0 = arith.constant 0 : i32
    %c0_i32_1 = arith.constant 0 : i32
    return %c0_i32, %c0_i32_0 : i32, i32
  }
  func.func @transform_5(%arg0: i32, %arg1: i32) -> (i32, i32) {
    %c0_i32 = arith.constant 0 : i32
    %c0_i32_0 = arith.constant 0 : i32
    %c0_i32_1 = arith.constant 0 : i32
    return %c0_i32, %c0_i32_0 : i32, i32
  }
  func.func @transform_6(%arg0: i32, %arg1: i32) -> (i32, i32, i32) {
    %c0_i32 = arith.constant 0 : i32
    %c0_i32_0 = arith.constant 0 : i32
    %c0_i32_1 = arith.constant 0 : i32
    %c0_i32_2 = arith.constant 0 : i32
    return %c0_i32, %c0_i32_0, %c0_i32_1 : i32, i32, i32
  }
  func.func @transform_7(%arg0: i32, %arg1: i32) -> (i32, i32, i32) {
    %c0_i32 = arith.constant 0 : i32
    %c0_i32_0 = arith.constant 0 : i32
    %c0_i32_1 = arith.constant 0 : i32
    %c0_i32_2 = arith.constant 0 : i32
    return %c0_i32, %c0_i32_0, %c0_i32_1 : i32, i32, i32
  }
  func.func @transform_8(%arg0: i32, %arg1: i32) -> (i32, i32, i32) {
    %c0_i32 = arith.constant 0 : i32
    %c0_i32_0 = arith.constant 0 : i32
    %c0_i32_1 = arith.constant 0 : i32
    %c0_i32_2 = arith.constant 0 : i32
    return %c0_i32, %c0_i32_0, %c0_i32_1 : i32, i32, i32
  }
  func.func @transform_9(%arg0: i32, %arg1: i32) -> (i32, i32, i32) {
    %c0_i32 = arith.constant 0 : i32
    %c0_i32_0 = arith.constant 0 : i32
    %c0_i32_1 = arith.constant 0 : i32
    %c0_i32_2 = arith.constant 0 : i32
    return %c0_i32, %c0_i32_0, %c0_i32_1 : i32, i32, i32
  }
  func.func @transform_10(%arg0: i32, %arg1: i32) -> (i32, i32, i32) {
    %c0_i32 = arith.constant 0 : i32
    %c0_i32_0 = arith.constant 0 : i32
    %c0_i32_1 = arith.constant 0 : i32
    %c0_i32_2 = arith.constant 0 : i32
    return %c0_i32, %c0_i32_0, %c0_i32_1 : i32, i32, i32
  }
  func.func @transform_11(%arg0: i32, %arg1: i32) -> (i32, i32, i32) {
    %c0_i32 = arith.constant 0 : i32
    %c0_i32_0 = arith.constant 0 : i32
    %c0_i32_1 = arith.constant 0 : i32
    %c0_i32_2 = arith.constant 0 : i32
    return %c0_i32, %c0_i32_0, %c0_i32_1 : i32, i32, i32
  }
  func.func @transform_12(%arg0: i32, %arg1: i32) -> (i32, i32, i32) {
    %c0_i32 = arith.constant 0 : i32
    %c0_i32_0 = arith.constant 0 : i32
    %c0_i32_1 = arith.constant 0 : i32
    %c0_i32_2 = arith.constant 0 : i32
    return %c0_i32, %c0_i32_0, %c0_i32_1 : i32, i32, i32
  }
  func.func @transform_13(%arg0: i32, %arg1: i32) -> (i32, i32, i32) {
    %c0_i32 = arith.constant 0 : i32
    %c0_i32_0 = arith.constant 0 : i32
    %c0_i32_1 = arith.constant 0 : i32
    %c0_i32_2 = arith.constant 0 : i32
    return %c0_i32, %c0_i32_0, %c0_i32_1 : i32, i32, i32
  }
  func.func @transform_14(%arg0: i32, %arg1: i32) -> (i32, i32) {
    %c0_i32 = arith.constant 0 : i32
    %c0_i32_0 = arith.constant 0 : i32
    %c0_i32_1 = arith.constant 0 : i32
    return %c0_i32, %c0_i32_0 : i32, i32
  }
  func.func @transform_15(%arg0: i32, %arg1: i32) -> (i32, i32) {
    %c0_i32 = arith.constant 0 : i32
    %c0_i32_0 = arith.constant 0 : i32
    %c0_i32_1 = arith.constant 0 : i32
    return %c0_i32, %c0_i32_0 : i32, i32
  }
  func.func @transform_16(%arg0: i32, %arg1: i32) -> (i32, i32) {
    %c0_i32 = arith.constant 0 : i32
    %c0_i32_0 = arith.constant 0 : i32
    %c0_i32_1 = arith.constant 0 : i32
    return %c0_i32, %c0_i32_0 : i32, i32
  }
  func.func @transform_17(%arg0: i32, %arg1: i32) -> (i32, i32) {
    %c0_i32 = arith.constant 0 : i32
    %c0_i32_0 = arith.constant 0 : i32
    %c0_i32_1 = arith.constant 0 : i32
    return %c0_i32, %c0_i32_0 : i32, i32
  }
  func.func @transform_18(%arg0: i32, %arg1: i32) -> (i32, i32, i32) {
    %c0_i32 = arith.constant 0 : i32
    %c0_i32_0 = arith.constant 0 : i32
    return %arg0, %arg1, %c0_i32 : i32, i32, i32
  }
}

</mosaic_0001>

<llo_original>
// kernel: tpu_custom_call.1
$region0: #{tpu_custom_call.1}
  #allocation0 [shape = 'u32[]', space=smem, size = 0x4, offset = 0x4, fixed_abs, tag = 'smem constant byte address 0x4 - core index']
  #allocation1 [shape = 'u32[144,128]{1,0:T(1,128)}', space=vmem, size = 0x12000, scoped, tag = 'internal scratch']
  #allocation2 [shape = 'f32[1,1]{1,0:T(1,128)S(1)}', space=vmem, size = 0x200, scoped, tag = 'scoped memory for tpu_custom_call.1']
  %s0 = inlined_call_operand.vmem [shape: f32[2,2,288,64], index: 0, kind: input, shape index: {}]
  %s1 = inlined_call_operand.vmem [shape: f32[2,512,1], index: 1, kind: input, shape index: {}]
  %s2 = inlined_call_operand.vmem [shape: bf16[64,32], index: 2, kind: input, shape index: {}]
  %s3 = inlined_call_operand.vmem [shape: f32[1,32], index: 3, kind: input, shape index: {}]
  %s4 = inlined_call_operand.vmem [shape: f32[1,32], index: 4, kind: input, shape index: {}]
  %s5 = inlined_call_operand.vmem [shape: f32[1,32], index: 5, kind: input, shape index: {}]
  %s6 = inlined_call_operand.vmem [shape: f32[3,7,32], index: 6, kind: input, shape index: {}]
  %s7 = inlined_call_operand.vmem [shape: f32[3,1,32], index: 7, kind: input, shape index: {}]
  %s8 = inlined_call_operand.vmem [shape: f32[3,1,32], index: 8, kind: input, shape index: {}]
  %s9 = inlined_call_operand.vmem [shape: f32[3,1,32], index: 9, kind: input, shape index: {}]
  %s10 = inlined_call_operand.vmem [shape: bf16[3,32,64], index: 10, kind: input, shape index: {}]
  %s11 = inlined_call_operand.vmem [shape: f32[3,1,64], index: 11, kind: input, shape index: {}]
  %s12 = inlined_call_operand.vmem [shape: bf16[3,64,32], index: 12, kind: input, shape index: {}]
  %s13 = inlined_call_operand.vmem [shape: f32[3,1,32], index: 13, kind: input, shape index: {}]
  %s14 = inlined_call_operand.vmem [shape: f32[1,32], index: 14, kind: input, shape index: {}]
  %s15 = inlined_call_operand.vmem [shape: f32[1,32], index: 15, kind: input, shape index: {}]
  %s16 = inlined_call_operand.vmem [shape: f32[1,32], index: 16, kind: input, shape index: {}]
  %s17 = inlined_call_operand.<no memory space> [shape: f32[1,1], index: 17, kind: input, shape index: {}]
  %s18 = inlined_call_operand.vmem [shape: f32[2,512,1], index: 18, kind: output, shape index: {}]
  %s19 = sld [smem:[#allocation0]]
  $region129: #{tpu_custom_call.1} parent=0
    _
  %s21 = ssub.s32 1, %s19
  %s22 = scalar_select 0, %s21, %s19
  %v23 = vstv %s17
  %24 = vst [vmem:[#allocation2] sm:$0x1] %v23
  loop: start=0, step=1, limit=6
  $region2: #{tpu_custom_call.1} parent=0 // loop_pre_header
    _
  $region3: #{tpu_custom_call.1} parent=0 // loop_header
    %s26 = sphi 0, %s30
    %p27 = scmp.ge.s32.totalorder %s26, 6
    %s33 = sphi 0, %s45
    %s34 = sphi 0, %s41
    %s35 = sphi 0, %s33
    %s36 = sphi 0, %s34
    %s37 = sphi 0, %s35
    %s38 = sphi 0, %s36
    %s50 = sphi 0, %s52
    %s53 = sphi 0, %s50
    %s54 = sphi 0, %s53
    %s70 = sphi 0, %s54
    %s78 = sphi 0, %s80
    %s81 = sphi 0, %s78
    %s82 = sphi 0, %s81
    %s98 = sphi 0, %s82
    %s102 = sphi 0, %s102
    %s104 = sphi 0, %s102
    %s105 = sphi 0, %s104
    %s119 = sphi 0, %s105
    %s123 = sphi 0, %s123
    %s125 = sphi 0, %s123
    %s126 = sphi 0, %s125
    %s140 = sphi 0, %s126
    %s144 = sphi 0, %s144
    %s146 = sphi 0, %s144
    %s147 = sphi 0, %s146
    %s161 = sphi 0, %s147
    %s165 = sphi 0, %s165
    %s167 = sphi 0, %s165
    %s168 = sphi 0, %s167
    %s182 = sphi 0, %s168
    %s186 = sphi 0, %s186
    %s188 = sphi 0, %s186
    %s189 = sphi 0, %s188
    %s203 = sphi 0, %s189
    %s207 = sphi 0, %s207
    %s209 = sphi 0, %s207
    %s210 = sphi 0, %s209
    %s224 = sphi 0, %s210
    %s228 = sphi 0, %s228
    %s230 = sphi 0, %s228
    %s231 = sphi 0, %s230
    %s245 = sphi 0, %s231
    %s249 = sphi 0, %s249
    %s251 = sphi 0, %s249
    %s252 = sphi 0, %s251
    %s266 = sphi 0, %s252
    %s270 = sphi 0, %s270
    %s272 = sphi 0, %s270
    %s273 = sphi 0, %s272
    %s287 = sphi 0, %s273
    %s291 = sphi 0, %s291
    %s293 = sphi 0, %s291
    %s294 = sphi 0, %s293
    %s308 = sphi 0, %s294
    %s312 = sphi 0, %s312
    %s314 = sphi 0, %s312
    %s315 = sphi 0, %s314
    %s329 = sphi 0, %s315
    %s333 = sphi 0, %s333
    %s335 = sphi 0, %s333
    %s336 = sphi 0, %s335
    %s350 = sphi 0, %s336
    %s354 = sphi 0, %s354
    %s356 = sphi 0, %s354
    %s357 = sphi 0, %s356
    %s371 = sphi 0, %s357
    %s375 = sphi 0, %s375
    %s377 = sphi 0, %s375
    %s378 = sphi 0, %s377
    %s392 = sphi 0, %s378
    %s396 = sphi 0, %s396
    %s398 = sphi 0, %s396
    %s399 = sphi 0, %s398
    %s413 = sphi 0, %s399
    %s417 = sphi 0, %s417
    %s419 = sphi 0, %s417
    %s420 = sphi 0, %s419
    %s434 = sphi 0, %s420
    %s442 = sphi 0, %s444
    %s445 = sphi 0, %s442
    %s446 = sphi 0, %s445
    %s462 = sphi 0, %s446
  $region4: #{tpu_custom_call.1} parent=0 // loop_header_branch
    %29 = sbr.rel (%p27) target = $region8
  $region5: #{tpu_custom_call.1} parent=0 // loop_body
    %s31 = ssub.s32 %s26, 1
    %s32 = ssub.s32 %s26, 2
    %s39 = sadd.s32 1, %s34
    %p40 = scmp.ge.s32.totalorder %s39, 2
    %s41 = scalar_select %p40, 0, %s39
    %s42 = sadd.s32 1, %s33
    %s43 = scalar_select %p40, %s42, %s33
    %p44 = scmp.ge.s32.totalorder %s43, 2
    %s45 = scalar_select %p44, 0, %s43
    %s46 = ssub.s32 %s33, %s45
    %s47 = ssub.s32 %s34, %s41
    %s48 = sor.u32 %s46, %s47
    %p49 = scmp.eq.s32.totalorder %s48, 0
    %s51 = sadd.s32 %s50, 1
    %s52 = scalar_select %p49, %s50, %s51
    %p55 = pneg %p49
    %p56 = scmp.eq.s32.totalorder %s26, 3
    %p57 = por %p55, %p56
    %p58 = scmp.ne.s32.totalorder %s50, %s53
    %p59 = scmp.eq.s32.totalorder %s26, 0
    %p60 = por %p58, %p59
    %p61 = scmp.ne.s32.totalorder %s50, %s53
    %p62 = scmp.eq.s32.totalorder %s31, 3
    %p63 = por %p61, %p62
    %p64 = scmp.ne.s32.totalorder %s53, %s54
    %p65 = scmp.eq.s32.totalorder %s31, 0
    %p66 = por %p64, %p65
    %p67 = scmp.ne.s32.totalorder %s53, %s54
    %p68 = scmp.eq.s32.totalorder %s32, 3
    %p69 = por %p67, %p68
    %p71 = scmp.ne.s32.totalorder %s54, %s70
    %p72 = scmp.eq.s32.totalorder %s32, 0
    %p73 = por %p71, %p72
    %s74 = ssub.s32 %s33, %s45
    %s75 = ssub.s32 %s34, %s41
    %s76 = sor.u32 %s74, %s75
    %p77 = scmp.eq.s32.totalorder %s76, 0
    %s79 = sadd.s32 %s78, 1
    %s80 = scalar_select %p77, %s78, %s79
    %p83 = pneg %p77
    %p84 = scmp.eq.s32.totalorder %s26, 3
    %p85 = por %p83, %p84
    %p86 = scmp.ne.s32.totalorder %s78, %s81
    %p87 = scmp.eq.s32.totalorder %s26, 0
    %p88 = por %p86, %p87
    %p89 = scmp.ne.s32.totalorder %s78, %s81
    %p90 = scmp.eq.s32.totalorder %s31, 3
    %p91 = por %p89, %p90
    %p92 = scmp.ne.s32.totalorder %s81, %s82
    %p93 = scmp.eq.s32.totalorder %s31, 0
    %p94 = por %p92, %p93
    %p95 = scmp.ne.s32.totalorder %s81, %s82
    %p96 = scmp.eq.s32.totalorder %s32, 3
    %p97 = por %p95, %p96
    %p99 = scmp.ne.s32.totalorder %s82, %s98
    %p100 = scmp.eq.s32.totalorder %s32, 0
    %p101 = por %p99, %p100
    %s103 = sadd.s32 %s102, 1
    %p106 = scmp.eq.s32.totalorder %s26, 3
    %p107 = scmp.ne.s32.totalorder %s102, %s104
    %p108 = scmp.eq.s32.totalorder %s26, 0
    %p109 = por %p107, %p108
    %p110 = scmp.ne.s32.totalorder %s102, %s104
    %p111 = scmp.eq.s32.totalorder %s31, 3
    %p112 = por %p110, %p111
    %p113 = scmp.ne.s32.totalorder %s104, %s105
    %p114 = scmp.eq.s32.totalorder %s31, 0
    %p115 = por %p113, %p114
    %p116 = scmp.ne.s32.totalorder %s104, %s105
    %p117 = scmp.eq.s32.totalorder %s32, 3
    %p118 = por %p116, %p117
    %p120 = scmp.ne.s32.totalorder %s105, %s119
    %p121 = scmp.eq.s32.totalorder %s32, 0
    %p122 = por %p120, %p121
    %s124 = sadd.s32 %s123, 1
    %p127 = scmp.eq.s32.totalorder %s26, 3
    %p128 = scmp.ne.s32.totalorder %s123, %s125
    %p129 = scmp.eq.s32.totalorder %s26, 0
    %p130 = por %p128, %p129
    %p131 = scmp.ne.s32.totalorder %s123, %s125
    %p132 = scmp.eq.s32.totalorder %s31, 3
    %p133 = por %p131, %p132
    %p134 = scmp.ne.s32.totalorder %s125, %s126
    %p135 = scmp.eq.s32.totalorder %s31, 0
    %p136 = por %p134, %p135
    %p137 = scmp.ne.s32.totalorder %s125, %s126
    %p138 = scmp.eq.s32.totalorder %s32, 3
    %p139 = por %p137, %p138
    %p141 = scmp.ne.s32.totalorder %s126, %s140
    %p142 = scmp.eq.s32.totalorder %s32, 0
    %p143 = por %p141, %p142
    %s145 = sadd.s32 %s144, 1
    %p148 = scmp.eq.s32.totalorder %s26, 3
    %p149 = scmp.ne.s32.totalorder %s144, %s146
    %p150 = scmp.eq.s32.totalorder %s26, 0
    %p151 = por %p149, %p150
    %p152 = scmp.ne.s32.totalorder %s144, %s146
    %p153 = scmp.eq.s32.totalorder %s31, 3
    %p154 = por %p152, %p153
    %p155 = scmp.ne.s32.totalorder %s146, %s147
    %p156 = scmp.eq.s32.totalorder %s31, 0
    %p157 = por %p155, %p156
    %p158 = scmp.ne.s32.totalorder %s146, %s147
    %p159 = scmp.eq.s32.totalorder %s32, 3
    %p160 = por %p158, %p159
    %p162 = scmp.ne.s32.totalorder %s147, %s161
    %p163 = scmp.eq.s32.totalorder %s32, 0
    %p164 = por %p162, %p163
    %s166 = sadd.s32 %s165, 1
    %p169 = scmp.eq.s32.totalorder %s26, 3
    %p170 = scmp.ne.s32.totalorder %s165, %s167
    %p171 = scmp.eq.s32.totalorder %s26, 0
    %p172 = por %p170, %p171
    %p173 = scmp.ne.s32.totalorder %s165, %s167
    %p174 = scmp.eq.s32.totalorder %s31, 3
    %p175 = por %p173, %p174
    %p176 = scmp.ne.s32.totalorder %s167, %s168
    %p177 = scmp.eq.s32.totalorder %s31, 0
    %p178 = por %p176, %p177
    %p179 = scmp.ne.s32.totalorder %s167, %s168
    %p180 = scmp.eq.s32.totalorder %s32, 3
    %p181 = por %p179, %p180
    %p183 = scmp.ne.s32.totalorder %s168, %s182
    %p184 = scmp.eq.s32.totalorder %s32, 0
    %p185 = por %p183, %p184
    %s187 = sadd.s32 %s186, 1
    %p190 = scmp.eq.s32.totalorder %s26, 3
    %p191 = scmp.ne.s32.totalorder %s186, %s188
    %p192 = scmp.eq.s32.totalorder %s26, 0
    %p193 = por %p191, %p192
    %p194 = scmp.ne.s32.totalorder %s186, %s188
    %p195 = scmp.eq.s32.totalorder %s31, 3
    %p196 = por %p194, %p195
    %p197 = scmp.ne.s32.totalorder %s188, %s189
    %p198 = scmp.eq.s32.totalorder %s31, 0
    %p199 = por %p197, %p198
    %p200 = scmp.ne.s32.totalorder %s188, %s189
    %p201 = scmp.eq.s32.totalorder %s32, 3
    %p202 = por %p200, %p201
    %p204 = scmp.ne.s32.totalorder %s189, %s203
    %p205 = scmp.eq.s32.totalorder %s32, 0
    %p206 = por %p204, %p205
    %s208 = sadd.s32 %s207, 1
    %p211 = scmp.eq.s32.totalorder %s26, 3
    %p212 = scmp.ne.s32.totalorder %s207, %s209
    %p213 = scmp.eq.s32.totalorder %s26, 0
    %p214 = por %p212, %p213
    %p215 = scmp.ne.s32.totalorder %s207, %s209
    %p216 = scmp.eq.s32.totalorder %s31, 3
    %p217 = por %p215, %p216
    %p218 = scmp.ne.s32.totalorder %s209, %s210
    %p219 = scmp.eq.s32.totalorder %s31, 0
    %p220 = por %p218, %p219
    %p221 = scmp.ne.s32.totalorder %s209, %s210
    %p222 = scmp.eq.s32.totalorder %s32, 3
    %p223 = por %p221, %p222
    %p225 = scmp.ne.s32.totalorder %s210, %s224
    %p226 = scmp.eq.s32.totalorder %s32, 0
    %p227 = por %p225, %p226
    %s229 = sadd.s32 %s228, 1
    %p232 = scmp.eq.s32.totalorder %s26, 3
    %p233 = scmp.ne.s32.totalorder %s228, %s230
    %p234 = scmp.eq.s32.totalorder %s26, 0
    %p235 = por %p233, %p234
    %p236 = scmp.ne.s32.totalorder %s228, %s230
    %p237 = scmp.eq.s32.totalorder %s31, 3
    %p238 = por %p236, %p237
    %p239 = scmp.ne.s32.totalorder %s230, %s231
    %p240 = scmp.eq.s32.totalorder %s31, 0
    %p241 = por %p239, %p240
    %p242 = scmp.ne.s32.totalorder %s230, %s231
    %p243 = scmp.eq.s32.totalorder %s32, 3
    %p244 = por %p242, %p243
    %p246 = scmp.ne.s32.totalorder %s231, %s245
    %p247 = scmp.eq.s32.totalorder %s32, 0
    %p248 = por %p246, %p247
    %s250 = sadd.s32 %s249, 1
    %p253 = scmp.eq.s32.totalorder %s26, 3
    %p254 = scmp.ne.s32.totalorder %s249, %s251
    %p255 = scmp.eq.s32.totalorder %s26, 0
    %p256 = por %p254, %p255
    %p257 = scmp.ne.s32.totalorder %s249, %s251
    %p258 = scmp.eq.s32.totalorder %s31, 3
    %p259 = por %p257, %p258
    %p260 = scmp.ne.s32.totalorder %s251, %s252
    %p261 = scmp.eq.s32.totalorder %s31, 0
    %p262 = por %p260, %p261
    %p263 = scmp.ne.s32.totalorder %s251, %s252
    %p264 = scmp.eq.s32.totalorder %s32, 3
    %p265 = por %p263, %p264
    %p267 = scmp.ne.s32.totalorder %s252, %s266
    %p268 = scmp.eq.s32.totalorder %s32, 0
    %p269 = por %p267, %p268
    %s271 = sadd.s32 %s270, 1
    %p274 = scmp.eq.s32.totalorder %s26, 3
    %p275 = scmp.ne.s32.totalorder %s270, %s272
    %p276 = scmp.eq.s32.totalorder %s26, 0
    %p277 = por %p275, %p276
    %p278 = scmp.ne.s32.totalorder %s270, %s272
    %p279 = scmp.eq.s32.totalorder %s31, 3
    %p280 = por %p278, %p279
    %p281 = scmp.ne.s32.totalorder %s272, %s273
    %p282 = scmp.eq.s32.totalorder %s31, 0
    %p283 = por %p281, %p282
    %p284 = scmp.ne.s32.totalorder %s272, %s273
    %p285 = scmp.eq.s32.totalorder %s32, 3
    %p286 = por %p284, %p285
    %p288 = scmp.ne.s32.totalorder %s273, %s287
    %p289 = scmp.eq.s32.totalorder %s32, 0
    %p290 = por %p288, %p289
    %s292 = sadd.s32 %s291, 1
    %p295 = scmp.eq.s32.totalorder %s26, 3
    %p296 = scmp.ne.s32.totalorder %s291, %s293
    %p297 = scmp.eq.s32.totalorder %s26, 0
    %p298 = por %p296, %p297
    %p299 = scmp.ne.s32.totalorder %s291, %s293
    %p300 = scmp.eq.s32.totalorder %s31, 3
    %p301 = por %p299, %p300
    %p302 = scmp.ne.s32.totalorder %s293, %s294
    %p303 = scmp.eq.s32.totalorder %s31, 0
    %p304 = por %p302, %p303
    %p305 = scmp.ne.s32.totalorder %s293, %s294
    %p306 = scmp.eq.s32.totalorder %s32, 3
    %p307 = por %p305, %p306
    %p309 = scmp.ne.s32.totalorder %s294, %s308
    %p310 = scmp.eq.s32.totalorder %s32, 0
    %p311 = por %p309, %p310
    %s313 = sadd.s32 %s312, 1
    %p316 = scmp.eq.s32.totalorder %s26, 3
    %p317 = scmp.ne.s32.totalorder %s312, %s314
    %p318 = scmp.eq.s32.totalorder %s26, 0
    %p319 = por %p317, %p318
    %p320 = scmp.ne.s32.totalorder %s312, %s314
    %p321 = scmp.eq.s32.totalorder %s31, 3
    %p322 = por %p320, %p321
    %p323 = scmp.ne.s32.totalorder %s314, %s315
    %p324 = scmp.eq.s32.totalorder %s31, 0
    %p325 = por %p323, %p324
    %p326 = scmp.ne.s32.totalorder %s314, %s315
    %p327 = scmp.eq.s32.totalorder %s32, 3
    %p328 = por %p326, %p327
    %p330 = scmp.ne.s32.totalorder %s315, %s329
    %p331 = scmp.eq.s32.totalorder %s32, 0
    %p332 = por %p330, %p331
    %s334 = sadd.s32 %s333, 1
    %p337 = scmp.eq.s32.totalorder %s26, 3
    %p338 = scmp.ne.s32.totalorder %s333, %s335
    %p339 = scmp.eq.s32.totalorder %s26, 0
    %p340 = por %p338, %p339
    %p341 = scmp.ne.s32.totalorder %s333, %s335
    %p342 = scmp.eq.s32.totalorder %s31, 3
    %p343 = por %p341, %p342
    %p344 = scmp.ne.s32.totalorder %s335, %s336
    %p345 = scmp.eq.s32.totalorder %s31, 0
    %p346 = por %p344, %p345
    %p347 = scmp.ne.s32.totalorder %s335, %s336
    %p348 = scmp.eq.s32.totalorder %s32, 3
    %p349 = por %p347, %p348
    %p351 = scmp.ne.s32.totalorder %s336, %s350
    %p352 = scmp.eq.s32.totalorder %s32, 0
    %p353 = por %p351, %p352
    %s355 = sadd.s32 %s354, 1
    %p358 = scmp.eq.s32.totalorder %s26, 3
    %p359 = scmp.ne.s32.totalorder %s354, %s356
    %p360 = scmp.eq.s32.totalorder %s26, 0
    %p361 = por %p359, %p360
    %p362 = scmp.ne.s32.totalorder %s354, %s356
    %p363 = scmp.eq.s32.totalorder %s31, 3
    %p364 = por %p362, %p363
    %p365 = scmp.ne.s32.totalorder %s356, %s357
    %p366 = scmp.eq.s32.totalorder %s31, 0
    %p367 = por %p365, %p366
    %p368 = scmp.ne.s32.totalorder %s356, %s357
    %p369 = scmp.eq.s32.totalorder %s32, 3
    %p370 = por %p368, %p369
    %p372 = scmp.ne.s32.totalorder %s357, %s371
    %p373 = scmp.eq.s32.totalorder %s32, 0
    %p374 = por %p372, %p373
    %s376 = sadd.s32 %s375, 1
    %p379 = scmp.eq.s32.totalorder %s26, 3
    %p380 = scmp.ne.s32.totalorder %s375, %s377
    %p381 = scmp.eq.s32.totalorder %s26, 0
    %p382 = por %p380, %p381
    %p383 = scmp.ne.s32.totalorder %s375, %s377
    %p384 = scmp.eq.s32.totalorder %s31, 3
    %p385 = por %p383, %p384
    %p386 = scmp.ne.s32.totalorder %s377, %s378
    %p387 = scmp.eq.s32.totalorder %s31, 0
    %p388 = por %p386, %p387
    %p389 = scmp.ne.s32.totalorder %s377, %s378
    %p390 = scmp.eq.s32.totalorder %s32, 3
    %p391 = por %p389, %p390
    %p393 = scmp.ne.s32.totalorder %s378, %s392
    %p394 = scmp.eq.s32.totalorder %s32, 0
    %p395 = por %p393, %p394
    %s397 = sadd.s32 %s396, 1
    %p400 = scmp.eq.s32.totalorder %s26, 3
    %p401 = scmp.ne.s32.totalorder %s396, %s398
    %p402 = scmp.eq.s32.totalorder %s26, 0
    %p403 = por %p401, %p402
    %p404 = scmp.ne.s32.totalorder %s396, %s398
    %p405 = scmp.eq.s32.totalorder %s31, 3
    %p406 = por %p404, %p405
    %p407 = scmp.ne.s32.totalorder %s398, %s399
    %p408 = scmp.eq.s32.totalorder %s31, 0
    %p409 = por %p407, %p408
    %p410 = scmp.ne.s32.totalorder %s398, %s399
    %p411 = scmp.eq.s32.totalorder %s32, 3
    %p412 = por %p410, %p411
    %p414 = scmp.ne.s32.totalorder %s399, %s413
    %p415 = scmp.eq.s32.totalorder %s32, 0
    %p416 = por %p414, %p415
    %s418 = sadd.s32 %s417, 1
    %p421 = scmp.eq.s32.totalorder %s26, 3
    %p422 = scmp.ne.s32.totalorder %s417, %s419
    %p423 = scmp.eq.s32.totalorder %s26, 0
    %p424 = por %p422, %p423
    %p425 = scmp.ne.s32.totalorder %s417, %s419
    %p426 = scmp.eq.s32.totalorder %s31, 3
    %p427 = por %p425, %p426
    %p428 = scmp.ne.s32.totalorder %s419, %s420
    %p429 = scmp.eq.s32.totalorder %s31, 0
    %p430 = por %p428, %p429
    %p431 = scmp.ne.s32.totalorder %s419, %s420
    %p432 = scmp.eq.s32.totalorder %s32, 3
    %p433 = por %p431, %p432
    %p435 = scmp.ne.s32.totalorder %s420, %s434
    %p436 = scmp.eq.s32.totalorder %s32, 0
    %p437 = por %p435, %p436
    %s438 = ssub.s32 %s33, %s45
    %s439 = ssub.s32 %s34, %s41
    %s440 = sor.u32 %s438, %s439
    %p441 = scmp.eq.s32.totalorder %s440, 0
    %s443 = sadd.s32 %s442, 1
    %s444 = scalar_select %p441, %s442, %s443
    %p447 = pneg %p441
    %p448 = scmp.eq.s32.totalorder %s26, 3
    %p449 = por %p447, %p448
    %p450 = scmp.ne.s32.totalorder %s442, %s445
    %p451 = scmp.eq.s32.totalorder %s26, 0
    %p452 = por %p450, %p451
    %p453 = scmp.ne.s32.totalorder %s442, %s445
    %p454 = scmp.eq.s32.totalorder %s31, 3
    %p455 = por %p453, %p454
    %p456 = scmp.ne.s32.totalorder %s445, %s446
    %p457 = scmp.eq.s32.totalorder %s31, 0
    %p458 = por %p456, %p457
    %p459 = scmp.ne.s32.totalorder %s445, %s446
    %p460 = scmp.eq.s32.totalorder %s32, 3
    %p461 = por %p459, %p460
    %p463 = scmp.ne.s32.totalorder %s446, %s462
    %p464 = scmp.eq.s32.totalorder %s32, 0
    %p465 = por %p463, %p464
    %p466 = scmp.le.s32.totalorder 1, %s26
    %p467 = scmp.lt.s32.totalorder %s26, 5
    %p468 = pnand %p466, %p467
    %p469 = pneg %p468
    // Predicated region
    $region9: #{tpu_custom_call.1} parent=5 // pred_check
      _
    $region10: #{tpu_custom_call.1} parent=5 // pred_check_branch
      %471 = sbr.rel (%p468) target = $region12
    $region11: #{tpu_custom_call.1} parent=5 // pred_region
      %s472 = ssub.s32 %s26, 1
      // Predicated region
      $region13: #{tpu_custom_call.1} parent=11 // pred_check
        %p473 = pneg %p115
      $region14: #{tpu_custom_call.1} parent=11 // pred_check_branch
        %475 = sbr.rel (%p473) target = $region16
      $region15: #{tpu_custom_call.1} parent=11 // pred_region
        _
      $region16: #{tpu_custom_call.1} parent=11 // pred_fallthru
        _
      // Predicated region
      $region17: #{tpu_custom_call.1} parent=11 // pred_check
        %p476 = pneg %p136
      $region18: #{tpu_custom_call.1} parent=11 // pred_check_branch
        %478 = sbr.rel (%p476) target = $region20
      $region19: #{tpu_custom_call.1} parent=11 // pred_region
        _
      $region20: #{tpu_custom_call.1} parent=11 // pred_fallthru
        _
      // Predicated region
      $region21: #{tpu_custom_call.1} parent=11 // pred_check
        %p479 = pneg %p157
      $region22: #{tpu_custom_call.1} parent=11 // pred_check_branch
        %481 = sbr.rel (%p479) target = $region24
      $region23: #{tpu_custom_call.1} parent=11 // pred_region
        _
      $region24: #{tpu_custom_call.1} parent=11 // pred_fallthru
        _
      // Predicated region
      $region25: #{tpu_custom_call.1} parent=11 // pred_check
        %p482 = pneg %p178
      $region26: #{tpu_custom_call.1} parent=11 // pred_check_branch
        %484 = sbr.rel (%p482) target = $region28
      $region27: #{tpu_custom_call.1} parent=11 // pred_region
        _
      $region28: #{tpu_custom_call.1} parent=11 // pred_fallthru
        _
      // Predicated region
      $region29: #{tpu_custom_call.1} parent=11 // pred_check
        %p485 = pneg %p199
      $region30: #{tpu_custom_call.1} parent=11 // pred_check_branch
        %487 = sbr.rel (%p485) target = $region32
      $region31: #{tpu_custom_call.1} parent=11 // pred_region
        _
      $region32: #{tpu_custom_call.1} parent=11 // pred_fallthru
        _
      // Predicated region
      $region33: #{tpu_custom_call.1} parent=11 // pred_check
        %p488 = pneg %p220
      $region34: #{tpu_custom_call.1} parent=11 // pred_check_branch
        %490 = sbr.rel (%p488) target = $region36
      $region35: #{tpu_custom_call.1} parent=11 // pred_region
        _
      $region36: #{tpu_custom_call.1} parent=11 // pred_fallthru
        _
      // Predicated region
      $region37: #{tpu_custom_call.1} parent=11 // pred_check
        %p491 = pneg %p241
      $region38: #{tpu_custom_call.1} parent=11 // pred_check_branch
        %493 = sbr.rel (%p491) target = $region40
      $region39: #{tpu_custom_call.1} parent=11 // pred_region
        _
      $region40: #{tpu_custom_call.1} parent=11 // pred_fallthru
        _
      // Predicated region
      $region41: #{tpu_custom_call.1} parent=11 // pred_check
        %p494 = pneg %p262
      $region42: #{tpu_custom_call.1} parent=11 // pred_check_branch
        %496 = sbr.rel (%p494) target = $region44
      $region43: #{tpu_custom_call.1} parent=11 // pred_region
        _
      $region44: #{tpu_custom_call.1} parent=11 // pred_fallthru
        _
      // Predicated region
      $region45: #{tpu_custom_call.1} parent=11 // pred_check
        %p497 = pneg %p283
      $region46: #{tpu_custom_call.1} parent=11 // pred_check_branch
        %499 = sbr.rel (%p497) target = $region48
      $region47: #{tpu_custom_call.1} parent=11 // pred_region
        _
      $region48: #{tpu_custom_call.1} parent=11 // pred_fallthru
        _
      // Predicated region
      $region49: #{tpu_custom_call.1} parent=11 // pred_check
        %p500 = pneg %p304
      $region50: #{tpu_custom_call.1} parent=11 // pred_check_branch
        %502 = sbr.rel (%p500) target = $region52
      $region51: #{tpu_custom_call.1} parent=11 // pred_region
        _
      $region52: #{tpu_custom_call.1} parent=11 // pred_fallthru
        _
      // Predicated region
      $region53: #{tpu_custom_call.1} parent=11 // pred_check
        %p503 = pneg %p325
      $region54: #{tpu_custom_call.1} parent=11 // pred_check_branch
        %505 = sbr.rel (%p503) target = $region56
      $region55: #{tpu_custom_call.1} parent=11 // pred_region
        _
      $region56: #{tpu_custom_call.1} parent=11 // pred_fallthru
        _
      // Predicated region
      $region57: #{tpu_custom_call.1} parent=11 // pred_check
        %p506 = pneg %p346
      $region58: #{tpu_custom_call.1} parent=11 // pred_check_branch
        %508 = sbr.rel (%p506) target = $region60
      $region59: #{tpu_custom_call.1} parent=11 // pred_region
        _
      $region60: #{tpu_custom_call.1} parent=11 // pred_fallthru
        _
      // Predicated region
      $region61: #{tpu_custom_call.1} parent=11 // pred_check
        %p509 = pneg %p367
      $region62: #{tpu_custom_call.1} parent=11 // pred_check_branch
        %511 = sbr.rel (%p509) target = $region64
      $region63: #{tpu_custom_call.1} parent=11 // pred_region
        _
      $region64: #{tpu_custom_call.1} parent=11 // pred_fallthru
        _
      // Predicated region
      $region65: #{tpu_custom_call.1} parent=11 // pred_check
        %p512 = pneg %p388
      $region66: #{tpu_custom_call.1} parent=11 // pred_check_branch
        %514 = sbr.rel (%p512) target = $region68
      $region67: #{tpu_custom_call.1} parent=11 // pred_region
        _
      $region68: #{tpu_custom_call.1} parent=11 // pred_fallthru
        _
      // Predicated region
      $region69: #{tpu_custom_call.1} parent=11 // pred_check
        %p515 = pneg %p409
      $region70: #{tpu_custom_call.1} parent=11 // pred_check_branch
        %517 = sbr.rel (%p515) target = $region72
      $region71: #{tpu_custom_call.1} parent=11 // pred_region
        _
      $region72: #{tpu_custom_call.1} parent=11 // pred_fallthru
        _
      // Predicated region
      $region73: #{tpu_custom_call.1} parent=11 // pred_check
        %p518 = pneg %p430
      $region74: #{tpu_custom_call.1} parent=11 // pred_check_branch
        %520 = sbr.rel (%p518) target = $region76
      $region75: #{tpu_custom_call.1} parent=11 // pred_region
        _
      $region76: #{tpu_custom_call.1} parent=11 // pred_fallthru
        _
    $region12: #{tpu_custom_call.1} parent=5 // pred_fallthru
      _
    %p521 = scmp.lt.s32.totalorder %s26, 4
    // Predicated region
    $region77: #{tpu_custom_call.1} parent=5 // pred_check
      %p522 = pneg %p521
    $region78: #{tpu_custom_call.1} parent=5 // pred_check_branch
      %524 = sbr.rel (%p522) target = $region80
    $region79: #{tpu_custom_call.1} parent=5 // pred_region
      // Predicated region
      $region81: #{tpu_custom_call.1} parent=79 // pred_check
        %p525 = pneg %p60
      $region82: #{tpu_custom_call.1} parent=79 // pred_check_branch
        %527 = sbr.rel (%p525) target = $region84
      $region83: #{tpu_custom_call.1} parent=79 // pred_region
        %p528 = scmp.lt.s32.totalorder %s33, 1
        %s529 = scalar_select %p528, %s33, 1
        %p530 = scmp.lt.s32.totalorder %s34, 1
        %s531 = scalar_select %p530, %s34, 1
        %s532 = smul.addr %s531, 36
        %s533 = smul.addr %s529, 72
        %s534 = sadd.s32 %s532, %s533
        %s535 = smul.addr %s534, 8
        %s536 = scalar_lea.vmem %s0, %s535
      $region84: #{tpu_custom_call.1} parent=79 // pred_fallthru
        _
      // Predicated region
      $region85: #{tpu_custom_call.1} parent=79 // pred_check
        %p537 = pneg %p88
      $region86: #{tpu_custom_call.1} parent=79 // pred_check_branch
        %539 = sbr.rel (%p537) target = $region88
      $region87: #{tpu_custom_call.1} parent=79 // pred_region
        %s540 = smul.u32 32, %s34
        %p541 = scmp.lt.s32.totalorder %s33, 1
        %s542 = scalar_select %p541, %s33, 1
        %p543 = scmp.lt.s32.totalorder %s540, 63
        %s544 = scalar_select %p543, %s540, 63
        %s545 = smul.addr %s542, 64
        %s546 = sadd.s32 %s544, %s545
        %s547 = smul.addr %s546, 8
        %s548 = scalar_lea.vmem %s1, %s547
        %s549 = smul.u32 32, %s34
      $region88: #{tpu_custom_call.1} parent=79 // pred_fallthru
        _
    $region80: #{tpu_custom_call.1} parent=5 // pred_fallthru
      _
    %p550 = scmp.le.s32.totalorder 1, %s26
    %p551 = scmp.lt.s32.totalorder %s26, 5
    %p552 = pnand %p550, %p551
    %p553 = pneg %p552
    // Predicated region
    $region89: #{tpu_custom_call.1} parent=5 // pred_check
      _
    $region90: #{tpu_custom_call.1} parent=5 // pred_check_branch
      %555 = sbr.rel (%p552) target = $region92
    $region91: #{tpu_custom_call.1} parent=5 // pred_region
      %s556 = ssub.s32 %s26, 1
      %p557 = scmp.lt.s32.totalorder %s35, 1
      %s558 = scalar_select %p557, %s35, 1
      %p559 = scmp.lt.s32.totalorder %s36, 1
      %s560 = scalar_select %p559, %s36, 1
      %s561 = smul.addr %s560, 36
      %s562 = smul.addr %s558, 72
      %s563 = sadd.s32 %s561, %s562
      %s564 = smul.addr %s563, 8
      %s565 = scalar_lea.vmem %s0, %s564
      %p566 = pneg %p66
      %p567 = pneg %p63
      %s568 = smul.u32 32, %s36
      %p569 = scmp.lt.s32.totalorder %s35, 1
      %s570 = scalar_select %p569, %s35, 1
      %p571 = scmp.lt.s32.totalorder %s568, 63
      %s572 = scalar_select %p571, %s568, 63
      %s573 = smul.addr %s570, 64
      %s574 = sadd.s32 %s572, %s573
      %s575 = smul.addr %s574, 8
      %s576 = scalar_lea.vmem %s1, %s575
      %p577 = pneg %p94
      %p578 = pneg %p91
      %p579 = pneg %p115
      %p580 = pneg %p112
      %p581 = pneg %p136
      %p582 = pneg %p133
      %p583 = pneg %p157
      %p584 = pneg %p154
      %p585 = pneg %p178
      %p586 = pneg %p175
      %p587 = pneg %p199
      %p588 = pneg %p196
      %p589 = pneg %p220
      %p590 = pneg %p217
      %p591 = pneg %p241
      %p592 = pneg %p238
      %p593 = pneg %p262
      %p594 = pneg %p259
      %p595 = pneg %p283
      %p596 = pneg %p280
      %p597 = pneg %p304
      %p598 = pneg %p301
      %p599 = pneg %p325
      %p600 = pneg %p322
      %p601 = pneg %p346
      %p602 = pneg %p343
      %p603 = pneg %p367
      %p604 = pneg %p364
      %p605 = pneg %p388
      %p606 = pneg %p385
      %p607 = pneg %p409
      %p608 = pneg %p406
      %p609 = pneg %p430
      %p610 = pneg %p427
      %p611 = pneg %p458
      %p612 = pneg %p455
      %s613 = smul.u32 32, %s36
      %p614 = scmp.lt.s32.totalorder %s35, 1
      %s615 = scalar_select %p614, %s35, 1
      %p616 = scmp.lt.s32.totalorder %s613, 63
      %s617 = scalar_select %p616, %s613, 63
      %s618 = smul.addr %s615, 64
      %s619 = sadd.s32 %s617, %s618
      %s620 = smul.addr %s619, 8
      %s621 = scalar_lea.vmem %s18, %s620
      %p622 = scmp.lt.s32.totalorder %s35, 1
      %s623 = scalar_select %p622, %s35, 1
      %p624 = scmp.lt.s32.totalorder %s36, 1
      %s625 = scalar_select %p624, %s36, 1
      %s626 = smul.addr %s625, 36
      %s627 = smul.addr %s623, 72
      %s628 = sadd.s32 %s626, %s627
      %s629 = smul.addr %s628, 8
      %s630 = scalar_lea.vmem %s0, %s629
      %s631 = smul.u32 32, %s36
      %p632 = scmp.lt.s32.totalorder %s35, 1
      %s633 = scalar_select %p632, %s35, 1
      %p634 = scmp.lt.s32.totalorder %s631, 63
      %s635 = scalar_select %p634, %s631, 63
      %s636 = smul.addr %s633, 64
      %s637 = sadd.s32 %s635, %s636
      %s638 = smul.addr %s637, 8
      %s639 = scalar_lea.vmem %s1, %s638
      %s640 = smul.u32 32, %s36
      %s641 = smul.u32 32, %s36
      %p642 = scmp.lt.s32.totalorder %s35, 1
      %s643 = scalar_select %p642, %s35, 1
      %p644 = scmp.lt.s32.totalorder %s641, 63
      %s645 = scalar_select %p644, %s641, 63
      %s646 = smul.addr %s643, 64
      %s647 = sadd.s32 %s645, %s646
      %s648 = smul.addr %s647, 8
      %s649 = scalar_lea.vmem %s18, %s648
      %s650 = smul.u32 32, %s36
      %v652 = vld [vmem:[%s630] sm:$0xff]
      %v653 = vld [vmem:[%s630 + $0x8] sm:$0xff]
      %v654 = vld [vmem:[%s630 + $0x10] sm:$0xff]
      %v655 = vld [vmem:[%s630 + $0x18] sm:$0xff]
      %v656 = vld [vmem:[%s630 + $0x20] sm:$0xff]
      %v657 = vld [vmem:[%s630 + $0x28] sm:$0xff]
      %v658 = vld [vmem:[%s630 + $0x30] sm:$0xff]
      %v659 = vld [vmem:[%s630 + $0x38] sm:$0xff]
      %v660 = vld [vmem:[%s630 + $0x40] sm:$0xff]
      %v661 = vld [vmem:[%s630 + $0x48] sm:$0xff]
      %v662 = vld [vmem:[%s630 + $0x50] sm:$0xff]
      %v663 = vld [vmem:[%s630 + $0x58] sm:$0xff]
      %v664 = vld [vmem:[%s630 + $0x60] sm:$0xff]
      %v665 = vld [vmem:[%s630 + $0x68] sm:$0xff]
      %v666 = vld [vmem:[%s630 + $0x70] sm:$0xff]
      %v667 = vld [vmem:[%s630 + $0x78] sm:$0xff]
      %v668 = vld [vmem:[%s630 + $0x80] sm:$0xff]
      %v669 = vld [vmem:[%s630 + $0x88] sm:$0xff]
      %v670 = vld [vmem:[%s630 + $0x90] sm:$0xff]
      %v671 = vld [vmem:[%s630 + $0x98] sm:$0xff]
      %v672 = vld [vmem:[%s630 + $0xa0] sm:$0xff]
      %v673 = vld [vmem:[%s630 + $0xa8] sm:$0xff]
      %v674 = vld [vmem:[%s630 + $0xb0] sm:$0xff]
      %v675 = vld [vmem:[%s630 + $0xb8] sm:$0xff]
      %v676 = vld [vmem:[%s630 + $0xc0] sm:$0xff]
      %v677 = vld [vmem:[%s630 + $0xc8] sm:$0xff]
      %v678 = vld [vmem:[%s630 + $0xd0] sm:$0xff]
      %v679 = vld [vmem:[%s630 + $0xd8] sm:$0xff]
      %v680 = vld [vmem:[%s630 + $0xe0] sm:$0xff]
      %v681 = vld [vmem:[%s630 + $0xe8] sm:$0xff]
      %v682 = vld [vmem:[%s630 + $0xf0] sm:$0xff]
      %v683 = vld [vmem:[%s630 + $0xf8] sm:$0xff]
      %v684 = vld [vmem:[%s630 + $0x100] sm:$0xff]
      %v685 = vld [vmem:[%s630 + $0x108] sm:$0xff]
      %v686 = vld [vmem:[%s630 + $0x110] sm:$0xff]
      %v687 = vld [vmem:[%s630 + $0x118] sm:$0xff]
      %s688 = smul.u32 %s36, 256
      %s689 = ssub.s32 %s688, 16
      %v690 = vlaneseq
      %v691 = vshrl.u32 %v690, 7
      %v692 = vadd.s32 %v691, 8
      %v693 = vadd.s32 %v691, 16
      %v694 = vadd.s32 %v691, 24
      %v695 = vadd.s32 %v691, 32
      %v696 = vadd.s32 %v691, 40
      %v697 = vadd.s32 %v691, 48
      %v698 = vadd.s32 %v691, 56
      %v699 = vadd.s32 %v691, 64
      %v700 = vadd.s32 %v691, 72
      %v701 = vadd.s32 %v691, 80
      %v702 = vadd.s32 %v691, 88
      %v703 = vadd.s32 %v691, 96
      %v704 = vadd.s32 %v691, 104
      %v705 = vadd.s32 %v691, 112
      %v706 = vadd.s32 %v691, 120
      %v707 = vadd.s32 %v691, 128
      %v708 = vadd.s32 %v691, 136
      %v709 = vadd.s32 %v691, 144
      %v710 = vadd.s32 %v691, 152
      %v711 = vadd.s32 %v691, 160
      %v712 = vadd.s32 %v691, 168
      %v713 = vadd.s32 %v691, 176
      %v714 = vadd.s32 %v691, 184
      %v715 = vadd.s32 %v691, 192
      %v716 = vadd.s32 %v691, 200
      %v717 = vadd.s32 %v691, 208
      %v718 = vadd.s32 %v691, 216
      %v719 = vadd.s32 %v691, 224
      %v720 = vadd.s32 %v691, 232
      %v721 = vadd.s32 %v691, 240
      %v722 = vadd.s32 %v691, 248
      %v723 = vadd.s32 %v691, 256
      %v724 = vadd.s32 %v691, 264
      %v725 = vadd.s32 %v691, 272
      %v726 = vadd.s32 %v691, 280
      %v727 = vstv %s689
      %v728 = vadd.s32 %v691, %v727
      %v729 = vadd.s32 %v692, %v727
      %v730 = vadd.s32 %v693, %v727
      %v731 = vadd.s32 %v694, %v727
      %v732 = vadd.s32 %v695, %v727
      %v733 = vadd.s32 %v696, %v727
      %v734 = vadd.s32 %v697, %v727
      %v735 = vadd.s32 %v698, %v727
      %v736 = vadd.s32 %v699, %v727
      %v737 = vadd.s32 %v700, %v727
      %v738 = vadd.s32 %v701, %v727
      %v739 = vadd.s32 %v702, %v727
      %v740 = vadd.s32 %v703, %v727
      %v741 = vadd.s32 %v704, %v727
      %v742 = vadd.s32 %v705, %v727
      %v743 = vadd.s32 %v706, %v727
      %v744 = vadd.s32 %v707, %v727
      %v745 = vadd.s32 %v708, %v727
      %v746 = vadd.s32 %v709, %v727
      %v747 = vadd.s32 %v710, %v727
      %v748 = vadd.s32 %v711, %v727
      %v749 = vadd.s32 %v712, %v727
      %v750 = vadd.s32 %v713, %v727
      %v751 = vadd.s32 %v714, %v727
      %v752 = vadd.s32 %v715, %v727
      %v753 = vadd.s32 %v716, %v727
      %v754 = vadd.s32 %v717, %v727
      %v755 = vadd.s32 %v718, %v727
      %v756 = vadd.s32 %v719, %v727
      %v757 = vadd.s32 %v720, %v727
      %v758 = vadd.s32 %v721, %v727
      %v759 = vadd.s32 %v722, %v727
      %v760 = vadd.s32 %v723, %v727
      %v761 = vadd.s32 %v724, %v727
      %v762 = vadd.s32 %v725, %v727
      %v763 = vadd.s32 %v726, %v727
      %vm764 = vcmp.ge.s32.totalorder %v728, 0
      %vm765 = vcmp.ge.s32.totalorder %v729, 0
      %vm766 = vcmp.ge.s32.totalorder %v730, 0
      %vm767 = vcmp.ge.s32.totalorder %v731, 0
      %vm768 = vcmp.ge.s32.totalorder %v732, 0
      %vm769 = vcmp.ge.s32.totalorder %v733, 0
      %vm770 = vcmp.ge.s32.totalorder %v734, 0
      %vm771 = vcmp.ge.s32.totalorder %v735, 0
      %vm772 = vcmp.ge.s32.totalorder %v736, 0
      %vm773 = vcmp.ge.s32.totalorder %v737, 0
      %vm774 = vcmp.ge.s32.totalorder %v738, 0
      %vm775 = vcmp.ge.s32.totalorder %v739, 0
      %vm776 = vcmp.ge.s32.totalorder %v740, 0
      %vm777 = vcmp.ge.s32.totalorder %v741, 0
      %vm778 = vcmp.ge.s32.totalorder %v742, 0
      %vm779 = vcmp.ge.s32.totalorder %v743, 0
      %vm780 = vcmp.ge.s32.totalorder %v744, 0
      %vm781 = vcmp.ge.s32.totalorder %v745, 0
      %vm782 = vcmp.ge.s32.totalorder %v746, 0
      %vm783 = vcmp.ge.s32.totalorder %v747, 0
      %vm784 = vcmp.ge.s32.totalorder %v748, 0
      %vm785 = vcmp.ge.s32.totalorder %v749, 0
      %vm786 = vcmp.ge.s32.totalorder %v750, 0
      %vm787 = vcmp.ge.s32.totalorder %v751, 0
      %vm788 = vcmp.ge.s32.totalorder %v752, 0
      %vm789 = vcmp.ge.s32.totalorder %v753, 0
      %vm790 = vcmp.ge.s32.totalorder %v754, 0
      %vm791 = vcmp.ge.s32.totalorder %v755, 0
      %vm792 = vcmp.ge.s32.totalorder %v756, 0
      %vm793 = vcmp.ge.s32.totalorder %v757, 0
      %vm794 = vcmp.ge.s32.totalorder %v758, 0
      %vm795 = vcmp.ge.s32.totalorder %v759, 0
      %vm796 = vcmp.ge.s32.totalorder %v760, 0
      %vm797 = vcmp.ge.s32.totalorder %v761, 0
      %vm798 = vcmp.ge.s32.totalorder %v762, 0
      %vm799 = vcmp.ge.s32.totalorder %v763, 0
      %vm800 = vcmp.lt.s32.totalorder %v728, 380
      %vm801 = vcmp.lt.s32.totalorder %v729, 380
      %vm802 = vcmp.lt.s32.totalorder %v730, 380
      %vm803 = vcmp.lt.s32.totalorder %v731, 380
      %vm804 = vcmp.lt.s32.totalorder %v732, 380
      %vm805 = vcmp.lt.s32.totalorder %v733, 380
      %vm806 = vcmp.lt.s32.totalorder %v734, 380
      %vm807 = vcmp.lt.s32.totalorder %v735, 380
      %vm808 = vcmp.lt.s32.totalorder %v736, 380
      %vm809 = vcmp.lt.s32.totalorder %v737, 380
      %vm810 = vcmp.lt.s32.totalorder %v738, 380
      %vm811 = vcmp.lt.s32.totalorder %v739, 380
      %vm812 = vcmp.lt.s32.totalorder %v740, 380
      %vm813 = vcmp.lt.s32.totalorder %v741, 380
      %vm814 = vcmp.lt.s32.totalorder %v742, 380
      %vm815 = vcmp.lt.s32.totalorder %v743, 380
      %vm816 = vcmp.lt.s32.totalorder %v744, 380
      %vm817 = vcmp.lt.s32.totalorder %v745, 380
      %vm818 = vcmp.lt.s32.totalorder %v746, 380
      %vm819 = vcmp.lt.s32.totalorder %v747, 380
      %vm820 = vcmp.lt.s32.totalorder %v748, 380
      %vm821 = vcmp.lt.s32.totalorder %v749, 380
      %vm822 = vcmp.lt.s32.totalorder %v750, 380
      %vm823 = vcmp.lt.s32.totalorder %v751, 380
      %vm824 = vcmp.lt.s32.totalorder %v752, 380
      %vm825 = vcmp.lt.s32.totalorder %v753, 380
      %vm826 = vcmp.lt.s32.totalorder %v754, 380
      %vm827 = vcmp.lt.s32.totalorder %v755, 380
      %vm828 = vcmp.lt.s32.totalorder %v756, 380
      %vm829 = vcmp.lt.s32.totalorder %v757, 380
      %vm830 = vcmp.lt.s32.totalorder %v758, 380
      %vm831 = vcmp.lt.s32.totalorder %v759, 380
      %vm832 = vcmp.lt.s32.totalorder %v760, 380
      %vm833 = vcmp.lt.s32.totalorder %v761, 380
      %vm834 = vcmp.lt.s32.totalorder %v762, 380
      %vm835 = vcmp.lt.s32.totalorder %v763, 380
      %vm836 = vmand %vm764, %vm800
      %vm837 = vmand %vm765, %vm801
      %vm838 = vmand %vm766, %vm802
      %vm839 = vmand %vm767, %vm803
      %vm840 = vmand %vm768, %vm804
      %vm841 = vmand %vm769, %vm805
      %vm842 = vmand %vm770, %vm806
      %vm843 = vmand %vm771, %vm807
      %vm844 = vmand %vm772, %vm808
      %vm845 = vmand %vm773, %vm809
      %vm846 = vmand %vm774, %vm810
      %vm847 = vmand %vm775, %vm811
      %vm848 = vmand %vm776, %vm812
      %vm849 = vmand %vm777, %vm813
      %vm850 = vmand %vm778, %vm814
      %vm851 = vmand %vm779, %vm815
      %vm852 = vmand %vm780, %vm816
      %vm853 = vmand %vm781, %vm817
      %vm854 = vmand %vm782, %vm818
      %vm855 = vmand %vm783, %vm819
      %vm856 = vmand %vm784, %vm820
      %vm857 = vmand %vm785, %vm821
      %vm858 = vmand %vm786, %vm822
      %vm859 = vmand %vm787, %vm823
      %vm860 = vmand %vm788, %vm824
      %vm861 = vmand %vm789, %vm825
      %vm862 = vmand %vm790, %vm826
      %vm863 = vmand %vm791, %vm827
      %vm864 = vmand %vm792, %vm828
      %vm865 = vmand %vm793, %vm829
      %vm866 = vmand %vm794, %vm830
      %vm867 = vmand %vm795, %vm831
      %vm868 = vmand %vm796, %vm832
      %vm869 = vmand %vm797, %vm833
      %vm870 = vmand %vm798, %vm834
      %vm871 = vmand %vm799, %vm835
      %v872 = vsel %vm836, 1, 0
      %v873 = vsel %vm837, 1, 0
      %v874 = vsel %vm838, 1, 0
      %v875 = vsel %vm839, 1, 0
      %v876 = vsel %vm840, 1, 0
      %v877 = vsel %vm841, 1, 0
      %v878 = vsel %vm842, 1, 0
      %v879 = vsel %vm843, 1, 0
      %v880 = vsel %vm844, 1, 0
      %v881 = vsel %vm845, 1, 0
      %v882 = vsel %vm846, 1, 0
      %v883 = vsel %vm847, 1, 0
      %v884 = vsel %vm848, 1, 0
      %v885 = vsel %vm849, 1, 0
      %v886 = vsel %vm850, 1, 0
      %v887 = vsel %vm851, 1, 0
      %v888 = vsel %vm852, 1, 0
      %v889 = vsel %vm853, 1, 0
      %v890 = vsel %vm854, 1, 0
      %v891 = vsel %vm855, 1, 0
      %v892 = vsel %vm856, 1, 0
      %v893 = vsel %vm857, 1, 0
      %v894 = vsel %vm858, 1, 0
      %v895 = vsel %vm859, 1, 0
      %v896 = vsel %vm860, 1, 0
      %v897 = vsel %vm861, 1, 0
      %v898 = vsel %vm862, 1, 0
      %v899 = vsel %vm863, 1, 0
      %v900 = vsel %vm864, 1, 0
      %v901 = vsel %vm865, 1, 0
      %v902 = vsel %vm866, 1, 0
      %v903 = vsel %vm867, 1, 0
      %v904 = vsel %vm868, 1, 0
      %v905 = vsel %vm869, 1, 0
      %v906 = vsel %vm870, 1, 0
      %v907 = vsel %vm871, 1, 0
      %v908 = vcvt.s32.f32 %v872
      %v909 = vcvt.s32.f32 %v873
      %v910 = vcvt.s32.f32 %v874
      %v911 = vcvt.s32.f32 %v875
      %v912 = vcvt.s32.f32 %v876
      %v913 = vcvt.s32.f32 %v877
      %v914 = vcvt.s32.f32 %v878
      %v915 = vcvt.s32.f32 %v879
      %v916 = vcvt.s32.f32 %v880
      %v917 = vcvt.s32.f32 %v881
      %v918 = vcvt.s32.f32 %v882
      %v919 = vcvt.s32.f32 %v883
      %v920 = vcvt.s32.f32 %v884
      %v921 = vcvt.s32.f32 %v885
      %v922 = vcvt.s32.f32 %v886
      %v923 = vcvt.s32.f32 %v887
      %v924 = vcvt.s32.f32 %v888
      %v925 = vcvt.s32.f32 %v889
      %v926 = vcvt.s32.f32 %v890
      %v927 = vcvt.s32.f32 %v891
      %v928 = vcvt.s32.f32 %v892
      %v929 = vcvt.s32.f32 %v893
      %v930 = vcvt.s32.f32 %v894
      %v931 = vcvt.s32.f32 %v895
      %v932 = vcvt.s32.f32 %v896
      %v933 = vcvt.s32.f32 %v897
      %v934 = vcvt.s32.f32 %v898
      %v935 = vcvt.s32.f32 %v899
      %v936 = vcvt.s32.f32 %v900
      %v937 = vcvt.s32.f32 %v901
      %v938 = vcvt.s32.f32 %v902
      %v939 = vcvt.s32.f32 %v903
      %v940 = vcvt.s32.f32 %v904
      %v941 = vcvt.s32.f32 %v905
      %v942 = vcvt.s32.f32 %v906
      %v943 = vcvt.s32.f32 %v907
      %p944 = scmp.eq.s32.totalorder %s36, 0
      %s945 = sadd.s32 %s36, 1
      %s946 = smul.u32 %s945, 256
      %s947 = sadd.s32 %s946, 16
      %p948 = scmp.gt.s32.totalorder %s947, 380
      %p949 = por %p944, %p948
      %v950 = vpack.c.bf16 %v653, %v652
      %v951 = vpack.c.bf16 %v655, %v654
      %v952 = vpack.c.bf16 %v657, %v656
      %v953 = vpack.c.bf16 %v659, %v658
      %v954 = vpack.c.bf16 %v661, %v660
      %v955 = vpack.c.bf16 %v663, %v662
      %v956 = vpack.c.bf16 %v665, %v664
      %v957 = vpack.c.bf16 %v667, %v666
      %v958 = vpack.c.bf16 %v669, %v668
      %v959 = vpack.c.bf16 %v671, %v670
      %v960 = vpack.c.bf16 %v673, %v672
      %v961 = vpack.c.bf16 %v675, %v674
      %v962 = vpack.c.bf16 %v677, %v676
      %v963 = vpack.c.bf16 %v679, %v678
      %v964 = vpack.c.bf16 %v681, %v680
      %v965 = vpack.c.bf16 %v683, %v682
      %v966 = vpack.c.bf16 %v685, %v684
      %v967 = vpack.c.bf16 %v687, %v686
      %v968 = vld [vmem:[%s2] sm:$0xf]
      %v969 = vld [vmem:[%s2 + $0x4] sm:$0xf]
      %v970 = vld [vmem:[%s2 + $0x8] sm:$0xf]
      %v971 = vld [vmem:[%s2 + $0xc] sm:$0xf]
      %v972 = vld [vmem:[%s2 + $0x10] sm:$0xf]
      %v973 = vld [vmem:[%s2 + $0x14] sm:$0xf]
      %v974 = vld [vmem:[%s2 + $0x18] sm:$0xf]
      %v975 = vld [vmem:[%s2 + $0x1c] sm:$0xf]
      %v976 = vld [vmem:[%s3] sm:$0x1]
      %v978 = vlaneseq
      %v979 = vshrl.u32 %v978, 7
      %v980 = vsub.s32 0, %v979
      %v981 = vrot.slane %v976, %v980
      %v991 = vunpack.c.l.b16 %v968
      %v992 = vunpack.c.l.b16 %v969
      %v993 = vunpack.c.l.b16 %v970
      %v994 = vunpack.c.l.b16 %v971
      %v995 = vunpack.c.l.b16 %v972
      %v996 = vunpack.c.l.b16 %v973
      %v997 = vunpack.c.l.b16 %v974
      %v998 = vunpack.c.l.b16 %v975
      %v999 = vpack.c.b16 %v992, %v991
      %v1000 = vpack.c.b16 %v994, %v993
      %v1001 = vpack.c.b16 %v996, %v995
      %v1002 = vpack.c.b16 %v998, %v997
      %vm1007 = vcmask 523264
      %v1009 = vsel %vm1007, %v950, 0
      %v1012 = vsel %vm1007, %v951, 0
      %v1015 = vsel %vm1007, %v952, 0
      %v1018 = vsel %vm1007, %v953, 0
      %v1021 = vsel %vm1007, %v954, 0
      %v1024 = vsel %vm1007, %v955, 0
      %v1027 = vsel %vm1007, %v956, 0
      %v1030 = vsel %vm1007, %v957, 0
      %v1033 = vsel %vm1007, %v958, 0
      %v1036 = vsel %vm1007, %v959, 0
      %v1039 = vsel %vm1007, %v960, 0
      %v1042 = vsel %vm1007, %v961, 0
      %v1045 = vsel %vm1007, %v962, 0
      %v1048 = vsel %vm1007, %v963, 0
      %v1051 = vsel %vm1007, %v964, 0
      %v1054 = vsel %vm1007, %v965, 0
      %v1057 = vsel %vm1007, %v966, 0
      %v1060 = vsel %vm1007, %v967, 0
      %1062 = vmatprep.subr.bf16.mxu0 0
      %1063 = vmatpush1.bf16.msra.mxu0 %v999
      %1064 = vmatprep.subr.bf16.mxu0 0
      %1065 = vmatpush1.bf16.msra.mxu0 %v1000
      %1066 = vmatprep.subr.bf16.mxu0 0
      %1067 = vmatpush1.bf16.msra.mxu0 %v1001
      %1068 = vmatprep.subr.bf16.mxu0 0
      %1069 = vmatpush1.bf16.msra.mxu0 %v1002
      %1070 = vmatprep.subr.bf16.mxu0 0
      %1071 = vmatpush1.bf16.msra.mxu0 0
      %1072 = vmatprep.subr.bf16.mxu0 0
      %1073 = vmatpush1.bf16.msra.mxu0 0
      %1074 = vmatprep.subr.bf16.mxu0 0
      %1075 = vmatpush1.bf16.msra.mxu0 0
      %1076 = vmatprep.subr.bf16.mxu0 0
      %1077 = vmatpush1.bf16.msra.mxu0 0
      %1078 = vmatprep.subr.bf16.mxu0 0
      %1079 = vmatpush1.bf16.msra.mxu0 0
      %1080 = vmatprep.subr.bf16.mxu0 0
      %1081 = vmatpush1.bf16.msra.mxu0 0
      %1082 = vmatprep.subr.bf16.mxu0 0
      %1083 = vmatpush1.bf16.msra.mxu0 0
      %1084 = vmatprep.subr.bf16.mxu0 0
      %1085 = vmatpush1.bf16.msra.mxu0 0
      %1086 = vmatprep.subr.bf16.mxu0 0
      %1087 = vmatpush1.bf16.msra.mxu0 0
      %1088 = vmatprep.subr.bf16.mxu0 0
      %1089 = vmatpush1.bf16.msra.mxu0 0
      %1090 = vmatprep.subr.bf16.mxu0 0
      %1091 = vmatpush1.bf16.msra.mxu0 0
      %1092 = vmatprep.subr.bf16.mxu0 0
      %1093 = vmatpush1.bf16.msra.mxu0 0
      %1094 = vmatprep.mubr.bf16.mxu0 0
      %1095 = vmatmul.mubr.bf16.gmra.mrb[0].mxu0 %v1009
      %v1096 = vpop.f32.mrb[0].mxu0
      %v1097 = vadd.f32 %v981, %v1096
      %v1098 = vpop.f32.mrb[0].mxu0
      %v1099 = vpop.f32.mrb[0].mxu0
      %v1100 = vadd.f32 %v981, %v1099
      %v1101 = vpop.f32.mrb[0].mxu0
      %1102 = vmatprep.mubr.bf16.mxu0 0
      %1103 = vmatmul.mubr.bf16.gmra.mrb[0].mxu0 %v1012
      %v1104 = vpop.f32.mrb[0].mxu0
      %v1105 = vadd.f32 %v981, %v1104
      %v1106 = vpop.f32.mrb[0].mxu0
      %v1107 = vpop.f32.mrb[0].mxu0
      %v1108 = vadd.f32 %v981, %v1107
      %v1109 = vpop.f32.mrb[0].mxu0
      %1110 = vmatprep.mubr.bf16.mxu0 0
      %1111 = vmatmul.mubr.bf16.gmra.mrb[0].mxu0 %v1015
      %v1112 = vpop.f32.mrb[0].mxu0
      %v1113 = vadd.f32 %v981, %v1112
      %v1114 = vpop.f32.mrb[0].mxu0
      %v1115 = vpop.f32.mrb[0].mxu0
      %v1116 = vadd.f32 %v981, %v1115
      %v1117 = vpop.f32.mrb[0].mxu0
      %1118 = vmatprep.mubr.bf16.mxu0 0
      %1119 = vmatmul.mubr.bf16.gmra.mrb[0].mxu0 %v1018
      %v1120 = vpop.f32.mrb[0].mxu0
      %v1121 = vadd.f32 %v981, %v1120
      %v1122 = vpop.f32.mrb[0].mxu0
      %v1123 = vpop.f32.mrb[0].mxu0
      %v1124 = vadd.f32 %v981, %v1123
      %v1125 = vpop.f32.mrb[0].mxu0
      %1126 = vmatprep.mubr.bf16.mxu0 0
      %1127 = vmatmul.mubr.bf16.gmra.mrb[0].mxu0 %v1021
      %v1128 = vpop.f32.mrb[0].mxu0
      %v1129 = vadd.f32 %v981, %v1128
      %v1130 = vpop.f32.mrb[0].mxu0
      %v1131 = vpop.f32.mrb[0].mxu0
      %v1132 = vadd.f32 %v981, %v1131
      %v1133 = vpop.f32.mrb[0].mxu0
      %1134 = vmatprep.mubr.bf16.mxu0 0
      %1135 = vmatmul.mubr.bf16.gmra.mrb[0].mxu0 %v1024
      %v1136 = vpop.f32.mrb[0].mxu0
      %v1137 = vadd.f32 %v981, %v1136
      %v1138 = vpop.f32.mrb[0].mxu0
      %v1139 = vpop.f32.mrb[0].mxu0
      %v1140 = vadd.f32 %v981, %v1139
      %v1141 = vpop.f32.mrb[0].mxu0
      %1142 = vmatprep.mubr.bf16.mxu0 0
      %1143 = vmatmul.mubr.bf16.gmra.mrb[0].mxu0 %v1027
      %v1144 = vpop.f32.mrb[0].mxu0
      %v1145 = vadd.f32 %v981, %v1144
      %v1146 = vpop.f32.mrb[0].mxu0
      %v1147 = vpop.f32.mrb[0].mxu0
      %v1148 = vadd.f32 %v981, %v1147
      %v1149 = vpop.f32.mrb[0].mxu0
      %1150 = vmatprep.mubr.bf16.mxu0 0
      %1151 = vmatmul.mubr.bf16.gmra.mrb[0].mxu0 %v1030
      %v1152 = vpop.f32.mrb[0].mxu0
      %v1153 = vadd.f32 %v981, %v1152
      %v1154 = vpop.f32.mrb[0].mxu0
      %v1155 = vpop.f32.mrb[0].mxu0
      %v1156 = vadd.f32 %v981, %v1155
      %v1157 = vpop.f32.mrb[0].mxu0
      %1158 = vmatprep.mubr.bf16.mxu0 0
      %1159 = vmatmul.mubr.bf16.gmra.mrb[0].mxu0 %v1033
      %v1160 = vpop.f32.mrb[0].mxu0
      %v1161 = vadd.f32 %v981, %v1160
      %v1162 = vpop.f32.mrb[0].mxu0
      %v1163 = vpop.f32.mrb[0].mxu0
      %v1164 = vadd.f32 %v981, %v1163
      %v1165 = vpop.f32.mrb[0].mxu0
      %1166 = vmatprep.mubr.bf16.mxu0 0
      %1167 = vmatmul.mubr.bf16.gmra.mrb[0].mxu0 %v1036
      %v1168 = vpop.f32.mrb[0].mxu0
      %v1169 = vadd.f32 %v981, %v1168
      %v1170 = vpop.f32.mrb[0].mxu0
      %v1171 = vpop.f32.mrb[0].mxu0
      %v1172 = vadd.f32 %v981, %v1171
      %v1173 = vpop.f32.mrb[0].mxu0
      %1174 = vmatprep.mubr.bf16.mxu0 0
      %1175 = vmatmul.mubr.bf16.gmra.mrb[0].mxu0 %v1039
      %v1176 = vpop.f32.mrb[0].mxu0
      %v1177 = vadd.f32 %v981, %v1176
      %v1178 = vpop.f32.mrb[0].mxu0
      %v1179 = vpop.f32.mrb[0].mxu0
      %v1180 = vadd.f32 %v981, %v1179
      %v1181 = vpop.f32.mrb[0].mxu0
      %1182 = vmatprep.mubr.bf16.mxu0 0
      %1183 = vmatmul.mubr.bf16.gmra.mrb[0].mxu0 %v1042
      %v1184 = vpop.f32.mrb[0].mxu0
      %v1185 = vadd.f32 %v981, %v1184
      %v1186 = vpop.f32.mrb[0].mxu0
      %v1187 = vpop.f32.mrb[0].mxu0
      %v1188 = vadd.f32 %v981, %v1187
      %v1189 = vpop.f32.mrb[0].mxu0
      %1190 = vmatprep.mubr.bf16.mxu0 0
      %1191 = vmatmul.mubr.bf16.gmra.mrb[0].mxu0 %v1045
      %v1192 = vpop.f32.mrb[0].mxu0
      %v1193 = vadd.f32 %v981, %v1192
      %v1194 = vpop.f32.mrb[0].mxu0
      %v1195 = vpop.f32.mrb[0].mxu0
      %v1196 = vadd.f32 %v981, %v1195
      %v1197 = vpop.f32.mrb[0].mxu0
      %1198 = vmatprep.mubr.bf16.mxu0 0
      %1199 = vmatmul.mubr.bf16.gmra.mrb[0].mxu0 %v1048
      %v1200 = vpop.f32.mrb[0].mxu0
      %v1201 = vadd.f32 %v981, %v1200
      %v1202 = vpop.f32.mrb[0].mxu0
      %v1203 = vpop.f32.mrb[0].mxu0
      %v1204 = vadd.f32 %v981, %v1203
      %v1205 = vpop.f32.mrb[0].mxu0
      %1206 = vmatprep.mubr.bf16.mxu0 0
      %1207 = vmatmul.mubr.bf16.gmra.mrb[0].mxu0 %v1051
      %v1208 = vpop.f32.mrb[0].mxu0
      %v1209 = vadd.f32 %v981, %v1208
      %v1210 = vpop.f32.mrb[0].mxu0
      %v1211 = vpop.f32.mrb[0].mxu0
      %v1212 = vadd.f32 %v981, %v1211
      %v1213 = vpop.f32.mrb[0].mxu0
      %1214 = vmatprep.mubr.bf16.mxu0 0
      %1215 = vmatmul.mubr.bf16.gmra.mrb[0].mxu0 %v1054
      %v1216 = vpop.f32.mrb[0].mxu0
      %v1217 = vadd.f32 %v981, %v1216
      %v1218 = vpop.f32.mrb[0].mxu0
      %v1219 = vpop.f32.mrb[0].mxu0
      %v1220 = vadd.f32 %v981, %v1219
      %v1221 = vpop.f32.mrb[0].mxu0
      %1222 = vmatprep.mubr.bf16.mxu0 0
      %1223 = vmatmul.mubr.bf16.gmra.mrb[0].mxu0 %v1057
      %v1224 = vpop.f32.mrb[0].mxu0
      %v1225 = vadd.f32 %v981, %v1224
      %v1226 = vpop.f32.mrb[0].mxu0
      %v1227 = vpop.f32.mrb[0].mxu0
      %v1228 = vadd.f32 %v981, %v1227
      %v1229 = vpop.f32.mrb[0].mxu0
      %1230 = vmatprep.mubr.bf16.mxu0 0
      %1231 = vmatmul.mubr.bf16.gmra.mrb[0].mxu0 %v1060
      %v1232 = vpop.f32.mrb[0].mxu0
      %v1233 = vadd.f32 %v981, %v1232
      %v1234 = vpop.f32.mrb[0].mxu0
      %v1235 = vpop.f32.mrb[0].mxu0
      %v1236 = vadd.f32 %v981, %v1235
      %v1237 = vpop.f32.mrb[0].mxu0
      %1238 = vdwg.mxu0
      %v1239 = vld [vmem:[%s4] sm:$0x1]
      %v1240 = vld [vmem:[%s5] sm:$0x1]
      %vm1241 = vcmask 261120
      %v1242 = vsel %vm1241, %v1097, 0.0
      %1243 = vadd.xlane.f32.xlu0 %v1242
      %v1244 = vpop.xlane.xlu0 %1243
      %v1245 = vsel %vm1241, %v1100, 0.0
      %1246 = vadd.xlane.f32.xlu0 %v1245
      %v1247 = vpop.xlane.xlu0 %1246
      %v1248 = vsel %vm1241, %v1105, 0.0
      %1249 = vadd.xlane.f32.xlu0 %v1248
      %v1250 = vpop.xlane.xlu0 %1249
      %v1251 = vsel %vm1241, %v1108, 0.0
      %1252 = vadd.xlane.f32.xlu0 %v1251
      %v1253 = vpop.xlane.xlu0 %1252
      %v1254 = vsel %vm1241, %v1113, 0.0
      %1255 = vadd.xlane.f32.xlu0 %v1254
      %v1256 = vpop.xlane.xlu0 %1255
      %v1257 = vsel %vm1241, %v1116, 0.0
      %1258 = vadd.xlane.f32.xlu0 %v1257
      %v1259 = vpop.xlane.xlu0 %1258
      %v1260 = vsel %vm1241, %v1121, 0.0
      %1261 = vadd.xlane.f32.xlu0 %v1260
      %v1262 = vpop.xlane.xlu0 %1261
      %v1263 = vsel %vm1241, %v1124, 0.0
      %1264 = vadd.xlane.f32.xlu0 %v1263
      %v1265 = vpop.xlane.xlu0 %1264
      %v1266 = vsel %vm1241, %v1129, 0.0
      %1267 = vadd.xlane.f32.xlu0 %v1266
      %v1268 = vpop.xlane.xlu0 %1267
      %v1269 = vsel %vm1241, %v1132, 0.0
      %1270 = vadd.xlane.f32.xlu0 %v1269
      %v1271 = vpop.xlane.xlu0 %1270
      %v1272 = vsel %vm1241, %v1137, 0.0
      %1273 = vadd.xlane.f32.xlu0 %v1272
      %v1274 = vpop.xlane.xlu0 %1273
      %v1275 = vsel %vm1241, %v1140, 0.0
      %1276 = vadd.xlane.f32.xlu0 %v1275
      %v1277 = vpop.xlane.xlu0 %1276
      %v1278 = vsel %vm1241, %v1145, 0.0
      %1279 = vadd.xlane.f32.xlu0 %v1278
      %v1280 = vpop.xlane.xlu0 %1279
      %v1281 = vsel %vm1241, %v1148, 0.0
      %1282 = vadd.xlane.f32.xlu0 %v1281
      %v1283 = vpop.xlane.xlu0 %1282
      %v1284 = vsel %vm1241, %v1153, 0.0
      %1285 = vadd.xlane.f32.xlu0 %v1284
      %v1286 = vpop.xlane.xlu0 %1285
      %v1287 = vsel %vm1241, %v1156, 0.0
      %1288 = vadd.xlane.f32.xlu0 %v1287
      %v1289 = vpop.xlane.xlu0 %1288
      %v1290 = vsel %vm1241, %v1161, 0.0
      %1291 = vadd.xlane.f32.xlu0 %v1290
      %v1292 = vpop.xlane.xlu0 %1291
      %v1293 = vsel %vm1241, %v1164, 0.0
      %1294 = vadd.xlane.f32.xlu0 %v1293
      %v1295 = vpop.xlane.xlu0 %1294
      %v1296 = vsel %vm1241, %v1169, 0.0
      %1297 = vadd.xlane.f32.xlu0 %v1296
      %v1298 = vpop.xlane.xlu0 %1297
      %v1299 = vsel %vm1241, %v1172, 0.0
      %1300 = vadd.xlane.f32.xlu0 %v1299
      %v1301 = vpop.xlane.xlu0 %1300
      %v1302 = vsel %vm1241, %v1177, 0.0
      %1303 = vadd.xlane.f32.xlu0 %v1302
      %v1304 = vpop.xlane.xlu0 %1303
      %v1305 = vsel %vm1241, %v1180, 0.0
      %1306 = vadd.xlane.f32.xlu0 %v1305
      %v1307 = vpop.xlane.xlu0 %1306
      %v1308 = vsel %vm1241, %v1185, 0.0
      %1309 = vadd.xlane.f32.xlu0 %v1308
      %v1310 = vpop.xlane.xlu0 %1309
      %v1311 = vsel %vm1241, %v1188, 0.0
      %1312 = vadd.xlane.f32.xlu0 %v1311
      %v1313 = vpop.xlane.xlu0 %1312
      %v1314 = vsel %vm1241, %v1193, 0.0
      %1315 = vadd.xlane.f32.xlu0 %v1314
      %v1316 = vpop.xlane.xlu0 %1315
      %v1317 = vsel %vm1241, %v1196, 0.0
      %1318 = vadd.xlane.f32.xlu0 %v1317
      %v1319 = vpop.xlane.xlu0 %1318
      %v1320 = vsel %vm1241, %v1201, 0.0
      %1321 = vadd.xlane.f32.xlu0 %v1320
      %v1322 = vpop.xlane.xlu0 %1321
      %v1323 = vsel %vm1241, %v1204, 0.0
      %1324 = vadd.xlane.f32.xlu0 %v1323
      %v1325 = vpop.xlane.xlu0 %1324
      %v1326 = vsel %vm1241, %v1209, 0.0
      %1327 = vadd.xlane.f32.xlu0 %v1326
      %v1328 = vpop.xlane.xlu0 %1327
      %v1329 = vsel %vm1241, %v1212, 0.0
      %1330 = vadd.xlane.f32.xlu0 %v1329
      %v1331 = vpop.xlane.xlu0 %1330
      %v1332 = vsel %vm1241, %v1217, 0.0
      %1333 = vadd.xlane.f32.xlu0 %v1332
      %v1334 = vpop.xlane.xlu0 %1333
      %v1335 = vsel %vm1241, %v1220, 0.0
      %1336 = vadd.xlane.f32.xlu0 %v1335
      %v1337 = vpop.xlane.xlu0 %1336
      %v1338 = vsel %vm1241, %v1225, 0.0
      %1339 = vadd.xlane.f32.xlu0 %v1338
      %v1340 = vpop.xlane.xlu0 %1339
      %v1341 = vsel %vm1241, %v1228, 0.0
      %1342 = vadd.xlane.f32.xlu0 %v1341
      %v1343 = vpop.xlane.xlu0 %1342
      %v1344 = vsel %vm1241, %v1233, 0.0
      %1345 = vadd.xlane.f32.xlu0 %v1344
      %v1346 = vpop.xlane.xlu0 %1345
      %v1347 = vsel %vm1241, %v1236, 0.0
      %1348 = vadd.xlane.f32.xlu0 %v1347
      %v1349 = vpop.xlane.xlu0 %1348
      %v1350 = vrcp.pop 32.0
      %v1351 = vmul.f32 %v1244, %v1350
      %v1352 = vmul.f32 %v1247, %v1350
      %v1353 = vmul.f32 %v1250, %v1350
      %v1354 = vmul.f32 %v1253, %v1350
      %v1355 = vmul.f32 %v1256, %v1350
      %v1356 = vmul.f32 %v1259, %v1350
      %v1357 = vmul.f32 %v1262, %v1350
      %v1358 = vmul.f32 %v1265, %v1350
      %v1359 = vmul.f32 %v1268, %v1350
      %v1360 = vmul.f32 %v1271, %v1350
      %v1361 = vmul.f32 %v1274, %v1350
      %v1362 = vmul.f32 %v1277, %v1350
      %v1363 = vmul.f32 %v1280, %v1350
      %v1364 = vmul.f32 %v1283, %v1350
      %v1365 = vmul.f32 %v1286, %v1350
      %v1366 = vmul.f32 %v1289, %v1350
      %v1367 = vmul.f32 %v1292, %v1350
      %v1368 = vmul.f32 %v1295, %v1350
      %v1369 = vmul.f32 %v1298, %v1350
      %v1370 = vmul.f32 %v1301, %v1350
      %v1371 = vmul.f32 %v1304, %v1350
      %v1372 = vmul.f32 %v1307, %v1350
      %v1373 = vmul.f32 %v1310, %v1350
      %v1374 = vmul.f32 %v1313, %v1350
      %v1375 = vmul.f32 %v1316, %v1350
      %v1376 = vmul.f32 %v1319, %v1350
      %v1377 = vmul.f32 %v1322, %v1350
      %v1378 = vmul.f32 %v1325, %v1350
      %v1379 = vmul.f32 %v1328, %v1350
      %v1380 = vmul.f32 %v1331, %v1350
      %v1381 = vmul.f32 %v1334, %v1350
      %v1382 = vmul.f32 %v1337, %v1350
      %v1383 = vmul.f32 %v1340, %v1350
      %v1384 = vmul.f32 %v1343, %v1350
      %v1385 = vmul.f32 %v1346, %v1350
      %v1386 = vmul.f32 %v1349, %v1350
      %v1387 = vmul.f32 %v1097, %v1097
      %v1388 = vmul.f32 %v1100, %v1100
      %v1389 = vmul.f32 %v1105, %v1105
      %v1390 = vmul.f32 %v1108, %v1108
      %v1391 = vmul.f32 %v1113, %v1113
      %v1392 = vmul.f32 %v1116, %v1116
      %v1393 = vmul.f32 %v1121, %v1121
      %v1394 = vmul.f32 %v1124, %v1124
      %v1395 = vmul.f32 %v1129, %v1129
      %v1396 = vmul.f32 %v1132, %v1132
      %v1397 = vmul.f32 %v1137, %v1137
      %v1398 = vmul.f32 %v1140, %v1140
      %v1399 = vmul.f32 %v1145, %v1145
      %v1400 = vmul.f32 %v1148, %v1148
      %v1401 = vmul.f32 %v1153, %v1153
      %v1402 = vmul.f32 %v1156, %v1156
      %v1403 = vmul.f32 %v1161, %v1161
      %v1404 = vmul.f32 %v1164, %v1164
      %v1405 = vmul.f32 %v1169, %v1169
      %v1406 = vmul.f32 %v1172, %v1172
      %v1407 = vmul.f32 %v1177, %v1177
      %v1408 = vmul.f32 %v1180, %v1180
      %v1409 = vmul.f32 %v1185, %v1185
      %v1410 = vmul.f32 %v1188, %v1188
      %v1411 = vmul.f32 %v1193, %v1193
      %v1412 = vmul.f32 %v1196, %v1196
      %v1413 = vmul.f32 %v1201, %v1201
      %v1414 = vmul.f32 %v1204, %v1204
      %v1415 = vmul.f32 %v1209, %v1209
      %v1416 = vmul.f32 %v1212, %v1212
      %v1417 = vmul.f32 %v1217, %v1217
      %v1418 = vmul.f32 %v1220, %v1220
      %v1419 = vmul.f32 %v1225, %v1225
      %v1420 = vmul.f32 %v1228, %v1228
      %v1421 = vmul.f32 %v1233, %v1233
      %v1422 = vmul.f32 %v1236, %v1236
      %v1423 = vsel %vm1241, %v1387, 0.0
      %1424 = vadd.xlane.f32.xlu0 %v1423
      %v1425 = vpop.xlane.xlu0 %1424
      %v1426 = vsel %vm1241, %v1388, 0.0
      %1427 = vadd.xlane.f32.xlu0 %v1426
      %v1428 = vpop.xlane.xlu0 %1427
      %v1429 = vsel %vm1241, %v1389, 0.0
      %1430 = vadd.xlane.f32.xlu0 %v1429
      %v1431 = vpop.xlane.xlu0 %1430
      %v1432 = vsel %vm1241, %v1390, 0.0
      %1433 = vadd.xlane.f32.xlu0 %v1432
      %v1434 = vpop.xlane.xlu0 %1433
      %v1435 = vsel %vm1241, %v1391, 0.0
      %1436 = vadd.xlane.f32.xlu0 %v1435
      %v1437 = vpop.xlane.xlu0 %1436
      %v1438 = vsel %vm1241, %v1392, 0.0
      %1439 = vadd.xlane.f32.xlu0 %v1438
      %v1440 = vpop.xlane.xlu0 %1439
      %v1441 = vsel %vm1241, %v1393, 0.0
      %1442 = vadd.xlane.f32.xlu0 %v1441
      %v1443 = vpop.xlane.xlu0 %1442
      %v1444 = vsel %vm1241, %v1394, 0.0
      %1445 = vadd.xlane.f32.xlu0 %v1444
      %v1446 = vpop.xlane.xlu0 %1445
      %v1447 = vsel %vm1241, %v1395, 0.0
      %1448 = vadd.xlane.f32.xlu0 %v1447
      %v1449 = vpop.xlane.xlu0 %1448
      %v1450 = vsel %vm1241, %v1396, 0.0
      %1451 = vadd.xlane.f32.xlu0 %v1450
      %v1452 = vpop.xlane.xlu0 %1451
      %v1453 = vsel %vm1241, %v1397, 0.0
      %1454 = vadd.xlane.f32.xlu0 %v1453
      %v1455 = vpop.xlane.xlu0 %1454
      %v1456 = vsel %vm1241, %v1398, 0.0
      %1457 = vadd.xlane.f32.xlu0 %v1456
      %v1458 = vpop.xlane.xlu0 %1457
      %v1459 = vsel %vm1241, %v1399, 0.0
      %1460 = vadd.xlane.f32.xlu0 %v1459
      %v1461 = vpop.xlane.xlu0 %1460
      %v1462 = vsel %vm1241, %v1400, 0.0
      %1463 = vadd.xlane.f32.xlu0 %v1462
      %v1464 = vpop.xlane.xlu0 %1463
      %v1465 = vsel %vm1241, %v1401, 0.0
      %1466 = vadd.xlane.f32.xlu0 %v1465
      %v1467 = vpop.xlane.xlu0 %1466
      %v1468 = vsel %vm1241, %v1402, 0.0
      %1469 = vadd.xlane.f32.xlu0 %v1468
      %v1470 = vpop.xlane.xlu0 %1469
      %v1471 = vsel %vm1241, %v1403, 0.0
      %1472 = vadd.xlane.f32.xlu0 %v1471
      %v1473 = vpop.xlane.xlu0 %1472
      %v1474 = vsel %vm1241, %v1404, 0.0
      %1475 = vadd.xlane.f32.xlu0 %v1474
      %v1476 = vpop.xlane.xlu0 %1475
      %v1477 = vsel %vm1241, %v1405, 0.0
      %1478 = vadd.xlane.f32.xlu0 %v1477
      %v1479 = vpop.xlane.xlu0 %1478
      %v1480 = vsel %vm1241, %v1406, 0.0
      %1481 = vadd.xlane.f32.xlu0 %v1480
      %v1482 = vpop.xlane.xlu0 %1481
      %v1483 = vsel %vm1241, %v1407, 0.0
      %1484 = vadd.xlane.f32.xlu0 %v1483
      %v1485 = vpop.xlane.xlu0 %1484
      %v1486 = vsel %vm1241, %v1408, 0.0
      %1487 = vadd.xlane.f32.xlu0 %v1486
      %v1488 = vpop.xlane.xlu0 %1487
      %v1489 = vsel %vm1241, %v1409, 0.0
      %1490 = vadd.xlane.f32.xlu0 %v1489
      %v1491 = vpop.xlane.xlu0 %1490
      %v1492 = vsel %vm1241, %v1410, 0.0
      %1493 = vadd.xlane.f32.xlu0 %v1492
      %v1494 = vpop.xlane.xlu0 %1493
      %v1495 = vsel %vm1241, %v1411, 0.0
      %1496 = vadd.xlane.f32.xlu0 %v1495
      %v1497 = vpop.xlane.xlu0 %1496
      %v1498 = vsel %vm1241, %v1412, 0.0
      %1499 = vadd.xlane.f32.xlu0 %v1498
      %v1500 = vpop.xlane.xlu0 %1499
      %v1501 = vsel %vm1241, %v1413, 0.0
      %1502 = vadd.xlane.f32.xlu0 %v1501
      %v1503 = vpop.xlane.xlu0 %1502
      %v1504 = vsel %vm1241, %v1414, 0.0
      %1505 = vadd.xlane.f32.xlu0 %v1504
      %v1506 = vpop.xlane.xlu0 %1505
      %v1507 = vsel %vm1241, %v1415, 0.0
      %1508 = vadd.xlane.f32.xlu0 %v1507
      %v1509 = vpop.xlane.xlu0 %1508
      %v1510 = vsel %vm1241, %v1416, 0.0
      %1511 = vadd.xlane.f32.xlu0 %v1510
      %v1512 = vpop.xlane.xlu0 %1511
      %v1513 = vsel %vm1241, %v1417, 0.0
      %1514 = vadd.xlane.f32.xlu0 %v1513
      %v1515 = vpop.xlane.xlu0 %1514
      %v1516 = vsel %vm1241, %v1418, 0.0
      %1517 = vadd.xlane.f32.xlu0 %v1516
      %v1518 = vpop.xlane.xlu0 %1517
      %v1519 = vsel %vm1241, %v1419, 0.0
      %1520 = vadd.xlane.f32.xlu0 %v1519
      %v1521 = vpop.xlane.xlu0 %1520
      %v1522 = vsel %vm1241, %v1420, 0.0
      %1523 = vadd.xlane.f32.xlu0 %v1522
      %v1524 = vpop.xlane.xlu0 %1523
      %v1525 = vsel %vm1241, %v1421, 0.0
      %1526 = vadd.xlane.f32.xlu0 %v1525
      %v1527 = vpop.xlane.xlu0 %1526
      %v1528 = vsel %vm1241, %v1422, 0.0
      %1529 = vadd.xlane.f32.xlu0 %v1528
      %v1530 = vpop.xlane.xlu0 %1529
      %v1531 = vmul.f32 %v1425, %v1350
      %v1532 = vmul.f32 %v1428, %v1350
      %v1533 = vmul.f32 %v1431, %v1350
      %v1534 = vmul.f32 %v1434, %v1350
      %v1535 = vmul.f32 %v1437, %v1350
      %v1536 = vmul.f32 %v1440, %v1350
      %v1537 = vmul.f32 %v1443, %v1350
      %v1538 = vmul.f32 %v1446, %v1350
      %v1539 = vmul.f32 %v1449, %v1350
      %v1540 = vmul.f32 %v1452, %v1350
      %v1541 = vmul.f32 %v1455, %v1350
      %v1542 = vmul.f32 %v1458, %v1350
      %v1543 = vmul.f32 %v1461, %v1350
      %v1544 = vmul.f32 %v1464, %v1350
      %v1545 = vmul.f32 %v1467, %v1350
      %v1546 = vmul.f32 %v1470, %v1350
      %v1547 = vmul.f32 %v1473, %v1350
      %v1548 = vmul.f32 %v1476, %v1350
      %v1549 = vmul.f32 %v1479, %v1350
      %v1550 = vmul.f32 %v1482, %v1350
      %v1551 = vmul.f32 %v1485, %v1350
      %v1552 = vmul.f32 %v1488, %v1350
      %v1553 = vmul.f32 %v1491, %v1350
      %v1554 = vmul.f32 %v1494, %v1350
      %v1555 = vmul.f32 %v1497, %v1350
      %v1556 = vmul.f32 %v1500, %v1350
      %v1557 = vmul.f32 %v1503, %v1350
      %v1558 = vmul.f32 %v1506, %v1350
      %v1559 = vmul.f32 %v1509, %v1350
      %v1560 = vmul.f32 %v1512, %v1350
      %v1561 = vmul.f32 %v1515, %v1350
      %v1562 = vmul.f32 %v1518, %v1350
      %v1563 = vmul.f32 %v1521, %v1350
      %v1564 = vmul.f32 %v1524, %v1350
      %v1565 = vmul.f32 %v1527, %v1350
      %v1566 = vmul.f32 %v1530, %v1350
      %v1567 = vmul.f32 %v1351, %v1351
      %v1568 = vmul.f32 %v1352, %v1352
      %v1569 = vmul.f32 %v1353, %v1353
      %v1570 = vmul.f32 %v1354, %v1354
      %v1571 = vmul.f32 %v1355, %v1355
      %v1572 = vmul.f32 %v1356, %v1356
      %v1573 = vmul.f32 %v1357, %v1357
      %v1574 = vmul.f32 %v1358, %v1358
      %v1575 = vmul.f32 %v1359, %v1359
      %v1576 = vmul.f32 %v1360, %v1360
      %v1577 = vmul.f32 %v1361, %v1361
      %v1578 = vmul.f32 %v1362, %v1362
      %v1579 = vmul.f32 %v1363, %v1363
      %v1580 = vmul.f32 %v1364, %v1364
      %v1581 = vmul.f32 %v1365, %v1365
      %v1582 = vmul.f32 %v1366, %v1366
      %v1583 = vmul.f32 %v1367, %v1367
      %v1584 = vmul.f32 %v1368, %v1368
      %v1585 = vmul.f32 %v1369, %v1369
      %v1586 = vmul.f32 %v1370, %v1370
      %v1587 = vmul.f32 %v1371, %v1371
      %v1588 = vmul.f32 %v1372, %v1372
      %v1589 = vmul.f32 %v1373, %v1373
      %v1590 = vmul.f32 %v1374, %v1374
      %v1591 = vmul.f32 %v1375, %v1375
      %v1592 = vmul.f32 %v1376, %v1376
      %v1593 = vmul.f32 %v1377, %v1377
      %v1594 = vmul.f32 %v1378, %v1378
      %v1595 = vmul.f32 %v1379, %v1379
      %v1596 = vmul.f32 %v1380, %v1380
      %v1597 = vmul.f32 %v1381, %v1381
      %v1598 = vmul.f32 %v1382, %v1382
      %v1599 = vmul.f32 %v1383, %v1383
      %v1600 = vmul.f32 %v1384, %v1384
      %v1601 = vmul.f32 %v1385, %v1385
      %v1602 = vmul.f32 %v1386, %v1386
      %v1603 = vsub.f32 %v1531, %v1567
      %v1604 = vsub.f32 %v1532, %v1568
      %v1605 = vsub.f32 %v1533, %v1569
      %v1606 = vsub.f32 %v1534, %v1570
      %v1607 = vsub.f32 %v1535, %v1571
      %v1608 = vsub.f32 %v1536, %v1572
      %v1609 = vsub.f32 %v1537, %v1573
      %v1610 = vsub.f32 %v1538, %v1574
      %v1611 = vsub.f32 %v1539, %v1575
      %v1612 = vsub.f32 %v1540, %v1576
      %v1613 = vsub.f32 %v1541, %v1577
      %v1614 = vsub.f32 %v1542, %v1578
      %v1615 = vsub.f32 %v1543, %v1579
      %v1616 = vsub.f32 %v1544, %v1580
      %v1617 = vsub.f32 %v1545, %v1581
      %v1618 = vsub.f32 %v1546, %v1582
      %v1619 = vsub.f32 %v1547, %v1583
      %v1620 = vsub.f32 %v1548, %v1584
      %v1621 = vsub.f32 %v1549, %v1585
      %v1622 = vsub.f32 %v1550, %v1586
      %v1623 = vsub.f32 %v1551, %v1587
      %v1624 = vsub.f32 %v1552, %v1588
      %v1625 = vsub.f32 %v1553, %v1589
      %v1626 = vsub.f32 %v1554, %v1590
      %v1627 = vsub.f32 %v1555, %v1591
      %v1628 = vsub.f32 %v1556, %v1592
      %v1629 = vsub.f32 %v1557, %v1593
      %v1630 = vsub.f32 %v1558, %v1594
      %v1631 = vsub.f32 %v1559, %v1595
      %v1632 = vsub.f32 %v1560, %v1596
      %v1633 = vsub.f32 %v1561, %v1597
      %v1634 = vsub.f32 %v1562, %v1598
      %v1635 = vsub.f32 %v1563, %v1599
      %v1636 = vsub.f32 %v1564, %v1600
      %v1637 = vsub.f32 %v1565, %v1601
      %v1638 = vsub.f32 %v1566, %v1602
      %v1639 = vmax.f32 %v1603, 0.0
      %v1640 = vmax.f32 %v1604, 0.0
      %v1641 = vmax.f32 %v1605, 0.0
      %v1642 = vmax.f32 %v1606, 0.0
      %v1643 = vmax.f32 %v1607, 0.0
      %v1644 = vmax.f32 %v1608, 0.0
      %v1645 = vmax.f32 %v1609, 0.0
      %v1646 = vmax.f32 %v1610, 0.0
      %v1647 = vmax.f32 %v1611, 0.0
      %v1648 = vmax.f32 %v1612, 0.0
      %v1649 = vmax.f32 %v1613, 0.0
      %v1650 = vmax.f32 %v1614, 0.0
      %v1651 = vmax.f32 %v1615, 0.0
      %v1652 = vmax.f32 %v1616, 0.0
      %v1653 = vmax.f32 %v1617, 0.0
      %v1654 = vmax.f32 %v1618, 0.0
      %v1655 = vmax.f32 %v1619, 0.0
      %v1656 = vmax.f32 %v1620, 0.0
      %v1657 = vmax.f32 %v1621, 0.0
      %v1658 = vmax.f32 %v1622, 0.0
      %v1659 = vmax.f32 %v1623, 0.0
      %v1660 = vmax.f32 %v1624, 0.0
      %v1661 = vmax.f32 %v1625, 0.0
      %v1662 = vmax.f32 %v1626, 0.0
      %v1663 = vmax.f32 %v1627, 0.0
      %v1664 = vmax.f32 %v1628, 0.0
      %v1665 = vmax.f32 %v1629, 0.0
      %v1666 = vmax.f32 %v1630, 0.0
      %v1667 = vmax.f32 %v1631, 0.0
      %v1668 = vmax.f32 %v1632, 0.0
      %v1669 = vmax.f32 %v1633, 0.0
      %v1670 = vmax.f32 %v1634, 0.0
      %v1671 = vmax.f32 %v1635, 0.0
      %v1672 = vmax.f32 %v1636, 0.0
      %v1673 = vmax.f32 %v1637, 0.0
      %v1674 = vmax.f32 %v1638, 0.0
      %v1675 = vsub.f32 %v1097, %v1351
      %v1676 = vsub.f32 %v1100, %v1352
      %v1677 = vsub.f32 %v1105, %v1353
      %v1678 = vsub.f32 %v1108, %v1354
      %v1679 = vsub.f32 %v1113, %v1355
      %v1680 = vsub.f32 %v1116, %v1356
      %v1681 = vsub.f32 %v1121, %v1357
      %v1682 = vsub.f32 %v1124, %v1358
      %v1683 = vsub.f32 %v1129, %v1359
      %v1684 = vsub.f32 %v1132, %v1360
      %v1685 = vsub.f32 %v1137, %v1361
      %v1686 = vsub.f32 %v1140, %v1362
      %v1687 = vsub.f32 %v1145, %v1363
      %v1688 = vsub.f32 %v1148, %v1364
      %v1689 = vsub.f32 %v1153, %v1365
      %v1690 = vsub.f32 %v1156, %v1366
      %v1691 = vsub.f32 %v1161, %v1367
      %v1692 = vsub.f32 %v1164, %v1368
      %v1693 = vsub.f32 %v1169, %v1369
      %v1694 = vsub.f32 %v1172, %v1370
      %v1695 = vsub.f32 %v1177, %v1371
      %v1696 = vsub.f32 %v1180, %v1372
      %v1697 = vsub.f32 %v1185, %v1373
      %v1698 = vsub.f32 %v1188, %v1374
      %v1699 = vsub.f32 %v1193, %v1375
      %v1700 = vsub.f32 %v1196, %v1376
      %v1701 = vsub.f32 %v1201, %v1377
      %v1702 = vsub.f32 %v1204, %v1378
      %v1703 = vsub.f32 %v1209, %v1379
      %v1704 = vsub.f32 %v1212, %v1380
      %v1705 = vsub.f32 %v1217, %v1381
      %v1706 = vsub.f32 %v1220, %v1382
      %v1707 = vsub.f32 %v1225, %v1383
      %v1708 = vsub.f32 %v1228, %v1384
      %v1709 = vsub.f32 %v1233, %v1385
      %v1710 = vsub.f32 %v1236, %v1386
      %v1711 = vadd.f32 %v1639, 1e-05
      %v1712 = vadd.f32 %v1640, 1e-05
      %v1713 = vadd.f32 %v1641, 1e-05
      %v1714 = vadd.f32 %v1642, 1e-05
      %v1715 = vadd.f32 %v1643, 1e-05
      %v1716 = vadd.f32 %v1644, 1e-05
      %v1717 = vadd.f32 %v1645, 1e-05
      %v1718 = vadd.f32 %v1646, 1e-05
      %v1719 = vadd.f32 %v1647, 1e-05
      %v1720 = vadd.f32 %v1648, 1e-05
      %v1721 = vadd.f32 %v1649, 1e-05
      %v1722 = vadd.f32 %v1650, 1e-05
      %v1723 = vadd.f32 %v1651, 1e-05
      %v1724 = vadd.f32 %v1652, 1e-05
      %v1725 = vadd.f32 %v1653, 1e-05
      %v1726 = vadd.f32 %v1654, 1e-05
      %v1727 = vadd.f32 %v1655, 1e-05
      %v1728 = vadd.f32 %v1656, 1e-05
      %v1729 = vadd.f32 %v1657, 1e-05
      %v1730 = vadd.f32 %v1658, 1e-05
      %v1731 = vadd.f32 %v1659, 1e-05
      %v1732 = vadd.f32 %v1660, 1e-05
      %v1733 = vadd.f32 %v1661, 1e-05
      %v1734 = vadd.f32 %v1662, 1e-05
      %v1735 = vadd.f32 %v1663, 1e-05
      %v1736 = vadd.f32 %v1664, 1e-05
      %v1737 = vadd.f32 %v1665, 1e-05
      %v1738 = vadd.f32 %v1666, 1e-05
      %v1739 = vadd.f32 %v1667, 1e-05
      %v1740 = vadd.f32 %v1668, 1e-05
      %v1741 = vadd.f32 %v1669, 1e-05
      %v1742 = vadd.f32 %v1670, 1e-05
      %v1743 = vadd.f32 %v1671, 1e-05
      %v1744 = vadd.f32 %v1672, 1e-05
      %v1745 = vadd.f32 %v1673, 1e-05
      %v1746 = vadd.f32 %v1674, 1e-05
      %v1747 = vrsqrt.pop %v1711
      %v1748 = vrsqrt.pop %v1712
      %v1749 = vrsqrt.pop %v1713
      %v1750 = vrsqrt.pop %v1714
      %v1751 = vrsqrt.pop %v1715
      %v1752 = vrsqrt.pop %v1716
      %v1753 = vrsqrt.pop %v1717
      %v1754 = vrsqrt.pop %v1718
      %v1755 = vrsqrt.pop %v1719
      %v1756 = vrsqrt.pop %v1720
      %v1757 = vrsqrt.pop %v1721
      %v1758 = vrsqrt.pop %v1722
      %v1759 = vrsqrt.pop %v1723
      %v1760 = vrsqrt.pop %v1724
      %v1761 = vrsqrt.pop %v1725
      %v1762 = vrsqrt.pop %v1726
      %v1763 = vrsqrt.pop %v1727
      %v1764 = vrsqrt.pop %v1728
      %v1765 = vrsqrt.pop %v1729
      %v1766 = vrsqrt.pop %v1730
      %v1767 = vrsqrt.pop %v1731
      %v1768 = vrsqrt.pop %v1732
      %v1769 = vrsqrt.pop %v1733
      %v1770 = vrsqrt.pop %v1734
      %v1771 = vrsqrt.pop %v1735
      %v1772 = vrsqrt.pop %v1736
      %v1773 = vrsqrt.pop %v1737
      %v1774 = vrsqrt.pop %v1738
      %v1775 = vrsqrt.pop %v1739
      %v1776 = vrsqrt.pop %v1740
      %v1777 = vrsqrt.pop %v1741
      %v1778 = vrsqrt.pop %v1742
      %v1779 = vrsqrt.pop %v1743
      %v1780 = vrsqrt.pop %v1744
      %v1781 = vrsqrt.pop %v1745
      %v1782 = vrsqrt.pop %v1746
      %v1783 = vmul.f32 %v1675, %v1747
      %v1784 = vmul.f32 %v1676, %v1748
      %v1785 = vmul.f32 %v1677, %v1749
      %v1786 = vmul.f32 %v1678, %v1750
      %v1787 = vmul.f32 %v1679, %v1751
      %v1788 = vmul.f32 %v1680, %v1752
      %v1789 = vmul.f32 %v1681, %v1753
      %v1790 = vmul.f32 %v1682, %v1754
      %v1791 = vmul.f32 %v1683, %v1755
      %v1792 = vmul.f32 %v1684, %v1756
      %v1793 = vmul.f32 %v1685, %v1757
      %v1794 = vmul.f32 %v1686, %v1758
      %v1795 = vmul.f32 %v1687, %v1759
      %v1796 = vmul.f32 %v1688, %v1760
      %v1797 = vmul.f32 %v1689, %v1761
      %v1798 = vmul.f32 %v1690, %v1762
      %v1799 = vmul.f32 %v1691, %v1763
      %v1800 = vmul.f32 %v1692, %v1764
      %v1801 = vmul.f32 %v1693, %v1765
      %v1802 = vmul.f32 %v1694, %v1766
      %v1803 = vmul.f32 %v1695, %v1767
      %v1804 = vmul.f32 %v1696, %v1768
      %v1805 = vmul.f32 %v1697, %v1769
      %v1806 = vmul.f32 %v1698, %v1770
      %v1807 = vmul.f32 %v1699, %v1771
      %v1808 = vmul.f32 %v1700, %v1772
      %v1809 = vmul.f32 %v1701, %v1773
      %v1810 = vmul.f32 %v1702, %v1774
      %v1811 = vmul.f32 %v1703, %v1775
      %v1812 = vmul.f32 %v1704, %v1776
      %v1813 = vmul.f32 %v1705, %v1777
      %v1814 = vmul.f32 %v1706, %v1778
      %v1815 = vmul.f32 %v1707, %v1779
      %v1816 = vmul.f32 %v1708, %v1780
      %v1817 = vmul.f32 %v1709, %v1781
      %v1818 = vmul.f32 %v1710, %v1782
      %v1820 = vlaneseq
      %v1821 = vshrl.u32 %v1820, 7
      %v1822 = vsub.s32 0, %v1821
      %v1823 = vrot.slane %v1239, %v1822
      %v1825 = vmul.f32 %v1783, %v1823
      %v1826 = vmul.f32 %v1784, %v1823
      %v1827 = vmul.f32 %v1785, %v1823
      %v1828 = vmul.f32 %v1786, %v1823
      %v1829 = vmul.f32 %v1787, %v1823
      %v1830 = vmul.f32 %v1788, %v1823
      %v1831 = vmul.f32 %v1789, %v1823
      %v1832 = vmul.f32 %v1790, %v1823
      %v1833 = vmul.f32 %v1791, %v1823
      %v1834 = vmul.f32 %v1792, %v1823
      %v1835 = vmul.f32 %v1793, %v1823
      %v1836 = vmul.f32 %v1794, %v1823
      %v1837 = vmul.f32 %v1795, %v1823
      %v1838 = vmul.f32 %v1796, %v1823
      %v1839 = vmul.f32 %v1797, %v1823
      %v1840 = vmul.f32 %v1798, %v1823
      %v1841 = vmul.f32 %v1799, %v1823
      %v1842 = vmul.f32 %v1800, %v1823
      %v1843 = vmul.f32 %v1801, %v1823
      %v1844 = vmul.f32 %v1802, %v1823
      %v1845 = vmul.f32 %v1803, %v1823
      %v1846 = vmul.f32 %v1804, %v1823
      %v1847 = vmul.f32 %v1805, %v1823
      %v1848 = vmul.f32 %v1806, %v1823
      %v1849 = vmul.f32 %v1807, %v1823
      %v1850 = vmul.f32 %v1808, %v1823
      %v1851 = vmul.f32 %v1809, %v1823
      %v1852 = vmul.f32 %v1810, %v1823
      %v1853 = vmul.f32 %v1811, %v1823
      %v1854 = vmul.f32 %v1812, %v1823
      %v1855 = vmul.f32 %v1813, %v1823
      %v1856 = vmul.f32 %v1814, %v1823
      %v1857 = vmul.f32 %v1815, %v1823
      %v1858 = vmul.f32 %v1816, %v1823
      %v1859 = vmul.f32 %v1817, %v1823
      %v1860 = vmul.f32 %v1818, %v1823
      %v1862 = vlaneseq
      %v1863 = vshrl.u32 %v1862, 7
      %v1864 = vsub.s32 0, %v1863
      %v1865 = vrot.slane %v1240, %v1864
      %v1867 = vadd.f32 %v1825, %v1865
      %v1868 = vadd.f32 %v1826, %v1865
      %v1869 = vadd.f32 %v1827, %v1865
      %v1870 = vadd.f32 %v1828, %v1865
      %v1871 = vadd.f32 %v1829, %v1865
      %v1872 = vadd.f32 %v1830, %v1865
      %v1873 = vadd.f32 %v1831, %v1865
      %v1874 = vadd.f32 %v1832, %v1865
      %v1875 = vadd.f32 %v1833, %v1865
      %v1876 = vadd.f32 %v1834, %v1865
      %v1877 = vadd.f32 %v1835, %v1865
      %v1878 = vadd.f32 %v1836, %v1865
      %v1879 = vadd.f32 %v1837, %v1865
      %v1880 = vadd.f32 %v1838, %v1865
      %v1881 = vadd.f32 %v1839, %v1865
      %v1882 = vadd.f32 %v1840, %v1865
      %v1883 = vadd.f32 %v1841, %v1865
      %v1884 = vadd.f32 %v1842, %v1865
      %v1885 = vadd.f32 %v1843, %v1865
      %v1886 = vadd.f32 %v1844, %v1865
      %v1887 = vadd.f32 %v1845, %v1865
      %v1888 = vadd.f32 %v1846, %v1865
      %v1889 = vadd.f32 %v1847, %v1865
      %v1890 = vadd.f32 %v1848, %v1865
      %v1891 = vadd.f32 %v1849, %v1865
      %v1892 = vadd.f32 %v1850, %v1865
      %v1893 = vadd.f32 %v1851, %v1865
      %v1894 = vadd.f32 %v1852, %v1865
      %v1895 = vadd.f32 %v1853, %v1865
      %v1896 = vadd.f32 %v1854, %v1865
      %v1897 = vadd.f32 %v1855, %v1865
      %v1898 = vadd.f32 %v1856, %v1865
      %v1899 = vadd.f32 %v1857, %v1865
      %v1900 = vadd.f32 %v1858, %v1865
      %v1901 = vadd.f32 %v1859, %v1865
      %v1902 = vadd.f32 %v1860, %v1865
      // Predicated region
      $region93: #{tpu_custom_call.1} parent=91 // pred_check
        %p1903 = pneg %p949
      $region94: #{tpu_custom_call.1} parent=91 // pred_check_branch
        %1905 = sbr.rel (%p1903) target = $region96
      $region95: #{tpu_custom_call.1} parent=91 // pred_region
        %v1906 = vmul.f32 %v1867, %v908
        %v1907 = vmul.f32 %v1868, %v909
        %v1908 = vmul.f32 %v1869, %v910
        %v1909 = vmul.f32 %v1870, %v911
        %v1910 = vmul.f32 %v1871, %v912
        %v1911 = vmul.f32 %v1872, %v913
        %v1912 = vmul.f32 %v1873, %v914
        %v1913 = vmul.f32 %v1874, %v915
        %v1914 = vmul.f32 %v1875, %v916
        %v1915 = vmul.f32 %v1876, %v917
        %v1916 = vmul.f32 %v1877, %v918
        %v1917 = vmul.f32 %v1878, %v919
        %v1918 = vmul.f32 %v1879, %v920
        %v1919 = vmul.f32 %v1880, %v921
        %v1920 = vmul.f32 %v1881, %v922
        %v1921 = vmul.f32 %v1882, %v923
        %v1922 = vmul.f32 %v1883, %v924
        %v1923 = vmul.f32 %v1884, %v925
        %v1924 = vmul.f32 %v1885, %v926
        %v1925 = vmul.f32 %v1886, %v927
        %v1926 = vmul.f32 %v1887, %v928
        %v1927 = vmul.f32 %v1888, %v929
        %v1928 = vmul.f32 %v1889, %v930
        %v1929 = vmul.f32 %v1890, %v931
        %v1930 = vmul.f32 %v1891, %v932
        %v1931 = vmul.f32 %v1892, %v933
        %v1932 = vmul.f32 %v1893, %v934
        %v1933 = vmul.f32 %v1894, %v935
        %v1934 = vmul.f32 %v1895, %v936
        %v1935 = vmul.f32 %v1896, %v937
        %v1936 = vmul.f32 %v1897, %v938
        %v1937 = vmul.f32 %v1898, %v939
        %v1938 = vmul.f32 %v1899, %v940
        %v1939 = vmul.f32 %v1900, %v941
        %v1940 = vmul.f32 %v1901, %v942
        %v1941 = vmul.f32 %v1902, %v943
      $region96: #{tpu_custom_call.1} parent=91 // pred_fallthru
        %v1942 = vphi 0, %v1906
        %v1943 = vphi 0, %v1907
        %v1944 = vphi 0, %v1908
        %v1945 = vphi 0, %v1909
        %v1946 = vphi 0, %v1910
        %v1947 = vphi 0, %v1911
        %v1948 = vphi 0, %v1912
        %v1949 = vphi 0, %v1913
        %v1950 = vphi 0, %v1914
        %v1951 = vphi 0, %v1915
        %v1952 = vphi 0, %v1916
        %v1953 = vphi 0, %v1917
        %v1954 = vphi 0, %v1918
        %v1955 = vphi 0, %v1919
        %v1956 = vphi 0, %v1920
        %v1957 = vphi 0, %v1921
        %v1958 = vphi 0, %v1922
        %v1959 = vphi 0, %v1923
        %v1960 = vphi 0, %v1924
        %v1961 = vphi 0, %v1925
        %v1962 = vphi 0, %v1926
        %v1963 = vphi 0, %v1927
        %v1964 = vphi 0, %v1928
        %v1965 = vphi 0, %v1929
        %v1966 = vphi 0, %v1930
        %v1967 = vphi 0, %v1931
        %v1968 = vphi 0, %v1932
        %v1969 = vphi 0, %v1933
        %v1970 = vphi 0, %v1934
        %v1971 = vphi 0, %v1935
        %v1972 = vphi 0, %v1936
        %v1973 = vphi 0, %v1937
        %v1974 = vphi 0, %v1938
        %v1975 = vphi 0, %v1939
        %v1976 = vphi 0, %v1940
        %v1977 = vphi 0, %v1941
      %p1978 = pneg %p949
      // Predicated region
      $region97: #{tpu_custom_call.1} parent=91 // pred_check
        _
      $region98: #{tpu_custom_call.1} parent=91 // pred_check_branch
        %1980 = sbr.rel (%p949) target = $region100
      $region99: #{tpu_custom_call.1} parent=91 // pred_region
        _
      $region100: #{tpu_custom_call.1} parent=91 // pred_fallthru
        %v1981 = vphi %v1942, %v1867
        %v1982 = vphi %v1943, %v1868
        %v1983 = vphi %v1944, %v1869
        %v1984 = vphi %v1945, %v1870
        %v1985 = vphi %v1946, %v1871
        %v1986 = vphi %v1947, %v1872
        %v1987 = vphi %v1948, %v1873
        %v1988 = vphi %v1949, %v1874
        %v1989 = vphi %v1950, %v1875
        %v1990 = vphi %v1951, %v1876
        %v1991 = vphi %v1952, %v1877
        %v1992 = vphi %v1953, %v1878
        %v1993 = vphi %v1954, %v1879
        %v1994 = vphi %v1955, %v1880
        %v1995 = vphi %v1956, %v1881
        %v1996 = vphi %v1957, %v1882
        %v1997 = vphi %v1958, %v1883
        %v1998 = vphi %v1959, %v1884
        %v1999 = vphi %v1960, %v1885
        %v2000 = vphi %v1961, %v1886
        %v2001 = vphi %v1962, %v1887
        %v2002 = vphi %v1963, %v1888
        %v2003 = vphi %v1964, %v1889
        %v2004 = vphi %v1965, %v1890
        %v2005 = vphi %v1966, %v1891
        %v2006 = vphi %v1967, %v1892
        %v2007 = vphi %v1968, %v1893
        %v2008 = vphi %v1969, %v1894
        %v2009 = vphi %v1970, %v1895
        %v2010 = vphi %v1971, %v1896
        %v2011 = vphi %v1972, %v1897
        %v2012 = vphi %v1973, %v1898
        %v2013 = vphi %v1974, %v1899
        %v2014 = vphi %v1975, %v1900
        %v2015 = vphi %v1976, %v1901
        %v2016 = vphi %v1977, %v1902
      %v2017 = vld [vmem:[%s6] sm:$0x7f]
      %v2018 = vlaneseq
      %v2019 = vshrl.u32 %v2018, 7
      %v2020 = vsub.s32 3, %v2019
      %v2021 = vrot.slane %v2017, %v2020
      %v2022 = vmul.f32 %v1981, %v2021
      %v2023 = vmul.f32 %v1982, %v2021
      %v2024 = vmul.f32 %v1983, %v2021
      %v2025 = vmul.f32 %v1984, %v2021
      %v2026 = vmul.f32 %v1985, %v2021
      %v2027 = vmul.f32 %v1986, %v2021
      %v2028 = vmul.f32 %v1987, %v2021
      %v2029 = vmul.f32 %v1988, %v2021
      %v2030 = vmul.f32 %v1989, %v2021
      %v2031 = vmul.f32 %v1990, %v2021
      %v2032 = vmul.f32 %v1991, %v2021
      %v2033 = vmul.f32 %v1992, %v2021
      %v2034 = vmul.f32 %v1993, %v2021
      %v2035 = vmul.f32 %v1994, %v2021
      %v2036 = vmul.f32 %v1995, %v2021
      %v2037 = vmul.f32 %v1996, %v2021
      %v2038 = vmul.f32 %v1997, %v2021
      %v2039 = vmul.f32 %v1998, %v2021
      %v2040 = vmul.f32 %v1999, %v2021
      %v2041 = vmul.f32 %v2000, %v2021
      %v2042 = vmul.f32 %v2001, %v2021
      %v2043 = vmul.f32 %v2002, %v2021
      %v2044 = vmul.f32 %v2003, %v2021
      %v2045 = vmul.f32 %v2004, %v2021
      %v2046 = vmul.f32 %v2005, %v2021
      %v2047 = vmul.f32 %v2006, %v2021
      %v2048 = vmul.f32 %v2007, %v2021
      %v2049 = vmul.f32 %v2008, %v2021
      %v2050 = vmul.f32 %v2009, %v2021
      %v2051 = vmul.f32 %v2010, %v2021
      %v2052 = vmul.f32 %v2011, %v2021
      %v2053 = vmul.f32 %v2012, %v2021
      %v2054 = vmul.f32 %v2013, %v2021
      %v2055 = vmul.f32 %v2014, %v2021
      %v2056 = vmul.f32 %v2015, %v2021
      %v2057 = vmul.f32 %v2016, %v2021
      %v2058 = vrot.slane %v1981, 5
      %v2059 = vrot.slane %v1982, 5
      %v2060 = vrot.slane %v1983, 5
      %v2061 = vrot.slane %v1984, 5
      %v2062 = vrot.slane %v1985, 5
      %v2063 = vrot.slane %v1986, 5
      %v2064 = vrot.slane %v1987, 5
      %v2065 = vrot.slane %v1988, 5
      %v2066 = vrot.slane %v1989, 5
      %v2067 = vrot.slane %v1990, 5
      %v2068 = vrot.slane %v1991, 5
      %v2069 = vrot.slane %v1992, 5
      %v2070 = vrot.slane %v1993, 5
      %v2071 = vrot.slane %v1994, 5
      %v2072 = vrot.slane %v1995, 5
      %v2073 = vrot.slane %v1996, 5
      %v2074 = vrot.slane %v1997, 5
      %v2075 = vrot.slane %v1998, 5
      %v2076 = vrot.slane %v1999, 5
      %v2077 = vrot.slane %v2000, 5
      %v2078 = vrot.slane %v2001, 5
      %v2079 = vrot.slane %v2002, 5
      %v2080 = vrot.slane %v2003, 5
      %v2081 = vrot.slane %v2004, 5
      %v2082 = vrot.slane %v2005, 5
      %v2083 = vrot.slane %v2006, 5
      %v2084 = vrot.slane %v2007, 5
      %v2085 = vrot.slane %v2008, 5
      %v2086 = vrot.slane %v2009, 5
      %v2087 = vrot.slane %v2010, 5
      %v2088 = vrot.slane %v2011, 5
      %v2089 = vrot.slane %v2012, 5
      %v2090 = vrot.slane %v2013, 5
      %v2091 = vrot.slane %v2014, 5
      %v2092 = vrot.slane %v2015, 5
      %v2093 = vrot.slane %v2016, 5
      %vm2094 = vcmp.lt.s32.totalorder %v691, 3
      %v2095 = vsel %vm2094, %v2092, %v2093
      %v2096 = vsel %vm2094, %v2091, %v2092
      %v2097 = vsel %vm2094, %v2090, %v2091
      %v2098 = vsel %vm2094, %v2089, %v2090
      %v2099 = vsel %vm2094, %v2088, %v2089
      %v2100 = vsel %vm2094, %v2087, %v2088
      %v2101 = vsel %vm2094, %v2086, %v2087
      %v2102 = vsel %vm2094, %v2085, %v2086
      %v2103 = vsel %vm2094, %v2084, %v2085
      %v2104 = vsel %vm2094, %v2083, %v2084
      %v2105 = vsel %vm2094, %v2082, %v2083
      %v2106 = vsel %vm2094, %v2081, %v2082
      %v2107 = vsel %vm2094, %v2080, %v2081
      %v2108 = vsel %vm2094, %v2079, %v2080
      %v2109 = vsel %vm2094, %v2078, %v2079
      %v2110 = vsel %vm2094, %v2077, %v2078
      %v2111 = vsel %vm2094, %v2076, %v2077
      %v2112 = vsel %vm2094, %v2075, %v2076
      %v2113 = vsel %vm2094, %v2074, %v2075
      %v2114 = vsel %vm2094, %v2073, %v2074
      %v2115 = vsel %vm2094, %v2072, %v2073
      %v2116 = vsel %vm2094, %v2071, %v2072
      %v2117 = vsel %vm2094, %v2070, %v2071
      %v2118 = vsel %vm2094, %v2069, %v2070
      %v2119 = vsel %vm2094, %v2068, %v2069
      %v2120 = vsel %vm2094, %v2067, %v2068
      %v2121 = vsel %vm2094, %v2066, %v2067
      %v2122 = vsel %vm2094, %v2065, %v2066
      %v2123 = vsel %vm2094, %v2064, %v2065
      %v2124 = vsel %vm2094, %v2063, %v2064
      %v2125 = vsel %vm2094, %v2062, %v2063
      %v2126 = vsel %vm2094, %v2061, %v2062
      %v2127 = vsel %vm2094, %v2060, %v2061
      %v2128 = vsel %vm2094, %v2059, %v2060
      %v2129 = vsel %vm2094, %v2058, %v2059
      %v2130 = vsel %vm2094, %v2093, %v2058
      %v2131 = vlaneseq
      %v2132 = vshrl.u32 %v2131, 7
      %v2133 = vsub.s32 0, %v2132
      %v2134 = vrot.slane %v2017, %v2133
      %v2135 = vmul.f32 %v2130, %v2134
      %v2136 = vmul.f32 %v2129, %v2134
      %v2137 = vmul.f32 %v2128, %v2134
      %v2138 = vmul.f32 %v2127, %v2134
      %v2139 = vmul.f32 %v2126, %v2134
      %v2140 = vmul.f32 %v2125, %v2134
      %v2141 = vmul.f32 %v2124, %v2134
      %v2142 = vmul.f32 %v2123, %v2134
      %v2143 = vmul.f32 %v2122, %v2134
      %v2144 = vmul.f32 %v2121, %v2134
      %v2145 = vmul.f32 %v2120, %v2134
      %v2146 = vmul.f32 %v2119, %v2134
      %v2147 = vmul.f32 %v2118, %v2134
      %v2148 = vmul.f32 %v2117, %v2134
      %v2149 = vmul.f32 %v2116, %v2134
      %v2150 = vmul.f32 %v2115, %v2134
      %v2151 = vmul.f32 %v2114, %v2134
      %v2152 = vmul.f32 %v2113, %v2134
      %v2153 = vmul.f32 %v2112, %v2134
      %v2154 = vmul.f32 %v2111, %v2134
      %v2155 = vmul.f32 %v2110, %v2134
      %v2156 = vmul.f32 %v2109, %v2134
      %v2157 = vmul.f32 %v2108, %v2134
      %v2158 = vmul.f32 %v2107, %v2134
      %v2159 = vmul.f32 %v2106, %v2134
      %v2160 = vmul.f32 %v2105, %v2134
      %v2161 = vmul.f32 %v2104, %v2134
      %v2162 = vmul.f32 %v2103, %v2134
      %v2163 = vmul.f32 %v2102, %v2134
      %v2164 = vmul.f32 %v2101, %v2134
      %v2165 = vmul.f32 %v2100, %v2134
      %v2166 = vmul.f32 %v2099, %v2134
      %v2167 = vmul.f32 %v2098, %v2134
      %v2168 = vmul.f32 %v2097, %v2134
      %v2169 = vmul.f32 %v2096, %v2134
      %v2170 = vmul.f32 %v2095, %v2134
      %v2171 = vadd.f32 %v2022, %v2135
      %v2172 = vadd.f32 %v2023, %v2136
      %v2173 = vadd.f32 %v2024, %v2137
      %v2174 = vadd.f32 %v2025, %v2138
      %v2175 = vadd.f32 %v2026, %v2139
      %v2176 = vadd.f32 %v2027, %v2140
      %v2177 = vadd.f32 %v2028, %v2141
      %v2178 = vadd.f32 %v2029, %v2142
      %v2179 = vadd.f32 %v2030, %v2143
      %v2180 = vadd.f32 %v2031, %v2144
      %v2181 = vadd.f32 %v2032, %v2145
      %v2182 = vadd.f32 %v2033, %v2146
      %v2183 = vadd.f32 %v2034, %v2147
      %v2184 = vadd.f32 %v2035, %v2148
      %v2185 = vadd.f32 %v2036, %v2149
      %v2186 = vadd.f32 %v2037, %v2150
      %v2187 = vadd.f32 %v2038, %v2151
      %v2188 = vadd.f32 %v2039, %v2152
      %v2189 = vadd.f32 %v2040, %v2153
      %v2190 = vadd.f32 %v2041, %v2154
      %v2191 = vadd.f32 %v2042, %v2155
      %v2192 = vadd.f32 %v2043, %v2156
      %v2193 = vadd.f32 %v2044, %v2157
      %v2194 = vadd.f32 %v2045, %v2158
      %v2195 = vadd.f32 %v2046, %v2159
      %v2196 = vadd.f32 %v2047, %v2160
      %v2197 = vadd.f32 %v2048, %v2161
      %v2198 = vadd.f32 %v2049, %v2162
      %v2199 = vadd.f32 %v2050, %v2163
      %v2200 = vadd.f32 %v2051, %v2164
      %v2201 = vadd.f32 %v2052, %v2165
      %v2202 = vadd.f32 %v2053, %v2166
      %v2203 = vadd.f32 %v2054, %v2167
      %v2204 = vadd.f32 %v2055, %v2168
      %v2205 = vadd.f32 %v2056, %v2169
      %v2206 = vadd.f32 %v2057, %v2170
      %v2207 = vrot.slane %v1981, 6
      %v2208 = vrot.slane %v1982, 6
      %v2209 = vrot.slane %v1983, 6
      %v2210 = vrot.slane %v1984, 6
      %v2211 = vrot.slane %v1985, 6
      %v2212 = vrot.slane %v1986, 6
      %v2213 = vrot.slane %v1987, 6
      %v2214 = vrot.slane %v1988, 6
      %v2215 = vrot.slane %v1989, 6
      %v2216 = vrot.slane %v1990, 6
      %v2217 = vrot.slane %v1991, 6
      %v2218 = vrot.slane %v1992, 6
      %v2219 = vrot.slane %v1993, 6
      %v2220 = vrot.slane %v1994, 6
      %v2221 = vrot.slane %v1995, 6
      %v2222 = vrot.slane %v1996, 6
      %v2223 = vrot.slane %v1997, 6
      %v2224 = vrot.slane %v1998, 6
      %v2225 = vrot.slane %v1999, 6
      %v2226 = vrot.slane %v2000, 6
      %v2227 = vrot.slane %v2001, 6
      %v2228 = vrot.slane %v2002, 6
      %v2229 = vrot.slane %v2003, 6
      %v2230 = vrot.slane %v2004, 6
      %v2231 = vrot.slane %v2005, 6
      %v2232 = vrot.slane %v2006, 6
      %v2233 = vrot.slane %v2007, 6
      %v2234 = vrot.slane %v2008, 6
      %v2235 = vrot.slane %v2009, 6
      %v2236 = vrot.slane %v2010, 6
      %v2237 = vrot.slane %v2011, 6
      %v2238 = vrot.slane %v2012, 6
      %v2239 = vrot.slane %v2013, 6
      %v2240 = vrot.slane %v2014, 6
      %v2241 = vrot.slane %v2015, 6
      %v2242 = vrot.slane %v2016, 6
      %vm2243 = vcmp.lt.s32.totalorder %v691, 2
      %v2244 = vsel %vm2243, %v2241, %v2242
      %v2245 = vsel %vm2243, %v2240, %v2241
      %v2246 = vsel %vm2243, %v2239, %v2240
      %v2247 = vsel %vm2243, %v2238, %v2239
      %v2248 = vsel %vm2243, %v2237, %v2238
      %v2249 = vsel %vm2243, %v2236, %v2237
      %v2250 = vsel %vm2243, %v2235, %v2236
      %v2251 = vsel %vm2243, %v2234, %v2235
      %v2252 = vsel %vm2243, %v2233, %v2234
      %v2253 = vsel %vm2243, %v2232, %v2233
      %v2254 = vsel %vm2243, %v2231, %v2232
      %v2255 = vsel %vm2243, %v2230, %v2231
      %v2256 = vsel %vm2243, %v2229, %v2230
      %v2257 = vsel %vm2243, %v2228, %v2229
      %v2258 = vsel %vm2243, %v2227, %v2228
      %v2259 = vsel %vm2243, %v2226, %v2227
      %v2260 = vsel %vm2243, %v2225, %v2226
      %v2261 = vsel %vm2243, %v2224, %v2225
      %v2262 = vsel %vm2243, %v2223, %v2224
      %v2263 = vsel %vm2243, %v2222, %v2223
      %v2264 = vsel %vm2243, %v2221, %v2222
      %v2265 = vsel %vm2243, %v2220, %v2221
      %v2266 = vsel %vm2243, %v2219, %v2220
      %v2267 = vsel %vm2243, %v2218, %v2219
      %v2268 = vsel %vm2243, %v2217, %v2218
      %v2269 = vsel %vm2243, %v2216, %v2217
      %v2270 = vsel %vm2243, %v2215, %v2216
      %v2271 = vsel %vm2243, %v2214, %v2215
      %v2272 = vsel %vm2243, %v2213, %v2214
      %v2273 = vsel %vm2243, %v2212, %v2213
      %v2274 = vsel %vm2243, %v2211, %v2212
      %v2275 = vsel %vm2243, %v2210, %v2211
      %v2276 = vsel %vm2243, %v2209, %v2210
      %v2277 = vsel %vm2243, %v2208, %v2209
      %v2278 = vsel %vm2243, %v2207, %v2208
      %v2279 = vsel %vm2243, %v2242, %v2207
      %v2280 = vlaneseq
      %v2281 = vshrl.u32 %v2280, 7
      %v2282 = vsub.s32 1, %v2281
      %v2283 = vrot.slane %v2017, %v2282
      %v2284 = vmul.f32 %v2279, %v2283
      %v2285 = vmul.f32 %v2278, %v2283
      %v2286 = vmul.f32 %v2277, %v2283
      %v2287 = vmul.f32 %v2276, %v2283
      %v2288 = vmul.f32 %v2275, %v2283
      %v2289 = vmul.f32 %v2274, %v2283
      %v2290 = vmul.f32 %v2273, %v2283
      %v2291 = vmul.f32 %v2272, %v2283
      %v2292 = vmul.f32 %v2271, %v2283
      %v2293 = vmul.f32 %v2270, %v2283
      %v2294 = vmul.f32 %v2269, %v2283
      %v2295 = vmul.f32 %v2268, %v2283
      %v2296 = vmul.f32 %v2267, %v2283
      %v2297 = vmul.f32 %v2266, %v2283
      %v2298 = vmul.f32 %v2265, %v2283
      %v2299 = vmul.f32 %v2264, %v2283
      %v2300 = vmul.f32 %v2263, %v2283
      %v2301 = vmul.f32 %v2262, %v2283
      %v2302 = vmul.f32 %v2261, %v2283
      %v2303 = vmul.f32 %v2260, %v2283
      %v2304 = vmul.f32 %v2259, %v2283
      %v2305 = vmul.f32 %v2258, %v2283
      %v2306 = vmul.f32 %v2257, %v2283
      %v2307 = vmul.f32 %v2256, %v2283
      %v2308 = vmul.f32 %v2255, %v2283
      %v2309 = vmul.f32 %v2254, %v2283
      %v2310 = vmul.f32 %v2253, %v2283
      %v2311 = vmul.f32 %v2252, %v2283
      %v2312 = vmul.f32 %v2251, %v2283
      %v2313 = vmul.f32 %v2250, %v2283
      %v2314 = vmul.f32 %v2249, %v2283
      %v2315 = vmul.f32 %v2248, %v2283
      %v2316 = vmul.f32 %v2247, %v2283
      %v2317 = vmul.f32 %v2246, %v2283
      %v2318 = vmul.f32 %v2245, %v2283
      %v2319 = vmul.f32 %v2244, %v2283
      %v2320 = vadd.f32 %v2171, %v2284
      %v2321 = vadd.f32 %v2172, %v2285
      %v2322 = vadd.f32 %v2173, %v2286
      %v2323 = vadd.f32 %v2174, %v2287
      %v2324 = vadd.f32 %v2175, %v2288
      %v2325 = vadd.f32 %v2176, %v2289
      %v2326 = vadd.f32 %v2177, %v2290
      %v2327 = vadd.f32 %v2178, %v2291
      %v2328 = vadd.f32 %v2179, %v2292
      %v2329 = vadd.f32 %v2180, %v2293
      %v2330 = vadd.f32 %v2181, %v2294
      %v2331 = vadd.f32 %v2182, %v2295
      %v2332 = vadd.f32 %v2183, %v2296
      %v2333 = vadd.f32 %v2184, %v2297
      %v2334 = vadd.f32 %v2185, %v2298
      %v2335 = vadd.f32 %v2186, %v2299
      %v2336 = vadd.f32 %v2187, %v2300
      %v2337 = vadd.f32 %v2188, %v2301
      %v2338 = vadd.f32 %v2189, %v2302
      %v2339 = vadd.f32 %v2190, %v2303
      %v2340 = vadd.f32 %v2191, %v2304
      %v2341 = vadd.f32 %v2192, %v2305
      %v2342 = vadd.f32 %v2193, %v2306
      %v2343 = vadd.f32 %v2194, %v2307
      %v2344 = vadd.f32 %v2195, %v2308
      %v2345 = vadd.f32 %v2196, %v2309
      %v2346 = vadd.f32 %v2197, %v2310
      %v2347 = vadd.f32 %v2198, %v2311
      %v2348 = vadd.f32 %v2199, %v2312
      %v2349 = vadd.f32 %v2200, %v2313
      %v2350 = vadd.f32 %v2201, %v2314
      %v2351 = vadd.f32 %v2202, %v2315
      %v2352 = vadd.f32 %v2203, %v2316
      %v2353 = vadd.f32 %v2204, %v2317
      %v2354 = vadd.f32 %v2205, %v2318
      %v2355 = vadd.f32 %v2206, %v2319
      %v2356 = vrot.slane %v1981, 7
      %v2357 = vrot.slane %v1982, 7
      %v2358 = vrot.slane %v1983, 7
      %v2359 = vrot.slane %v1984, 7
      %v2360 = vrot.slane %v1985, 7
      %v2361 = vrot.slane %v1986, 7
      %v2362 = vrot.slane %v1987, 7
      %v2363 = vrot.slane %v1988, 7
      %v2364 = vrot.slane %v1989, 7
      %v2365 = vrot.slane %v1990, 7
      %v2366 = vrot.slane %v1991, 7
      %v2367 = vrot.slane %v1992, 7
      %v2368 = vrot.slane %v1993, 7
      %v2369 = vrot.slane %v1994, 7
      %v2370 = vrot.slane %v1995, 7
      %v2371 = vrot.slane %v1996, 7
      %v2372 = vrot.slane %v1997, 7
      %v2373 = vrot.slane %v1998, 7
      %v2374 = vrot.slane %v1999, 7
      %v2375 = vrot.slane %v2000, 7
      %v2376 = vrot.slane %v2001, 7
      %v2377 = vrot.slane %v2002, 7
      %v2378 = vrot.slane %v2003, 7
      %v2379 = vrot.slane %v2004, 7
      %v2380 = vrot.slane %v2005, 7
      %v2381 = vrot.slane %v2006, 7
      %v2382 = vrot.slane %v2007, 7
      %v2383 = vrot.slane %v2008, 7
      %v2384 = vrot.slane %v2009, 7
      %v2385 = vrot.slane %v2010, 7
      %v2386 = vrot.slane %v2011, 7
      %v2387 = vrot.slane %v2012, 7
      %v2388 = vrot.slane %v2013, 7
      %v2389 = vrot.slane %v2014, 7
      %v2390 = vrot.slane %v2015, 7
      %v2391 = vrot.slane %v2016, 7
      %vm2392 = vcmp.lt.s32.totalorder %v691, 1
      %v2393 = vsel %vm2392, %v2390, %v2391
      %v2394 = vsel %vm2392, %v2389, %v2390
      %v2395 = vsel %vm2392, %v2388, %v2389
      %v2396 = vsel %vm2392, %v2387, %v2388
      %v2397 = vsel %vm2392, %v2386, %v2387
      %v2398 = vsel %vm2392, %v2385, %v2386
      %v2399 = vsel %vm2392, %v2384, %v2385
      %v2400 = vsel %vm2392, %v2383, %v2384
      %v2401 = vsel %vm2392, %v2382, %v2383
      %v2402 = vsel %vm2392, %v2381, %v2382
      %v2403 = vsel %vm2392, %v2380, %v2381
      %v2404 = vsel %vm2392, %v2379, %v2380
      %v2405 = vsel %vm2392, %v2378, %v2379
      %v2406 = vsel %vm2392, %v2377, %v2378
      %v2407 = vsel %vm2392, %v2376, %v2377
      %v2408 = vsel %vm2392, %v2375, %v2376
      %v2409 = vsel %vm2392, %v2374, %v2375
      %v2410 = vsel %vm2392, %v2373, %v2374
      %v2411 = vsel %vm2392, %v2372, %v2373
      %v2412 = vsel %vm2392, %v2371, %v2372
      %v2413 = vsel %vm2392, %v2370, %v2371
      %v2414 = vsel %vm2392, %v2369, %v2370
      %v2415 = vsel %vm2392, %v2368, %v2369
      %v2416 = vsel %vm2392, %v2367, %v2368
      %v2417 = vsel %vm2392, %v2366, %v2367
      %v2418 = vsel %vm2392, %v2365, %v2366
      %v2419 = vsel %vm2392, %v2364, %v2365
      %v2420 = vsel %vm2392, %v2363, %v2364
      %v2421 = vsel %vm2392, %v2362, %v2363
      %v2422 = vsel %vm2392, %v2361, %v2362
      %v2423 = vsel %vm2392, %v2360, %v2361
      %v2424 = vsel %vm2392, %v2359, %v2360
      %v2425 = vsel %vm2392, %v2358, %v2359
      %v2426 = vsel %vm2392, %v2357, %v2358
      %v2427 = vsel %vm2392, %v2356, %v2357
      %v2428 = vsel %vm2392, %v2391, %v2356
      %v2429 = vlaneseq
      %v2430 = vshrl.u32 %v2429, 7
      %v2431 = vsub.s32 2, %v2430
      %v2432 = vrot.slane %v2017, %v2431
      %v2433 = vmul.f32 %v2428, %v2432
      %v2434 = vmul.f32 %v2427, %v2432
      %v2435 = vmul.f32 %v2426, %v2432
      %v2436 = vmul.f32 %v2425, %v2432
      %v2437 = vmul.f32 %v2424, %v2432
      %v2438 = vmul.f32 %v2423, %v2432
      %v2439 = vmul.f32 %v2422, %v2432
      %v2440 = vmul.f32 %v2421, %v2432
      %v2441 = vmul.f32 %v2420, %v2432
      %v2442 = vmul.f32 %v2419, %v2432
      %v2443 = vmul.f32 %v2418, %v2432
      %v2444 = vmul.f32 %v2417, %v2432
      %v2445 = vmul.f32 %v2416, %v2432
      %v2446 = vmul.f32 %v2415, %v2432
      %v2447 = vmul.f32 %v2414, %v2432
      %v2448 = vmul.f32 %v2413, %v2432
      %v2449 = vmul.f32 %v2412, %v2432
      %v2450 = vmul.f32 %v2411, %v2432
      %v2451 = vmul.f32 %v2410, %v2432
      %v2452 = vmul.f32 %v2409, %v2432
      %v2453 = vmul.f32 %v2408, %v2432
      %v2454 = vmul.f32 %v2407, %v2432
      %v2455 = vmul.f32 %v2406, %v2432
      %v2456 = vmul.f32 %v2405, %v2432
      %v2457 = vmul.f32 %v2404, %v2432
      %v2458 = vmul.f32 %v2403, %v2432
      %v2459 = vmul.f32 %v2402, %v2432
      %v2460 = vmul.f32 %v2401, %v2432
      %v2461 = vmul.f32 %v2400, %v2432
      %v2462 = vmul.f32 %v2399, %v2432
      %v2463 = vmul.f32 %v2398, %v2432
      %v2464 = vmul.f32 %v2397, %v2432
      %v2465 = vmul.f32 %v2396, %v2432
      %v2466 = vmul.f32 %v2395, %v2432
      %v2467 = vmul.f32 %v2394, %v2432
      %v2468 = vmul.f32 %v2393, %v2432
      %v2469 = vadd.f32 %v2320, %v2433
      %v2470 = vadd.f32 %v2321, %v2434
      %v2471 = vadd.f32 %v2322, %v2435
      %v2472 = vadd.f32 %v2323, %v2436
      %v2473 = vadd.f32 %v2324, %v2437
      %v2474 = vadd.f32 %v2325, %v2438
      %v2475 = vadd.f32 %v2326, %v2439
      %v2476 = vadd.f32 %v2327, %v2440
      %v2477 = vadd.f32 %v2328, %v2441
      %v2478 = vadd.f32 %v2329, %v2442
      %v2479 = vadd.f32 %v2330, %v2443
      %v2480 = vadd.f32 %v2331, %v2444
      %v2481 = vadd.f32 %v2332, %v2445
      %v2482 = vadd.f32 %v2333, %v2446
      %v2483 = vadd.f32 %v2334, %v2447
      %v2484 = vadd.f32 %v2335, %v2448
      %v2485 = vadd.f32 %v2336, %v2449
      %v2486 = vadd.f32 %v2337, %v2450
      %v2487 = vadd.f32 %v2338, %v2451
      %v2488 = vadd.f32 %v2339, %v2452
      %v2489 = vadd.f32 %v2340, %v2453
      %v2490 = vadd.f32 %v2341, %v2454
      %v2491 = vadd.f32 %v2342, %v2455
      %v2492 = vadd.f32 %v2343, %v2456
      %v2493 = vadd.f32 %v2344, %v2457
      %v2494 = vadd.f32 %v2345, %v2458
      %v2495 = vadd.f32 %v2346, %v2459
      %v2496 = vadd.f32 %v2347, %v2460
      %v2497 = vadd.f32 %v2348, %v2461
      %v2498 = vadd.f32 %v2349, %v2462
      %v2499 = vadd.f32 %v2350, %v2463
      %v2500 = vadd.f32 %v2351, %v2464
      %v2501 = vadd.f32 %v2352, %v2465
      %v2502 = vadd.f32 %v2353, %v2466
      %v2503 = vadd.f32 %v2354, %v2467
      %v2504 = vadd.f32 %v2355, %v2468
      %v2505 = vrot.slane %v1981, 1
      %v2506 = vrot.slane %v1982, 1
      %v2507 = vrot.slane %v1983, 1
      %v2508 = vrot.slane %v1984, 1
      %v2509 = vrot.slane %v1985, 1
      %v2510 = vrot.slane %v1986, 1
      %v2511 = vrot.slane %v1987, 1
      %v2512 = vrot.slane %v1988, 1
      %v2513 = vrot.slane %v1989, 1
      %v2514 = vrot.slane %v1990, 1
      %v2515 = vrot.slane %v1991, 1
      %v2516 = vrot.slane %v1992, 1
      %v2517 = vrot.slane %v1993, 1
      %v2518 = vrot.slane %v1994, 1
      %v2519 = vrot.slane %v1995, 1
      %v2520 = vrot.slane %v1996, 1
      %v2521 = vrot.slane %v1997, 1
      %v2522 = vrot.slane %v1998, 1
      %v2523 = vrot.slane %v1999, 1
      %v2524 = vrot.slane %v2000, 1
      %v2525 = vrot.slane %v2001, 1
      %v2526 = vrot.slane %v2002, 1
      %v2527 = vrot.slane %v2003, 1
      %v2528 = vrot.slane %v2004, 1
      %v2529 = vrot.slane %v2005, 1
      %v2530 = vrot.slane %v2006, 1
      %v2531 = vrot.slane %v2007, 1
      %v2532 = vrot.slane %v2008, 1
      %v2533 = vrot.slane %v2009, 1
      %v2534 = vrot.slane %v2010, 1
      %v2535 = vrot.slane %v2011, 1
      %v2536 = vrot.slane %v2012, 1
      %v2537 = vrot.slane %v2013, 1
      %v2538 = vrot.slane %v2014, 1
      %v2539 = vrot.slane %v2015, 1
      %v2540 = vrot.slane %v2016, 1
      %vm2541 = vcmp.lt.s32.totalorder %v691, 7
      %v2542 = vsel %vm2541, %v2539, %v2540
      %v2543 = vsel %vm2541, %v2538, %v2539
      %v2544 = vsel %vm2541, %v2537, %v2538
      %v2545 = vsel %vm2541, %v2536, %v2537
      %v2546 = vsel %vm2541, %v2535, %v2536
      %v2547 = vsel %vm2541, %v2534, %v2535
      %v2548 = vsel %vm2541, %v2533, %v2534
      %v2549 = vsel %vm2541, %v2532, %v2533
      %v2550 = vsel %vm2541, %v2531, %v2532
      %v2551 = vsel %vm2541, %v2530, %v2531
      %v2552 = vsel %vm2541, %v2529, %v2530
      %v2553 = vsel %vm2541, %v2528, %v2529
      %v2554 = vsel %vm2541, %v2527, %v2528
      %v2555 = vsel %vm2541, %v2526, %v2527
      %v2556 = vsel %vm2541, %v2525, %v2526
      %v2557 = vsel %vm2541, %v2524, %v2525
      %v2558 = vsel %vm2541, %v2523, %v2524
      %v2559 = vsel %vm2541, %v2522, %v2523
      %v2560 = vsel %vm2541, %v2521, %v2522
      %v2561 = vsel %vm2541, %v2520, %v2521
      %v2562 = vsel %vm2541, %v2519, %v2520
      %v2563 = vsel %vm2541, %v2518, %v2519
      %v2564 = vsel %vm2541, %v2517, %v2518
      %v2565 = vsel %vm2541, %v2516, %v2517
      %v2566 = vsel %vm2541, %v2515, %v2516
      %v2567 = vsel %vm2541, %v2514, %v2515
      %v2568 = vsel %vm2541, %v2513, %v2514
      %v2569 = vsel %vm2541, %v2512, %v2513
      %v2570 = vsel %vm2541, %v2511, %v2512
      %v2571 = vsel %vm2541, %v2510, %v2511
      %v2572 = vsel %vm2541, %v2509, %v2510
      %v2573 = vsel %vm2541, %v2508, %v2509
      %v2574 = vsel %vm2541, %v2507, %v2508
      %v2575 = vsel %vm2541, %v2506, %v2507
      %v2576 = vsel %vm2541, %v2505, %v2506
      %v2577 = vsel %vm2541, %v2540, %v2505
      %v2578 = vlaneseq
      %v2579 = vshrl.u32 %v2578, 7
      %v2580 = vsub.s32 4, %v2579
      %v2581 = vrot.slane %v2017, %v2580
      %v2582 = vmul.f32 %v2576, %v2581
      %v2583 = vmul.f32 %v2575, %v2581
      %v2584 = vmul.f32 %v2574, %v2581
      %v2585 = vmul.f32 %v2573, %v2581
      %v2586 = vmul.f32 %v2572, %v2581
      %v2587 = vmul.f32 %v2571, %v2581
      %v2588 = vmul.f32 %v2570, %v2581
      %v2589 = vmul.f32 %v2569, %v2581
      %v2590 = vmul.f32 %v2568, %v2581
      %v2591 = vmul.f32 %v2567, %v2581
      %v2592 = vmul.f32 %v2566, %v2581
      %v2593 = vmul.f32 %v2565, %v2581
      %v2594 = vmul.f32 %v2564, %v2581
      %v2595 = vmul.f32 %v2563, %v2581
      %v2596 = vmul.f32 %v2562, %v2581
      %v2597 = vmul.f32 %v2561, %v2581
      %v2598 = vmul.f32 %v2560, %v2581
      %v2599 = vmul.f32 %v2559, %v2581
      %v2600 = vmul.f32 %v2558, %v2581
      %v2601 = vmul.f32 %v2557, %v2581
      %v2602 = vmul.f32 %v2556, %v2581
      %v2603 = vmul.f32 %v2555, %v2581
      %v2604 = vmul.f32 %v2554, %v2581
      %v2605 = vmul.f32 %v2553, %v2581
      %v2606 = vmul.f32 %v2552, %v2581
      %v2607 = vmul.f32 %v2551, %v2581
      %v2608 = vmul.f32 %v2550, %v2581
      %v2609 = vmul.f32 %v2549, %v2581
      %v2610 = vmul.f32 %v2548, %v2581
      %v2611 = vmul.f32 %v2547, %v2581
      %v2612 = vmul.f32 %v2546, %v2581
      %v2613 = vmul.f32 %v2545, %v2581
      %v2614 = vmul.f32 %v2544, %v2581
      %v2615 = vmul.f32 %v2543, %v2581
      %v2616 = vmul.f32 %v2542, %v2581
      %v2617 = vmul.f32 %v2577, %v2581
      %v2618 = vadd.f32 %v2469, %v2582
      %v2619 = vadd.f32 %v2470, %v2583
      %v2620 = vadd.f32 %v2471, %v2584
      %v2621 = vadd.f32 %v2472, %v2585
      %v2622 = vadd.f32 %v2473, %v2586
      %v2623 = vadd.f32 %v2474, %v2587
      %v2624 = vadd.f32 %v2475, %v2588
      %v2625 = vadd.f32 %v2476, %v2589
      %v2626 = vadd.f32 %v2477, %v2590
      %v2627 = vadd.f32 %v2478, %v2591
      %v2628 = vadd.f32 %v2479, %v2592
      %v2629 = vadd.f32 %v2480, %v2593
      %v2630 = vadd.f32 %v2481, %v2594
      %v2631 = vadd.f32 %v2482, %v2595
      %v2632 = vadd.f32 %v2483, %v2596
      %v2633 = vadd.f32 %v2484, %v2597
      %v2634 = vadd.f32 %v2485, %v2598
      %v2635 = vadd.f32 %v2486, %v2599
      %v2636 = vadd.f32 %v2487, %v2600
      %v2637 = vadd.f32 %v2488, %v2601
      %v2638 = vadd.f32 %v2489, %v2602
      %v2639 = vadd.f32 %v2490, %v2603
      %v2640 = vadd.f32 %v2491, %v2604
      %v2641 = vadd.f32 %v2492, %v2605
      %v2642 = vadd.f32 %v2493, %v2606
      %v2643 = vadd.f32 %v2494, %v2607
      %v2644 = vadd.f32 %v2495, %v2608
      %v2645 = vadd.f32 %v2496, %v2609
      %v2646 = vadd.f32 %v2497, %v2610
      %v2647 = vadd.f32 %v2498, %v2611
      %v2648 = vadd.f32 %v2499, %v2612
      %v2649 = vadd.f32 %v2500, %v2613
      %v2650 = vadd.f32 %v2501, %v2614
      %v2651 = vadd.f32 %v2502, %v2615
      %v2652 = vadd.f32 %v2503, %v2616
      %v2653 = vadd.f32 %v2504, %v2617
      %v2654 = vrot.slane %v1981, 2
      %v2655 = vrot.slane %v1982, 2
      %v2656 = vrot.slane %v1983, 2
      %v2657 = vrot.slane %v1984, 2
      %v2658 = vrot.slane %v1985, 2
      %v2659 = vrot.slane %v1986, 2
      %v2660 = vrot.slane %v1987, 2
      %v2661 = vrot.slane %v1988, 2
      %v2662 = vrot.slane %v1989, 2
      %v2663 = vrot.slane %v1990, 2
      %v2664 = vrot.slane %v1991, 2
      %v2665 = vrot.slane %v1992, 2
      %v2666 = vrot.slane %v1993, 2
      %v2667 = vrot.slane %v1994, 2
      %v2668 = vrot.slane %v1995, 2
      %v2669 = vrot.slane %v1996, 2
      %v2670 = vrot.slane %v1997, 2
      %v2671 = vrot.slane %v1998, 2
      %v2672 = vrot.slane %v1999, 2
      %v2673 = vrot.slane %v2000, 2
      %v2674 = vrot.slane %v2001, 2
      %v2675 = vrot.slane %v2002, 2
      %v2676 = vrot.slane %v2003, 2
      %v2677 = vrot.slane %v2004, 2
      %v2678 = vrot.slane %v2005, 2
      %v2679 = vrot.slane %v2006, 2
      %v2680 = vrot.slane %v2007, 2
      %v2681 = vrot.slane %v2008, 2
      %v2682 = vrot.slane %v2009, 2
      %v2683 = vrot.slane %v2010, 2
      %v2684 = vrot.slane %v2011, 2
      %v2685 = vrot.slane %v2012, 2
      %v2686 = vrot.slane %v2013, 2
      %v2687 = vrot.slane %v2014, 2
      %v2688 = vrot.slane %v2015, 2
      %v2689 = vrot.slane %v2016, 2
      %vm2690 = vcmp.lt.s32.totalorder %v691, 6
      %v2691 = vsel %vm2690, %v2688, %v2689
      %v2692 = vsel %vm2690, %v2687, %v2688
      %v2693 = vsel %vm2690, %v2686, %v2687
      %v2694 = vsel %vm2690, %v2685, %v2686
      %v2695 = vsel %vm2690, %v2684, %v2685
      %v2696 = vsel %vm2690, %v2683, %v2684
      %v2697 = vsel %vm2690, %v2682, %v2683
      %v2698 = vsel %vm2690, %v2681, %v2682
      %v2699 = vsel %vm2690, %v2680, %v2681
      %v2700 = vsel %vm2690, %v2679, %v2680
      %v2701 = vsel %vm2690, %v2678, %v2679
      %v2702 = vsel %vm2690, %v2677, %v2678
      %v2703 = vsel %vm2690, %v2676, %v2677
      %v2704 = vsel %vm2690, %v2675, %v2676
      %v2705 = vsel %vm2690, %v2674, %v2675
      %v2706 = vsel %vm2690, %v2673, %v2674
      %v2707 = vsel %vm2690, %v2672, %v2673
      %v2708 = vsel %vm2690, %v2671, %v2672
      %v2709 = vsel %vm2690, %v2670, %v2671
      %v2710 = vsel %vm2690, %v2669, %v2670
      %v2711 = vsel %vm2690, %v2668, %v2669
      %v2712 = vsel %vm2690, %v2667, %v2668
      %v2713 = vsel %vm2690, %v2666, %v2667
      %v2714 = vsel %vm2690, %v2665, %v2666
      %v2715 = vsel %vm2690, %v2664, %v2665
      %v2716 = vsel %vm2690, %v2663, %v2664
      %v2717 = vsel %vm2690, %v2662, %v2663
      %v2718 = vsel %vm2690, %v2661, %v2662
      %v2719 = vsel %vm2690, %v2660, %v2661
      %v2720 = vsel %vm2690, %v2659, %v2660
      %v2721 = vsel %vm2690, %v2658, %v2659
      %v2722 = vsel %vm2690, %v2657, %v2658
      %v2723 = vsel %vm2690, %v2656, %v2657
      %v2724 = vsel %vm2690, %v2655, %v2656
      %v2725 = vsel %vm2690, %v2654, %v2655
      %v2726 = vsel %vm2690, %v2689, %v2654
      %v2727 = vlaneseq
      %v2728 = vshrl.u32 %v2727, 7
      %v2729 = vsub.s32 5, %v2728
      %v2730 = vrot.slane %v2017, %v2729
      %v2731 = vmul.f32 %v2725, %v2730
      %v2732 = vmul.f32 %v2724, %v2730
      %v2733 = vmul.f32 %v2723, %v2730
      %v2734 = vmul.f32 %v2722, %v2730
      %v2735 = vmul.f32 %v2721, %v2730
      %v2736 = vmul.f32 %v2720, %v2730
      %v2737 = vmul.f32 %v2719, %v2730
      %v2738 = vmul.f32 %v2718, %v2730
      %v2739 = vmul.f32 %v2717, %v2730
      %v2740 = vmul.f32 %v2716, %v2730
      %v2741 = vmul.f32 %v2715, %v2730
      %v2742 = vmul.f32 %v2714, %v2730
      %v2743 = vmul.f32 %v2713, %v2730
      %v2744 = vmul.f32 %v2712, %v2730
      %v2745 = vmul.f32 %v2711, %v2730
      %v2746 = vmul.f32 %v2710, %v2730
      %v2747 = vmul.f32 %v2709, %v2730
      %v2748 = vmul.f32 %v2708, %v2730
      %v2749 = vmul.f32 %v2707, %v2730
      %v2750 = vmul.f32 %v2706, %v2730
      %v2751 = vmul.f32 %v2705, %v2730
      %v2752 = vmul.f32 %v2704, %v2730
      %v2753 = vmul.f32 %v2703, %v2730
      %v2754 = vmul.f32 %v2702, %v2730
      %v2755 = vmul.f32 %v2701, %v2730
      %v2756 = vmul.f32 %v2700, %v2730
      %v2757 = vmul.f32 %v2699, %v2730
      %v2758 = vmul.f32 %v2698, %v2730
      %v2759 = vmul.f32 %v2697, %v2730
      %v2760 = vmul.f32 %v2696, %v2730
      %v2761 = vmul.f32 %v2695, %v2730
      %v2762 = vmul.f32 %v2694, %v2730
      %v2763 = vmul.f32 %v2693, %v2730
      %v2764 = vmul.f32 %v2692, %v2730
      %v2765 = vmul.f32 %v2691, %v2730
      %v2766 = vmul.f32 %v2726, %v2730
      %v2767 = vadd.f32 %v2618, %v2731
      %v2768 = vadd.f32 %v2619, %v2732
      %v2769 = vadd.f32 %v2620, %v2733
      %v2770 = vadd.f32 %v2621, %v2734
      %v2771 = vadd.f32 %v2622, %v2735
      %v2772 = vadd.f32 %v2623, %v2736
      %v2773 = vadd.f32 %v2624, %v2737
      %v2774 = vadd.f32 %v2625, %v2738
      %v2775 = vadd.f32 %v2626, %v2739
      %v2776 = vadd.f32 %v2627, %v2740
      %v2777 = vadd.f32 %v2628, %v2741
      %v2778 = vadd.f32 %v2629, %v2742
      %v2779 = vadd.f32 %v2630, %v2743
      %v2780 = vadd.f32 %v2631, %v2744
      %v2781 = vadd.f32 %v2632, %v2745
      %v2782 = vadd.f32 %v2633, %v2746
      %v2783 = vadd.f32 %v2634, %v2747
      %v2784 = vadd.f32 %v2635, %v2748
      %v2785 = vadd.f32 %v2636, %v2749
      %v2786 = vadd.f32 %v2637, %v2750
      %v2787 = vadd.f32 %v2638, %v2751
      %v2788 = vadd.f32 %v2639, %v2752
      %v2789 = vadd.f32 %v2640, %v2753
      %v2790 = vadd.f32 %v2641, %v2754
      %v2791 = vadd.f32 %v2642, %v2755
      %v2792 = vadd.f32 %v2643, %v2756
      %v2793 = vadd.f32 %v2644, %v2757
      %v2794 = vadd.f32 %v2645, %v2758
      %v2795 = vadd.f32 %v2646, %v2759
      %v2796 = vadd.f32 %v2647, %v2760
      %v2797 = vadd.f32 %v2648, %v2761
      %v2798 = vadd.f32 %v2649, %v2762
      %v2799 = vadd.f32 %v2650, %v2763
      %v2800 = vadd.f32 %v2651, %v2764
      %v2801 = vadd.f32 %v2652, %v2765
      %v2802 = vadd.f32 %v2653, %v2766
      %v2803 = vrot.slane %v1981, 3
      %v2804 = vrot.slane %v1982, 3
      %v2805 = vrot.slane %v1983, 3
      %v2806 = vrot.slane %v1984, 3
      %v2807 = vrot.slane %v1985, 3
      %v2808 = vrot.slane %v1986, 3
      %v2809 = vrot.slane %v1987, 3
      %v2810 = vrot.slane %v1988, 3
      %v2811 = vrot.slane %v1989, 3
      %v2812 = vrot.slane %v1990, 3
      %v2813 = vrot.slane %v1991, 3
      %v2814 = vrot.slane %v1992, 3
      %v2815 = vrot.slane %v1993, 3
      %v2816 = vrot.slane %v1994, 3
      %v2817 = vrot.slane %v1995, 3
      %v2818 = vrot.slane %v1996, 3
      %v2819 = vrot.slane %v1997, 3
      %v2820 = vrot.slane %v1998, 3
      %v2821 = vrot.slane %v1999, 3
      %v2822 = vrot.slane %v2000, 3
      %v2823 = vrot.slane %v2001, 3
      %v2824 = vrot.slane %v2002, 3
      %v2825 = vrot.slane %v2003, 3
      %v2826 = vrot.slane %v2004, 3
      %v2827 = vrot.slane %v2005, 3
      %v2828 = vrot.slane %v2006, 3
      %v2829 = vrot.slane %v2007, 3
      %v2830 = vrot.slane %v2008, 3
      %v2831 = vrot.slane %v2009, 3
      %v2832 = vrot.slane %v2010, 3
      %v2833 = vrot.slane %v2011, 3
      %v2834 = vrot.slane %v2012, 3
      %v2835 = vrot.slane %v2013, 3
      %v2836 = vrot.slane %v2014, 3
      %v2837 = vrot.slane %v2015, 3
      %v2838 = vrot.slane %v2016, 3
      %vm2839 = vcmp.lt.s32.totalorder %v691, 5
      %v2840 = vsel %vm2839, %v2837, %v2838
      %v2841 = vsel %vm2839, %v2836, %v2837
      %v2842 = vsel %vm2839, %v2835, %v2836
      %v2843 = vsel %vm2839, %v2834, %v2835
      %v2844 = vsel %vm2839, %v2833, %v2834
      %v2845 = vsel %vm2839, %v2832, %v2833
      %v2846 = vsel %vm2839, %v2831, %v2832
      %v2847 = vsel %vm2839, %v2830, %v2831
      %v2848 = vsel %vm2839, %v2829, %v2830
      %v2849 = vsel %vm2839, %v2828, %v2829
      %v2850 = vsel %vm2839, %v2827, %v2828
      %v2851 = vsel %vm2839, %v2826, %v2827
      %v2852 = vsel %vm2839, %v2825, %v2826
      %v2853 = vsel %vm2839, %v2824, %v2825
      %v2854 = vsel %vm2839, %v2823, %v2824
      %v2855 = vsel %vm2839, %v2822, %v2823
      %v2856 = vsel %vm2839, %v2821, %v2822
      %v2857 = vsel %vm2839, %v2820, %v2821
      %v2858 = vsel %vm2839, %v2819, %v2820
      %v2859 = vsel %vm2839, %v2818, %v2819
      %v2860 = vsel %vm2839, %v2817, %v2818
      %v2861 = vsel %vm2839, %v2816, %v2817
      %v2862 = vsel %vm2839, %v2815, %v2816
      %v2863 = vsel %vm2839, %v2814, %v2815
      %v2864 = vsel %vm2839, %v2813, %v2814
      %v2865 = vsel %vm2839, %v2812, %v2813
      %v2866 = vsel %vm2839, %v2811, %v2812
      %v2867 = vsel %vm2839, %v2810, %v2811
      %v2868 = vsel %vm2839, %v2809, %v2810
      %v2869 = vsel %vm2839, %v2808, %v2809
      %v2870 = vsel %vm2839, %v2807, %v2808
      %v2871 = vsel %vm2839, %v2806, %v2807
      %v2872 = vsel %vm2839, %v2805, %v2806
      %v2873 = vsel %vm2839, %v2804, %v2805
      %v2874 = vsel %vm2839, %v2803, %v2804
      %v2875 = vsel %vm2839, %v2838, %v2803
      %v2876 = vlaneseq
      %v2877 = vshrl.u32 %v2876, 7
      %v2878 = vsub.s32 6, %v2877
      %v2879 = vrot.slane %v2017, %v2878
      %v2880 = vmul.f32 %v2874, %v2879
      %v2881 = vmul.f32 %v2873, %v2879
      %v2882 = vmul.f32 %v2872, %v2879
      %v2883 = vmul.f32 %v2871, %v2879
      %v2884 = vmul.f32 %v2870, %v2879
      %v2885 = vmul.f32 %v2869, %v2879
      %v2886 = vmul.f32 %v2868, %v2879
      %v2887 = vmul.f32 %v2867, %v2879
      %v2888 = vmul.f32 %v2866, %v2879
      %v2889 = vmul.f32 %v2865, %v2879
      %v2890 = vmul.f32 %v2864, %v2879
      %v2891 = vmul.f32 %v2863, %v2879
      %v2892 = vmul.f32 %v2862, %v2879
      %v2893 = vmul.f32 %v2861, %v2879
      %v2894 = vmul.f32 %v2860, %v2879
      %v2895 = vmul.f32 %v2859, %v2879
      %v2896 = vmul.f32 %v2858, %v2879
      %v2897 = vmul.f32 %v2857, %v2879
      %v2898 = vmul.f32 %v2856, %v2879
      %v2899 = vmul.f32 %v2855, %v2879
      %v2900 = vmul.f32 %v2854, %v2879
      %v2901 = vmul.f32 %v2853, %v2879
      %v2902 = vmul.f32 %v2852, %v2879
      %v2903 = vmul.f32 %v2851, %v2879
      %v2904 = vmul.f32 %v2850, %v2879
      %v2905 = vmul.f32 %v2849, %v2879
      %v2906 = vmul.f32 %v2848, %v2879
      %v2907 = vmul.f32 %v2847, %v2879
      %v2908 = vmul.f32 %v2846, %v2879
      %v2909 = vmul.f32 %v2845, %v2879
      %v2910 = vmul.f32 %v2844, %v2879
      %v2911 = vmul.f32 %v2843, %v2879
      %v2912 = vmul.f32 %v2842, %v2879
      %v2913 = vmul.f32 %v2841, %v2879
      %v2914 = vmul.f32 %v2840, %v2879
      %v2915 = vmul.f32 %v2875, %v2879
      %v2916 = vadd.f32 %v2767, %v2880
      %v2917 = vadd.f32 %v2768, %v2881
      %v2918 = vadd.f32 %v2769, %v2882
      %v2919 = vadd.f32 %v2770, %v2883
      %v2920 = vadd.f32 %v2771, %v2884
      %v2921 = vadd.f32 %v2772, %v2885
      %v2922 = vadd.f32 %v2773, %v2886
      %v2923 = vadd.f32 %v2774, %v2887
      %v2924 = vadd.f32 %v2775, %v2888
      %v2925 = vadd.f32 %v2776, %v2889
      %v2926 = vadd.f32 %v2777, %v2890
      %v2927 = vadd.f32 %v2778, %v2891
      %v2928 = vadd.f32 %v2779, %v2892
      %v2929 = vadd.f32 %v2780, %v2893
      %v2930 = vadd.f32 %v2781, %v2894
      %v2931 = vadd.f32 %v2782, %v2895
      %v2932 = vadd.f32 %v2783, %v2896
      %v2933 = vadd.f32 %v2784, %v2897
      %v2934 = vadd.f32 %v2785, %v2898
      %v2935 = vadd.f32 %v2786, %v2899
      %v2936 = vadd.f32 %v2787, %v2900
      %v2937 = vadd.f32 %v2788, %v2901
      %v2938 = vadd.f32 %v2789, %v2902
      %v2939 = vadd.f32 %v2790, %v2903
      %v2940 = vadd.f32 %v2791, %v2904
      %v2941 = vadd.f32 %v2792, %v2905
      %v2942 = vadd.f32 %v2793, %v2906
      %v2943 = vadd.f32 %v2794, %v2907
      %v2944 = vadd.f32 %v2795, %v2908
      %v2945 = vadd.f32 %v2796, %v2909
      %v2946 = vadd.f32 %v2797, %v2910
      %v2947 = vadd.f32 %v2798, %v2911
      %v2948 = vadd.f32 %v2799, %v2912
      %v2949 = vadd.f32 %v2800, %v2913
      %v2950 = vadd.f32 %v2801, %v2914
      %v2951 = vadd.f32 %v2802, %v2915
      %v2952 = vld [vmem:[%s7] sm:$0x1]
      %v2954 = vlaneseq
      %v2955 = vshrl.u32 %v2954, 7
      %v2956 = vsub.s32 0, %v2955
      %v2957 = vrot.slane %v2952, %v2956
      %v2959 = vadd.f32 %v2916, %v2957
      %v2960 = vadd.f32 %v2917, %v2957
      %v2961 = vadd.f32 %v2918, %v2957
      %v2962 = vadd.f32 %v2919, %v2957
      %v2963 = vadd.f32 %v2920, %v2957
      %v2964 = vadd.f32 %v2921, %v2957
      %v2965 = vadd.f32 %v2922, %v2957
      %v2966 = vadd.f32 %v2923, %v2957
      %v2967 = vadd.f32 %v2924, %v2957
      %v2968 = vadd.f32 %v2925, %v2957
      %v2969 = vadd.f32 %v2926, %v2957
      %v2970 = vadd.f32 %v2927, %v2957
      %v2971 = vadd.f32 %v2928, %v2957
      %v2972 = vadd.f32 %v2929, %v2957
      %v2973 = vadd.f32 %v2930, %v2957
      %v2974 = vadd.f32 %v2931, %v2957
      %v2975 = vadd.f32 %v2932, %v2957
      %v2976 = vadd.f32 %v2933, %v2957
      %v2977 = vadd.f32 %v2934, %v2957
      %v2978 = vadd.f32 %v2935, %v2957
      %v2979 = vadd.f32 %v2936, %v2957
      %v2980 = vadd.f32 %v2937, %v2957
      %v2981 = vadd.f32 %v2938, %v2957
      %v2982 = vadd.f32 %v2939, %v2957
      %v2983 = vadd.f32 %v2940, %v2957
      %v2984 = vadd.f32 %v2941, %v2957
      %v2985 = vadd.f32 %v2942, %v2957
      %v2986 = vadd.f32 %v2943, %v2957
      %v2987 = vadd.f32 %v2944, %v2957
      %v2988 = vadd.f32 %v2945, %v2957
      %v2989 = vadd.f32 %v2946, %v2957
      %v2990 = vadd.f32 %v2947, %v2957
      %v2991 = vadd.f32 %v2948, %v2957
      %v2992 = vadd.f32 %v2949, %v2957
      %v2993 = vadd.f32 %v2950, %v2957
      %v2994 = vadd.f32 %v2951, %v2957
      %v2995 = vld [vmem:[%s8] sm:$0x1]
      %v2996 = vld [vmem:[%s9] sm:$0x1]
      %v2997 = vsel %vm1241, %v2959, 0.0
      %2998 = vadd.xlane.f32.xlu0 %v2997
      %v2999 = vpop.xlane.xlu0 %2998
      %v3000 = vsel %vm1241, %v2960, 0.0
      %3001 = vadd.xlane.f32.xlu0 %v3000
      %v3002 = vpop.xlane.xlu0 %3001
      %v3003 = vsel %vm1241, %v2961, 0.0
      %3004 = vadd.xlane.f32.xlu0 %v3003
      %v3005 = vpop.xlane.xlu0 %3004
      %v3006 = vsel %vm1241, %v2962, 0.0
      %3007 = vadd.xlane.f32.xlu0 %v3006
      %v3008 = vpop.xlane.xlu0 %3007
      %v3009 = vsel %vm1241, %v2963, 0.0
      %3010 = vadd.xlane.f32.xlu0 %v3009
      %v3011 = vpop.xlane.xlu0 %3010
      %v3012 = vsel %vm1241, %v2964, 0.0
      %3013 = vadd.xlane.f32.xlu0 %v3012
      %v3014 = vpop.xlane.xlu0 %3013
      %v3015 = vsel %vm1241, %v2965, 0.0
      %3016 = vadd.xlane.f32.xlu0 %v3015
      %v3017 = vpop.xlane.xlu0 %3016
      %v3018 = vsel %vm1241, %v2966, 0.0
      %3019 = vadd.xlane.f32.xlu0 %v3018
      %v3020 = vpop.xlane.xlu0 %3019
      %v3021 = vsel %vm1241, %v2967, 0.0
      %3022 = vadd.xlane.f32.xlu0 %v3021
      %v3023 = vpop.xlane.xlu0 %3022
      %v3024 = vsel %vm1241, %v2968, 0.0
      %3025 = vadd.xlane.f32.xlu0 %v3024
      %v3026 = vpop.xlane.xlu0 %3025
      %v3027 = vsel %vm1241, %v2969, 0.0
      %3028 = vadd.xlane.f32.xlu0 %v3027
      %v3029 = vpop.xlane.xlu0 %3028
      %v3030 = vsel %vm1241, %v2970, 0.0
      %3031 = vadd.xlane.f32.xlu0 %v3030
      %v3032 = vpop.xlane.xlu0 %3031
      %v3033 = vsel %vm1241, %v2971, 0.0
      %3034 = vadd.xlane.f32.xlu0 %v3033
      %v3035 = vpop.xlane.xlu0 %3034
      %v3036 = vsel %vm1241, %v2972, 0.0
      %3037 = vadd.xlane.f32.xlu0 %v3036
      %v3038 = vpop.xlane.xlu0 %3037
      %v3039 = vsel %vm1241, %v2973, 0.0
      %3040 = vadd.xlane.f32.xlu0 %v3039
      %v3041 = vpop.xlane.xlu0 %3040
      %v3042 = vsel %vm1241, %v2974, 0.0
      %3043 = vadd.xlane.f32.xlu0 %v3042
      %v3044 = vpop.xlane.xlu0 %3043
      %v3045 = vsel %vm1241, %v2975, 0.0
      %3046 = vadd.xlane.f32.xlu0 %v3045
      %v3047 = vpop.xlane.xlu0 %3046
      %v3048 = vsel %vm1241, %v2976, 0.0
      %3049 = vadd.xlane.f32.xlu0 %v3048
      %v3050 = vpop.xlane.xlu0 %3049
      %v3051 = vsel %vm1241, %v2977, 0.0
      %3052 = vadd.xlane.f32.xlu0 %v3051
      %v3053 = vpop.xlane.xlu0 %3052
      %v3054 = vsel %vm1241, %v2978, 0.0
      %3055 = vadd.xlane.f32.xlu0 %v3054
      %v3056 = vpop.xlane.xlu0 %3055
      %v3057 = vsel %vm1241, %v2979, 0.0
      %3058 = vadd.xlane.f32.xlu0 %v3057
      %v3059 = vpop.xlane.xlu0 %3058
      %v3060 = vsel %vm1241, %v2980, 0.0
      %3061 = vadd.xlane.f32.xlu0 %v3060
      %v3062 = vpop.xlane.xlu0 %3061
      %v3063 = vsel %vm1241, %v2981, 0.0
      %3064 = vadd.xlane.f32.xlu0 %v3063
      %v3065 = vpop.xlane.xlu0 %3064
      %v3066 = vsel %vm1241, %v2982, 0.0
      %3067 = vadd.xlane.f32.xlu0 %v3066
      %v3068 = vpop.xlane.xlu0 %3067
      %v3069 = vsel %vm1241, %v2983, 0.0
      %3070 = vadd.xlane.f32.xlu0 %v3069
      %v3071 = vpop.xlane.xlu0 %3070
      %v3072 = vsel %vm1241, %v2984, 0.0
      %3073 = vadd.xlane.f32.xlu0 %v3072
      %v3074 = vpop.xlane.xlu0 %3073
      %v3075 = vsel %vm1241, %v2985, 0.0
      %3076 = vadd.xlane.f32.xlu0 %v3075
      %v3077 = vpop.xlane.xlu0 %3076
      %v3078 = vsel %vm1241, %v2986, 0.0
      %3079 = vadd.xlane.f32.xlu0 %v3078
      %v3080 = vpop.xlane.xlu0 %3079
      %v3081 = vsel %vm1241, %v2987, 0.0
      %3082 = vadd.xlane.f32.xlu0 %v3081
      %v3083 = vpop.xlane.xlu0 %3082
      %v3084 = vsel %vm1241, %v2988, 0.0
      %3085 = vadd.xlane.f32.xlu0 %v3084
      %v3086 = vpop.xlane.xlu0 %3085
      %v3087 = vsel %vm1241, %v2989, 0.0
      %3088 = vadd.xlane.f32.xlu0 %v3087
      %v3089 = vpop.xlane.xlu0 %3088
      %v3090 = vsel %vm1241, %v2990, 0.0
      %3091 = vadd.xlane.f32.xlu0 %v3090
      %v3092 = vpop.xlane.xlu0 %3091
      %v3093 = vsel %vm1241, %v2991, 0.0
      %3094 = vadd.xlane.f32.xlu0 %v3093
      %v3095 = vpop.xlane.xlu0 %3094
      %v3096 = vsel %vm1241, %v2992, 0.0
      %3097 = vadd.xlane.f32.xlu0 %v3096
      %v3098 = vpop.xlane.xlu0 %3097
      %v3099 = vsel %vm1241, %v2993, 0.0
      %3100 = vadd.xlane.f32.xlu0 %v3099
      %v3101 = vpop.xlane.xlu0 %3100
      %v3102 = vsel %vm1241, %v2994, 0.0
      %3103 = vadd.xlane.f32.xlu0 %v3102
      %v3104 = vpop.xlane.xlu0 %3103
      %v3105 = vmul.f32 %v2999, %v1350
      %v3106 = vmul.f32 %v3002, %v1350
      %v3107 = vmul.f32 %v3005, %v1350
      %v3108 = vmul.f32 %v3008, %v1350
      %v3109 = vmul.f32 %v3011, %v1350
      %v3110 = vmul.f32 %v3014, %v1350
      %v3111 = vmul.f32 %v3017, %v1350
      %v3112 = vmul.f32 %v3020, %v1350
      %v3113 = vmul.f32 %v3023, %v1350
      %v3114 = vmul.f32 %v3026, %v1350
      %v3115 = vmul.f32 %v3029, %v1350
      %v3116 = vmul.f32 %v3032, %v1350
      %v3117 = vmul.f32 %v3035, %v1350
      %v3118 = vmul.f32 %v3038, %v1350
      %v3119 = vmul.f32 %v3041, %v1350
      %v3120 = vmul.f32 %v3044, %v1350
      %v3121 = vmul.f32 %v3047, %v1350
      %v3122 = vmul.f32 %v3050, %v1350
      %v3123 = vmul.f32 %v3053, %v1350
      %v3124 = vmul.f32 %v3056, %v1350
      %v3125 = vmul.f32 %v3059, %v1350
      %v3126 = vmul.f32 %v3062, %v1350
      %v3127 = vmul.f32 %v3065, %v1350
      %v3128 = vmul.f32 %v3068, %v1350
      %v3129 = vmul.f32 %v3071, %v1350
      %v3130 = vmul.f32 %v3074, %v1350
      %v3131 = vmul.f32 %v3077, %v1350
      %v3132 = vmul.f32 %v3080, %v1350
      %v3133 = vmul.f32 %v3083, %v1350
      %v3134 = vmul.f32 %v3086, %v1350
      %v3135 = vmul.f32 %v3089, %v1350
      %v3136 = vmul.f32 %v3092, %v1350
      %v3137 = vmul.f32 %v3095, %v1350
      %v3138 = vmul.f32 %v3098, %v1350
      %v3139 = vmul.f32 %v3101, %v1350
      %v3140 = vmul.f32 %v3104, %v1350
      %v3141 = vmul.f32 %v2959, %v2959
      %v3142 = vmul.f32 %v2960, %v2960
      %v3143 = vmul.f32 %v2961, %v2961
      %v3144 = vmul.f32 %v2962, %v2962
      %v3145 = vmul.f32 %v2963, %v2963
      %v3146 = vmul.f32 %v2964, %v2964
      %v3147 = vmul.f32 %v2965, %v2965
      %v3148 = vmul.f32 %v2966, %v2966
      %v3149 = vmul.f32 %v2967, %v2967
      %v3150 = vmul.f32 %v2968, %v2968
      %v3151 = vmul.f32 %v2969, %v2969
      %v3152 = vmul.f32 %v2970, %v2970
      %v3153 = vmul.f32 %v2971, %v2971
      %v3154 = vmul.f32 %v2972, %v2972
      %v3155 = vmul.f32 %v2973, %v2973
      %v3156 = vmul.f32 %v2974, %v2974
      %v3157 = vmul.f32 %v2975, %v2975
      %v3158 = vmul.f32 %v2976, %v2976
      %v3159 = vmul.f32 %v2977, %v2977
      %v3160 = vmul.f32 %v2978, %v2978
      %v3161 = vmul.f32 %v2979, %v2979
      %v3162 = vmul.f32 %v2980, %v2980
      %v3163 = vmul.f32 %v2981, %v2981
      %v3164 = vmul.f32 %v2982, %v2982
      %v3165 = vmul.f32 %v2983, %v2983
      %v3166 = vmul.f32 %v2984, %v2984
      %v3167 = vmul.f32 %v2985, %v2985
      %v3168 = vmul.f32 %v2986, %v2986
      %v3169 = vmul.f32 %v2987, %v2987
      %v3170 = vmul.f32 %v2988, %v2988
      %v3171 = vmul.f32 %v2989, %v2989
      %v3172 = vmul.f32 %v2990, %v2990
      %v3173 = vmul.f32 %v2991, %v2991
      %v3174 = vmul.f32 %v2992, %v2992
      %v3175 = vmul.f32 %v2993, %v2993
      %v3176 = vmul.f32 %v2994, %v2994
      %v3177 = vsel %vm1241, %v3141, 0.0
      %3178 = vadd.xlane.f32.xlu0 %v3177
      %v3179 = vpop.xlane.xlu0 %3178
      %v3180 = vsel %vm1241, %v3142, 0.0
      %3181 = vadd.xlane.f32.xlu0 %v3180
      %v3182 = vpop.xlane.xlu0 %3181
      %v3183 = vsel %vm1241, %v3143, 0.0
      %3184 = vadd.xlane.f32.xlu0 %v3183
      %v3185 = vpop.xlane.xlu0 %3184
      %v3186 = vsel %vm1241, %v3144, 0.0
      %3187 = vadd.xlane.f32.xlu0 %v3186
      %v3188 = vpop.xlane.xlu0 %3187
      %v3189 = vsel %vm1241, %v3145, 0.0
      %3190 = vadd.xlane.f32.xlu0 %v3189
      %v3191 = vpop.xlane.xlu0 %3190
      %v3192 = vsel %vm1241, %v3146, 0.0
      %3193 = vadd.xlane.f32.xlu0 %v3192
      %v3194 = vpop.xlane.xlu0 %3193
      %v3195 = vsel %vm1241, %v3147, 0.0
      %3196 = vadd.xlane.f32.xlu0 %v3195
      %v3197 = vpop.xlane.xlu0 %3196
      %v3198 = vsel %vm1241, %v3148, 0.0
      %3199 = vadd.xlane.f32.xlu0 %v3198
      %v3200 = vpop.xlane.xlu0 %3199
      %v3201 = vsel %vm1241, %v3149, 0.0
      %3202 = vadd.xlane.f32.xlu0 %v3201
      %v3203 = vpop.xlane.xlu0 %3202
      %v3204 = vsel %vm1241, %v3150, 0.0
      %3205 = vadd.xlane.f32.xlu0 %v3204
      %v3206 = vpop.xlane.xlu0 %3205
      %v3207 = vsel %vm1241, %v3151, 0.0
      %3208 = vadd.xlane.f32.xlu0 %v3207
      %v3209 = vpop.xlane.xlu0 %3208
      %v3210 = vsel %vm1241, %v3152, 0.0
      %3211 = vadd.xlane.f32.xlu0 %v3210
      %v3212 = vpop.xlane.xlu0 %3211
      %v3213 = vsel %vm1241, %v3153, 0.0
      %3214 = vadd.xlane.f32.xlu0 %v3213
      %v3215 = vpop.xlane.xlu0 %3214
      %v3216 = vsel %vm1241, %v3154, 0.0
      %3217 = vadd.xlane.f32.xlu0 %v3216
      %v3218 = vpop.xlane.xlu0 %3217
      %v3219 = vsel %vm1241, %v3155, 0.0
      %3220 = vadd.xlane.f32.xlu0 %v3219
      %v3221 = vpop.xlane.xlu0 %3220
      %v3222 = vsel %vm1241, %v3156, 0.0
      %3223 = vadd.xlane.f32.xlu0 %v3222
      %v3224 = vpop.xlane.xlu0 %3223
      %v3225 = vsel %vm1241, %v3157, 0.0
      %3226 = vadd.xlane.f32.xlu0 %v3225
      %v3227 = vpop.xlane.xlu0 %3226
      %v3228 = vsel %vm1241, %v3158, 0.0
      %3229 = vadd.xlane.f32.xlu0 %v3228
      %v3230 = vpop.xlane.xlu0 %3229
      %v3231 = vsel %vm1241, %v3159, 0.0
      %3232 = vadd.xlane.f32.xlu0 %v3231
      %v3233 = vpop.xlane.xlu0 %3232
      %v3234 = vsel %vm1241, %v3160, 0.0
      %3235 = vadd.xlane.f32.xlu0 %v3234
      %v3236 = vpop.xlane.xlu0 %3235
      %v3237 = vsel %vm1241, %v3161, 0.0
      %3238 = vadd.xlane.f32.xlu0 %v3237
      %v3239 = vpop.xlane.xlu0 %3238
      %v3240 = vsel %vm1241, %v3162, 0.0
      %3241 = vadd.xlane.f32.xlu0 %v3240
      %v3242 = vpop.xlane.xlu0 %3241
      %v3243 = vsel %vm1241, %v3163, 0.0
      %3244 = vadd.xlane.f32.xlu0 %v3243
      %v3245 = vpop.xlane.xlu0 %3244
      %v3246 = vsel %vm1241, %v3164, 0.0
      %3247 = vadd.xlane.f32.xlu0 %v3246
      %v3248 = vpop.xlane.xlu0 %3247
      %v3249 = vsel %vm1241, %v3165, 0.0
      %3250 = vadd.xlane.f32.xlu0 %v3249
      %v3251 = vpop.xlane.xlu0 %3250
      %v3252 = vsel %vm1241, %v3166, 0.0
      %3253 = vadd.xlane.f32.xlu0 %v3252
      %v3254 = vpop.xlane.xlu0 %3253
      %v3255 = vsel %vm1241, %v3167, 0.0
      %3256 = vadd.xlane.f32.xlu0 %v3255
      %v3257 = vpop.xlane.xlu0 %3256
      %v3258 = vsel %vm1241, %v3168, 0.0
      %3259 = vadd.xlane.f32.xlu0 %v3258
      %v3260 = vpop.xlane.xlu0 %3259
      %v3261 = vsel %vm1241, %v3169, 0.0
      %3262 = vadd.xlane.f32.xlu0 %v3261
      %v3263 = vpop.xlane.xlu0 %3262
      %v3264 = vsel %vm1241, %v3170, 0.0
      %3265 = vadd.xlane.f32.xlu0 %v3264
      %v3266 = vpop.xlane.xlu0 %3265
      %v3267 = vsel %vm1241, %v3171, 0.0
      %3268 = vadd.xlane.f32.xlu0 %v3267
      %v3269 = vpop.xlane.xlu0 %3268
      %v3270 = vsel %vm1241, %v3172, 0.0
      %3271 = vadd.xlane.f32.xlu0 %v3270
      %v3272 = vpop.xlane.xlu0 %3271
      %v3273 = vsel %vm1241, %v3173, 0.0
      %3274 = vadd.xlane.f32.xlu0 %v3273
      %v3275 = vpop.xlane.xlu0 %3274
      %v3276 = vsel %vm1241, %v3174, 0.0
      %3277 = vadd.xlane.f32.xlu0 %v3276
      %v3278 = vpop.xlane.xlu0 %3277
      %v3279 = vsel %vm1241, %v3175, 0.0
      %3280 = vadd.xlane.f32.xlu0 %v3279
      %v3281 = vpop.xlane.xlu0 %3280
      %v3282 = vsel %vm1241, %v3176, 0.0
      %3283 = vadd.xlane.f32.xlu0 %v3282
      %v3284 = vpop.xlane.xlu0 %3283
      %v3285 = vmul.f32 %v3179, %v1350
      %v3286 = vmul.f32 %v3182, %v1350
      %v3287 = vmul.f32 %v3185, %v1350
      %v3288 = vmul.f32 %v3188, %v1350
      %v3289 = vmul.f32 %v3191, %v1350
      %v3290 = vmul.f32 %v3194, %v1350
      %v3291 = vmul.f32 %v3197, %v1350
      %v3292 = vmul.f32 %v3200, %v1350
      %v3293 = vmul.f32 %v3203, %v1350
      %v3294 = vmul.f32 %v3206, %v1350
      %v3295 = vmul.f32 %v3209, %v1350
      %v3296 = vmul.f32 %v3212, %v1350
      %v3297 = vmul.f32 %v3215, %v1350
      %v3298 = vmul.f32 %v3218, %v1350
      %v3299 = vmul.f32 %v3221, %v1350
      %v3300 = vmul.f32 %v3224, %v1350
      %v3301 = vmul.f32 %v3227, %v1350
      %v3302 = vmul.f32 %v3230, %v1350
      %v3303 = vmul.f32 %v3233, %v1350
      %v3304 = vmul.f32 %v3236, %v1350
      %v3305 = vmul.f32 %v3239, %v1350
      %v3306 = vmul.f32 %v3242, %v1350
      %v3307 = vmul.f32 %v3245, %v1350
      %v3308 = vmul.f32 %v3248, %v1350
      %v3309 = vmul.f32 %v3251, %v1350
      %v3310 = vmul.f32 %v3254, %v1350
      %v3311 = vmul.f32 %v3257, %v1350
      %v3312 = vmul.f32 %v3260, %v1350
      %v3313 = vmul.f32 %v3263, %v1350
      %v3314 = vmul.f32 %v3266, %v1350
      %v3315 = vmul.f32 %v3269, %v1350
      %v3316 = vmul.f32 %v3272, %v1350
      %v3317 = vmul.f32 %v3275, %v1350
      %v3318 = vmul.f32 %v3278, %v1350
      %v3319 = vmul.f32 %v3281, %v1350
      %v3320 = vmul.f32 %v3284, %v1350
      %v3321 = vmul.f32 %v3105, %v3105
      %v3322 = vmul.f32 %v3106, %v3106
      %v3323 = vmul.f32 %v3107, %v3107
      %v3324 = vmul.f32 %v3108, %v3108
      %v3325 = vmul.f32 %v3109, %v3109
      %v3326 = vmul.f32 %v3110, %v3110
      %v3327 = vmul.f32 %v3111, %v3111
      %v3328 = vmul.f32 %v3112, %v3112
      %v3329 = vmul.f32 %v3113, %v3113
      %v3330 = vmul.f32 %v3114, %v3114
      %v3331 = vmul.f32 %v3115, %v3115
      %v3332 = vmul.f32 %v3116, %v3116
      %v3333 = vmul.f32 %v3117, %v3117
      %v3334 = vmul.f32 %v3118, %v3118
      %v3335 = vmul.f32 %v3119, %v3119
      %v3336 = vmul.f32 %v3120, %v3120
      %v3337 = vmul.f32 %v3121, %v3121
      %v3338 = vmul.f32 %v3122, %v3122
      %v3339 = vmul.f32 %v3123, %v3123
      %v3340 = vmul.f32 %v3124, %v3124
      %v3341 = vmul.f32 %v3125, %v3125
      %v3342 = vmul.f32 %v3126, %v3126
      %v3343 = vmul.f32 %v3127, %v3127
      %v3344 = vmul.f32 %v3128, %v3128
      %v3345 = vmul.f32 %v3129, %v3129
      %v3346 = vmul.f32 %v3130, %v3130
      %v3347 = vmul.f32 %v3131, %v3131
      %v3348 = vmul.f32 %v3132, %v3132
      %v3349 = vmul.f32 %v3133, %v3133
      %v3350 = vmul.f32 %v3134, %v3134
      %v3351 = vmul.f32 %v3135, %v3135
      %v3352 = vmul.f32 %v3136, %v3136
      %v3353 = vmul.f32 %v3137, %v3137
      %v3354 = vmul.f32 %v3138, %v3138
      %v3355 = vmul.f32 %v3139, %v3139
      %v3356 = vmul.f32 %v3140, %v3140
      %v3357 = vsub.f32 %v3285, %v3321
      %v3358 = vsub.f32 %v3286, %v3322
      %v3359 = vsub.f32 %v3287, %v3323
      %v3360 = vsub.f32 %v3288, %v3324
      %v3361 = vsub.f32 %v3289, %v3325
      %v3362 = vsub.f32 %v3290, %v3326
      %v3363 = vsub.f32 %v3291, %v3327
      %v3364 = vsub.f32 %v3292, %v3328
      %v3365 = vsub.f32 %v3293, %v3329
      %v3366 = vsub.f32 %v3294, %v3330
      %v3367 = vsub.f32 %v3295, %v3331
      %v3368 = vsub.f32 %v3296, %v3332
      %v3369 = vsub.f32 %v3297, %v3333
      %v3370 = vsub.f32 %v3298, %v3334
      %v3371 = vsub.f32 %v3299, %v3335
      %v3372 = vsub.f32 %v3300, %v3336
      %v3373 = vsub.f32 %v3301, %v3337
      %v3374 = vsub.f32 %v3302, %v3338
      %v3375 = vsub.f32 %v3303, %v3339
      %v3376 = vsub.f32 %v3304, %v3340
      %v3377 = vsub.f32 %v3305, %v3341
      %v3378 = vsub.f32 %v3306, %v3342
      %v3379 = vsub.f32 %v3307, %v3343
      %v3380 = vsub.f32 %v3308, %v3344
      %v3381 = vsub.f32 %v3309, %v3345
      %v3382 = vsub.f32 %v3310, %v3346
      %v3383 = vsub.f32 %v3311, %v3347
      %v3384 = vsub.f32 %v3312, %v3348
      %v3385 = vsub.f32 %v3313, %v3349
      %v3386 = vsub.f32 %v3314, %v3350
      %v3387 = vsub.f32 %v3315, %v3351
      %v3388 = vsub.f32 %v3316, %v3352
      %v3389 = vsub.f32 %v3317, %v3353
      %v3390 = vsub.f32 %v3318, %v3354
      %v3391 = vsub.f32 %v3319, %v3355
      %v3392 = vsub.f32 %v3320, %v3356
      %v3393 = vmax.f32 %v3357, 0.0
      %v3394 = vmax.f32 %v3358, 0.0
      %v3395 = vmax.f32 %v3359, 0.0
      %v3396 = vmax.f32 %v3360, 0.0
      %v3397 = vmax.f32 %v3361, 0.0
      %v3398 = vmax.f32 %v3362, 0.0
      %v3399 = vmax.f32 %v3363, 0.0
      %v3400 = vmax.f32 %v3364, 0.0
      %v3401 = vmax.f32 %v3365, 0.0
      %v3402 = vmax.f32 %v3366, 0.0
      %v3403 = vmax.f32 %v3367, 0.0
      %v3404 = vmax.f32 %v3368, 0.0
      %v3405 = vmax.f32 %v3369, 0.0
      %v3406 = vmax.f32 %v3370, 0.0
      %v3407 = vmax.f32 %v3371, 0.0
      %v3408 = vmax.f32 %v3372, 0.0
      %v3409 = vmax.f32 %v3373, 0.0
      %v3410 = vmax.f32 %v3374, 0.0
      %v3411 = vmax.f32 %v3375, 0.0
      %v3412 = vmax.f32 %v3376, 0.0
      %v3413 = vmax.f32 %v3377, 0.0
      %v3414 = vmax.f32 %v3378, 0.0
      %v3415 = vmax.f32 %v3379, 0.0
      %v3416 = vmax.f32 %v3380, 0.0
      %v3417 = vmax.f32 %v3381, 0.0
      %v3418 = vmax.f32 %v3382, 0.0
      %v3419 = vmax.f32 %v3383, 0.0
      %v3420 = vmax.f32 %v3384, 0.0
      %v3421 = vmax.f32 %v3385, 0.0
      %v3422 = vmax.f32 %v3386, 0.0
      %v3423 = vmax.f32 %v3387, 0.0
      %v3424 = vmax.f32 %v3388, 0.0
      %v3425 = vmax.f32 %v3389, 0.0
      %v3426 = vmax.f32 %v3390, 0.0
      %v3427 = vmax.f32 %v3391, 0.0
      %v3428 = vmax.f32 %v3392, 0.0
      %v3429 = vsub.f32 %v2959, %v3105
      %v3430 = vsub.f32 %v2960, %v3106
      %v3431 = vsub.f32 %v2961, %v3107
      %v3432 = vsub.f32 %v2962, %v3108
      %v3433 = vsub.f32 %v2963, %v3109
      %v3434 = vsub.f32 %v2964, %v3110
      %v3435 = vsub.f32 %v2965, %v3111
      %v3436 = vsub.f32 %v2966, %v3112
      %v3437 = vsub.f32 %v2967, %v3113
      %v3438 = vsub.f32 %v2968, %v3114
      %v3439 = vsub.f32 %v2969, %v3115
      %v3440 = vsub.f32 %v2970, %v3116
      %v3441 = vsub.f32 %v2971, %v3117
      %v3442 = vsub.f32 %v2972, %v3118
      %v3443 = vsub.f32 %v2973, %v3119
      %v3444 = vsub.f32 %v2974, %v3120
      %v3445 = vsub.f32 %v2975, %v3121
      %v3446 = vsub.f32 %v2976, %v3122
      %v3447 = vsub.f32 %v2977, %v3123
      %v3448 = vsub.f32 %v2978, %v3124
      %v3449 = vsub.f32 %v2979, %v3125
      %v3450 = vsub.f32 %v2980, %v3126
      %v3451 = vsub.f32 %v2981, %v3127
      %v3452 = vsub.f32 %v2982, %v3128
      %v3453 = vsub.f32 %v2983, %v3129
      %v3454 = vsub.f32 %v2984, %v3130
      %v3455 = vsub.f32 %v2985, %v3131
      %v3456 = vsub.f32 %v2986, %v3132
      %v3457 = vsub.f32 %v2987, %v3133
      %v3458 = vsub.f32 %v2988, %v3134
      %v3459 = vsub.f32 %v2989, %v3135
      %v3460 = vsub.f32 %v2990, %v3136
      %v3461 = vsub.f32 %v2991, %v3137
      %v3462 = vsub.f32 %v2992, %v3138
      %v3463 = vsub.f32 %v2993, %v3139
      %v3464 = vsub.f32 %v2994, %v3140
      %v3465 = vadd.f32 %v3393, 1e-05
      %v3466 = vadd.f32 %v3394, 1e-05
      %v3467 = vadd.f32 %v3395, 1e-05
      %v3468 = vadd.f32 %v3396, 1e-05
      %v3469 = vadd.f32 %v3397, 1e-05
      %v3470 = vadd.f32 %v3398, 1e-05
      %v3471 = vadd.f32 %v3399, 1e-05
      %v3472 = vadd.f32 %v3400, 1e-05
      %v3473 = vadd.f32 %v3401, 1e-05
      %v3474 = vadd.f32 %v3402, 1e-05
      %v3475 = vadd.f32 %v3403, 1e-05
      %v3476 = vadd.f32 %v3404, 1e-05
      %v3477 = vadd.f32 %v3405, 1e-05
      %v3478 = vadd.f32 %v3406, 1e-05
      %v3479 = vadd.f32 %v3407, 1e-05
      %v3480 = vadd.f32 %v3408, 1e-05
      %v3481 = vadd.f32 %v3409, 1e-05
      %v3482 = vadd.f32 %v3410, 1e-05
      %v3483 = vadd.f32 %v3411, 1e-05
      %v3484 = vadd.f32 %v3412, 1e-05
      %v3485 = vadd.f32 %v3413, 1e-05
      %v3486 = vadd.f32 %v3414, 1e-05
      %v3487 = vadd.f32 %v3415, 1e-05
      %v3488 = vadd.f32 %v3416, 1e-05
      %v3489 = vadd.f32 %v3417, 1e-05
      %v3490 = vadd.f32 %v3418, 1e-05
      %v3491 = vadd.f32 %v3419, 1e-05
      %v3492 = vadd.f32 %v3420, 1e-05
      %v3493 = vadd.f32 %v3421, 1e-05
      %v3494 = vadd.f32 %v3422, 1e-05
      %v3495 = vadd.f32 %v3423, 1e-05
      %v3496 = vadd.f32 %v3424, 1e-05
      %v3497 = vadd.f32 %v3425, 1e-05
      %v3498 = vadd.f32 %v3426, 1e-05
      %v3499 = vadd.f32 %v3427, 1e-05
      %v3500 = vadd.f32 %v3428, 1e-05
      %v3501 = vrsqrt.pop %v3465
      %v3502 = vrsqrt.pop %v3466
      %v3503 = vrsqrt.pop %v3467
      %v3504 = vrsqrt.pop %v3468
      %v3505 = vrsqrt.pop %v3469
      %v3506 = vrsqrt.pop %v3470
      %v3507 = vrsqrt.pop %v3471
      %v3508 = vrsqrt.pop %v3472
      %v3509 = vrsqrt.pop %v3473
      %v3510 = vrsqrt.pop %v3474
      %v3511 = vrsqrt.pop %v3475
      %v3512 = vrsqrt.pop %v3476
      %v3513 = vrsqrt.pop %v3477
      %v3514 = vrsqrt.pop %v3478
      %v3515 = vrsqrt.pop %v3479
      %v3516 = vrsqrt.pop %v3480
      %v3517 = vrsqrt.pop %v3481
      %v3518 = vrsqrt.pop %v3482
      %v3519 = vrsqrt.pop %v3483
      %v3520 = vrsqrt.pop %v3484
      %v3521 = vrsqrt.pop %v3485
      %v3522 = vrsqrt.pop %v3486
      %v3523 = vrsqrt.pop %v3487
      %v3524 = vrsqrt.pop %v3488
      %v3525 = vrsqrt.pop %v3489
      %v3526 = vrsqrt.pop %v3490
      %v3527 = vrsqrt.pop %v3491
      %v3528 = vrsqrt.pop %v3492
      %v3529 = vrsqrt.pop %v3493
      %v3530 = vrsqrt.pop %v3494
      %v3531 = vrsqrt.pop %v3495
      %v3532 = vrsqrt.pop %v3496
      %v3533 = vrsqrt.pop %v3497
      %v3534 = vrsqrt.pop %v3498
      %v3535 = vrsqrt.pop %v3499
      %v3536 = vrsqrt.pop %v3500
      %v3537 = vmul.f32 %v3429, %v3501
      %v3538 = vmul.f32 %v3430, %v3502
      %v3539 = vmul.f32 %v3431, %v3503
      %v3540 = vmul.f32 %v3432, %v3504
      %v3541 = vmul.f32 %v3433, %v3505
      %v3542 = vmul.f32 %v3434, %v3506
      %v3543 = vmul.f32 %v3435, %v3507
      %v3544 = vmul.f32 %v3436, %v3508
      %v3545 = vmul.f32 %v3437, %v3509
      %v3546 = vmul.f32 %v3438, %v3510
      %v3547 = vmul.f32 %v3439, %v3511
      %v3548 = vmul.f32 %v3440, %v3512
      %v3549 = vmul.f32 %v3441, %v3513
      %v3550 = vmul.f32 %v3442, %v3514
      %v3551 = vmul.f32 %v3443, %v3515
      %v3552 = vmul.f32 %v3444, %v3516
      %v3553 = vmul.f32 %v3445, %v3517
      %v3554 = vmul.f32 %v3446, %v3518
      %v3555 = vmul.f32 %v3447, %v3519
      %v3556 = vmul.f32 %v3448, %v3520
      %v3557 = vmul.f32 %v3449, %v3521
      %v3558 = vmul.f32 %v3450, %v3522
      %v3559 = vmul.f32 %v3451, %v3523
      %v3560 = vmul.f32 %v3452, %v3524
      %v3561 = vmul.f32 %v3453, %v3525
      %v3562 = vmul.f32 %v3454, %v3526
      %v3563 = vmul.f32 %v3455, %v3527
      %v3564 = vmul.f32 %v3456, %v3528
      %v3565 = vmul.f32 %v3457, %v3529
      %v3566 = vmul.f32 %v3458, %v3530
      %v3567 = vmul.f32 %v3459, %v3531
      %v3568 = vmul.f32 %v3460, %v3532
      %v3569 = vmul.f32 %v3461, %v3533
      %v3570 = vmul.f32 %v3462, %v3534
      %v3571 = vmul.f32 %v3463, %v3535
      %v3572 = vmul.f32 %v3464, %v3536
      %v3574 = vlaneseq
      %v3575 = vshrl.u32 %v3574, 7
      %v3576 = vsub.s32 0, %v3575
      %v3577 = vrot.slane %v2995, %v3576
      %v3579 = vmul.f32 %v3537, %v3577
      %v3580 = vmul.f32 %v3538, %v3577
      %v3581 = vmul.f32 %v3539, %v3577
      %v3582 = vmul.f32 %v3540, %v3577
      %v3583 = vmul.f32 %v3541, %v3577
      %v3584 = vmul.f32 %v3542, %v3577
      %v3585 = vmul.f32 %v3543, %v3577
      %v3586 = vmul.f32 %v3544, %v3577
      %v3587 = vmul.f32 %v3545, %v3577
      %v3588 = vmul.f32 %v3546, %v3577
      %v3589 = vmul.f32 %v3547, %v3577
      %v3590 = vmul.f32 %v3548, %v3577
      %v3591 = vmul.f32 %v3549, %v3577
      %v3592 = vmul.f32 %v3550, %v3577
      %v3593 = vmul.f32 %v3551, %v3577
      %v3594 = vmul.f32 %v3552, %v3577
      %v3595 = vmul.f32 %v3553, %v3577
      %v3596 = vmul.f32 %v3554, %v3577
      %v3597 = vmul.f32 %v3555, %v3577
      %v3598 = vmul.f32 %v3556, %v3577
      %v3599 = vmul.f32 %v3557, %v3577
      %v3600 = vmul.f32 %v3558, %v3577
      %v3601 = vmul.f32 %v3559, %v3577
      %v3602 = vmul.f32 %v3560, %v3577
      %v3603 = vmul.f32 %v3561, %v3577
      %v3604 = vmul.f32 %v3562, %v3577
      %v3605 = vmul.f32 %v3563, %v3577
      %v3606 = vmul.f32 %v3564, %v3577
      %v3607 = vmul.f32 %v3565, %v3577
      %v3608 = vmul.f32 %v3566, %v3577
      %v3609 = vmul.f32 %v3567, %v3577
      %v3610 = vmul.f32 %v3568, %v3577
      %v3611 = vmul.f32 %v3569, %v3577
      %v3612 = vmul.f32 %v3570, %v3577
      %v3613 = vmul.f32 %v3571, %v3577
      %v3614 = vmul.f32 %v3572, %v3577
      %v3616 = vlaneseq
      %v3617 = vshrl.u32 %v3616, 7
      %v3618 = vsub.s32 0, %v3617
      %v3619 = vrot.slane %v2996, %v3618
      %v3621 = vadd.f32 %v3579, %v3619
      %v3622 = vadd.f32 %v3580, %v3619
      %v3623 = vadd.f32 %v3581, %v3619
      %v3624 = vadd.f32 %v3582, %v3619
      %v3625 = vadd.f32 %v3583, %v3619
      %v3626 = vadd.f32 %v3584, %v3619
      %v3627 = vadd.f32 %v3585, %v3619
      %v3628 = vadd.f32 %v3586, %v3619
      %v3629 = vadd.f32 %v3587, %v3619
      %v3630 = vadd.f32 %v3588, %v3619
      %v3631 = vadd.f32 %v3589, %v3619
      %v3632 = vadd.f32 %v3590, %v3619
      %v3633 = vadd.f32 %v3591, %v3619
      %v3634 = vadd.f32 %v3592, %v3619
      %v3635 = vadd.f32 %v3593, %v3619
      %v3636 = vadd.f32 %v3594, %v3619
      %v3637 = vadd.f32 %v3595, %v3619
      %v3638 = vadd.f32 %v3596, %v3619
      %v3639 = vadd.f32 %v3597, %v3619
      %v3640 = vadd.f32 %v3598, %v3619
      %v3641 = vadd.f32 %v3599, %v3619
      %v3642 = vadd.f32 %v3600, %v3619
      %v3643 = vadd.f32 %v3601, %v3619
      %v3644 = vadd.f32 %v3602, %v3619
      %v3645 = vadd.f32 %v3603, %v3619
      %v3646 = vadd.f32 %v3604, %v3619
      %v3647 = vadd.f32 %v3605, %v3619
      %v3648 = vadd.f32 %v3606, %v3619
      %v3649 = vadd.f32 %v3607, %v3619
      %v3650 = vadd.f32 %v3608, %v3619
      %v3651 = vadd.f32 %v3609, %v3619
      %v3652 = vadd.f32 %v3610, %v3619
      %v3653 = vadd.f32 %v3611, %v3619
      %v3654 = vadd.f32 %v3612, %v3619
      %v3655 = vadd.f32 %v3613, %v3619
      %v3656 = vadd.f32 %v3614, %v3619
      %v3657 = vpack.c.bf16 %v3622, %v3621
      %v3658 = vpack.c.bf16 %v3624, %v3623
      %v3659 = vpack.c.bf16 %v3626, %v3625
      %v3660 = vpack.c.bf16 %v3628, %v3627
      %v3661 = vpack.c.bf16 %v3630, %v3629
      %v3662 = vpack.c.bf16 %v3632, %v3631
      %v3663 = vpack.c.bf16 %v3634, %v3633
      %v3664 = vpack.c.bf16 %v3636, %v3635
      %v3665 = vpack.c.bf16 %v3638, %v3637
      %v3666 = vpack.c.bf16 %v3640, %v3639
      %v3667 = vpack.c.bf16 %v3642, %v3641
      %v3668 = vpack.c.bf16 %v3644, %v3643
      %v3669 = vpack.c.bf16 %v3646, %v3645
      %v3670 = vpack.c.bf16 %v3648, %v3647
      %v3671 = vpack.c.bf16 %v3650, %v3649
      %v3672 = vpack.c.bf16 %v3652, %v3651
      %v3673 = vpack.c.bf16 %v3654, %v3653
      %v3674 = vpack.c.bf16 %v3656, %v3655
      %v3675 = vld [vmem:[%s10] sm:$0xf]
      %v3676 = vld [vmem:[%s10 + $0x4] sm:$0xf]
      %v3677 = vld [vmem:[%s10 + $0x8] sm:$0xf]
      %v3678 = vld [vmem:[%s10 + $0xc] sm:$0xf]
      %v3679 = vld [vmem:[%s11] sm:$0x1]
      %v3681 = vlaneseq
      %v3682 = vshrl.u32 %v3681, 7
      %v3683 = vsub.s32 0, %v3682
      %v3684 = vrot.slane %v3679, %v3683
      %v3690 = vunpack.c.l.b16 %v3675
      %v3691 = vunpack.c.l.b16 %v3676
      %v3692 = vunpack.c.l.b16 %v3677
      %v3693 = vunpack.c.l.b16 %v3678
      %v3694 = vpack.c.b16 %v3691, %v3690
      %v3695 = vpack.c.b16 %v3693, %v3692
      %v3699 = vsel %vm1241, %v3657, 0
      %v3702 = vsel %vm1241, %v3658, 0
      %v3705 = vsel %vm1241, %v3659, 0
      %v3708 = vsel %vm1241, %v3660, 0
      %v3711 = vsel %vm1241, %v3661, 0
      %v3714 = vsel %vm1241, %v3662, 0
      %v3717 = vsel %vm1241, %v3663, 0
      %v3720 = vsel %vm1241, %v3664, 0
      %v3723 = vsel %vm1241, %v3665, 0
      %v3726 = vsel %vm1241, %v3666, 0
      %v3729 = vsel %vm1241, %v3667, 0
      %v3732 = vsel %vm1241, %v3668, 0
      %v3735 = vsel %vm1241, %v3669, 0
      %v3738 = vsel %vm1241, %v3670, 0
      %v3741 = vsel %vm1241, %v3671, 0
      %v3744 = vsel %vm1241, %v3672, 0
      %v3747 = vsel %vm1241, %v3673, 0
      %v3750 = vsel %vm1241, %v3674, 0
      %3752 = vmatprep.subr.bf16.mxu0 0
      %3753 = vmatpush1.bf16.msra.mxu0 %v3694
      %3754 = vmatprep.subr.bf16.mxu0 0
      %3755 = vmatpush1.bf16.msra.mxu0 %v3695
      %3756 = vmatprep.subr.bf16.mxu0 0
      %3757 = vmatpush1.bf16.msra.mxu0 0
      %3758 = vmatprep.subr.bf16.mxu0 0
      %3759 = vmatpush1.bf16.msra.mxu0 0
      %3760 = vmatprep.subr.bf16.mxu0 0
      %3761 = vmatpush1.bf16.msra.mxu0 0
      %3762 = vmatprep.subr.bf16.mxu0 0
      %3763 = vmatpush1.bf16.msra.mxu0 0
      %3764 = vmatprep.subr.bf16.mxu0 0
      %3765 = vmatpush1.bf16.msra.mxu0 0
      %3766 = vmatprep.subr.bf16.mxu0 0
      %3767 = vmatpush1.bf16.msra.mxu0 0
      %3768 = vmatprep.subr.bf16.mxu0 0
      %3769 = vmatpush1.bf16.msra.mxu0 0
      %3770 = vmatprep.subr.bf16.mxu0 0
      %3771 = vmatpush1.bf16.msra.mxu0 0
      %3772 = vmatprep.subr.bf16.mxu0 0
      %3773 = vmatpush1.bf16.msra.mxu0 0
      %3774 = vmatprep.subr.bf16.mxu0 0
      %3775 = vmatpush1.bf16.msra.mxu0 0
      %3776 = vmatprep.subr.bf16.mxu0 0
      %3777 = vmatpush1.bf16.msra.mxu0 0
      %3778 = vmatprep.subr.bf16.mxu0 0
      %3779 = vmatpush1.bf16.msra.mxu0 0
      %3780 = vmatprep.subr.bf16.mxu0 0
      %3781 = vmatpush1.bf16.msra.mxu0 0
      %3782 = vmatprep.subr.bf16.mxu0 0
      %3783 = vmatpush1.bf16.msra.mxu0 0
      %3784 = vmatprep.mubr.bf16.mxu0 0
      %3785 = vmatmul.mubr.bf16.gmra.mrb[0].mxu0 %v3699
      %v3786 = vpop.f32.mrb[0].mxu0
      %v3787 = vadd.f32 %v3684, %v3786
      %v3788 = vpop.f32.mrb[0].mxu0
      %v3789 = vpop.f32.mrb[0].mxu0
      %v3790 = vadd.f32 %v3684, %v3789
      %v3791 = vpop.f32.mrb[0].mxu0
      %3792 = vmatprep.mubr.bf16.mxu0 0
      %3793 = vmatmul.mubr.bf16.gmra.mrb[0].mxu0 %v3702
      %v3794 = vpop.f32.mrb[0].mxu0
      %v3795 = vadd.f32 %v3684, %v3794
      %v3796 = vpop.f32.mrb[0].mxu0
      %v3797 = vpop.f32.mrb[0].mxu0
      %v3798 = vadd.f32 %v3684, %v3797
      %v3799 = vpop.f32.mrb[0].mxu0
      %3800 = vmatprep.mubr.bf16.mxu0 0
      %3801 = vmatmul.mubr.bf16.gmra.mrb[0].mxu0 %v3705
      %v3802 = vpop.f32.mrb[0].mxu0
      %v3803 = vadd.f32 %v3684, %v3802
      %v3804 = vpop.f32.mrb[0].mxu0
      %v3805 = vpop.f32.mrb[0].mxu0
      %v3806 = vadd.f32 %v3684, %v3805
      %v3807 = vpop.f32.mrb[0].mxu0
      %3808 = vmatprep.mubr.bf16.mxu0 0
      %3809 = vmatmul.mubr.bf16.gmra.mrb[0].mxu0 %v3708
      %v3810 = vpop.f32.mrb[0].mxu0
      %v3811 = vadd.f32 %v3684, %v3810
      %v3812 = vpop.f32.mrb[0].mxu0
      %v3813 = vpop.f32.mrb[0].mxu0
      %v3814 = vadd.f32 %v3684, %v3813
      %v3815 = vpop.f32.mrb[0].mxu0
      %3816 = vmatprep.mubr.bf16.mxu0 0
      %3817 = vmatmul.mubr.bf16.gmra.mrb[0].mxu0 %v3711
      %v3818 = vpop.f32.mrb[0].mxu0
      %v3819 = vadd.f32 %v3684, %v3818
      %v3820 = vpop.f32.mrb[0].mxu0
      %v3821 = vpop.f32.mrb[0].mxu0
      %v3822 = vadd.f32 %v3684, %v3821
      %v3823 = vpop.f32.mrb[0].mxu0
      %3824 = vmatprep.mubr.bf16.mxu0 0
      %3825 = vmatmul.mubr.bf16.gmra.mrb[0].mxu0 %v3714
      %v3826 = vpop.f32.mrb[0].mxu0
      %v3827 = vadd.f32 %v3684, %v3826
      %v3828 = vpop.f32.mrb[0].mxu0
      %v3829 = vpop.f32.mrb[0].mxu0
      %v3830 = vadd.f32 %v3684, %v3829
      %v3831 = vpop.f32.mrb[0].mxu0
      %3832 = vmatprep.mubr.bf16.mxu0 0
      %3833 = vmatmul.mubr.bf16.gmra.mrb[0].mxu0 %v3717
      %v3834 = vpop.f32.mrb[0].mxu0
      %v3835 = vadd.f32 %v3684, %v3834
      %v3836 = vpop.f32.mrb[0].mxu0
      %v3837 = vpop.f32.mrb[0].mxu0
      %v3838 = vadd.f32 %v3684, %v3837
      %v3839 = vpop.f32.mrb[0].mxu0
      %3840 = vmatprep.mubr.bf16.mxu0 0
      %3841 = vmatmul.mubr.bf16.gmra.mrb[0].mxu0 %v3720
      %v3842 = vpop.f32.mrb[0].mxu0
      %v3843 = vadd.f32 %v3684, %v3842
      %v3844 = vpop.f32.mrb[0].mxu0
      %v3845 = vpop.f32.mrb[0].mxu0
      %v3846 = vadd.f32 %v3684, %v3845
      %v3847 = vpop.f32.mrb[0].mxu0
      %3848 = vmatprep.mubr.bf16.mxu0 0
      %3849 = vmatmul.mubr.bf16.gmra.mrb[0].mxu0 %v3723
      %v3850 = vpop.f32.mrb[0].mxu0
      %v3851 = vadd.f32 %v3684, %v3850
      %v3852 = vpop.f32.mrb[0].mxu0
      %v3853 = vpop.f32.mrb[0].mxu0
      %v3854 = vadd.f32 %v3684, %v3853
      %v3855 = vpop.f32.mrb[0].mxu0
      %3856 = vmatprep.mubr.bf16.mxu0 0
      %3857 = vmatmul.mubr.bf16.gmra.mrb[0].mxu0 %v3726
      %v3858 = vpop.f32.mrb[0].mxu0
      %v3859 = vadd.f32 %v3684, %v3858
      %v3860 = vpop.f32.mrb[0].mxu0
      %v3861 = vpop.f32.mrb[0].mxu0
      %v3862 = vadd.f32 %v3684, %v3861
      %v3863 = vpop.f32.mrb[0].mxu0
      %3864 = vmatprep.mubr.bf16.mxu0 0
      %3865 = vmatmul.mubr.bf16.gmra.mrb[0].mxu0 %v3729
      %v3866 = vpop.f32.mrb[0].mxu0
      %v3867 = vadd.f32 %v3684, %v3866
      %v3868 = vpop.f32.mrb[0].mxu0
      %v3869 = vpop.f32.mrb[0].mxu0
      %v3870 = vadd.f32 %v3684, %v3869
      %v3871 = vpop.f32.mrb[0].mxu0
      %3872 = vmatprep.mubr.bf16.mxu0 0
      %3873 = vmatmul.mubr.bf16.gmra.mrb[0].mxu0 %v3732
      %v3874 = vpop.f32.mrb[0].mxu0
      %v3875 = vadd.f32 %v3684, %v3874
      %v3876 = vpop.f32.mrb[0].mxu0
      %v3877 = vpop.f32.mrb[0].mxu0
      %v3878 = vadd.f32 %v3684, %v3877
      %v3879 = vpop.f32.mrb[0].mxu0
      %3880 = vmatprep.mubr.bf16.mxu0 0
      %3881 = vmatmul.mubr.bf16.gmra.mrb[0].mxu0 %v3735
      %v3882 = vpop.f32.mrb[0].mxu0
      %v3883 = vadd.f32 %v3684, %v3882
      %v3884 = vpop.f32.mrb[0].mxu0
      %v3885 = vpop.f32.mrb[0].mxu0
      %v3886 = vadd.f32 %v3684, %v3885
      %v3887 = vpop.f32.mrb[0].mxu0
      %3888 = vmatprep.mubr.bf16.mxu0 0
      %3889 = vmatmul.mubr.bf16.gmra.mrb[0].mxu0 %v3738
      %v3890 = vpop.f32.mrb[0].mxu0
      %v3891 = vadd.f32 %v3684, %v3890
      %v3892 = vpop.f32.mrb[0].mxu0
      %v3893 = vpop.f32.mrb[0].mxu0
      %v3894 = vadd.f32 %v3684, %v3893
      %v3895 = vpop.f32.mrb[0].mxu0
      %3896 = vmatprep.mubr.bf16.mxu0 0
      %3897 = vmatmul.mubr.bf16.gmra.mrb[0].mxu0 %v3741
      %v3898 = vpop.f32.mrb[0].mxu0
      %v3899 = vadd.f32 %v3684, %v3898
      %v3900 = vpop.f32.mrb[0].mxu0
      %v3901 = vpop.f32.mrb[0].mxu0
      %v3902 = vadd.f32 %v3684, %v3901
      %v3903 = vpop.f32.mrb[0].mxu0
      %3904 = vmatprep.mubr.bf16.mxu0 0
      %3905 = vmatmul.mubr.bf16.gmra.mrb[0].mxu0 %v3744
      %v3906 = vpop.f32.mrb[0].mxu0
      %v3907 = vadd.f32 %v3684, %v3906
      %v3908 = vpop.f32.mrb[0].mxu0
      %v3909 = vpop.f32.mrb[0].mxu0
      %v3910 = vadd.f32 %v3684, %v3909
      %v3911 = vpop.f32.mrb[0].mxu0
      %3912 = vmatprep.mubr.bf16.mxu0 0
      %3913 = vmatmul.mubr.bf16.gmra.mrb[0].mxu0 %v3747
      %v3914 = vpop.f32.mrb[0].mxu0
      %v3915 = vadd.f32 %v3684, %v3914
      %v3916 = vpop.f32.mrb[0].mxu0
      %v3917 = vpop.f32.mrb[0].mxu0
      %v3918 = vadd.f32 %v3684, %v3917
      %v3919 = vpop.f32.mrb[0].mxu0
      %3920 = vmatprep.mubr.bf16.mxu0 0
      %3921 = vmatmul.mubr.bf16.gmra.mrb[0].mxu0 %v3750
      %v3922 = vpop.f32.mrb[0].mxu0
      %v3923 = vadd.f32 %v3684, %v3922
      %v3924 = vpop.f32.mrb[0].mxu0
      %v3925 = vpop.f32.mrb[0].mxu0
      %v3926 = vadd.f32 %v3684, %v3925
      %v3927 = vpop.f32.mrb[0].mxu0
      %3928 = vdwg.mxu0
      %v3929 = vmul.f32 %v3787, 0.5
      %v3930 = vmul.f32 %v3790, 0.5
      %v3931 = vmul.f32 %v3795, 0.5
      %v3932 = vmul.f32 %v3798, 0.5
      %v3933 = vmul.f32 %v3803, 0.5
      %v3934 = vmul.f32 %v3806, 0.5
      %v3935 = vmul.f32 %v3811, 0.5
      %v3936 = vmul.f32 %v3814, 0.5
      %v3937 = vmul.f32 %v3819, 0.5
      %v3938 = vmul.f32 %v3822, 0.5
      %v3939 = vmul.f32 %v3827, 0.5
      %v3940 = vmul.f32 %v3830, 0.5
      %v3941 = vmul.f32 %v3835, 0.5
      %v3942 = vmul.f32 %v3838, 0.5
      %v3943 = vmul.f32 %v3843, 0.5
      %v3944 = vmul.f32 %v3846, 0.5
      %v3945 = vmul.f32 %v3851, 0.5
      %v3946 = vmul.f32 %v3854, 0.5
      %v3947 = vmul.f32 %v3859, 0.5
      %v3948 = vmul.f32 %v3862, 0.5
      %v3949 = vmul.f32 %v3867, 0.5
      %v3950 = vmul.f32 %v3870, 0.5
      %v3951 = vmul.f32 %v3875, 0.5
      %v3952 = vmul.f32 %v3878, 0.5
      %v3953 = vmul.f32 %v3883, 0.5
      %v3954 = vmul.f32 %v3886, 0.5
      %v3955 = vmul.f32 %v3891, 0.5
      %v3956 = vmul.f32 %v3894, 0.5
      %v3957 = vmul.f32 %v3899, 0.5
      %v3958 = vmul.f32 %v3902, 0.5
      %v3959 = vmul.f32 %v3907, 0.5
      %v3960 = vmul.f32 %v3910, 0.5
      %v3961 = vmul.f32 %v3915, 0.5
      %v3962 = vmul.f32 %v3918, 0.5
      %v3963 = vmul.f32 %v3923, 0.5
      %v3964 = vmul.f32 %v3926, 0.5
      %v3965 = vmul.f32 %v3787, 0.044715
      %v3966 = vmul.f32 %v3790, 0.044715
      %v3967 = vmul.f32 %v3795, 0.044715
      %v3968 = vmul.f32 %v3798, 0.044715
      %v3969 = vmul.f32 %v3803, 0.044715
      %v3970 = vmul.f32 %v3806, 0.044715
      %v3971 = vmul.f32 %v3811, 0.044715
      %v3972 = vmul.f32 %v3814, 0.044715
      %v3973 = vmul.f32 %v3819, 0.044715
      %v3974 = vmul.f32 %v3822, 0.044715
      %v3975 = vmul.f32 %v3827, 0.044715
      %v3976 = vmul.f32 %v3830, 0.044715
      %v3977 = vmul.f32 %v3835, 0.044715
      %v3978 = vmul.f32 %v3838, 0.044715
      %v3979 = vmul.f32 %v3843, 0.044715
      %v3980 = vmul.f32 %v3846, 0.044715
      %v3981 = vmul.f32 %v3851, 0.044715
      %v3982 = vmul.f32 %v3854, 0.044715
      %v3983 = vmul.f32 %v3859, 0.044715
      %v3984 = vmul.f32 %v3862, 0.044715
      %v3985 = vmul.f32 %v3867, 0.044715
      %v3986 = vmul.f32 %v3870, 0.044715
      %v3987 = vmul.f32 %v3875, 0.044715
      %v3988 = vmul.f32 %v3878, 0.044715
      %v3989 = vmul.f32 %v3883, 0.044715
      %v3990 = vmul.f32 %v3886, 0.044715
      %v3991 = vmul.f32 %v3891, 0.044715
      %v3992 = vmul.f32 %v3894, 0.044715
      %v3993 = vmul.f32 %v3899, 0.044715
      %v3994 = vmul.f32 %v3902, 0.044715
      %v3995 = vmul.f32 %v3907, 0.044715
      %v3996 = vmul.f32 %v3910, 0.044715
      %v3997 = vmul.f32 %v3915, 0.044715
      %v3998 = vmul.f32 %v3918, 0.044715
      %v3999 = vmul.f32 %v3923, 0.044715
      %v4000 = vmul.f32 %v3926, 0.044715
      %v4001 = vmul.f32 %v3965, %v3787
      %v4002 = vmul.f32 %v3966, %v3790
      %v4003 = vmul.f32 %v3967, %v3795
      %v4004 = vmul.f32 %v3968, %v3798
      %v4005 = vmul.f32 %v3969, %v3803
      %v4006 = vmul.f32 %v3970, %v3806
      %v4007 = vmul.f32 %v3971, %v3811
      %v4008 = vmul.f32 %v3972, %v3814
      %v4009 = vmul.f32 %v3973, %v3819
      %v4010 = vmul.f32 %v3974, %v3822
      %v4011 = vmul.f32 %v3975, %v3827
      %v4012 = vmul.f32 %v3976, %v3830
      %v4013 = vmul.f32 %v3977, %v3835
      %v4014 = vmul.f32 %v3978, %v3838
      %v4015 = vmul.f32 %v3979, %v3843
      %v4016 = vmul.f32 %v3980, %v3846
      %v4017 = vmul.f32 %v3981, %v3851
      %v4018 = vmul.f32 %v3982, %v3854
      %v4019 = vmul.f32 %v3983, %v3859
      %v4020 = vmul.f32 %v3984, %v3862
      %v4021 = vmul.f32 %v3985, %v3867
      %v4022 = vmul.f32 %v3986, %v3870
      %v4023 = vmul.f32 %v3987, %v3875
      %v4024 = vmul.f32 %v3988, %v3878
      %v4025 = vmul.f32 %v3989, %v3883
      %v4026 = vmul.f32 %v3990, %v3886
      %v4027 = vmul.f32 %v3991, %v3891
      %v4028 = vmul.f32 %v3992, %v3894
      %v4029 = vmul.f32 %v3993, %v3899
      %v4030 = vmul.f32 %v3994, %v3902
      %v4031 = vmul.f32 %v3995, %v3907
      %v4032 = vmul.f32 %v3996, %v3910
      %v4033 = vmul.f32 %v3997, %v3915
      %v4034 = vmul.f32 %v3998, %v3918
      %v4035 = vmul.f32 %v3999, %v3923
      %v4036 = vmul.f32 %v4000, %v3926
      %v4037 = vmul.f32 %v4001, %v3787
      %v4038 = vmul.f32 %v4002, %v3790
      %v4039 = vmul.f32 %v4003, %v3795
      %v4040 = vmul.f32 %v4004, %v3798
      %v4041 = vmul.f32 %v4005, %v3803
      %v4042 = vmul.f32 %v4006, %v3806
      %v4043 = vmul.f32 %v4007, %v3811
      %v4044 = vmul.f32 %v4008, %v3814
      %v4045 = vmul.f32 %v4009, %v3819
      %v4046 = vmul.f32 %v4010, %v3822
      %v4047 = vmul.f32 %v4011, %v3827
      %v4048 = vmul.f32 %v4012, %v3830
      %v4049 = vmul.f32 %v4013, %v3835
      %v4050 = vmul.f32 %v4014, %v3838
      %v4051 = vmul.f32 %v4015, %v3843
      %v4052 = vmul.f32 %v4016, %v3846
      %v4053 = vmul.f32 %v4017, %v3851
      %v4054 = vmul.f32 %v4018, %v3854
      %v4055 = vmul.f32 %v4019, %v3859
      %v4056 = vmul.f32 %v4020, %v3862
      %v4057 = vmul.f32 %v4021, %v3867
      %v4058 = vmul.f32 %v4022, %v3870
      %v4059 = vmul.f32 %v4023, %v3875
      %v4060 = vmul.f32 %v4024, %v3878
      %v4061 = vmul.f32 %v4025, %v3883
      %v4062 = vmul.f32 %v4026, %v3886
      %v4063 = vmul.f32 %v4027, %v3891
      %v4064 = vmul.f32 %v4028, %v3894
      %v4065 = vmul.f32 %v4029, %v3899
      %v4066 = vmul.f32 %v4030, %v3902
      %v4067 = vmul.f32 %v4031, %v3907
      %v4068 = vmul.f32 %v4032, %v3910
      %v4069 = vmul.f32 %v4033, %v3915
      %v4070 = vmul.f32 %v4034, %v3918
      %v4071 = vmul.f32 %v4035, %v3923
      %v4072 = vmul.f32 %v4036, %v3926
      %v4073 = vadd.f32 %v3787, %v4037
      %v4074 = vadd.f32 %v3790, %v4038
      %v4075 = vadd.f32 %v3795, %v4039
      %v4076 = vadd.f32 %v3798, %v4040
      %v4077 = vadd.f32 %v3803, %v4041
      %v4078 = vadd.f32 %v3806, %v4042
      %v4079 = vadd.f32 %v3811, %v4043
      %v4080 = vadd.f32 %v3814, %v4044
      %v4081 = vadd.f32 %v3819, %v4045
      %v4082 = vadd.f32 %v3822, %v4046
      %v4083 = vadd.f32 %v3827, %v4047
      %v4084 = vadd.f32 %v3830, %v4048
      %v4085 = vadd.f32 %v3835, %v4049
      %v4086 = vadd.f32 %v3838, %v4050
      %v4087 = vadd.f32 %v3843, %v4051
      %v4088 = vadd.f32 %v3846, %v4052
      %v4089 = vadd.f32 %v3851, %v4053
      %v4090 = vadd.f32 %v3854, %v4054
      %v4091 = vadd.f32 %v3859, %v4055
      %v4092 = vadd.f32 %v3862, %v4056
      %v4093 = vadd.f32 %v3867, %v4057
      %v4094 = vadd.f32 %v3870, %v4058
      %v4095 = vadd.f32 %v3875, %v4059
      %v4096 = vadd.f32 %v3878, %v4060
      %v4097 = vadd.f32 %v3883, %v4061
      %v4098 = vadd.f32 %v3886, %v4062
      %v4099 = vadd.f32 %v3891, %v4063
      %v4100 = vadd.f32 %v3894, %v4064
      %v4101 = vadd.f32 %v3899, %v4065
      %v4102 = vadd.f32 %v3902, %v4066
      %v4103 = vadd.f32 %v3907, %v4067
      %v4104 = vadd.f32 %v3910, %v4068
      %v4105 = vadd.f32 %v3915, %v4069
      %v4106 = vadd.f32 %v3918, %v4070
      %v4107 = vadd.f32 %v3923, %v4071
      %v4108 = vadd.f32 %v3926, %v4072
      %v4109 = vmul.f32 %v4073, 0.7978846
      %v4110 = vmul.f32 %v4074, 0.7978846
      %v4111 = vmul.f32 %v4075, 0.7978846
      %v4112 = vmul.f32 %v4076, 0.7978846
      %v4113 = vmul.f32 %v4077, 0.7978846
      %v4114 = vmul.f32 %v4078, 0.7978846
      %v4115 = vmul.f32 %v4079, 0.7978846
      %v4116 = vmul.f32 %v4080, 0.7978846
      %v4117 = vmul.f32 %v4081, 0.7978846
      %v4118 = vmul.f32 %v4082, 0.7978846
      %v4119 = vmul.f32 %v4083, 0.7978846
      %v4120 = vmul.f32 %v4084, 0.7978846
      %v4121 = vmul.f32 %v4085, 0.7978846
      %v4122 = vmul.f32 %v4086, 0.7978846
      %v4123 = vmul.f32 %v4087, 0.7978846
      %v4124 = vmul.f32 %v4088, 0.7978846
      %v4125 = vmul.f32 %v4089, 0.7978846
      %v4126 = vmul.f32 %v4090, 0.7978846
      %v4127 = vmul.f32 %v4091, 0.7978846
      %v4128 = vmul.f32 %v4092, 0.7978846
      %v4129 = vmul.f32 %v4093, 0.7978846
      %v4130 = vmul.f32 %v4094, 0.7978846
      %v4131 = vmul.f32 %v4095, 0.7978846
      %v4132 = vmul.f32 %v4096, 0.7978846
      %v4133 = vmul.f32 %v4097, 0.7978846
      %v4134 = vmul.f32 %v4098, 0.7978846
      %v4135 = vmul.f32 %v4099, 0.7978846
      %v4136 = vmul.f32 %v4100, 0.7978846
      %v4137 = vmul.f32 %v4101, 0.7978846
      %v4138 = vmul.f32 %v4102, 0.7978846
      %v4139 = vmul.f32 %v4103, 0.7978846
      %v4140 = vmul.f32 %v4104, 0.7978846
      %v4141 = vmul.f32 %v4105, 0.7978846
      %v4142 = vmul.f32 %v4106, 0.7978846
      %v4143 = vmul.f32 %v4107, 0.7978846
      %v4144 = vmul.f32 %v4108, 0.7978846
      %v4145 = vtanh.pop %v4109
      %v4146 = vtanh.pop %v4110
      %v4147 = vtanh.pop %v4111
      %v4148 = vtanh.pop %v4112
      %v4149 = vtanh.pop %v4113
      %v4150 = vtanh.pop %v4114
      %v4151 = vtanh.pop %v4115
      %v4152 = vtanh.pop %v4116
      %v4153 = vtanh.pop %v4117
      %v4154 = vtanh.pop %v4118
      %v4155 = vtanh.pop %v4119
      %v4156 = vtanh.pop %v4120
      %v4157 = vtanh.pop %v4121
      %v4158 = vtanh.pop %v4122
      %v4159 = vtanh.pop %v4123
      %v4160 = vtanh.pop %v4124
      %v4161 = vtanh.pop %v4125
      %v4162 = vtanh.pop %v4126
      %v4163 = vtanh.pop %v4127
      %v4164 = vtanh.pop %v4128
      %v4165 = vtanh.pop %v4129
      %v4166 = vtanh.pop %v4130
      %v4167 = vtanh.pop %v4131
      %v4168 = vtanh.pop %v4132
      %v4169 = vtanh.pop %v4133
      %v4170 = vtanh.pop %v4134
      %v4171 = vtanh.pop %v4135
      %v4172 = vtanh.pop %v4136
      %v4173 = vtanh.pop %v4137
      %v4174 = vtanh.pop %v4138
      %v4175 = vtanh.pop %v4139
      %v4176 = vtanh.pop %v4140
      %v4177 = vtanh.pop %v4141
      %v4178 = vtanh.pop %v4142
      %v4179 = vtanh.pop %v4143
      %v4180 = vtanh.pop %v4144
      %v4181 = vadd.f32 %v4145, 1.0
      %v4182 = vadd.f32 %v4146, 1.0
      %v4183 = vadd.f32 %v4147, 1.0
      %v4184 = vadd.f32 %v4148, 1.0
      %v4185 = vadd.f32 %v4149, 1.0
      %v4186 = vadd.f32 %v4150, 1.0
      %v4187 = vadd.f32 %v4151, 1.0
      %v4188 = vadd.f32 %v4152, 1.0
      %v4189 = vadd.f32 %v4153, 1.0
      %v4190 = vadd.f32 %v4154, 1.0
      %v4191 = vadd.f32 %v4155, 1.0
      %v4192 = vadd.f32 %v4156, 1.0
      %v4193 = vadd.f32 %v4157, 1.0
      %v4194 = vadd.f32 %v4158, 1.0
      %v4195 = vadd.f32 %v4159, 1.0
      %v4196 = vadd.f32 %v4160, 1.0
      %v4197 = vadd.f32 %v4161, 1.0
      %v4198 = vadd.f32 %v4162, 1.0
      %v4199 = vadd.f32 %v4163, 1.0
      %v4200 = vadd.f32 %v4164, 1.0
      %v4201 = vadd.f32 %v4165, 1.0
      %v4202 = vadd.f32 %v4166, 1.0
      %v4203 = vadd.f32 %v4167, 1.0
      %v4204 = vadd.f32 %v4168, 1.0
      %v4205 = vadd.f32 %v4169, 1.0
      %v4206 = vadd.f32 %v4170, 1.0
      %v4207 = vadd.f32 %v4171, 1.0
      %v4208 = vadd.f32 %v4172, 1.0
      %v4209 = vadd.f32 %v4173, 1.0
      %v4210 = vadd.f32 %v4174, 1.0
      %v4211 = vadd.f32 %v4175, 1.0
      %v4212 = vadd.f32 %v4176, 1.0
      %v4213 = vadd.f32 %v4177, 1.0
      %v4214 = vadd.f32 %v4178, 1.0
      %v4215 = vadd.f32 %v4179, 1.0
      %v4216 = vadd.f32 %v4180, 1.0
      %v4217 = vmul.f32 %v3929, %v4181
      %v4218 = vmul.f32 %v3930, %v4182
      %v4219 = vmul.f32 %v3931, %v4183
      %v4220 = vmul.f32 %v3932, %v4184
      %v4221 = vmul.f32 %v3933, %v4185
      %v4222 = vmul.f32 %v3934, %v4186
      %v4223 = vmul.f32 %v3935, %v4187
      %v4224 = vmul.f32 %v3936, %v4188
      %v4225 = vmul.f32 %v3937, %v4189
      %v4226 = vmul.f32 %v3938, %v4190
      %v4227 = vmul.f32 %v3939, %v4191
      %v4228 = vmul.f32 %v3940, %v4192
      %v4229 = vmul.f32 %v3941, %v4193
      %v4230 = vmul.f32 %v3942, %v4194
      %v4231 = vmul.f32 %v3943, %v4195
      %v4232 = vmul.f32 %v3944, %v4196
      %v4233 = vmul.f32 %v3945, %v4197
      %v4234 = vmul.f32 %v3946, %v4198
      %v4235 = vmul.f32 %v3947, %v4199
      %v4236 = vmul.f32 %v3948, %v4200
      %v4237 = vmul.f32 %v3949, %v4201
      %v4238 = vmul.f32 %v3950, %v4202
      %v4239 = vmul.f32 %v3951, %v4203
      %v4240 = vmul.f32 %v3952, %v4204
      %v4241 = vmul.f32 %v3953, %v4205
      %v4242 = vmul.f32 %v3954, %v4206
      %v4243 = vmul.f32 %v3955, %v4207
      %v4244 = vmul.f32 %v3956, %v4208
      %v4245 = vmul.f32 %v3957, %v4209
      %v4246 = vmul.f32 %v3958, %v4210
      %v4247 = vmul.f32 %v3959, %v4211
      %v4248 = vmul.f32 %v3960, %v4212
      %v4249 = vmul.f32 %v3961, %v4213
      %v4250 = vmul.f32 %v3962, %v4214
      %v4251 = vmul.f32 %v3963, %v4215
      %v4252 = vmul.f32 %v3964, %v4216
      %v4253 = vpack.c.bf16 %v4218, %v4217
      %v4254 = vpack.c.bf16 %v4220, %v4219
      %v4255 = vpack.c.bf16 %v4222, %v4221
      %v4256 = vpack.c.bf16 %v4224, %v4223
      %v4257 = vpack.c.bf16 %v4226, %v4225
      %v4258 = vpack.c.bf16 %v4228, %v4227
      %v4259 = vpack.c.bf16 %v4230, %v4229
      %v4260 = vpack.c.bf16 %v4232, %v4231
      %v4261 = vpack.c.bf16 %v4234, %v4233
      %v4262 = vpack.c.bf16 %v4236, %v4235
      %v4263 = vpack.c.bf16 %v4238, %v4237
      %v4264 = vpack.c.bf16 %v4240, %v4239
      %v4265 = vpack.c.bf16 %v4242, %v4241
      %v4266 = vpack.c.bf16 %v4244, %v4243
      %v4267 = vpack.c.bf16 %v4246, %v4245
      %v4268 = vpack.c.bf16 %v4248, %v4247
      %v4269 = vpack.c.bf16 %v4250, %v4249
      %v4270 = vpack.c.bf16 %v4252, %v4251
      %v4271 = vld [vmem:[%s12] sm:$0xf]
      %v4272 = vld [vmem:[%s12 + $0x4] sm:$0xf]
      %v4273 = vld [vmem:[%s12 + $0x8] sm:$0xf]
      %v4274 = vld [vmem:[%s12 + $0xc] sm:$0xf]
      %v4275 = vld [vmem:[%s12 + $0x10] sm:$0xf]
      %v4276 = vld [vmem:[%s12 + $0x14] sm:$0xf]
      %v4277 = vld [vmem:[%s12 + $0x18] sm:$0xf]
      %v4278 = vld [vmem:[%s12 + $0x1c] sm:$0xf]
      %v4279 = vld [vmem:[%s13] sm:$0x1]
      %v4281 = vlaneseq
      %v4282 = vshrl.u32 %v4281, 7
      %v4283 = vsub.s32 0, %v4282
      %v4284 = vrot.slane %v4279, %v4283
      %v4294 = vunpack.c.l.b16 %v4271
      %v4295 = vunpack.c.l.b16 %v4272
      %v4296 = vunpack.c.l.b16 %v4273
      %v4297 = vunpack.c.l.b16 %v4274
      %v4298 = vunpack.c.l.b16 %v4275
      %v4299 = vunpack.c.l.b16 %v4276
      %v4300 = vunpack.c.l.b16 %v4277
      %v4301 = vunpack.c.l.b16 %v4278
      %v4302 = vpack.c.b16 %v4295, %v4294
      %v4303 = vpack.c.b16 %v4297, %v4296
      %v4304 = vpack.c.b16 %v4299, %v4298
      %v4305 = vpack.c.b16 %v4301, %v4300
      %v4311 = vsel %vm1007, %v4253, 0
      %v4314 = vsel %vm1007, %v4254, 0
      %v4317 = vsel %vm1007, %v4255, 0
      %v4320 = vsel %vm1007, %v4256, 0
      %v4323 = vsel %vm1007, %v4257, 0
      %v4326 = vsel %vm1007, %v4258, 0
      %v4329 = vsel %vm1007, %v4259, 0
      %v4332 = vsel %vm1007, %v4260, 0
      %v4335 = vsel %vm1007, %v4261, 0
      %v4338 = vsel %vm1007, %v4262, 0
      %v4341 = vsel %vm1007, %v4263, 0
      %v4344 = vsel %vm1007, %v4264, 0
      %v4347 = vsel %vm1007, %v4265, 0
      %v4350 = vsel %vm1007, %v4266, 0
      %v4353 = vsel %vm1007, %v4267, 0
      %v4356 = vsel %vm1007, %v4268, 0
      %v4359 = vsel %vm1007, %v4269, 0
      %v4362 = vsel %vm1007, %v4270, 0
      %4364 = vmatprep.subr.bf16.mxu0 0
      %4365 = vmatpush1.bf16.msra.mxu0 %v4302
      %4366 = vmatprep.subr.bf16.mxu0 0
      %4367 = vmatpush1.bf16.msra.mxu0 %v4303
      %4368 = vmatprep.subr.bf16.mxu0 0
      %4369 = vmatpush1.bf16.msra.mxu0 %v4304
      %4370 = vmatprep.subr.bf16.mxu0 0
      %4371 = vmatpush1.bf16.msra.mxu0 %v4305
      %4372 = vmatprep.subr.bf16.mxu0 0
      %4373 = vmatpush1.bf16.msra.mxu0 0
      %4374 = vmatprep.subr.bf16.mxu0 0
      %4375 = vmatpush1.bf16.msra.mxu0 0
      %4376 = vmatprep.subr.bf16.mxu0 0
      %4377 = vmatpush1.bf16.msra.mxu0 0
      %4378 = vmatprep.subr.bf16.mxu0 0
      %4379 = vmatpush1.bf16.msra.mxu0 0
      %4380 = vmatprep.subr.bf16.mxu0 0
      %4381 = vmatpush1.bf16.msra.mxu0 0
      %4382 = vmatprep.subr.bf16.mxu0 0
      %4383 = vmatpush1.bf16.msra.mxu0 0
      %4384 = vmatprep.subr.bf16.mxu0 0
      %4385 = vmatpush1.bf16.msra.mxu0 0
      %4386 = vmatprep.subr.bf16.mxu0 0
      %4387 = vmatpush1.bf16.msra.mxu0 0
      %4388 = vmatprep.subr.bf16.mxu0 0
      %4389 = vmatpush1.bf16.msra.mxu0 0
      %4390 = vmatprep.subr.bf16.mxu0 0
      %4391 = vmatpush1.bf16.msra.mxu0 0
      %4392 = vmatprep.subr.bf16.mxu0 0
      %4393 = vmatpush1.bf16.msra.mxu0 0
      %4394 = vmatprep.subr.bf16.mxu0 0
      %4395 = vmatpush1.bf16.msra.mxu0 0
      %4396 = vmatprep.mubr.bf16.mxu0 0
      %4397 = vmatmul.mubr.bf16.gmra.mrb[0].mxu0 %v4311
      %v4398 = vpop.f32.mrb[0].mxu0
      %v4399 = vadd.f32 %v4284, %v4398
      %v4400 = vpop.f32.mrb[0].mxu0
      %v4401 = vpop.f32.mrb[0].mxu0
      %v4402 = vadd.f32 %v4284, %v4401
      %v4403 = vpop.f32.mrb[0].mxu0
      %4404 = vmatprep.mubr.bf16.mxu0 0
      %4405 = vmatmul.mubr.bf16.gmra.mrb[0].mxu0 %v4314
      %v4406 = vpop.f32.mrb[0].mxu0
      %v4407 = vadd.f32 %v4284, %v4406
      %v4408 = vpop.f32.mrb[0].mxu0
      %v4409 = vpop.f32.mrb[0].mxu0
      %v4410 = vadd.f32 %v4284, %v4409
      %v4411 = vpop.f32.mrb[0].mxu0
      %4412 = vmatprep.mubr.bf16.mxu0 0
      %4413 = vmatmul.mubr.bf16.gmra.mrb[0].mxu0 %v4317
      %v4414 = vpop.f32.mrb[0].mxu0
      %v4415 = vadd.f32 %v4284, %v4414
      %v4416 = vpop.f32.mrb[0].mxu0
      %v4417 = vpop.f32.mrb[0].mxu0
      %v4418 = vadd.f32 %v4284, %v4417
      %v4419 = vpop.f32.mrb[0].mxu0
      %4420 = vmatprep.mubr.bf16.mxu0 0
      %4421 = vmatmul.mubr.bf16.gmra.mrb[0].mxu0 %v4320
      %v4422 = vpop.f32.mrb[0].mxu0
      %v4423 = vadd.f32 %v4284, %v4422
      %v4424 = vpop.f32.mrb[0].mxu0
      %v4425 = vpop.f32.mrb[0].mxu0
      %v4426 = vadd.f32 %v4284, %v4425
      %v4427 = vpop.f32.mrb[0].mxu0
      %4428 = vmatprep.mubr.bf16.mxu0 0
      %4429 = vmatmul.mubr.bf16.gmra.mrb[0].mxu0 %v4323
      %v4430 = vpop.f32.mrb[0].mxu0
      %v4431 = vadd.f32 %v4284, %v4430
      %v4432 = vpop.f32.mrb[0].mxu0
      %v4433 = vpop.f32.mrb[0].mxu0
      %v4434 = vadd.f32 %v4284, %v4433
      %v4435 = vpop.f32.mrb[0].mxu0
      %4436 = vmatprep.mubr.bf16.mxu0 0
      %4437 = vmatmul.mubr.bf16.gmra.mrb[0].mxu0 %v4326
      %v4438 = vpop.f32.mrb[0].mxu0
      %v4439 = vadd.f32 %v4284, %v4438
      %v4440 = vpop.f32.mrb[0].mxu0
      %v4441 = vpop.f32.mrb[0].mxu0
      %v4442 = vadd.f32 %v4284, %v4441
      %v4443 = vpop.f32.mrb[0].mxu0
      %4444 = vmatprep.mubr.bf16.mxu0 0
      %4445 = vmatmul.mubr.bf16.gmra.mrb[0].mxu0 %v4329
      %v4446 = vpop.f32.mrb[0].mxu0
      %v4447 = vadd.f32 %v4284, %v4446
      %v4448 = vpop.f32.mrb[0].mxu0
      %v4449 = vpop.f32.mrb[0].mxu0
      %v4450 = vadd.f32 %v4284, %v4449
      %v4451 = vpop.f32.mrb[0].mxu0
      %4452 = vmatprep.mubr.bf16.mxu0 0
      %4453 = vmatmul.mubr.bf16.gmra.mrb[0].mxu0 %v4332
      %v4454 = vpop.f32.mrb[0].mxu0
      %v4455 = vadd.f32 %v4284, %v4454
      %v4456 = vpop.f32.mrb[0].mxu0
      %v4457 = vpop.f32.mrb[0].mxu0
      %v4458 = vadd.f32 %v4284, %v4457
      %v4459 = vpop.f32.mrb[0].mxu0
      %4460 = vmatprep.mubr.bf16.mxu0 0
      %4461 = vmatmul.mubr.bf16.gmra.mrb[0].mxu0 %v4335
      %v4462 = vpop.f32.mrb[0].mxu0
      %v4463 = vadd.f32 %v4284, %v4462
      %v4464 = vpop.f32.mrb[0].mxu0
      %v4465 = vpop.f32.mrb[0].mxu0
      %v4466 = vadd.f32 %v4284, %v4465
      %v4467 = vpop.f32.mrb[0].mxu0
      %4468 = vmatprep.mubr.bf16.mxu0 0
      %4469 = vmatmul.mubr.bf16.gmra.mrb[0].mxu0 %v4338
      %v4470 = vpop.f32.mrb[0].mxu0
      %v4471 = vadd.f32 %v4284, %v4470
      %v4472 = vpop.f32.mrb[0].mxu0
      %v4473 = vpop.f32.mrb[0].mxu0
      %v4474 = vadd.f32 %v4284, %v4473
      %v4475 = vpop.f32.mrb[0].mxu0
      %4476 = vmatprep.mubr.bf16.mxu0 0
      %4477 = vmatmul.mubr.bf16.gmra.mrb[0].mxu0 %v4341
      %v4478 = vpop.f32.mrb[0].mxu0
      %v4479 = vadd.f32 %v4284, %v4478
      %v4480 = vpop.f32.mrb[0].mxu0
      %v4481 = vpop.f32.mrb[0].mxu0
      %v4482 = vadd.f32 %v4284, %v4481
      %v4483 = vpop.f32.mrb[0].mxu0
      %4484 = vmatprep.mubr.bf16.mxu0 0
      %4485 = vmatmul.mubr.bf16.gmra.mrb[0].mxu0 %v4344
      %v4486 = vpop.f32.mrb[0].mxu0
      %v4487 = vadd.f32 %v4284, %v4486
      %v4488 = vpop.f32.mrb[0].mxu0
      %v4489 = vpop.f32.mrb[0].mxu0
      %v4490 = vadd.f32 %v4284, %v4489
      %v4491 = vpop.f32.mrb[0].mxu0
      %4492 = vmatprep.mubr.bf16.mxu0 0
      %4493 = vmatmul.mubr.bf16.gmra.mrb[0].mxu0 %v4347
      %v4494 = vpop.f32.mrb[0].mxu0
      %v4495 = vadd.f32 %v4284, %v4494
      %v4496 = vpop.f32.mrb[0].mxu0
      %v4497 = vpop.f32.mrb[0].mxu0
      %v4498 = vadd.f32 %v4284, %v4497
      %v4499 = vpop.f32.mrb[0].mxu0
      %4500 = vmatprep.mubr.bf16.mxu0 0
      %4501 = vmatmul.mubr.bf16.gmra.mrb[0].mxu0 %v4350
      %v4502 = vpop.f32.mrb[0].mxu0
      %v4503 = vadd.f32 %v4284, %v4502
      %v4504 = vpop.f32.mrb[0].mxu0
      %v4505 = vpop.f32.mrb[0].mxu0
      %v4506 = vadd.f32 %v4284, %v4505
      %v4507 = vpop.f32.mrb[0].mxu0
      %4508 = vmatprep.mubr.bf16.mxu0 0
      %4509 = vmatmul.mubr.bf16.gmra.mrb[0].mxu0 %v4353
      %v4510 = vpop.f32.mrb[0].mxu0
      %v4511 = vadd.f32 %v4284, %v4510
      %v4512 = vpop.f32.mrb[0].mxu0
      %v4513 = vpop.f32.mrb[0].mxu0
      %v4514 = vadd.f32 %v4284, %v4513
      %v4515 = vpop.f32.mrb[0].mxu0
      %4516 = vmatprep.mubr.bf16.mxu0 0
      %4517 = vmatmul.mubr.bf16.gmra.mrb[0].mxu0 %v4356
      %v4518 = vpop.f32.mrb[0].mxu0
      %v4519 = vadd.f32 %v4284, %v4518
      %v4520 = vpop.f32.mrb[0].mxu0
      %v4521 = vpop.f32.mrb[0].mxu0
      %v4522 = vadd.f32 %v4284, %v4521
      %v4523 = vpop.f32.mrb[0].mxu0
      %4524 = vmatprep.mubr.bf16.mxu0 0
      %4525 = vmatmul.mubr.bf16.gmra.mrb[0].mxu0 %v4359
      %v4526 = vpop.f32.mrb[0].mxu0
      %v4527 = vadd.f32 %v4284, %v4526
      %v4528 = vpop.f32.mrb[0].mxu0
      %v4529 = vpop.f32.mrb[0].mxu0
      %v4530 = vadd.f32 %v4284, %v4529
      %v4531 = vpop.f32.mrb[0].mxu0
      %4532 = vmatprep.mubr.bf16.mxu0 0
      %4533 = vmatmul.mubr.bf16.gmra.mrb[0].mxu0 %v4362
      %v4534 = vpop.f32.mrb[0].mxu0
      %v4535 = vadd.f32 %v4284, %v4534
      %v4536 = vpop.f32.mrb[0].mxu0
      %v4537 = vpop.f32.mrb[0].mxu0
      %v4538 = vadd.f32 %v4284, %v4537
      %v4539 = vpop.f32.mrb[0].mxu0
      %4540 = vdwg.mxu0
      %v4541 = vadd.f32 %v1867, %v4399
      %v4542 = vadd.f32 %v1868, %v4402
      %v4543 = vadd.f32 %v1869, %v4407
      %v4544 = vadd.f32 %v1870, %v4410
      %v4545 = vadd.f32 %v1871, %v4415
      %v4546 = vadd.f32 %v1872, %v4418
      %v4547 = vadd.f32 %v1873, %v4423
      %v4548 = vadd.f32 %v1874, %v4426
      %v4549 = vadd.f32 %v1875, %v4431
      %v4550 = vadd.f32 %v1876, %v4434
      %v4551 = vadd.f32 %v1877, %v4439
      %v4552 = vadd.f32 %v1878, %v4442
      %v4553 = vadd.f32 %v1879, %v4447
      %v4554 = vadd.f32 %v1880, %v4450
      %v4555 = vadd.f32 %v1881, %v4455
      %v4556 = vadd.f32 %v1882, %v4458
      %v4557 = vadd.f32 %v1883, %v4463
      %v4558 = vadd.f32 %v1884, %v4466
      %v4559 = vadd.f32 %v1885, %v4471
      %v4560 = vadd.f32 %v1886, %v4474
      %v4561 = vadd.f32 %v1887, %v4479
      %v4562 = vadd.f32 %v1888, %v4482
      %v4563 = vadd.f32 %v1889, %v4487
      %v4564 = vadd.f32 %v1890, %v4490
      %v4565 = vadd.f32 %v1891, %v4495
      %v4566 = vadd.f32 %v1892, %v4498
      %v4567 = vadd.f32 %v1893, %v4503
      %v4568 = vadd.f32 %v1894, %v4506
      %v4569 = vadd.f32 %v1895, %v4511
      %v4570 = vadd.f32 %v1896, %v4514
      %v4571 = vadd.f32 %v1897, %v4519
      %v4572 = vadd.f32 %v1898, %v4522
      %v4573 = vadd.f32 %v1899, %v4527
      %v4574 = vadd.f32 %v1900, %v4530
      %v4575 = vadd.f32 %v1901, %v4535
      %v4576 = vadd.f32 %v1902, %v4538
      // Predicated region
      $region101: #{tpu_custom_call.1} parent=91 // pred_check
        %p4577 = pneg %p949
      $region102: #{tpu_custom_call.1} parent=91 // pred_check_branch
        %4579 = sbr.rel (%p4577) target = $region104
      $region103: #{tpu_custom_call.1} parent=91 // pred_region
        %v4580 = vmul.f32 %v4541, %v908
        %v4581 = vmul.f32 %v4542, %v909
        %v4582 = vmul.f32 %v4543, %v910
        %v4583 = vmul.f32 %v4544, %v911
        %v4584 = vmul.f32 %v4545, %v912
        %v4585 = vmul.f32 %v4546, %v913
        %v4586 = vmul.f32 %v4547, %v914
        %v4587 = vmul.f32 %v4548, %v915
        %v4588 = vmul.f32 %v4549, %v916
        %v4589 = vmul.f32 %v4550, %v917
        %v4590 = vmul.f32 %v4551, %v918
        %v4591 = vmul.f32 %v4552, %v919
        %v4592 = vmul.f32 %v4553, %v920
        %v4593 = vmul.f32 %v4554, %v921
        %v4594 = vmul.f32 %v4555, %v922
        %v4595 = vmul.f32 %v4556, %v923
        %v4596 = vmul.f32 %v4557, %v924
        %v4597 = vmul.f32 %v4558, %v925
        %v4598 = vmul.f32 %v4559, %v926
        %v4599 = vmul.f32 %v4560, %v927
        %v4600 = vmul.f32 %v4561, %v928
        %v4601 = vmul.f32 %v4562, %v929
        %v4602 = vmul.f32 %v4563, %v930
        %v4603 = vmul.f32 %v4564, %v931
        %v4604 = vmul.f32 %v4565, %v932
        %v4605 = vmul.f32 %v4566, %v933
        %v4606 = vmul.f32 %v4567, %v934
        %v4607 = vmul.f32 %v4568, %v935
        %v4608 = vmul.f32 %v4569, %v936
        %v4609 = vmul.f32 %v4570, %v937
        %v4610 = vmul.f32 %v4571, %v938
        %v4611 = vmul.f32 %v4572, %v939
        %v4612 = vmul.f32 %v4573, %v940
        %v4613 = vmul.f32 %v4574, %v941
        %v4614 = vmul.f32 %v4575, %v942
        %v4615 = vmul.f32 %v4576, %v943
      $region104: #{tpu_custom_call.1} parent=91 // pred_fallthru
        %v4616 = vphi 0, %v4580
        %v4617 = vphi 0, %v4581
        %v4618 = vphi 0, %v4582
        %v4619 = vphi 0, %v4583
        %v4620 = vphi 0, %v4584
        %v4621 = vphi 0, %v4585
        %v4622 = vphi 0, %v4586
        %v4623 = vphi 0, %v4587
        %v4624 = vphi 0, %v4588
        %v4625 = vphi 0, %v4589
        %v4626 = vphi 0, %v4590
        %v4627 = vphi 0, %v4591
        %v4628 = vphi 0, %v4592
        %v4629 = vphi 0, %v4593
        %v4630 = vphi 0, %v4594
        %v4631 = vphi 0, %v4595
        %v4632 = vphi 0, %v4596
        %v4633 = vphi 0, %v4597
        %v4634 = vphi 0, %v4598
        %v4635 = vphi 0, %v4599
        %v4636 = vphi 0, %v4600
        %v4637 = vphi 0, %v4601
        %v4638 = vphi 0, %v4602
        %v4639 = vphi 0, %v4603
        %v4640 = vphi 0, %v4604
        %v4641 = vphi 0, %v4605
        %v4642 = vphi 0, %v4606
        %v4643 = vphi 0, %v4607
        %v4644 = vphi 0, %v4608
        %v4645 = vphi 0, %v4609
        %v4646 = vphi 0, %v4610
        %v4647 = vphi 0, %v4611
        %v4648 = vphi 0, %v4612
        %v4649 = vphi 0, %v4613
        %v4650 = vphi 0, %v4614
        %v4651 = vphi 0, %v4615
      %p4652 = pneg %p949
      // Predicated region
      $region105: #{tpu_custom_call.1} parent=91 // pred_check
        _
      $region106: #{tpu_custom_call.1} parent=91 // pred_check_branch
        %4654 = sbr.rel (%p949) target = $region108
      $region107: #{tpu_custom_call.1} parent=91 // pred_region
        _
      $region108: #{tpu_custom_call.1} parent=91 // pred_fallthru
        %v4655 = vphi %v4616, %v4541
        %v4656 = vphi %v4617, %v4542
        %v4657 = vphi %v4618, %v4543
        %v4658 = vphi %v4619, %v4544
        %v4659 = vphi %v4620, %v4545
        %v4660 = vphi %v4621, %v4546
        %v4661 = vphi %v4622, %v4547
        %v4662 = vphi %v4623, %v4548
        %v4663 = vphi %v4624, %v4549
        %v4664 = vphi %v4625, %v4550
        %v4665 = vphi %v4626, %v4551
        %v4666 = vphi %v4627, %v4552
        %v4667 = vphi %v4628, %v4553
        %v4668 = vphi %v4629, %v4554
        %v4669 = vphi %v4630, %v4555
        %v4670 = vphi %v4631, %v4556
        %v4671 = vphi %v4632, %v4557
        %v4672 = vphi %v4633, %v4558
        %v4673 = vphi %v4634, %v4559
        %v4674 = vphi %v4635, %v4560
        %v4675 = vphi %v4636, %v4561
        %v4676 = vphi %v4637, %v4562
        %v4677 = vphi %v4638, %v4563
        %v4678 = vphi %v4639, %v4564
        %v4679 = vphi %v4640, %v4565
        %v4680 = vphi %v4641, %v4566
        %v4681 = vphi %v4642, %v4567
        %v4682 = vphi %v4643, %v4568
        %v4683 = vphi %v4644, %v4569
        %v4684 = vphi %v4645, %v4570
        %v4685 = vphi %v4646, %v4571
        %v4686 = vphi %v4647, %v4572
        %v4687 = vphi %v4648, %v4573
        %v4688 = vphi %v4649, %v4574
        %v4689 = vphi %v4650, %v4575
        %v4690 = vphi %v4651, %v4576
      %s4691 = scalar_lea.vmem %s6, 8
      %v4692 = vld [vmem:[%s4691] sm:$0x7f]
      %v4693 = vlaneseq
      %v4694 = vshrl.u32 %v4693, 7
      %v4695 = vsub.s32 3, %v4694
      %v4696 = vrot.slane %v4692, %v4695
      %v4697 = vmul.f32 %v4655, %v4696
      %v4698 = vmul.f32 %v4656, %v4696
      %v4699 = vmul.f32 %v4657, %v4696
      %v4700 = vmul.f32 %v4658, %v4696
      %v4701 = vmul.f32 %v4659, %v4696
      %v4702 = vmul.f32 %v4660, %v4696
      %v4703 = vmul.f32 %v4661, %v4696
      %v4704 = vmul.f32 %v4662, %v4696
      %v4705 = vmul.f32 %v4663, %v4696
      %v4706 = vmul.f32 %v4664, %v4696
      %v4707 = vmul.f32 %v4665, %v4696
      %v4708 = vmul.f32 %v4666, %v4696
      %v4709 = vmul.f32 %v4667, %v4696
      %v4710 = vmul.f32 %v4668, %v4696
      %v4711 = vmul.f32 %v4669, %v4696
      %v4712 = vmul.f32 %v4670, %v4696
      %v4713 = vmul.f32 %v4671, %v4696
      %v4714 = vmul.f32 %v4672, %v4696
      %v4715 = vmul.f32 %v4673, %v4696
      %v4716 = vmul.f32 %v4674, %v4696
      %v4717 = vmul.f32 %v4675, %v4696
      %v4718 = vmul.f32 %v4676, %v4696
      %v4719 = vmul.f32 %v4677, %v4696
      %v4720 = vmul.f32 %v4678, %v4696
      %v4721 = vmul.f32 %v4679, %v4696
      %v4722 = vmul.f32 %v4680, %v4696
      %v4723 = vmul.f32 %v4681, %v4696
      %v4724 = vmul.f32 %v4682, %v4696
      %v4725 = vmul.f32 %v4683, %v4696
      %v4726 = vmul.f32 %v4684, %v4696
      %v4727 = vmul.f32 %v4685, %v4696
      %v4728 = vmul.f32 %v4686, %v4696
      %v4729 = vmul.f32 %v4687, %v4696
      %v4730 = vmul.f32 %v4688, %v4696
      %v4731 = vmul.f32 %v4689, %v4696
      %v4732 = vmul.f32 %v4690, %v4696
      %v4733 = vrot.slane %v4655, 5
      %v4734 = vrot.slane %v4656, 5
      %v4735 = vrot.slane %v4657, 5
      %v4736 = vrot.slane %v4658, 5
      %v4737 = vrot.slane %v4659, 5
      %v4738 = vrot.slane %v4660, 5
      %v4739 = vrot.slane %v4661, 5
      %v4740 = vrot.slane %v4662, 5
      %v4741 = vrot.slane %v4663, 5
      %v4742 = vrot.slane %v4664, 5
      %v4743 = vrot.slane %v4665, 5
      %v4744 = vrot.slane %v4666, 5
      %v4745 = vrot.slane %v4667, 5
      %v4746 = vrot.slane %v4668, 5
      %v4747 = vrot.slane %v4669, 5
      %v4748 = vrot.slane %v4670, 5
      %v4749 = vrot.slane %v4671, 5
      %v4750 = vrot.slane %v4672, 5
      %v4751 = vrot.slane %v4673, 5
      %v4752 = vrot.slane %v4674, 5
      %v4753 = vrot.slane %v4675, 5
      %v4754 = vrot.slane %v4676, 5
      %v4755 = vrot.slane %v4677, 5
      %v4756 = vrot.slane %v4678, 5
      %v4757 = vrot.slane %v4679, 5
      %v4758 = vrot.slane %v4680, 5
      %v4759 = vrot.slane %v4681, 5
      %v4760 = vrot.slane %v4682, 5
      %v4761 = vrot.slane %v4683, 5
      %v4762 = vrot.slane %v4684, 5
      %v4763 = vrot.slane %v4685, 5
      %v4764 = vrot.slane %v4686, 5
      %v4765 = vrot.slane %v4687, 5
      %v4766 = vrot.slane %v4688, 5
      %v4767 = vrot.slane %v4689, 5
      %v4768 = vrot.slane %v4690, 5
      %v4769 = vsel %vm2094, %v4767, %v4768
      %v4770 = vsel %vm2094, %v4766, %v4767
      %v4771 = vsel %vm2094, %v4765, %v4766
      %v4772 = vsel %vm2094, %v4764, %v4765
      %v4773 = vsel %vm2094, %v4763, %v4764
      %v4774 = vsel %vm2094, %v4762, %v4763
      %v4775 = vsel %vm2094, %v4761, %v4762
      %v4776 = vsel %vm2094, %v4760, %v4761
      %v4777 = vsel %vm2094, %v4759, %v4760
      %v4778 = vsel %vm2094, %v4758, %v4759
      %v4779 = vsel %vm2094, %v4757, %v4758
      %v4780 = vsel %vm2094, %v4756, %v4757
      %v4781 = vsel %vm2094, %v4755, %v4756
      %v4782 = vsel %vm2094, %v4754, %v4755
      %v4783 = vsel %vm2094, %v4753, %v4754
      %v4784 = vsel %vm2094, %v4752, %v4753
      %v4785 = vsel %vm2094, %v4751, %v4752
      %v4786 = vsel %vm2094, %v4750, %v4751
      %v4787 = vsel %vm2094, %v4749, %v4750
      %v4788 = vsel %vm2094, %v4748, %v4749
      %v4789 = vsel %vm2094, %v4747, %v4748
      %v4790 = vsel %vm2094, %v4746, %v4747
      %v4791 = vsel %vm2094, %v4745, %v4746
      %v4792 = vsel %vm2094, %v4744, %v4745
      %v4793 = vsel %vm2094, %v4743, %v4744
      %v4794 = vsel %vm2094, %v4742, %v4743
      %v4795 = vsel %vm2094, %v4741, %v4742
      %v4796 = vsel %vm2094, %v4740, %v4741
      %v4797 = vsel %vm2094, %v4739, %v4740
      %v4798 = vsel %vm2094, %v4738, %v4739
      %v4799 = vsel %vm2094, %v4737, %v4738
      %v4800 = vsel %vm2094, %v4736, %v4737
      %v4801 = vsel %vm2094, %v4735, %v4736
      %v4802 = vsel %vm2094, %v4734, %v4735
      %v4803 = vsel %vm2094, %v4733, %v4734
      %v4804 = vsel %vm2094, %v4768, %v4733
      %v4805 = vlaneseq
      %v4806 = vshrl.u32 %v4805, 7
      %v4807 = vsub.s32 0, %v4806
      %v4808 = vrot.slane %v4692, %v4807
      %v4809 = vmul.f32 %v4804, %v4808
      %v4810 = vmul.f32 %v4803, %v4808
      %v4811 = vmul.f32 %v4802, %v4808
      %v4812 = vmul.f32 %v4801, %v4808
      %v4813 = vmul.f32 %v4800, %v4808
      %v4814 = vmul.f32 %v4799, %v4808
      %v4815 = vmul.f32 %v4798, %v4808
      %v4816 = vmul.f32 %v4797, %v4808
      %v4817 = vmul.f32 %v4796, %v4808
      %v4818 = vmul.f32 %v4795, %v4808
      %v4819 = vmul.f32 %v4794, %v4808
      %v4820 = vmul.f32 %v4793, %v4808
      %v4821 = vmul.f32 %v4792, %v4808
      %v4822 = vmul.f32 %v4791, %v4808
      %v4823 = vmul.f32 %v4790, %v4808
      %v4824 = vmul.f32 %v4789, %v4808
      %v4825 = vmul.f32 %v4788, %v4808
      %v4826 = vmul.f32 %v4787, %v4808
      %v4827 = vmul.f32 %v4786, %v4808
      %v4828 = vmul.f32 %v4785, %v4808
      %v4829 = vmul.f32 %v4784, %v4808
      %v4830 = vmul.f32 %v4783, %v4808
      %v4831 = vmul.f32 %v4782, %v4808
      %v4832 = vmul.f32 %v4781, %v4808
      %v4833 = vmul.f32 %v4780, %v4808
      %v4834 = vmul.f32 %v4779, %v4808
      %v4835 = vmul.f32 %v4778, %v4808
      %v4836 = vmul.f32 %v4777, %v4808
      %v4837 = vmul.f32 %v4776, %v4808
      %v4838 = vmul.f32 %v4775, %v4808
      %v4839 = vmul.f32 %v4774, %v4808
      %v4840 = vmul.f32 %v4773, %v4808
      %v4841 = vmul.f32 %v4772, %v4808
      %v4842 = vmul.f32 %v4771, %v4808
      %v4843 = vmul.f32 %v4770, %v4808
      %v4844 = vmul.f32 %v4769, %v4808
      %v4845 = vadd.f32 %v4697, %v4809
      %v4846 = vadd.f32 %v4698, %v4810
      %v4847 = vadd.f32 %v4699, %v4811
      %v4848 = vadd.f32 %v4700, %v4812
      %v4849 = vadd.f32 %v4701, %v4813
      %v4850 = vadd.f32 %v4702, %v4814
      %v4851 = vadd.f32 %v4703, %v4815
      %v4852 = vadd.f32 %v4704, %v4816
      %v4853 = vadd.f32 %v4705, %v4817
      %v4854 = vadd.f32 %v4706, %v4818
      %v4855 = vadd.f32 %v4707, %v4819
      %v4856 = vadd.f32 %v4708, %v4820
      %v4857 = vadd.f32 %v4709, %v4821
      %v4858 = vadd.f32 %v4710, %v4822
      %v4859 = vadd.f32 %v4711, %v4823
      %v4860 = vadd.f32 %v4712, %v4824
      %v4861 = vadd.f32 %v4713, %v4825
      %v4862 = vadd.f32 %v4714, %v4826
      %v4863 = vadd.f32 %v4715, %v4827
      %v4864 = vadd.f32 %v4716, %v4828
      %v4865 = vadd.f32 %v4717, %v4829
      %v4866 = vadd.f32 %v4718, %v4830
      %v4867 = vadd.f32 %v4719, %v4831
      %v4868 = vadd.f32 %v4720, %v4832
      %v4869 = vadd.f32 %v4721, %v4833
      %v4870 = vadd.f32 %v4722, %v4834
      %v4871 = vadd.f32 %v4723, %v4835
      %v4872 = vadd.f32 %v4724, %v4836
      %v4873 = vadd.f32 %v4725, %v4837
      %v4874 = vadd.f32 %v4726, %v4838
      %v4875 = vadd.f32 %v4727, %v4839
      %v4876 = vadd.f32 %v4728, %v4840
      %v4877 = vadd.f32 %v4729, %v4841
      %v4878 = vadd.f32 %v4730, %v4842
      %v4879 = vadd.f32 %v4731, %v4843
      %v4880 = vadd.f32 %v4732, %v4844
      %v4881 = vrot.slane %v4655, 6
      %v4882 = vrot.slane %v4656, 6
      %v4883 = vrot.slane %v4657, 6
      %v4884 = vrot.slane %v4658, 6
      %v4885 = vrot.slane %v4659, 6
      %v4886 = vrot.slane %v4660, 6
      %v4887 = vrot.slane %v4661, 6
      %v4888 = vrot.slane %v4662, 6
      %v4889 = vrot.slane %v4663, 6
      %v4890 = vrot.slane %v4664, 6
      %v4891 = vrot.slane %v4665, 6
      %v4892 = vrot.slane %v4666, 6
      %v4893 = vrot.slane %v4667, 6
      %v4894 = vrot.slane %v4668, 6
      %v4895 = vrot.slane %v4669, 6
      %v4896 = vrot.slane %v4670, 6
      %v4897 = vrot.slane %v4671, 6
      %v4898 = vrot.slane %v4672, 6
      %v4899 = vrot.slane %v4673, 6
      %v4900 = vrot.slane %v4674, 6
      %v4901 = vrot.slane %v4675, 6
      %v4902 = vrot.slane %v4676, 6
      %v4903 = vrot.slane %v4677, 6
      %v4904 = vrot.slane %v4678, 6
      %v4905 = vrot.slane %v4679, 6
      %v4906 = vrot.slane %v4680, 6
      %v4907 = vrot.slane %v4681, 6
      %v4908 = vrot.slane %v4682, 6
      %v4909 = vrot.slane %v4683, 6
      %v4910 = vrot.slane %v4684, 6
      %v4911 = vrot.slane %v4685, 6
      %v4912 = vrot.slane %v4686, 6
      %v4913 = vrot.slane %v4687, 6
      %v4914 = vrot.slane %v4688, 6
      %v4915 = vrot.slane %v4689, 6
      %v4916 = vrot.slane %v4690, 6
      %v4917 = vsel %vm2243, %v4915, %v4916
      %v4918 = vsel %vm2243, %v4914, %v4915
      %v4919 = vsel %vm2243, %v4913, %v4914
      %v4920 = vsel %vm2243, %v4912, %v4913
      %v4921 = vsel %vm2243, %v4911, %v4912
      %v4922 = vsel %vm2243, %v4910, %v4911
      %v4923 = vsel %vm2243, %v4909, %v4910
      %v4924 = vsel %vm2243, %v4908, %v4909
      %v4925 = vsel %vm2243, %v4907, %v4908
      %v4926 = vsel %vm2243, %v4906, %v4907
      %v4927 = vsel %vm2243, %v4905, %v4906
      %v4928 = vsel %vm2243, %v4904, %v4905
      %v4929 = vsel %vm2243, %v4903, %v4904
      %v4930 = vsel %vm2243, %v4902, %v4903
      %v4931 = vsel %vm2243, %v4901, %v4902
      %v4932 = vsel %vm2243, %v4900, %v4901
      %v4933 = vsel %vm2243, %v4899, %v4900
      %v4934 = vsel %vm2243, %v4898, %v4899
      %v4935 = vsel %vm2243, %v4897, %v4898
      %v4936 = vsel %vm2243, %v4896, %v4897
      %v4937 = vsel %vm2243, %v4895, %v4896
      %v4938 = vsel %vm2243, %v4894, %v4895
      %v4939 = vsel %vm2243, %v4893, %v4894
      %v4940 = vsel %vm2243, %v4892, %v4893
      %v4941 = vsel %vm2243, %v4891, %v4892
      %v4942 = vsel %vm2243, %v4890, %v4891
      %v4943 = vsel %vm2243, %v4889, %v4890
      %v4944 = vsel %vm2243, %v4888, %v4889
      %v4945 = vsel %vm2243, %v4887, %v4888
      %v4946 = vsel %vm2243, %v4886, %v4887
      %v4947 = vsel %vm2243, %v4885, %v4886
      %v4948 = vsel %vm2243, %v4884, %v4885
      %v4949 = vsel %vm2243, %v4883, %v4884
      %v4950 = vsel %vm2243, %v4882, %v4883
      %v4951 = vsel %vm2243, %v4881, %v4882
      %v4952 = vsel %vm2243, %v4916, %v4881
      %v4953 = vlaneseq
      %v4954 = vshrl.u32 %v4953, 7
      %v4955 = vsub.s32 1, %v4954
      %v4956 = vrot.slane %v4692, %v4955
      %v4957 = vmul.f32 %v4952, %v4956
      %v4958 = vmul.f32 %v4951, %v4956
      %v4959 = vmul.f32 %v4950, %v4956
      %v4960 = vmul.f32 %v4949, %v4956
      %v4961 = vmul.f32 %v4948, %v4956
      %v4962 = vmul.f32 %v4947, %v4956
      %v4963 = vmul.f32 %v4946, %v4956
      %v4964 = vmul.f32 %v4945, %v4956
      %v4965 = vmul.f32 %v4944, %v4956
      %v4966 = vmul.f32 %v4943, %v4956
      %v4967 = vmul.f32 %v4942, %v4956
      %v4968 = vmul.f32 %v4941, %v4956
      %v4969 = vmul.f32 %v4940, %v4956
      %v4970 = vmul.f32 %v4939, %v4956
      %v4971 = vmul.f32 %v4938, %v4956
      %v4972 = vmul.f32 %v4937, %v4956
      %v4973 = vmul.f32 %v4936, %v4956
      %v4974 = vmul.f32 %v4935, %v4956
      %v4975 = vmul.f32 %v4934, %v4956
      %v4976 = vmul.f32 %v4933, %v4956
      %v4977 = vmul.f32 %v4932, %v4956
      %v4978 = vmul.f32 %v4931, %v4956
      %v4979 = vmul.f32 %v4930, %v4956
      %v4980 = vmul.f32 %v4929, %v4956
      %v4981 = vmul.f32 %v4928, %v4956
      %v4982 = vmul.f32 %v4927, %v4956
      %v4983 = vmul.f32 %v4926, %v4956
      %v4984 = vmul.f32 %v4925, %v4956
      %v4985 = vmul.f32 %v4924, %v4956
      %v4986 = vmul.f32 %v4923, %v4956
      %v4987 = vmul.f32 %v4922, %v4956
      %v4988 = vmul.f32 %v4921, %v4956
      %v4989 = vmul.f32 %v4920, %v4956
      %v4990 = vmul.f32 %v4919, %v4956
      %v4991 = vmul.f32 %v4918, %v4956
      %v4992 = vmul.f32 %v4917, %v4956
      %v4993 = vadd.f32 %v4845, %v4957
      %v4994 = vadd.f32 %v4846, %v4958
      %v4995 = vadd.f32 %v4847, %v4959
      %v4996 = vadd.f32 %v4848, %v4960
      %v4997 = vadd.f32 %v4849, %v4961
      %v4998 = vadd.f32 %v4850, %v4962
      %v4999 = vadd.f32 %v4851, %v4963
      %v5000 = vadd.f32 %v4852, %v4964
      %v5001 = vadd.f32 %v4853, %v4965
      %v5002 = vadd.f32 %v4854, %v4966
      %v5003 = vadd.f32 %v4855, %v4967
      %v5004 = vadd.f32 %v4856, %v4968
      %v5005 = vadd.f32 %v4857, %v4969
      %v5006 = vadd.f32 %v4858, %v4970
      %v5007 = vadd.f32 %v4859, %v4971
      %v5008 = vadd.f32 %v4860, %v4972
      %v5009 = vadd.f32 %v4861, %v4973
      %v5010 = vadd.f32 %v4862, %v4974
      %v5011 = vadd.f32 %v4863, %v4975
      %v5012 = vadd.f32 %v4864, %v4976
      %v5013 = vadd.f32 %v4865, %v4977
      %v5014 = vadd.f32 %v4866, %v4978
      %v5015 = vadd.f32 %v4867, %v4979
      %v5016 = vadd.f32 %v4868, %v4980
      %v5017 = vadd.f32 %v4869, %v4981
      %v5018 = vadd.f32 %v4870, %v4982
      %v5019 = vadd.f32 %v4871, %v4983
      %v5020 = vadd.f32 %v4872, %v4984
      %v5021 = vadd.f32 %v4873, %v4985
      %v5022 = vadd.f32 %v4874, %v4986
      %v5023 = vadd.f32 %v4875, %v4987
      %v5024 = vadd.f32 %v4876, %v4988
      %v5025 = vadd.f32 %v4877, %v4989
      %v5026 = vadd.f32 %v4878, %v4990
      %v5027 = vadd.f32 %v4879, %v4991
      %v5028 = vadd.f32 %v4880, %v4992
      %v5029 = vrot.slane %v4655, 7
      %v5030 = vrot.slane %v4656, 7
      %v5031 = vrot.slane %v4657, 7
      %v5032 = vrot.slane %v4658, 7
      %v5033 = vrot.slane %v4659, 7
      %v5034 = vrot.slane %v4660, 7
      %v5035 = vrot.slane %v4661, 7
      %v5036 = vrot.slane %v4662, 7
      %v5037 = vrot.slane %v4663, 7
      %v5038 = vrot.slane %v4664, 7
      %v5039 = vrot.slane %v4665, 7
      %v5040 = vrot.slane %v4666, 7
      %v5041 = vrot.slane %v4667, 7
      %v5042 = vrot.slane %v4668, 7
      %v5043 = vrot.slane %v4669, 7
      %v5044 = vrot.slane %v4670, 7
      %v5045 = vrot.slane %v4671, 7
      %v5046 = vrot.slane %v4672, 7
      %v5047 = vrot.slane %v4673, 7
      %v5048 = vrot.slane %v4674, 7
      %v5049 = vrot.slane %v4675, 7
      %v5050 = vrot.slane %v4676, 7
      %v5051 = vrot.slane %v4677, 7
      %v5052 = vrot.slane %v4678, 7
      %v5053 = vrot.slane %v4679, 7
      %v5054 = vrot.slane %v4680, 7
      %v5055 = vrot.slane %v4681, 7
      %v5056 = vrot.slane %v4682, 7
      %v5057 = vrot.slane %v4683, 7
      %v5058 = vrot.slane %v4684, 7
      %v5059 = vrot.slane %v4685, 7
      %v5060 = vrot.slane %v4686, 7
      %v5061 = vrot.slane %v4687, 7
      %v5062 = vrot.slane %v4688, 7
      %v5063 = vrot.slane %v4689, 7
      %v5064 = vrot.slane %v4690, 7
      %v5065 = vsel %vm2392, %v5063, %v5064
      %v5066 = vsel %vm2392, %v5062, %v5063
      %v5067 = vsel %vm2392, %v5061, %v5062
      %v5068 = vsel %vm2392, %v5060, %v5061
      %v5069 = vsel %vm2392, %v5059, %v5060
      %v5070 = vsel %vm2392, %v5058, %v5059
      %v5071 = vsel %vm2392, %v5057, %v5058
      %v5072 = vsel %vm2392, %v5056, %v5057
      %v5073 = vsel %vm2392, %v5055, %v5056
      %v5074 = vsel %vm2392, %v5054, %v5055
      %v5075 = vsel %vm2392, %v5053, %v5054
      %v5076 = vsel %vm2392, %v5052, %v5053
      %v5077 = vsel %vm2392, %v5051, %v5052
      %v5078 = vsel %vm2392, %v5050, %v5051
      %v5079 = vsel %vm2392, %v5049, %v5050
      %v5080 = vsel %vm2392, %v5048, %v5049
      %v5081 = vsel %vm2392, %v5047, %v5048
      %v5082 = vsel %vm2392, %v5046, %v5047
      %v5083 = vsel %vm2392, %v5045, %v5046
      %v5084 = vsel %vm2392, %v5044, %v5045
      %v5085 = vsel %vm2392, %v5043, %v5044
      %v5086 = vsel %vm2392, %v5042, %v5043
      %v5087 = vsel %vm2392, %v5041, %v5042
      %v5088 = vsel %vm2392, %v5040, %v5041
      %v5089 = vsel %vm2392, %v5039, %v5040
      %v5090 = vsel %vm2392, %v5038, %v5039
      %v5091 = vsel %vm2392, %v5037, %v5038
      %v5092 = vsel %vm2392, %v5036, %v5037
      %v5093 = vsel %vm2392, %v5035, %v5036
      %v5094 = vsel %vm2392, %v5034, %v5035
      %v5095 = vsel %vm2392, %v5033, %v5034
      %v5096 = vsel %vm2392, %v5032, %v5033
      %v5097 = vsel %vm2392, %v5031, %v5032
      %v5098 = vsel %vm2392, %v5030, %v5031
      %v5099 = vsel %vm2392, %v5029, %v5030
      %v5100 = vsel %vm2392, %v5064, %v5029
      %v5101 = vlaneseq
      %v5102 = vshrl.u32 %v5101, 7
      %v5103 = vsub.s32 2, %v5102
      %v5104 = vrot.slane %v4692, %v5103
      %v5105 = vmul.f32 %v5100, %v5104
      %v5106 = vmul.f32 %v5099, %v5104
      %v5107 = vmul.f32 %v5098, %v5104
      %v5108 = vmul.f32 %v5097, %v5104
      %v5109 = vmul.f32 %v5096, %v5104
      %v5110 = vmul.f32 %v5095, %v5104
      %v5111 = vmul.f32 %v5094, %v5104
      %v5112 = vmul.f32 %v5093, %v5104
      %v5113 = vmul.f32 %v5092, %v5104
      %v5114 = vmul.f32 %v5091, %v5104
      %v5115 = vmul.f32 %v5090, %v5104
      %v5116 = vmul.f32 %v5089, %v5104
      %v5117 = vmul.f32 %v5088, %v5104
      %v5118 = vmul.f32 %v5087, %v5104
      %v5119 = vmul.f32 %v5086, %v5104
      %v5120 = vmul.f32 %v5085, %v5104
      %v5121 = vmul.f32 %v5084, %v5104
      %v5122 = vmul.f32 %v5083, %v5104
      %v5123 = vmul.f32 %v5082, %v5104
      %v5124 = vmul.f32 %v5081, %v5104
      %v5125 = vmul.f32 %v5080, %v5104
      %v5126 = vmul.f32 %v5079, %v5104
      %v5127 = vmul.f32 %v5078, %v5104
      %v5128 = vmul.f32 %v5077, %v5104
      %v5129 = vmul.f32 %v5076, %v5104
      %v5130 = vmul.f32 %v5075, %v5104
      %v5131 = vmul.f32 %v5074, %v5104
      %v5132 = vmul.f32 %v5073, %v5104
      %v5133 = vmul.f32 %v5072, %v5104
      %v5134 = vmul.f32 %v5071, %v5104
      %v5135 = vmul.f32 %v5070, %v5104
      %v5136 = vmul.f32 %v5069, %v5104
      %v5137 = vmul.f32 %v5068, %v5104
      %v5138 = vmul.f32 %v5067, %v5104
      %v5139 = vmul.f32 %v5066, %v5104
      %v5140 = vmul.f32 %v5065, %v5104
      %v5141 = vadd.f32 %v4993, %v5105
      %v5142 = vadd.f32 %v4994, %v5106
      %v5143 = vadd.f32 %v4995, %v5107
      %v5144 = vadd.f32 %v4996, %v5108
      %v5145 = vadd.f32 %v4997, %v5109
      %v5146 = vadd.f32 %v4998, %v5110
      %v5147 = vadd.f32 %v4999, %v5111
      %v5148 = vadd.f32 %v5000, %v5112
      %v5149 = vadd.f32 %v5001, %v5113
      %v5150 = vadd.f32 %v5002, %v5114
      %v5151 = vadd.f32 %v5003, %v5115
      %v5152 = vadd.f32 %v5004, %v5116
      %v5153 = vadd.f32 %v5005, %v5117
      %v5154 = vadd.f32 %v5006, %v5118
      %v5155 = vadd.f32 %v5007, %v5119
      %v5156 = vadd.f32 %v5008, %v5120
      %v5157 = vadd.f32 %v5009, %v5121
      %v5158 = vadd.f32 %v5010, %v5122
      %v5159 = vadd.f32 %v5011, %v5123
      %v5160 = vadd.f32 %v5012, %v5124
      %v5161 = vadd.f32 %v5013, %v5125
      %v5162 = vadd.f32 %v5014, %v5126
      %v5163 = vadd.f32 %v5015, %v5127
      %v5164 = vadd.f32 %v5016, %v5128
      %v5165 = vadd.f32 %v5017, %v5129
      %v5166 = vadd.f32 %v5018, %v5130
      %v5167 = vadd.f32 %v5019, %v5131
      %v5168 = vadd.f32 %v5020, %v5132
      %v5169 = vadd.f32 %v5021, %v5133
      %v5170 = vadd.f32 %v5022, %v5134
      %v5171 = vadd.f32 %v5023, %v5135
      %v5172 = vadd.f32 %v5024, %v5136
      %v5173 = vadd.f32 %v5025, %v5137
      %v5174 = vadd.f32 %v5026, %v5138
      %v5175 = vadd.f32 %v5027, %v5139
      %v5176 = vadd.f32 %v5028, %v5140
      %v5177 = vrot.slane %v4655, 1
      %v5178 = vrot.slane %v4656, 1
      %v5179 = vrot.slane %v4657, 1
      %v5180 = vrot.slane %v4658, 1
      %v5181 = vrot.slane %v4659, 1
      %v5182 = vrot.slane %v4660, 1
      %v5183 = vrot.slane %v4661, 1
      %v5184 = vrot.slane %v4662, 1
      %v5185 = vrot.slane %v4663, 1
      %v5186 = vrot.slane %v4664, 1
      %v5187 = vrot.slane %v4665, 1
      %v5188 = vrot.slane %v4666, 1
      %v5189 = vrot.slane %v4667, 1
      %v5190 = vrot.slane %v4668, 1
      %v5191 = vrot.slane %v4669, 1
      %v5192 = vrot.slane %v4670, 1
      %v5193 = vrot.slane %v4671, 1
      %v5194 = vrot.slane %v4672, 1
      %v5195 = vrot.slane %v4673, 1
      %v5196 = vrot.slane %v4674, 1
      %v5197 = vrot.slane %v4675, 1
      %v5198 = vrot.slane %v4676, 1
      %v5199 = vrot.slane %v4677, 1
      %v5200 = vrot.slane %v4678, 1
      %v5201 = vrot.slane %v4679, 1
      %v5202 = vrot.slane %v4680, 1
      %v5203 = vrot.slane %v4681, 1
      %v5204 = vrot.slane %v4682, 1
      %v5205 = vrot.slane %v4683, 1
      %v5206 = vrot.slane %v4684, 1
      %v5207 = vrot.slane %v4685, 1
      %v5208 = vrot.slane %v4686, 1
      %v5209 = vrot.slane %v4687, 1
      %v5210 = vrot.slane %v4688, 1
      %v5211 = vrot.slane %v4689, 1
      %v5212 = vrot.slane %v4690, 1
      %v5213 = vsel %vm2541, %v5211, %v5212
      %v5214 = vsel %vm2541, %v5210, %v5211
      %v5215 = vsel %vm2541, %v5209, %v5210
      %v5216 = vsel %vm2541, %v5208, %v5209
      %v5217 = vsel %vm2541, %v5207, %v5208
      %v5218 = vsel %vm2541, %v5206, %v5207
      %v5219 = vsel %vm2541, %v5205, %v5206
      %v5220 = vsel %vm2541, %v5204, %v5205
      %v5221 = vsel %vm2541, %v5203, %v5204
      %v5222 = vsel %vm2541, %v5202, %v5203
      %v5223 = vsel %vm2541, %v5201, %v5202
      %v5224 = vsel %vm2541, %v5200, %v5201
      %v5225 = vsel %vm2541, %v5199, %v5200
      %v5226 = vsel %vm2541, %v5198, %v5199
      %v5227 = vsel %vm2541, %v5197, %v5198
      %v5228 = vsel %vm2541, %v5196, %v5197
      %v5229 = vsel %vm2541, %v5195, %v5196
      %v5230 = vsel %vm2541, %v5194, %v5195
      %v5231 = vsel %vm2541, %v5193, %v5194
      %v5232 = vsel %vm2541, %v5192, %v5193
      %v5233 = vsel %vm2541, %v5191, %v5192
      %v5234 = vsel %vm2541, %v5190, %v5191
      %v5235 = vsel %vm2541, %v5189, %v5190
      %v5236 = vsel %vm2541, %v5188, %v5189
      %v5237 = vsel %vm2541, %v5187, %v5188
      %v5238 = vsel %vm2541, %v5186, %v5187
      %v5239 = vsel %vm2541, %v5185, %v5186
      %v5240 = vsel %vm2541, %v5184, %v5185
      %v5241 = vsel %vm2541, %v5183, %v5184
      %v5242 = vsel %vm2541, %v5182, %v5183
      %v5243 = vsel %vm2541, %v5181, %v5182
      %v5244 = vsel %vm2541, %v5180, %v5181
      %v5245 = vsel %vm2541, %v5179, %v5180
      %v5246 = vsel %vm2541, %v5178, %v5179
      %v5247 = vsel %vm2541, %v5177, %v5178
      %v5248 = vsel %vm2541, %v5212, %v5177
      %v5249 = vlaneseq
      %v5250 = vshrl.u32 %v5249, 7
      %v5251 = vsub.s32 4, %v5250
      %v5252 = vrot.slane %v4692, %v5251
      %v5253 = vmul.f32 %v5247, %v5252
      %v5254 = vmul.f32 %v5246, %v5252
      %v5255 = vmul.f32 %v5245, %v5252
      %v5256 = vmul.f32 %v5244, %v5252
      %v5257 = vmul.f32 %v5243, %v5252
      %v5258 = vmul.f32 %v5242, %v5252
      %v5259 = vmul.f32 %v5241, %v5252
      %v5260 = vmul.f32 %v5240, %v5252
      %v5261 = vmul.f32 %v5239, %v5252
      %v5262 = vmul.f32 %v5238, %v5252
      %v5263 = vmul.f32 %v5237, %v5252
      %v5264 = vmul.f32 %v5236, %v5252
      %v5265 = vmul.f32 %v5235, %v5252
      %v5266 = vmul.f32 %v5234, %v5252
      %v5267 = vmul.f32 %v5233, %v5252
      %v5268 = vmul.f32 %v5232, %v5252
      %v5269 = vmul.f32 %v5231, %v5252
      %v5270 = vmul.f32 %v5230, %v5252
      %v5271 = vmul.f32 %v5229, %v5252
      %v5272 = vmul.f32 %v5228, %v5252
      %v5273 = vmul.f32 %v5227, %v5252
      %v5274 = vmul.f32 %v5226, %v5252
      %v5275 = vmul.f32 %v5225, %v5252
      %v5276 = vmul.f32 %v5224, %v5252
      %v5277 = vmul.f32 %v5223, %v5252
      %v5278 = vmul.f32 %v5222, %v5252
      %v5279 = vmul.f32 %v5221, %v5252
      %v5280 = vmul.f32 %v5220, %v5252
      %v5281 = vmul.f32 %v5219, %v5252
      %v5282 = vmul.f32 %v5218, %v5252
      %v5283 = vmul.f32 %v5217, %v5252
      %v5284 = vmul.f32 %v5216, %v5252
      %v5285 = vmul.f32 %v5215, %v5252
      %v5286 = vmul.f32 %v5214, %v5252
      %v5287 = vmul.f32 %v5213, %v5252
      %v5288 = vmul.f32 %v5248, %v5252
      %v5289 = vadd.f32 %v5141, %v5253
      %v5290 = vadd.f32 %v5142, %v5254
      %v5291 = vadd.f32 %v5143, %v5255
      %v5292 = vadd.f32 %v5144, %v5256
      %v5293 = vadd.f32 %v5145, %v5257
      %v5294 = vadd.f32 %v5146, %v5258
      %v5295 = vadd.f32 %v5147, %v5259
      %v5296 = vadd.f32 %v5148, %v5260
      %v5297 = vadd.f32 %v5149, %v5261
      %v5298 = vadd.f32 %v5150, %v5262
      %v5299 = vadd.f32 %v5151, %v5263
      %v5300 = vadd.f32 %v5152, %v5264
      %v5301 = vadd.f32 %v5153, %v5265
      %v5302 = vadd.f32 %v5154, %v5266
      %v5303 = vadd.f32 %v5155, %v5267
      %v5304 = vadd.f32 %v5156, %v5268
      %v5305 = vadd.f32 %v5157, %v5269
      %v5306 = vadd.f32 %v5158, %v5270
      %v5307 = vadd.f32 %v5159, %v5271
      %v5308 = vadd.f32 %v5160, %v5272
      %v5309 = vadd.f32 %v5161, %v5273
      %v5310 = vadd.f32 %v5162, %v5274
      %v5311 = vadd.f32 %v5163, %v5275
      %v5312 = vadd.f32 %v5164, %v5276
      %v5313 = vadd.f32 %v5165, %v5277
      %v5314 = vadd.f32 %v5166, %v5278
      %v5315 = vadd.f32 %v5167, %v5279
      %v5316 = vadd.f32 %v5168, %v5280
      %v5317 = vadd.f32 %v5169, %v5281
      %v5318 = vadd.f32 %v5170, %v5282
      %v5319 = vadd.f32 %v5171, %v5283
      %v5320 = vadd.f32 %v5172, %v5284
      %v5321 = vadd.f32 %v5173, %v5285
      %v5322 = vadd.f32 %v5174, %v5286
      %v5323 = vadd.f32 %v5175, %v5287
      %v5324 = vadd.f32 %v5176, %v5288
      %v5325 = vrot.slane %v4655, 2
      %v5326 = vrot.slane %v4656, 2
      %v5327 = vrot.slane %v4657, 2
      %v5328 = vrot.slane %v4658, 2
      %v5329 = vrot.slane %v4659, 2
      %v5330 = vrot.slane %v4660, 2
      %v5331 = vrot.slane %v4661, 2
      %v5332 = vrot.slane %v4662, 2
      %v5333 = vrot.slane %v4663, 2
      %v5334 = vrot.slane %v4664, 2
      %v5335 = vrot.slane %v4665, 2
      %v5336 = vrot.slane %v4666, 2
      %v5337 = vrot.slane %v4667, 2
      %v5338 = vrot.slane %v4668, 2
      %v5339 = vrot.slane %v4669, 2
      %v5340 = vrot.slane %v4670, 2
      %v5341 = vrot.slane %v4671, 2
      %v5342 = vrot.slane %v4672, 2
      %v5343 = vrot.slane %v4673, 2
      %v5344 = vrot.slane %v4674, 2
      %v5345 = vrot.slane %v4675, 2
      %v5346 = vrot.slane %v4676, 2
      %v5347 = vrot.slane %v4677, 2
      %v5348 = vrot.slane %v4678, 2
      %v5349 = vrot.slane %v4679, 2
      %v5350 = vrot.slane %v4680, 2
      %v5351 = vrot.slane %v4681, 2
      %v5352 = vrot.slane %v4682, 2
      %v5353 = vrot.slane %v4683, 2
      %v5354 = vrot.slane %v4684, 2
      %v5355 = vrot.slane %v4685, 2
      %v5356 = vrot.slane %v4686, 2
      %v5357 = vrot.slane %v4687, 2
      %v5358 = vrot.slane %v4688, 2
      %v5359 = vrot.slane %v4689, 2
      %v5360 = vrot.slane %v4690, 2
      %v5361 = vsel %vm2690, %v5359, %v5360
      %v5362 = vsel %vm2690, %v5358, %v5359
      %v5363 = vsel %vm2690, %v5357, %v5358
      %v5364 = vsel %vm2690, %v5356, %v5357
      %v5365 = vsel %vm2690, %v5355, %v5356
      %v5366 = vsel %vm2690, %v5354, %v5355
      %v5367 = vsel %vm2690, %v5353, %v5354
      %v5368 = vsel %vm2690, %v5352, %v5353
      %v5369 = vsel %vm2690, %v5351, %v5352
      %v5370 = vsel %vm2690, %v5350, %v5351
      %v5371 = vsel %vm2690, %v5349, %v5350
      %v5372 = vsel %vm2690, %v5348, %v5349
      %v5373 = vsel %vm2690, %v5347, %v5348
      %v5374 = vsel %vm2690, %v5346, %v5347
      %v5375 = vsel %vm2690, %v5345, %v5346
      %v5376 = vsel %vm2690, %v5344, %v5345
      %v5377 = vsel %vm2690, %v5343, %v5344
      %v5378 = vsel %vm2690, %v5342, %v5343
      %v5379 = vsel %vm2690, %v5341, %v5342
      %v5380 = vsel %vm2690, %v5340, %v5341
      %v5381 = vsel %vm2690, %v5339, %v5340
      %v5382 = vsel %vm2690, %v5338, %v5339
      %v5383 = vsel %vm2690, %v5337, %v5338
      %v5384 = vsel %vm2690, %v5336, %v5337
      %v5385 = vsel %vm2690, %v5335, %v5336
      %v5386 = vsel %vm2690, %v5334, %v5335
      %v5387 = vsel %vm2690, %v5333, %v5334
      %v5388 = vsel %vm2690, %v5332, %v5333
      %v5389 = vsel %vm2690, %v5331, %v5332
      %v5390 = vsel %vm2690, %v5330, %v5331
      %v5391 = vsel %vm2690, %v5329, %v5330
      %v5392 = vsel %vm2690, %v5328, %v5329
      %v5393 = vsel %vm2690, %v5327, %v5328
      %v5394 = vsel %vm2690, %v5326, %v5327
      %v5395 = vsel %vm2690, %v5325, %v5326
      %v5396 = vsel %vm2690, %v5360, %v5325
      %v5397 = vlaneseq
      %v5398 = vshrl.u32 %v5397, 7
      %v5399 = vsub.s32 5, %v5398
      %v5400 = vrot.slane %v4692, %v5399
      %v5401 = vmul.f32 %v5395, %v5400
      %v5402 = vmul.f32 %v5394, %v5400
      %v5403 = vmul.f32 %v5393, %v5400
      %v5404 = vmul.f32 %v5392, %v5400
      %v5405 = vmul.f32 %v5391, %v5400
      %v5406 = vmul.f32 %v5390, %v5400
      %v5407 = vmul.f32 %v5389, %v5400
      %v5408 = vmul.f32 %v5388, %v5400
      %v5409 = vmul.f32 %v5387, %v5400
      %v5410 = vmul.f32 %v5386, %v5400
      %v5411 = vmul.f32 %v5385, %v5400
      %v5412 = vmul.f32 %v5384, %v5400
      %v5413 = vmul.f32 %v5383, %v5400
      %v5414 = vmul.f32 %v5382, %v5400
      %v5415 = vmul.f32 %v5381, %v5400
      %v5416 = vmul.f32 %v5380, %v5400
      %v5417 = vmul.f32 %v5379, %v5400
      %v5418 = vmul.f32 %v5378, %v5400
      %v5419 = vmul.f32 %v5377, %v5400
      %v5420 = vmul.f32 %v5376, %v5400
      %v5421 = vmul.f32 %v5375, %v5400
      %v5422 = vmul.f32 %v5374, %v5400
      %v5423 = vmul.f32 %v5373, %v5400
      %v5424 = vmul.f32 %v5372, %v5400
      %v5425 = vmul.f32 %v5371, %v5400
      %v5426 = vmul.f32 %v5370, %v5400
      %v5427 = vmul.f32 %v5369, %v5400
      %v5428 = vmul.f32 %v5368, %v5400
      %v5429 = vmul.f32 %v5367, %v5400
      %v5430 = vmul.f32 %v5366, %v5400
      %v5431 = vmul.f32 %v5365, %v5400
      %v5432 = vmul.f32 %v5364, %v5400
      %v5433 = vmul.f32 %v5363, %v5400
      %v5434 = vmul.f32 %v5362, %v5400
      %v5435 = vmul.f32 %v5361, %v5400
      %v5436 = vmul.f32 %v5396, %v5400
      %v5437 = vadd.f32 %v5289, %v5401
      %v5438 = vadd.f32 %v5290, %v5402
      %v5439 = vadd.f32 %v5291, %v5403
      %v5440 = vadd.f32 %v5292, %v5404
      %v5441 = vadd.f32 %v5293, %v5405
      %v5442 = vadd.f32 %v5294, %v5406
      %v5443 = vadd.f32 %v5295, %v5407
      %v5444 = vadd.f32 %v5296, %v5408
      %v5445 = vadd.f32 %v5297, %v5409
      %v5446 = vadd.f32 %v5298, %v5410
      %v5447 = vadd.f32 %v5299, %v5411
      %v5448 = vadd.f32 %v5300, %v5412
      %v5449 = vadd.f32 %v5301, %v5413
      %v5450 = vadd.f32 %v5302, %v5414
      %v5451 = vadd.f32 %v5303, %v5415
      %v5452 = vadd.f32 %v5304, %v5416
      %v5453 = vadd.f32 %v5305, %v5417
      %v5454 = vadd.f32 %v5306, %v5418
      %v5455 = vadd.f32 %v5307, %v5419
      %v5456 = vadd.f32 %v5308, %v5420
      %v5457 = vadd.f32 %v5309, %v5421
      %v5458 = vadd.f32 %v5310, %v5422
      %v5459 = vadd.f32 %v5311, %v5423
      %v5460 = vadd.f32 %v5312, %v5424
      %v5461 = vadd.f32 %v5313, %v5425
      %v5462 = vadd.f32 %v5314, %v5426
      %v5463 = vadd.f32 %v5315, %v5427
      %v5464 = vadd.f32 %v5316, %v5428
      %v5465 = vadd.f32 %v5317, %v5429
      %v5466 = vadd.f32 %v5318, %v5430
      %v5467 = vadd.f32 %v5319, %v5431
      %v5468 = vadd.f32 %v5320, %v5432
      %v5469 = vadd.f32 %v5321, %v5433
      %v5470 = vadd.f32 %v5322, %v5434
      %v5471 = vadd.f32 %v5323, %v5435
      %v5472 = vadd.f32 %v5324, %v5436
      %v5473 = vrot.slane %v4655, 3
      %v5474 = vrot.slane %v4656, 3
      %v5475 = vrot.slane %v4657, 3
      %v5476 = vrot.slane %v4658, 3
      %v5477 = vrot.slane %v4659, 3
      %v5478 = vrot.slane %v4660, 3
      %v5479 = vrot.slane %v4661, 3
      %v5480 = vrot.slane %v4662, 3
      %v5481 = vrot.slane %v4663, 3
      %v5482 = vrot.slane %v4664, 3
      %v5483 = vrot.slane %v4665, 3
      %v5484 = vrot.slane %v4666, 3
      %v5485 = vrot.slane %v4667, 3
      %v5486 = vrot.slane %v4668, 3
      %v5487 = vrot.slane %v4669, 3
      %v5488 = vrot.slane %v4670, 3
      %v5489 = vrot.slane %v4671, 3
      %v5490 = vrot.slane %v4672, 3
      %v5491 = vrot.slane %v4673, 3
      %v5492 = vrot.slane %v4674, 3
      %v5493 = vrot.slane %v4675, 3
      %v5494 = vrot.slane %v4676, 3
      %v5495 = vrot.slane %v4677, 3
      %v5496 = vrot.slane %v4678, 3
      %v5497 = vrot.slane %v4679, 3
      %v5498 = vrot.slane %v4680, 3
      %v5499 = vrot.slane %v4681, 3
      %v5500 = vrot.slane %v4682, 3
      %v5501 = vrot.slane %v4683, 3
      %v5502 = vrot.slane %v4684, 3
      %v5503 = vrot.slane %v4685, 3
      %v5504 = vrot.slane %v4686, 3
      %v5505 = vrot.slane %v4687, 3
      %v5506 = vrot.slane %v4688, 3
      %v5507 = vrot.slane %v4689, 3
      %v5508 = vrot.slane %v4690, 3
      %v5509 = vsel %vm2839, %v5507, %v5508
      %v5510 = vsel %vm2839, %v5506, %v5507
      %v5511 = vsel %vm2839, %v5505, %v5506
      %v5512 = vsel %vm2839, %v5504, %v5505
      %v5513 = vsel %vm2839, %v5503, %v5504
      %v5514 = vsel %vm2839, %v5502, %v5503
      %v5515 = vsel %vm2839, %v5501, %v5502
      %v5516 = vsel %vm2839, %v5500, %v5501
      %v5517 = vsel %vm2839, %v5499, %v5500
      %v5518 = vsel %vm2839, %v5498, %v5499
      %v5519 = vsel %vm2839, %v5497, %v5498
      %v5520 = vsel %vm2839, %v5496, %v5497
      %v5521 = vsel %vm2839, %v5495, %v5496
      %v5522 = vsel %vm2839, %v5494, %v5495
      %v5523 = vsel %vm2839, %v5493, %v5494
      %v5524 = vsel %vm2839, %v5492, %v5493
      %v5525 = vsel %vm2839, %v5491, %v5492
      %v5526 = vsel %vm2839, %v5490, %v5491
      %v5527 = vsel %vm2839, %v5489, %v5490
      %v5528 = vsel %vm2839, %v5488, %v5489
      %v5529 = vsel %vm2839, %v5487, %v5488
      %v5530 = vsel %vm2839, %v5486, %v5487
      %v5531 = vsel %vm2839, %v5485, %v5486
      %v5532 = vsel %vm2839, %v5484, %v5485
      %v5533 = vsel %vm2839, %v5483, %v5484
      %v5534 = vsel %vm2839, %v5482, %v5483
      %v5535 = vsel %vm2839, %v5481, %v5482
      %v5536 = vsel %vm2839, %v5480, %v5481
      %v5537 = vsel %vm2839, %v5479, %v5480
      %v5538 = vsel %vm2839, %v5478, %v5479
      %v5539 = vsel %vm2839, %v5477, %v5478
      %v5540 = vsel %vm2839, %v5476, %v5477
      %v5541 = vsel %vm2839, %v5475, %v5476
      %v5542 = vsel %vm2839, %v5474, %v5475
      %v5543 = vsel %vm2839, %v5473, %v5474
      %v5544 = vsel %vm2839, %v5508, %v5473
      %v5545 = vlaneseq
      %v5546 = vshrl.u32 %v5545, 7
      %v5547 = vsub.s32 6, %v5546
      %v5548 = vrot.slane %v4692, %v5547
      %v5549 = vmul.f32 %v5543, %v5548
      %v5550 = vmul.f32 %v5542, %v5548
      %v5551 = vmul.f32 %v5541, %v5548
      %v5552 = vmul.f32 %v5540, %v5548
      %v5553 = vmul.f32 %v5539, %v5548
      %v5554 = vmul.f32 %v5538, %v5548
      %v5555 = vmul.f32 %v5537, %v5548
      %v5556 = vmul.f32 %v5536, %v5548
      %v5557 = vmul.f32 %v5535, %v5548
      %v5558 = vmul.f32 %v5534, %v5548
      %v5559 = vmul.f32 %v5533, %v5548
      %v5560 = vmul.f32 %v5532, %v5548
      %v5561 = vmul.f32 %v5531, %v5548
      %v5562 = vmul.f32 %v5530, %v5548
      %v5563 = vmul.f32 %v5529, %v5548
      %v5564 = vmul.f32 %v5528, %v5548
      %v5565 = vmul.f32 %v5527, %v5548
      %v5566 = vmul.f32 %v5526, %v5548
      %v5567 = vmul.f32 %v5525, %v5548
      %v5568 = vmul.f32 %v5524, %v5548
      %v5569 = vmul.f32 %v5523, %v5548
      %v5570 = vmul.f32 %v5522, %v5548
      %v5571 = vmul.f32 %v5521, %v5548
      %v5572 = vmul.f32 %v5520, %v5548
      %v5573 = vmul.f32 %v5519, %v5548
      %v5574 = vmul.f32 %v5518, %v5548
      %v5575 = vmul.f32 %v5517, %v5548
      %v5576 = vmul.f32 %v5516, %v5548
      %v5577 = vmul.f32 %v5515, %v5548
      %v5578 = vmul.f32 %v5514, %v5548
      %v5579 = vmul.f32 %v5513, %v5548
      %v5580 = vmul.f32 %v5512, %v5548
      %v5581 = vmul.f32 %v5511, %v5548
      %v5582 = vmul.f32 %v5510, %v5548
      %v5583 = vmul.f32 %v5509, %v5548
      %v5584 = vmul.f32 %v5544, %v5548
      %v5585 = vadd.f32 %v5437, %v5549
      %v5586 = vadd.f32 %v5438, %v5550
      %v5587 = vadd.f32 %v5439, %v5551
      %v5588 = vadd.f32 %v5440, %v5552
      %v5589 = vadd.f32 %v5441, %v5553
      %v5590 = vadd.f32 %v5442, %v5554
      %v5591 = vadd.f32 %v5443, %v5555
      %v5592 = vadd.f32 %v5444, %v5556
      %v5593 = vadd.f32 %v5445, %v5557
      %v5594 = vadd.f32 %v5446, %v5558
      %v5595 = vadd.f32 %v5447, %v5559
      %v5596 = vadd.f32 %v5448, %v5560
      %v5597 = vadd.f32 %v5449, %v5561
      %v5598 = vadd.f32 %v5450, %v5562
      %v5599 = vadd.f32 %v5451, %v5563
      %v5600 = vadd.f32 %v5452, %v5564
      %v5601 = vadd.f32 %v5453, %v5565
      %v5602 = vadd.f32 %v5454, %v5566
      %v5603 = vadd.f32 %v5455, %v5567
      %v5604 = vadd.f32 %v5456, %v5568
      %v5605 = vadd.f32 %v5457, %v5569
      %v5606 = vadd.f32 %v5458, %v5570
      %v5607 = vadd.f32 %v5459, %v5571
      %v5608 = vadd.f32 %v5460, %v5572
      %v5609 = vadd.f32 %v5461, %v5573
      %v5610 = vadd.f32 %v5462, %v5574
      %v5611 = vadd.f32 %v5463, %v5575
      %v5612 = vadd.f32 %v5464, %v5576
      %v5613 = vadd.f32 %v5465, %v5577
      %v5614 = vadd.f32 %v5466, %v5578
      %v5615 = vadd.f32 %v5467, %v5579
      %v5616 = vadd.f32 %v5468, %v5580
      %v5617 = vadd.f32 %v5469, %v5581
      %v5618 = vadd.f32 %v5470, %v5582
      %v5619 = vadd.f32 %v5471, %v5583
      %v5620 = vadd.f32 %v5472, %v5584
      %s5621 = scalar_lea.vmem %s7, 1
      %v5622 = vld [vmem:[%s5621] sm:$0x1]
      %v5624 = vlaneseq
      %v5625 = vshrl.u32 %v5624, 7
      %v5626 = vsub.s32 0, %v5625
      %v5627 = vrot.slane %v5622, %v5626
      %v5629 = vadd.f32 %v5585, %v5627
      %v5630 = vadd.f32 %v5586, %v5627
      %v5631 = vadd.f32 %v5587, %v5627
      %v5632 = vadd.f32 %v5588, %v5627
      %v5633 = vadd.f32 %v5589, %v5627
      %v5634 = vadd.f32 %v5590, %v5627
      %v5635 = vadd.f32 %v5591, %v5627
      %v5636 = vadd.f32 %v5592, %v5627
      %v5637 = vadd.f32 %v5593, %v5627
      %v5638 = vadd.f32 %v5594, %v5627
      %v5639 = vadd.f32 %v5595, %v5627
      %v5640 = vadd.f32 %v5596, %v5627
      %v5641 = vadd.f32 %v5597, %v5627
      %v5642 = vadd.f32 %v5598, %v5627
      %v5643 = vadd.f32 %v5599, %v5627
      %v5644 = vadd.f32 %v5600, %v5627
      %v5645 = vadd.f32 %v5601, %v5627
      %v5646 = vadd.f32 %v5602, %v5627
      %v5647 = vadd.f32 %v5603, %v5627
      %v5648 = vadd.f32 %v5604, %v5627
      %v5649 = vadd.f32 %v5605, %v5627
      %v5650 = vadd.f32 %v5606, %v5627
      %v5651 = vadd.f32 %v5607, %v5627
      %v5652 = vadd.f32 %v5608, %v5627
      %v5653 = vadd.f32 %v5609, %v5627
      %v5654 = vadd.f32 %v5610, %v5627
      %v5655 = vadd.f32 %v5611, %v5627
      %v5656 = vadd.f32 %v5612, %v5627
      %v5657 = vadd.f32 %v5613, %v5627
      %v5658 = vadd.f32 %v5614, %v5627
      %v5659 = vadd.f32 %v5615, %v5627
      %v5660 = vadd.f32 %v5616, %v5627
      %v5661 = vadd.f32 %v5617, %v5627
      %v5662 = vadd.f32 %v5618, %v5627
      %v5663 = vadd.f32 %v5619, %v5627
      %v5664 = vadd.f32 %v5620, %v5627
      %s5665 = scalar_lea.vmem %s8, 1
      %v5666 = vld [vmem:[%s5665] sm:$0x1]
      %s5667 = scalar_lea.vmem %s9, 1
      %v5668 = vld [vmem:[%s5667] sm:$0x1]
      %v5669 = vsel %vm1241, %v5629, 0.0
      %5670 = vadd.xlane.f32.xlu0 %v5669
      %v5671 = vpop.xlane.xlu0 %5670
      %v5672 = vsel %vm1241, %v5630, 0.0
      %5673 = vadd.xlane.f32.xlu0 %v5672
      %v5674 = vpop.xlane.xlu0 %5673
      %v5675 = vsel %vm1241, %v5631, 0.0
      %5676 = vadd.xlane.f32.xlu0 %v5675
      %v5677 = vpop.xlane.xlu0 %5676
      %v5678 = vsel %vm1241, %v5632, 0.0
      %5679 = vadd.xlane.f32.xlu0 %v5678
      %v5680 = vpop.xlane.xlu0 %5679
      %v5681 = vsel %vm1241, %v5633, 0.0
      %5682 = vadd.xlane.f32.xlu0 %v5681
      %v5683 = vpop.xlane.xlu0 %5682
      %v5684 = vsel %vm1241, %v5634, 0.0
      %5685 = vadd.xlane.f32.xlu0 %v5684
      %v5686 = vpop.xlane.xlu0 %5685
      %v5687 = vsel %vm1241, %v5635, 0.0
      %5688 = vadd.xlane.f32.xlu0 %v5687
      %v5689 = vpop.xlane.xlu0 %5688
      %v5690 = vsel %vm1241, %v5636, 0.0
      %5691 = vadd.xlane.f32.xlu0 %v5690
      %v5692 = vpop.xlane.xlu0 %5691
      %v5693 = vsel %vm1241, %v5637, 0.0
      %5694 = vadd.xlane.f32.xlu0 %v5693
      %v5695 = vpop.xlane.xlu0 %5694
      %v5696 = vsel %vm1241, %v5638, 0.0
      %5697 = vadd.xlane.f32.xlu0 %v5696
      %v5698 = vpop.xlane.xlu0 %5697
      %v5699 = vsel %vm1241, %v5639, 0.0
      %5700 = vadd.xlane.f32.xlu0 %v5699
      %v5701 = vpop.xlane.xlu0 %5700
      %v5702 = vsel %vm1241, %v5640, 0.0
      %5703 = vadd.xlane.f32.xlu0 %v5702
      %v5704 = vpop.xlane.xlu0 %5703
      %v5705 = vsel %vm1241, %v5641, 0.0
      %5706 = vadd.xlane.f32.xlu0 %v5705
      %v5707 = vpop.xlane.xlu0 %5706
      %v5708 = vsel %vm1241, %v5642, 0.0
      %5709 = vadd.xlane.f32.xlu0 %v5708
      %v5710 = vpop.xlane.xlu0 %5709
      %v5711 = vsel %vm1241, %v5643, 0.0
      %5712 = vadd.xlane.f32.xlu0 %v5711
      %v5713 = vpop.xlane.xlu0 %5712
      %v5714 = vsel %vm1241, %v5644, 0.0
      %5715 = vadd.xlane.f32.xlu0 %v5714
      %v5716 = vpop.xlane.xlu0 %5715
      %v5717 = vsel %vm1241, %v5645, 0.0
      %5718 = vadd.xlane.f32.xlu0 %v5717
      %v5719 = vpop.xlane.xlu0 %5718
      %v5720 = vsel %vm1241, %v5646, 0.0
      %5721 = vadd.xlane.f32.xlu0 %v5720
      %v5722 = vpop.xlane.xlu0 %5721
      %v5723 = vsel %vm1241, %v5647, 0.0
      %5724 = vadd.xlane.f32.xlu0 %v5723
      %v5725 = vpop.xlane.xlu0 %5724
      %v5726 = vsel %vm1241, %v5648, 0.0
      %5727 = vadd.xlane.f32.xlu0 %v5726
      %v5728 = vpop.xlane.xlu0 %5727
      %v5729 = vsel %vm1241, %v5649, 0.0
      %5730 = vadd.xlane.f32.xlu0 %v5729
      %v5731 = vpop.xlane.xlu0 %5730
      %v5732 = vsel %vm1241, %v5650, 0.0
      %5733 = vadd.xlane.f32.xlu0 %v5732
      %v5734 = vpop.xlane.xlu0 %5733
      %v5735 = vsel %vm1241, %v5651, 0.0
      %5736 = vadd.xlane.f32.xlu0 %v5735
      %v5737 = vpop.xlane.xlu0 %5736
      %v5738 = vsel %vm1241, %v5652, 0.0
      %5739 = vadd.xlane.f32.xlu0 %v5738
      %v5740 = vpop.xlane.xlu0 %5739
      %v5741 = vsel %vm1241, %v5653, 0.0
      %5742 = vadd.xlane.f32.xlu0 %v5741
      %v5743 = vpop.xlane.xlu0 %5742
      %v5744 = vsel %vm1241, %v5654, 0.0
      %5745 = vadd.xlane.f32.xlu0 %v5744
      %v5746 = vpop.xlane.xlu0 %5745
      %v5747 = vsel %vm1241, %v5655, 0.0
      %5748 = vadd.xlane.f32.xlu0 %v5747
      %v5749 = vpop.xlane.xlu0 %5748
      %v5750 = vsel %vm1241, %v5656, 0.0
      %5751 = vadd.xlane.f32.xlu0 %v5750
      %v5752 = vpop.xlane.xlu0 %5751
      %v5753 = vsel %vm1241, %v5657, 0.0
      %5754 = vadd.xlane.f32.xlu0 %v5753
      %v5755 = vpop.xlane.xlu0 %5754
      %v5756 = vsel %vm1241, %v5658, 0.0
      %5757 = vadd.xlane.f32.xlu0 %v5756
      %v5758 = vpop.xlane.xlu0 %5757
      %v5759 = vsel %vm1241, %v5659, 0.0
      %5760 = vadd.xlane.f32.xlu0 %v5759
      %v5761 = vpop.xlane.xlu0 %5760
      %v5762 = vsel %vm1241, %v5660, 0.0
      %5763 = vadd.xlane.f32.xlu0 %v5762
      %v5764 = vpop.xlane.xlu0 %5763
      %v5765 = vsel %vm1241, %v5661, 0.0
      %5766 = vadd.xlane.f32.xlu0 %v5765
      %v5767 = vpop.xlane.xlu0 %5766
      %v5768 = vsel %vm1241, %v5662, 0.0
      %5769 = vadd.xlane.f32.xlu0 %v5768
      %v5770 = vpop.xlane.xlu0 %5769
      %v5771 = vsel %vm1241, %v5663, 0.0
      %5772 = vadd.xlane.f32.xlu0 %v5771
      %v5773 = vpop.xlane.xlu0 %5772
      %v5774 = vsel %vm1241, %v5664, 0.0
      %5775 = vadd.xlane.f32.xlu0 %v5774
      %v5776 = vpop.xlane.xlu0 %5775
      %v5777 = vmul.f32 %v5671, %v1350
      %v5778 = vmul.f32 %v5674, %v1350
      %v5779 = vmul.f32 %v5677, %v1350
      %v5780 = vmul.f32 %v5680, %v1350
      %v5781 = vmul.f32 %v5683, %v1350
      %v5782 = vmul.f32 %v5686, %v1350
      %v5783 = vmul.f32 %v5689, %v1350
      %v5784 = vmul.f32 %v5692, %v1350
      %v5785 = vmul.f32 %v5695, %v1350
      %v5786 = vmul.f32 %v5698, %v1350
      %v5787 = vmul.f32 %v5701, %v1350
      %v5788 = vmul.f32 %v5704, %v1350
      %v5789 = vmul.f32 %v5707, %v1350
      %v5790 = vmul.f32 %v5710, %v1350
      %v5791 = vmul.f32 %v5713, %v1350
      %v5792 = vmul.f32 %v5716, %v1350
      %v5793 = vmul.f32 %v5719, %v1350
      %v5794 = vmul.f32 %v5722, %v1350
      %v5795 = vmul.f32 %v5725, %v1350
      %v5796 = vmul.f32 %v5728, %v1350
      %v5797 = vmul.f32 %v5731, %v1350
      %v5798 = vmul.f32 %v5734, %v1350
      %v5799 = vmul.f32 %v5737, %v1350
      %v5800 = vmul.f32 %v5740, %v1350
      %v5801 = vmul.f32 %v5743, %v1350
      %v5802 = vmul.f32 %v5746, %v1350
      %v5803 = vmul.f32 %v5749, %v1350
      %v5804 = vmul.f32 %v5752, %v1350
      %v5805 = vmul.f32 %v5755, %v1350
      %v5806 = vmul.f32 %v5758, %v1350
      %v5807 = vmul.f32 %v5761, %v1350
      %v5808 = vmul.f32 %v5764, %v1350
      %v5809 = vmul.f32 %v5767, %v1350
      %v5810 = vmul.f32 %v5770, %v1350
      %v5811 = vmul.f32 %v5773, %v1350
      %v5812 = vmul.f32 %v5776, %v1350
      %v5813 = vmul.f32 %v5629, %v5629
      %v5814 = vmul.f32 %v5630, %v5630
      %v5815 = vmul.f32 %v5631, %v5631
      %v5816 = vmul.f32 %v5632, %v5632
      %v5817 = vmul.f32 %v5633, %v5633
      %v5818 = vmul.f32 %v5634, %v5634
      %v5819 = vmul.f32 %v5635, %v5635
      %v5820 = vmul.f32 %v5636, %v5636
      %v5821 = vmul.f32 %v5637, %v5637
      %v5822 = vmul.f32 %v5638, %v5638
      %v5823 = vmul.f32 %v5639, %v5639
      %v5824 = vmul.f32 %v5640, %v5640
      %v5825 = vmul.f32 %v5641, %v5641
      %v5826 = vmul.f32 %v5642, %v5642
      %v5827 = vmul.f32 %v5643, %v5643
      %v5828 = vmul.f32 %v5644, %v5644
      %v5829 = vmul.f32 %v5645, %v5645
      %v5830 = vmul.f32 %v5646, %v5646
      %v5831 = vmul.f32 %v5647, %v5647
      %v5832 = vmul.f32 %v5648, %v5648
      %v5833 = vmul.f32 %v5649, %v5649
      %v5834 = vmul.f32 %v5650, %v5650
      %v5835 = vmul.f32 %v5651, %v5651
      %v5836 = vmul.f32 %v5652, %v5652
      %v5837 = vmul.f32 %v5653, %v5653
      %v5838 = vmul.f32 %v5654, %v5654
      %v5839 = vmul.f32 %v5655, %v5655
      %v5840 = vmul.f32 %v5656, %v5656
      %v5841 = vmul.f32 %v5657, %v5657
      %v5842 = vmul.f32 %v5658, %v5658
      %v5843 = vmul.f32 %v5659, %v5659
      %v5844 = vmul.f32 %v5660, %v5660
      %v5845 = vmul.f32 %v5661, %v5661
      %v5846 = vmul.f32 %v5662, %v5662
      %v5847 = vmul.f32 %v5663, %v5663
      %v5848 = vmul.f32 %v5664, %v5664
      %v5849 = vsel %vm1241, %v5813, 0.0
      %5850 = vadd.xlane.f32.xlu0 %v5849
      %v5851 = vpop.xlane.xlu0 %5850
      %v5852 = vsel %vm1241, %v5814, 0.0
      %5853 = vadd.xlane.f32.xlu0 %v5852
      %v5854 = vpop.xlane.xlu0 %5853
      %v5855 = vsel %vm1241, %v5815, 0.0
      %5856 = vadd.xlane.f32.xlu0 %v5855
      %v5857 = vpop.xlane.xlu0 %5856
      %v5858 = vsel %vm1241, %v5816, 0.0
      %5859 = vadd.xlane.f32.xlu0 %v5858
      %v5860 = vpop.xlane.xlu0 %5859
      %v5861 = vsel %vm1241, %v5817, 0.0
      %5862 = vadd.xlane.f32.xlu0 %v5861
      %v5863 = vpop.xlane.xlu0 %5862
      %v5864 = vsel %vm1241, %v5818, 0.0
      %5865 = vadd.xlane.f32.xlu0 %v5864
      %v5866 = vpop.xlane.xlu0 %5865
      %v5867 = vsel %vm1241, %v5819, 0.0
      %5868 = vadd.xlane.f32.xlu0 %v5867
      %v5869 = vpop.xlane.xlu0 %5868
      %v5870 = vsel %vm1241, %v5820, 0.0
      %5871 = vadd.xlane.f32.xlu0 %v5870
      %v5872 = vpop.xlane.xlu0 %5871
      %v5873 = vsel %vm1241, %v5821, 0.0
      %5874 = vadd.xlane.f32.xlu0 %v5873
      %v5875 = vpop.xlane.xlu0 %5874
      %v5876 = vsel %vm1241, %v5822, 0.0
      %5877 = vadd.xlane.f32.xlu0 %v5876
      %v5878 = vpop.xlane.xlu0 %5877
      %v5879 = vsel %vm1241, %v5823, 0.0
      %5880 = vadd.xlane.f32.xlu0 %v5879
      %v5881 = vpop.xlane.xlu0 %5880
      %v5882 = vsel %vm1241, %v5824, 0.0
      %5883 = vadd.xlane.f32.xlu0 %v5882
      %v5884 = vpop.xlane.xlu0 %5883
      %v5885 = vsel %vm1241, %v5825, 0.0
      %5886 = vadd.xlane.f32.xlu0 %v5885
      %v5887 = vpop.xlane.xlu0 %5886
      %v5888 = vsel %vm1241, %v5826, 0.0
      %5889 = vadd.xlane.f32.xlu0 %v5888
      %v5890 = vpop.xlane.xlu0 %5889
      %v5891 = vsel %vm1241, %v5827, 0.0
      %5892 = vadd.xlane.f32.xlu0 %v5891
      %v5893 = vpop.xlane.xlu0 %5892
      %v5894 = vsel %vm1241, %v5828, 0.0
      %5895 = vadd.xlane.f32.xlu0 %v5894
      %v5896 = vpop.xlane.xlu0 %5895
      %v5897 = vsel %vm1241, %v5829, 0.0
      %5898 = vadd.xlane.f32.xlu0 %v5897
      %v5899 = vpop.xlane.xlu0 %5898
      %v5900 = vsel %vm1241, %v5830, 0.0
      %5901 = vadd.xlane.f32.xlu0 %v5900
      %v5902 = vpop.xlane.xlu0 %5901
      %v5903 = vsel %vm1241, %v5831, 0.0
      %5904 = vadd.xlane.f32.xlu0 %v5903
      %v5905 = vpop.xlane.xlu0 %5904
      %v5906 = vsel %vm1241, %v5832, 0.0
      %5907 = vadd.xlane.f32.xlu0 %v5906
      %v5908 = vpop.xlane.xlu0 %5907
      %v5909 = vsel %vm1241, %v5833, 0.0
      %5910 = vadd.xlane.f32.xlu0 %v5909
      %v5911 = vpop.xlane.xlu0 %5910
      %v5912 = vsel %vm1241, %v5834, 0.0
      %5913 = vadd.xlane.f32.xlu0 %v5912
      %v5914 = vpop.xlane.xlu0 %5913
      %v5915 = vsel %vm1241, %v5835, 0.0
      %5916 = vadd.xlane.f32.xlu0 %v5915
      %v5917 = vpop.xlane.xlu0 %5916
      %v5918 = vsel %vm1241, %v5836, 0.0
      %5919 = vadd.xlane.f32.xlu0 %v5918
      %v5920 = vpop.xlane.xlu0 %5919
      %v5921 = vsel %vm1241, %v5837, 0.0
      %5922 = vadd.xlane.f32.xlu0 %v5921
      %v5923 = vpop.xlane.xlu0 %5922
      %v5924 = vsel %vm1241, %v5838, 0.0
      %5925 = vadd.xlane.f32.xlu0 %v5924
      %v5926 = vpop.xlane.xlu0 %5925
      %v5927 = vsel %vm1241, %v5839, 0.0
      %5928 = vadd.xlane.f32.xlu0 %v5927
      %v5929 = vpop.xlane.xlu0 %5928
      %v5930 = vsel %vm1241, %v5840, 0.0
      %5931 = vadd.xlane.f32.xlu0 %v5930
      %v5932 = vpop.xlane.xlu0 %5931
      %v5933 = vsel %vm1241, %v5841, 0.0
      %5934 = vadd.xlane.f32.xlu0 %v5933
      %v5935 = vpop.xlane.xlu0 %5934
      %v5936 = vsel %vm1241, %v5842, 0.0
      %5937 = vadd.xlane.f32.xlu0 %v5936
      %v5938 = vpop.xlane.xlu0 %5937
      %v5939 = vsel %vm1241, %v5843, 0.0
      %5940 = vadd.xlane.f32.xlu0 %v5939
      %v5941 = vpop.xlane.xlu0 %5940
      %v5942 = vsel %vm1241, %v5844, 0.0
      %5943 = vadd.xlane.f32.xlu0 %v5942
      %v5944 = vpop.xlane.xlu0 %5943
      %v5945 = vsel %vm1241, %v5845, 0.0
      %5946 = vadd.xlane.f32.xlu0 %v5945
      %v5947 = vpop.xlane.xlu0 %5946
      %v5948 = vsel %vm1241, %v5846, 0.0
      %5949 = vadd.xlane.f32.xlu0 %v5948
      %v5950 = vpop.xlane.xlu0 %5949
      %v5951 = vsel %vm1241, %v5847, 0.0
      %5952 = vadd.xlane.f32.xlu0 %v5951
      %v5953 = vpop.xlane.xlu0 %5952
      %v5954 = vsel %vm1241, %v5848, 0.0
      %5955 = vadd.xlane.f32.xlu0 %v5954
      %v5956 = vpop.xlane.xlu0 %5955
      %v5957 = vmul.f32 %v5851, %v1350
      %v5958 = vmul.f32 %v5854, %v1350
      %v5959 = vmul.f32 %v5857, %v1350
      %v5960 = vmul.f32 %v5860, %v1350
      %v5961 = vmul.f32 %v5863, %v1350
      %v5962 = vmul.f32 %v5866, %v1350
      %v5963 = vmul.f32 %v5869, %v1350
      %v5964 = vmul.f32 %v5872, %v1350
      %v5965 = vmul.f32 %v5875, %v1350
      %v5966 = vmul.f32 %v5878, %v1350
      %v5967 = vmul.f32 %v5881, %v1350
      %v5968 = vmul.f32 %v5884, %v1350
      %v5969 = vmul.f32 %v5887, %v1350
      %v5970 = vmul.f32 %v5890, %v1350
      %v5971 = vmul.f32 %v5893, %v1350
      %v5972 = vmul.f32 %v5896, %v1350
      %v5973 = vmul.f32 %v5899, %v1350
      %v5974 = vmul.f32 %v5902, %v1350
      %v5975 = vmul.f32 %v5905, %v1350
      %v5976 = vmul.f32 %v5908, %v1350
      %v5977 = vmul.f32 %v5911, %v1350
      %v5978 = vmul.f32 %v5914, %v1350
      %v5979 = vmul.f32 %v5917, %v1350
      %v5980 = vmul.f32 %v5920, %v1350
      %v5981 = vmul.f32 %v5923, %v1350
      %v5982 = vmul.f32 %v5926, %v1350
      %v5983 = vmul.f32 %v5929, %v1350
      %v5984 = vmul.f32 %v5932, %v1350
      %v5985 = vmul.f32 %v5935, %v1350
      %v5986 = vmul.f32 %v5938, %v1350
      %v5987 = vmul.f32 %v5941, %v1350
      %v5988 = vmul.f32 %v5944, %v1350
      %v5989 = vmul.f32 %v5947, %v1350
      %v5990 = vmul.f32 %v5950, %v1350
      %v5991 = vmul.f32 %v5953, %v1350
      %v5992 = vmul.f32 %v5956, %v1350
      %v5993 = vmul.f32 %v5777, %v5777
      %v5994 = vmul.f32 %v5778, %v5778
      %v5995 = vmul.f32 %v5779, %v5779
      %v5996 = vmul.f32 %v5780, %v5780
      %v5997 = vmul.f32 %v5781, %v5781
      %v5998 = vmul.f32 %v5782, %v5782
      %v5999 = vmul.f32 %v5783, %v5783
      %v6000 = vmul.f32 %v5784, %v5784
      %v6001 = vmul.f32 %v5785, %v5785
      %v6002 = vmul.f32 %v5786, %v5786
      %v6003 = vmul.f32 %v5787, %v5787
      %v6004 = vmul.f32 %v5788, %v5788
      %v6005 = vmul.f32 %v5789, %v5789
      %v6006 = vmul.f32 %v5790, %v5790
      %v6007 = vmul.f32 %v5791, %v5791
      %v6008 = vmul.f32 %v5792, %v5792
      %v6009 = vmul.f32 %v5793, %v5793
      %v6010 = vmul.f32 %v5794, %v5794
      %v6011 = vmul.f32 %v5795, %v5795
      %v6012 = vmul.f32 %v5796, %v5796
      %v6013 = vmul.f32 %v5797, %v5797
      %v6014 = vmul.f32 %v5798, %v5798
      %v6015 = vmul.f32 %v5799, %v5799
      %v6016 = vmul.f32 %v5800, %v5800
      %v6017 = vmul.f32 %v5801, %v5801
      %v6018 = vmul.f32 %v5802, %v5802
      %v6019 = vmul.f32 %v5803, %v5803
      %v6020 = vmul.f32 %v5804, %v5804
      %v6021 = vmul.f32 %v5805, %v5805
      %v6022 = vmul.f32 %v5806, %v5806
      %v6023 = vmul.f32 %v5807, %v5807
      %v6024 = vmul.f32 %v5808, %v5808
      %v6025 = vmul.f32 %v5809, %v5809
      %v6026 = vmul.f32 %v5810, %v5810
      %v6027 = vmul.f32 %v5811, %v5811
      %v6028 = vmul.f32 %v5812, %v5812
      %v6029 = vsub.f32 %v5957, %v5993
      %v6030 = vsub.f32 %v5958, %v5994
      %v6031 = vsub.f32 %v5959, %v5995
      %v6032 = vsub.f32 %v5960, %v5996
      %v6033 = vsub.f32 %v5961, %v5997
      %v6034 = vsub.f32 %v5962, %v5998
      %v6035 = vsub.f32 %v5963, %v5999
      %v6036 = vsub.f32 %v5964, %v6000
      %v6037 = vsub.f32 %v5965, %v6001
      %v6038 = vsub.f32 %v5966, %v6002
      %v6039 = vsub.f32 %v5967, %v6003
      %v6040 = vsub.f32 %v5968, %v6004
      %v6041 = vsub.f32 %v5969, %v6005
      %v6042 = vsub.f32 %v5970, %v6006
      %v6043 = vsub.f32 %v5971, %v6007
      %v6044 = vsub.f32 %v5972, %v6008
      %v6045 = vsub.f32 %v5973, %v6009
      %v6046 = vsub.f32 %v5974, %v6010
      %v6047 = vsub.f32 %v5975, %v6011
      %v6048 = vsub.f32 %v5976, %v6012
      %v6049 = vsub.f32 %v5977, %v6013
      %v6050 = vsub.f32 %v5978, %v6014
      %v6051 = vsub.f32 %v5979, %v6015
      %v6052 = vsub.f32 %v5980, %v6016
      %v6053 = vsub.f32 %v5981, %v6017
      %v6054 = vsub.f32 %v5982, %v6018
      %v6055 = vsub.f32 %v5983, %v6019
      %v6056 = vsub.f32 %v5984, %v6020
      %v6057 = vsub.f32 %v5985, %v6021
      %v6058 = vsub.f32 %v5986, %v6022
      %v6059 = vsub.f32 %v5987, %v6023
      %v6060 = vsub.f32 %v5988, %v6024
      %v6061 = vsub.f32 %v5989, %v6025
      %v6062 = vsub.f32 %v5990, %v6026
      %v6063 = vsub.f32 %v5991, %v6027
      %v6064 = vsub.f32 %v5992, %v6028
      %v6065 = vmax.f32 %v6029, 0.0
      %v6066 = vmax.f32 %v6030, 0.0
      %v6067 = vmax.f32 %v6031, 0.0
      %v6068 = vmax.f32 %v6032, 0.0
      %v6069 = vmax.f32 %v6033, 0.0
      %v6070 = vmax.f32 %v6034, 0.0
      %v6071 = vmax.f32 %v6035, 0.0
      %v6072 = vmax.f32 %v6036, 0.0
      %v6073 = vmax.f32 %v6037, 0.0
      %v6074 = vmax.f32 %v6038, 0.0
      %v6075 = vmax.f32 %v6039, 0.0
      %v6076 = vmax.f32 %v6040, 0.0
      %v6077 = vmax.f32 %v6041, 0.0
      %v6078 = vmax.f32 %v6042, 0.0
      %v6079 = vmax.f32 %v6043, 0.0
      %v6080 = vmax.f32 %v6044, 0.0
      %v6081 = vmax.f32 %v6045, 0.0
      %v6082 = vmax.f32 %v6046, 0.0
      %v6083 = vmax.f32 %v6047, 0.0
      %v6084 = vmax.f32 %v6048, 0.0
      %v6085 = vmax.f32 %v6049, 0.0
      %v6086 = vmax.f32 %v6050, 0.0
      %v6087 = vmax.f32 %v6051, 0.0
      %v6088 = vmax.f32 %v6052, 0.0
      %v6089 = vmax.f32 %v6053, 0.0
      %v6090 = vmax.f32 %v6054, 0.0
      %v6091 = vmax.f32 %v6055, 0.0
      %v6092 = vmax.f32 %v6056, 0.0
      %v6093 = vmax.f32 %v6057, 0.0
      %v6094 = vmax.f32 %v6058, 0.0
      %v6095 = vmax.f32 %v6059, 0.0
      %v6096 = vmax.f32 %v6060, 0.0
      %v6097 = vmax.f32 %v6061, 0.0
      %v6098 = vmax.f32 %v6062, 0.0
      %v6099 = vmax.f32 %v6063, 0.0
      %v6100 = vmax.f32 %v6064, 0.0
      %v6101 = vsub.f32 %v5629, %v5777
      %v6102 = vsub.f32 %v5630, %v5778
      %v6103 = vsub.f32 %v5631, %v5779
      %v6104 = vsub.f32 %v5632, %v5780
      %v6105 = vsub.f32 %v5633, %v5781
      %v6106 = vsub.f32 %v5634, %v5782
      %v6107 = vsub.f32 %v5635, %v5783
      %v6108 = vsub.f32 %v5636, %v5784
      %v6109 = vsub.f32 %v5637, %v5785
      %v6110 = vsub.f32 %v5638, %v5786
      %v6111 = vsub.f32 %v5639, %v5787
      %v6112 = vsub.f32 %v5640, %v5788
      %v6113 = vsub.f32 %v5641, %v5789
      %v6114 = vsub.f32 %v5642, %v5790
      %v6115 = vsub.f32 %v5643, %v5791
      %v6116 = vsub.f32 %v5644, %v5792
      %v6117 = vsub.f32 %v5645, %v5793
      %v6118 = vsub.f32 %v5646, %v5794
      %v6119 = vsub.f32 %v5647, %v5795
      %v6120 = vsub.f32 %v5648, %v5796
      %v6121 = vsub.f32 %v5649, %v5797
      %v6122 = vsub.f32 %v5650, %v5798
      %v6123 = vsub.f32 %v5651, %v5799
      %v6124 = vsub.f32 %v5652, %v5800
      %v6125 = vsub.f32 %v5653, %v5801
      %v6126 = vsub.f32 %v5654, %v5802
      %v6127 = vsub.f32 %v5655, %v5803
      %v6128 = vsub.f32 %v5656, %v5804
      %v6129 = vsub.f32 %v5657, %v5805
      %v6130 = vsub.f32 %v5658, %v5806
      %v6131 = vsub.f32 %v5659, %v5807
      %v6132 = vsub.f32 %v5660, %v5808
      %v6133 = vsub.f32 %v5661, %v5809
      %v6134 = vsub.f32 %v5662, %v5810
      %v6135 = vsub.f32 %v5663, %v5811
      %v6136 = vsub.f32 %v5664, %v5812
      %v6137 = vadd.f32 %v6065, 1e-05
      %v6138 = vadd.f32 %v6066, 1e-05
      %v6139 = vadd.f32 %v6067, 1e-05
      %v6140 = vadd.f32 %v6068, 1e-05
      %v6141 = vadd.f32 %v6069, 1e-05
      %v6142 = vadd.f32 %v6070, 1e-05
      %v6143 = vadd.f32 %v6071, 1e-05
      %v6144 = vadd.f32 %v6072, 1e-05
      %v6145 = vadd.f32 %v6073, 1e-05
      %v6146 = vadd.f32 %v6074, 1e-05
      %v6147 = vadd.f32 %v6075, 1e-05
      %v6148 = vadd.f32 %v6076, 1e-05
      %v6149 = vadd.f32 %v6077, 1e-05
      %v6150 = vadd.f32 %v6078, 1e-05
      %v6151 = vadd.f32 %v6079, 1e-05
      %v6152 = vadd.f32 %v6080, 1e-05
      %v6153 = vadd.f32 %v6081, 1e-05
      %v6154 = vadd.f32 %v6082, 1e-05
      %v6155 = vadd.f32 %v6083, 1e-05
      %v6156 = vadd.f32 %v6084, 1e-05
      %v6157 = vadd.f32 %v6085, 1e-05
      %v6158 = vadd.f32 %v6086, 1e-05
      %v6159 = vadd.f32 %v6087, 1e-05
      %v6160 = vadd.f32 %v6088, 1e-05
      %v6161 = vadd.f32 %v6089, 1e-05
      %v6162 = vadd.f32 %v6090, 1e-05
      %v6163 = vadd.f32 %v6091, 1e-05
      %v6164 = vadd.f32 %v6092, 1e-05
      %v6165 = vadd.f32 %v6093, 1e-05
      %v6166 = vadd.f32 %v6094, 1e-05
      %v6167 = vadd.f32 %v6095, 1e-05
      %v6168 = vadd.f32 %v6096, 1e-05
      %v6169 = vadd.f32 %v6097, 1e-05
      %v6170 = vadd.f32 %v6098, 1e-05
      %v6171 = vadd.f32 %v6099, 1e-05
      %v6172 = vadd.f32 %v6100, 1e-05
      %v6173 = vrsqrt.pop %v6137
      %v6174 = vrsqrt.pop %v6138
      %v6175 = vrsqrt.pop %v6139
      %v6176 = vrsqrt.pop %v6140
      %v6177 = vrsqrt.pop %v6141
      %v6178 = vrsqrt.pop %v6142
      %v6179 = vrsqrt.pop %v6143
      %v6180 = vrsqrt.pop %v6144
      %v6181 = vrsqrt.pop %v6145
      %v6182 = vrsqrt.pop %v6146
      %v6183 = vrsqrt.pop %v6147
      %v6184 = vrsqrt.pop %v6148
      %v6185 = vrsqrt.pop %v6149
      %v6186 = vrsqrt.pop %v6150
      %v6187 = vrsqrt.pop %v6151
      %v6188 = vrsqrt.pop %v6152
      %v6189 = vrsqrt.pop %v6153
      %v6190 = vrsqrt.pop %v6154
      %v6191 = vrsqrt.pop %v6155
      %v6192 = vrsqrt.pop %v6156
      %v6193 = vrsqrt.pop %v6157
      %v6194 = vrsqrt.pop %v6158
      %v6195 = vrsqrt.pop %v6159
      %v6196 = vrsqrt.pop %v6160
      %v6197 = vrsqrt.pop %v6161
      %v6198 = vrsqrt.pop %v6162
      %v6199 = vrsqrt.pop %v6163
      %v6200 = vrsqrt.pop %v6164
      %v6201 = vrsqrt.pop %v6165
      %v6202 = vrsqrt.pop %v6166
      %v6203 = vrsqrt.pop %v6167
      %v6204 = vrsqrt.pop %v6168
      %v6205 = vrsqrt.pop %v6169
      %v6206 = vrsqrt.pop %v6170
      %v6207 = vrsqrt.pop %v6171
      %v6208 = vrsqrt.pop %v6172
      %v6209 = vmul.f32 %v6101, %v6173
      %v6210 = vmul.f32 %v6102, %v6174
      %v6211 = vmul.f32 %v6103, %v6175
      %v6212 = vmul.f32 %v6104, %v6176
      %v6213 = vmul.f32 %v6105, %v6177
      %v6214 = vmul.f32 %v6106, %v6178
      %v6215 = vmul.f32 %v6107, %v6179
      %v6216 = vmul.f32 %v6108, %v6180
      %v6217 = vmul.f32 %v6109, %v6181
      %v6218 = vmul.f32 %v6110, %v6182
      %v6219 = vmul.f32 %v6111, %v6183
      %v6220 = vmul.f32 %v6112, %v6184
      %v6221 = vmul.f32 %v6113, %v6185
      %v6222 = vmul.f32 %v6114, %v6186
      %v6223 = vmul.f32 %v6115, %v6187
      %v6224 = vmul.f32 %v6116, %v6188
      %v6225 = vmul.f32 %v6117, %v6189
      %v6226 = vmul.f32 %v6118, %v6190
      %v6227 = vmul.f32 %v6119, %v6191
      %v6228 = vmul.f32 %v6120, %v6192
      %v6229 = vmul.f32 %v6121, %v6193
      %v6230 = vmul.f32 %v6122, %v6194
      %v6231 = vmul.f32 %v6123, %v6195
      %v6232 = vmul.f32 %v6124, %v6196
      %v6233 = vmul.f32 %v6125, %v6197
      %v6234 = vmul.f32 %v6126, %v6198
      %v6235 = vmul.f32 %v6127, %v6199
      %v6236 = vmul.f32 %v6128, %v6200
      %v6237 = vmul.f32 %v6129, %v6201
      %v6238 = vmul.f32 %v6130, %v6202
      %v6239 = vmul.f32 %v6131, %v6203
      %v6240 = vmul.f32 %v6132, %v6204
      %v6241 = vmul.f32 %v6133, %v6205
      %v6242 = vmul.f32 %v6134, %v6206
      %v6243 = vmul.f32 %v6135, %v6207
      %v6244 = vmul.f32 %v6136, %v6208
      %v6246 = vlaneseq
      %v6247 = vshrl.u32 %v6246, 7
      %v6248 = vsub.s32 0, %v6247
      %v6249 = vrot.slane %v5666, %v6248
      %v6251 = vmul.f32 %v6209, %v6249
      %v6252 = vmul.f32 %v6210, %v6249
      %v6253 = vmul.f32 %v6211, %v6249
      %v6254 = vmul.f32 %v6212, %v6249
      %v6255 = vmul.f32 %v6213, %v6249
      %v6256 = vmul.f32 %v6214, %v6249
      %v6257 = vmul.f32 %v6215, %v6249
      %v6258 = vmul.f32 %v6216, %v6249
      %v6259 = vmul.f32 %v6217, %v6249
      %v6260 = vmul.f32 %v6218, %v6249
      %v6261 = vmul.f32 %v6219, %v6249
      %v6262 = vmul.f32 %v6220, %v6249
      %v6263 = vmul.f32 %v6221, %v6249
      %v6264 = vmul.f32 %v6222, %v6249
      %v6265 = vmul.f32 %v6223, %v6249
      %v6266 = vmul.f32 %v6224, %v6249
      %v6267 = vmul.f32 %v6225, %v6249
      %v6268 = vmul.f32 %v6226, %v6249
      %v6269 = vmul.f32 %v6227, %v6249
      %v6270 = vmul.f32 %v6228, %v6249
      %v6271 = vmul.f32 %v6229, %v6249
      %v6272 = vmul.f32 %v6230, %v6249
      %v6273 = vmul.f32 %v6231, %v6249
      %v6274 = vmul.f32 %v6232, %v6249
      %v6275 = vmul.f32 %v6233, %v6249
      %v6276 = vmul.f32 %v6234, %v6249
      %v6277 = vmul.f32 %v6235, %v6249
      %v6278 = vmul.f32 %v6236, %v6249
      %v6279 = vmul.f32 %v6237, %v6249
      %v6280 = vmul.f32 %v6238, %v6249
      %v6281 = vmul.f32 %v6239, %v6249
      %v6282 = vmul.f32 %v6240, %v6249
      %v6283 = vmul.f32 %v6241, %v6249
      %v6284 = vmul.f32 %v6242, %v6249
      %v6285 = vmul.f32 %v6243, %v6249
      %v6286 = vmul.f32 %v6244, %v6249
      %v6288 = vlaneseq
      %v6289 = vshrl.u32 %v6288, 7
      %v6290 = vsub.s32 0, %v6289
      %v6291 = vrot.slane %v5668, %v6290
      %v6293 = vadd.f32 %v6251, %v6291
      %v6294 = vadd.f32 %v6252, %v6291
      %v6295 = vadd.f32 %v6253, %v6291
      %v6296 = vadd.f32 %v6254, %v6291
      %v6297 = vadd.f32 %v6255, %v6291
      %v6298 = vadd.f32 %v6256, %v6291
      %v6299 = vadd.f32 %v6257, %v6291
      %v6300 = vadd.f32 %v6258, %v6291
      %v6301 = vadd.f32 %v6259, %v6291
      %v6302 = vadd.f32 %v6260, %v6291
      %v6303 = vadd.f32 %v6261, %v6291
      %v6304 = vadd.f32 %v6262, %v6291
      %v6305 = vadd.f32 %v6263, %v6291
      %v6306 = vadd.f32 %v6264, %v6291
      %v6307 = vadd.f32 %v6265, %v6291
      %v6308 = vadd.f32 %v6266, %v6291
      %v6309 = vadd.f32 %v6267, %v6291
      %v6310 = vadd.f32 %v6268, %v6291
      %v6311 = vadd.f32 %v6269, %v6291
      %v6312 = vadd.f32 %v6270, %v6291
      %v6313 = vadd.f32 %v6271, %v6291
      %v6314 = vadd.f32 %v6272, %v6291
      %v6315 = vadd.f32 %v6273, %v6291
      %v6316 = vadd.f32 %v6274, %v6291
      %v6317 = vadd.f32 %v6275, %v6291
      %v6318 = vadd.f32 %v6276, %v6291
      %v6319 = vadd.f32 %v6277, %v6291
      %v6320 = vadd.f32 %v6278, %v6291
      %v6321 = vadd.f32 %v6279, %v6291
      %v6322 = vadd.f32 %v6280, %v6291
      %v6323 = vadd.f32 %v6281, %v6291
      %v6324 = vadd.f32 %v6282, %v6291
      %v6325 = vadd.f32 %v6283, %v6291
      %v6326 = vadd.f32 %v6284, %v6291
      %v6327 = vadd.f32 %v6285, %v6291
      %v6328 = vadd.f32 %v6286, %v6291
      %v6329 = vpack.c.bf16 %v6294, %v6293
      %v6330 = vpack.c.bf16 %v6296, %v6295
      %v6331 = vpack.c.bf16 %v6298, %v6297
      %v6332 = vpack.c.bf16 %v6300, %v6299
      %v6333 = vpack.c.bf16 %v6302, %v6301
      %v6334 = vpack.c.bf16 %v6304, %v6303
      %v6335 = vpack.c.bf16 %v6306, %v6305
      %v6336 = vpack.c.bf16 %v6308, %v6307
      %v6337 = vpack.c.bf16 %v6310, %v6309
      %v6338 = vpack.c.bf16 %v6312, %v6311
      %v6339 = vpack.c.bf16 %v6314, %v6313
      %v6340 = vpack.c.bf16 %v6316, %v6315
      %v6341 = vpack.c.bf16 %v6318, %v6317
      %v6342 = vpack.c.bf16 %v6320, %v6319
      %v6343 = vpack.c.bf16 %v6322, %v6321
      %v6344 = vpack.c.bf16 %v6324, %v6323
      %v6345 = vpack.c.bf16 %v6326, %v6325
      %v6346 = vpack.c.bf16 %v6328, %v6327
      %s6347 = scalar_lea.vmem %s10, 16
      %v6348 = vld [vmem:[%s6347] sm:$0xf]
      %v6349 = vld [vmem:[%s6347 + $0x4] sm:$0xf]
      %v6350 = vld [vmem:[%s6347 + $0x8] sm:$0xf]
      %v6351 = vld [vmem:[%s6347 + $0xc] sm:$0xf]
      %s6352 = scalar_lea.vmem %s11, 1
      %v6353 = vld [vmem:[%s6352] sm:$0x1]
      %v6355 = vlaneseq
      %v6356 = vshrl.u32 %v6355, 7
      %v6357 = vsub.s32 0, %v6356
      %v6358 = vrot.slane %v6353, %v6357
      %v6364 = vunpack.c.l.b16 %v6348
      %v6365 = vunpack.c.l.b16 %v6349
      %v6366 = vunpack.c.l.b16 %v6350
      %v6367 = vunpack.c.l.b16 %v6351
      %v6368 = vpack.c.b16 %v6365, %v6364
      %v6369 = vpack.c.b16 %v6367, %v6366
      %v6373 = vsel %vm1241, %v6329, 0
      %v6376 = vsel %vm1241, %v6330, 0
      %v6379 = vsel %vm1241, %v6331, 0
      %v6382 = vsel %vm1241, %v6332, 0
      %v6385 = vsel %vm1241, %v6333, 0
      %v6388 = vsel %vm1241, %v6334, 0
      %v6391 = vsel %vm1241, %v6335, 0
      %v6394 = vsel %vm1241, %v6336, 0
      %v6397 = vsel %vm1241, %v6337, 0
      %v6400 = vsel %vm1241, %v6338, 0
      %v6403 = vsel %vm1241, %v6339, 0
      %v6406 = vsel %vm1241, %v6340, 0
      %v6409 = vsel %vm1241, %v6341, 0
      %v6412 = vsel %vm1241, %v6342, 0
      %v6415 = vsel %vm1241, %v6343, 0
      %v6418 = vsel %vm1241, %v6344, 0
      %v6421 = vsel %vm1241, %v6345, 0
      %v6424 = vsel %vm1241, %v6346, 0
      %6426 = vmatprep.subr.bf16.mxu0 0
      %6427 = vmatpush1.bf16.msra.mxu0 %v6368
      %6428 = vmatprep.subr.bf16.mxu0 0
      %6429 = vmatpush1.bf16.msra.mxu0 %v6369
      %6430 = vmatprep.subr.bf16.mxu0 0
      %6431 = vmatpush1.bf16.msra.mxu0 0
      %6432 = vmatprep.subr.bf16.mxu0 0
      %6433 = vmatpush1.bf16.msra.mxu0 0
      %6434 = vmatprep.subr.bf16.mxu0 0
      %6435 = vmatpush1.bf16.msra.mxu0 0
      %6436 = vmatprep.subr.bf16.mxu0 0
      %6437 = vmatpush1.bf16.msra.mxu0 0
      %6438 = vmatprep.subr.bf16.mxu0 0
      %6439 = vmatpush1.bf16.msra.mxu0 0
      %6440 = vmatprep.subr.bf16.mxu0 0
      %6441 = vmatpush1.bf16.msra.mxu0 0
      %6442 = vmatprep.subr.bf16.mxu0 0
      %6443 = vmatpush1.bf16.msra.mxu0 0
      %6444 = vmatprep.subr.bf16.mxu0 0
      %6445 = vmatpush1.bf16.msra.mxu0 0
      %6446 = vmatprep.subr.bf16.mxu0 0
      %6447 = vmatpush1.bf16.msra.mxu0 0
      %6448 = vmatprep.subr.bf16.mxu0 0
      %6449 = vmatpush1.bf16.msra.mxu0 0
      %6450 = vmatprep.subr.bf16.mxu0 0
      %6451 = vmatpush1.bf16.msra.mxu0 0
      %6452 = vmatprep.subr.bf16.mxu0 0
      %6453 = vmatpush1.bf16.msra.mxu0 0
      %6454 = vmatprep.subr.bf16.mxu0 0
      %6455 = vmatpush1.bf16.msra.mxu0 0
      %6456 = vmatprep.subr.bf16.mxu0 0
      %6457 = vmatpush1.bf16.msra.mxu0 0
      %6458 = vmatprep.mubr.bf16.mxu0 0
      %6459 = vmatmul.mubr.bf16.gmra.mrb[0].mxu0 %v6373
      %v6460 = vpop.f32.mrb[0].mxu0
      %v6461 = vadd.f32 %v6358, %v6460
      %v6462 = vpop.f32.mrb[0].mxu0
      %v6463 = vpop.f32.mrb[0].mxu0
      %v6464 = vadd.f32 %v6358, %v6463
      %v6465 = vpop.f32.mrb[0].mxu0
      %6466 = vmatprep.mubr.bf16.mxu0 0
      %6467 = vmatmul.mubr.bf16.gmra.mrb[0].mxu0 %v6376
      %v6468 = vpop.f32.mrb[0].mxu0
      %v6469 = vadd.f32 %v6358, %v6468
      %v6470 = vpop.f32.mrb[0].mxu0
      %v6471 = vpop.f32.mrb[0].mxu0
      %v6472 = vadd.f32 %v6358, %v6471
      %v6473 = vpop.f32.mrb[0].mxu0
      %6474 = vmatprep.mubr.bf16.mxu0 0
      %6475 = vmatmul.mubr.bf16.gmra.mrb[0].mxu0 %v6379
      %v6476 = vpop.f32.mrb[0].mxu0
      %v6477 = vadd.f32 %v6358, %v6476
      %v6478 = vpop.f32.mrb[0].mxu0
      %v6479 = vpop.f32.mrb[0].mxu0
      %v6480 = vadd.f32 %v6358, %v6479
      %v6481 = vpop.f32.mrb[0].mxu0
      %6482 = vmatprep.mubr.bf16.mxu0 0
      %6483 = vmatmul.mubr.bf16.gmra.mrb[0].mxu0 %v6382
      %v6484 = vpop.f32.mrb[0].mxu0
      %v6485 = vadd.f32 %v6358, %v6484
      %v6486 = vpop.f32.mrb[0].mxu0
      %v6487 = vpop.f32.mrb[0].mxu0
      %v6488 = vadd.f32 %v6358, %v6487
      %v6489 = vpop.f32.mrb[0].mxu0
      %6490 = vmatprep.mubr.bf16.mxu0 0
      %6491 = vmatmul.mubr.bf16.gmra.mrb[0].mxu0 %v6385
      %v6492 = vpop.f32.mrb[0].mxu0
      %v6493 = vadd.f32 %v6358, %v6492
      %v6494 = vpop.f32.mrb[0].mxu0
      %v6495 = vpop.f32.mrb[0].mxu0
      %v6496 = vadd.f32 %v6358, %v6495
      %v6497 = vpop.f32.mrb[0].mxu0
      %6498 = vmatprep.mubr.bf16.mxu0 0
      %6499 = vmatmul.mubr.bf16.gmra.mrb[0].mxu0 %v6388
      %v6500 = vpop.f32.mrb[0].mxu0
      %v6501 = vadd.f32 %v6358, %v6500
      %v6502 = vpop.f32.mrb[0].mxu0
      %v6503 = vpop.f32.mrb[0].mxu0
      %v6504 = vadd.f32 %v6358, %v6503
      %v6505 = vpop.f32.mrb[0].mxu0
      %6506 = vmatprep.mubr.bf16.mxu0 0
      %6507 = vmatmul.mubr.bf16.gmra.mrb[0].mxu0 %v6391
      %v6508 = vpop.f32.mrb[0].mxu0
      %v6509 = vadd.f32 %v6358, %v6508
      %v6510 = vpop.f32.mrb[0].mxu0
      %v6511 = vpop.f32.mrb[0].mxu0
      %v6512 = vadd.f32 %v6358, %v6511
      %v6513 = vpop.f32.mrb[0].mxu0
      %6514 = vmatprep.mubr.bf16.mxu0 0
      %6515 = vmatmul.mubr.bf16.gmra.mrb[0].mxu0 %v6394
      %v6516 = vpop.f32.mrb[0].mxu0
      %v6517 = vadd.f32 %v6358, %v6516
      %v6518 = vpop.f32.mrb[0].mxu0
      %v6519 = vpop.f32.mrb[0].mxu0
      %v6520 = vadd.f32 %v6358, %v6519
      %v6521 = vpop.f32.mrb[0].mxu0
      %6522 = vmatprep.mubr.bf16.mxu0 0
      %6523 = vmatmul.mubr.bf16.gmra.mrb[0].mxu0 %v6397
      %v6524 = vpop.f32.mrb[0].mxu0
      %v6525 = vadd.f32 %v6358, %v6524
      %v6526 = vpop.f32.mrb[0].mxu0
      %v6527 = vpop.f32.mrb[0].mxu0
      %v6528 = vadd.f32 %v6358, %v6527
      %v6529 = vpop.f32.mrb[0].mxu0
      %6530 = vmatprep.mubr.bf16.mxu0 0
      %6531 = vmatmul.mubr.bf16.gmra.mrb[0].mxu0 %v6400
      %v6532 = vpop.f32.mrb[0].mxu0
      %v6533 = vadd.f32 %v6358, %v6532
      %v6534 = vpop.f32.mrb[0].mxu0
      %v6535 = vpop.f32.mrb[0].mxu0
      %v6536 = vadd.f32 %v6358, %v6535
      %v6537 = vpop.f32.mrb[0].mxu0
      %6538 = vmatprep.mubr.bf16.mxu0 0
      %6539 = vmatmul.mubr.bf16.gmra.mrb[0].mxu0 %v6403
      %v6540 = vpop.f32.mrb[0].mxu0
      %v6541 = vadd.f32 %v6358, %v6540
      %v6542 = vpop.f32.mrb[0].mxu0
      %v6543 = vpop.f32.mrb[0].mxu0
      %v6544 = vadd.f32 %v6358, %v6543
      %v6545 = vpop.f32.mrb[0].mxu0
      %6546 = vmatprep.mubr.bf16.mxu0 0
      %6547 = vmatmul.mubr.bf16.gmra.mrb[0].mxu0 %v6406
      %v6548 = vpop.f32.mrb[0].mxu0
      %v6549 = vadd.f32 %v6358, %v6548
      %v6550 = vpop.f32.mrb[0].mxu0
      %v6551 = vpop.f32.mrb[0].mxu0
      %v6552 = vadd.f32 %v6358, %v6551
      %v6553 = vpop.f32.mrb[0].mxu0
      %6554 = vmatprep.mubr.bf16.mxu0 0
      %6555 = vmatmul.mubr.bf16.gmra.mrb[0].mxu0 %v6409
      %v6556 = vpop.f32.mrb[0].mxu0
      %v6557 = vadd.f32 %v6358, %v6556
      %v6558 = vpop.f32.mrb[0].mxu0
      %v6559 = vpop.f32.mrb[0].mxu0
      %v6560 = vadd.f32 %v6358, %v6559
      %v6561 = vpop.f32.mrb[0].mxu0
      %6562 = vmatprep.mubr.bf16.mxu0 0
      %6563 = vmatmul.mubr.bf16.gmra.mrb[0].mxu0 %v6412
      %v6564 = vpop.f32.mrb[0].mxu0
      %v6565 = vadd.f32 %v6358, %v6564
      %v6566 = vpop.f32.mrb[0].mxu0
      %v6567 = vpop.f32.mrb[0].mxu0
      %v6568 = vadd.f32 %v6358, %v6567
      %v6569 = vpop.f32.mrb[0].mxu0
      %6570 = vmatprep.mubr.bf16.mxu0 0
      %6571 = vmatmul.mubr.bf16.gmra.mrb[0].mxu0 %v6415
      %v6572 = vpop.f32.mrb[0].mxu0
      %v6573 = vadd.f32 %v6358, %v6572
      %v6574 = vpop.f32.mrb[0].mxu0
      %v6575 = vpop.f32.mrb[0].mxu0
      %v6576 = vadd.f32 %v6358, %v6575
      %v6577 = vpop.f32.mrb[0].mxu0
      %6578 = vmatprep.mubr.bf16.mxu0 0
      %6579 = vmatmul.mubr.bf16.gmra.mrb[0].mxu0 %v6418
      %v6580 = vpop.f32.mrb[0].mxu0
      %v6581 = vadd.f32 %v6358, %v6580
      %v6582 = vpop.f32.mrb[0].mxu0
      %v6583 = vpop.f32.mrb[0].mxu0
      %v6584 = vadd.f32 %v6358, %v6583
      %v6585 = vpop.f32.mrb[0].mxu0
      %6586 = vmatprep.mubr.bf16.mxu0 0
      %6587 = vmatmul.mubr.bf16.gmra.mrb[0].mxu0 %v6421
      %v6588 = vpop.f32.mrb[0].mxu0
      %v6589 = vadd.f32 %v6358, %v6588
      %v6590 = vpop.f32.mrb[0].mxu0
      %v6591 = vpop.f32.mrb[0].mxu0
      %v6592 = vadd.f32 %v6358, %v6591
      %v6593 = vpop.f32.mrb[0].mxu0
      %6594 = vmatprep.mubr.bf16.mxu0 0
      %6595 = vmatmul.mubr.bf16.gmra.mrb[0].mxu0 %v6424
      %v6596 = vpop.f32.mrb[0].mxu0
      %v6597 = vadd.f32 %v6358, %v6596
      %v6598 = vpop.f32.mrb[0].mxu0
      %v6599 = vpop.f32.mrb[0].mxu0
      %v6600 = vadd.f32 %v6358, %v6599
      %v6601 = vpop.f32.mrb[0].mxu0
      %6602 = vdwg.mxu0
      %v6603 = vmul.f32 %v6461, 0.5
      %v6604 = vmul.f32 %v6464, 0.5
      %v6605 = vmul.f32 %v6469, 0.5
      %v6606 = vmul.f32 %v6472, 0.5
      %v6607 = vmul.f32 %v6477, 0.5
      %v6608 = vmul.f32 %v6480, 0.5
      %v6609 = vmul.f32 %v6485, 0.5
      %v6610 = vmul.f32 %v6488, 0.5
      %v6611 = vmul.f32 %v6493, 0.5
      %v6612 = vmul.f32 %v6496, 0.5
      %v6613 = vmul.f32 %v6501, 0.5
      %v6614 = vmul.f32 %v6504, 0.5
      %v6615 = vmul.f32 %v6509, 0.5
      %v6616 = vmul.f32 %v6512, 0.5
      %v6617 = vmul.f32 %v6517, 0.5
      %v6618 = vmul.f32 %v6520, 0.5
      %v6619 = vmul.f32 %v6525, 0.5
      %v6620 = vmul.f32 %v6528, 0.5
      %v6621 = vmul.f32 %v6533, 0.5
      %v6622 = vmul.f32 %v6536, 0.5
      %v6623 = vmul.f32 %v6541, 0.5
      %v6624 = vmul.f32 %v6544, 0.5
      %v6625 = vmul.f32 %v6549, 0.5
      %v6626 = vmul.f32 %v6552, 0.5
      %v6627 = vmul.f32 %v6557, 0.5
      %v6628 = vmul.f32 %v6560, 0.5
      %v6629 = vmul.f32 %v6565, 0.5
      %v6630 = vmul.f32 %v6568, 0.5
      %v6631 = vmul.f32 %v6573, 0.5
      %v6632 = vmul.f32 %v6576, 0.5
      %v6633 = vmul.f32 %v6581, 0.5
      %v6634 = vmul.f32 %v6584, 0.5
      %v6635 = vmul.f32 %v6589, 0.5
      %v6636 = vmul.f32 %v6592, 0.5
      %v6637 = vmul.f32 %v6597, 0.5
      %v6638 = vmul.f32 %v6600, 0.5
      %v6639 = vmul.f32 %v6461, 0.044715
      %v6640 = vmul.f32 %v6464, 0.044715
      %v6641 = vmul.f32 %v6469, 0.044715
      %v6642 = vmul.f32 %v6472, 0.044715
      %v6643 = vmul.f32 %v6477, 0.044715
      %v6644 = vmul.f32 %v6480, 0.044715
      %v6645 = vmul.f32 %v6485, 0.044715
      %v6646 = vmul.f32 %v6488, 0.044715
      %v6647 = vmul.f32 %v6493, 0.044715
      %v6648 = vmul.f32 %v6496, 0.044715
      %v6649 = vmul.f32 %v6501, 0.044715
      %v6650 = vmul.f32 %v6504, 0.044715
      %v6651 = vmul.f32 %v6509, 0.044715
      %v6652 = vmul.f32 %v6512, 0.044715
      %v6653 = vmul.f32 %v6517, 0.044715
      %v6654 = vmul.f32 %v6520, 0.044715
      %v6655 = vmul.f32 %v6525, 0.044715
      %v6656 = vmul.f32 %v6528, 0.044715
      %v6657 = vmul.f32 %v6533, 0.044715
      %v6658 = vmul.f32 %v6536, 0.044715
      %v6659 = vmul.f32 %v6541, 0.044715
      %v6660 = vmul.f32 %v6544, 0.044715
      %v6661 = vmul.f32 %v6549, 0.044715
      %v6662 = vmul.f32 %v6552, 0.044715
      %v6663 = vmul.f32 %v6557, 0.044715
      %v6664 = vmul.f32 %v6560, 0.044715
      %v6665 = vmul.f32 %v6565, 0.044715
      %v6666 = vmul.f32 %v6568, 0.044715
      %v6667 = vmul.f32 %v6573, 0.044715
      %v6668 = vmul.f32 %v6576, 0.044715
      %v6669 = vmul.f32 %v6581, 0.044715
      %v6670 = vmul.f32 %v6584, 0.044715
      %v6671 = vmul.f32 %v6589, 0.044715
      %v6672 = vmul.f32 %v6592, 0.044715
      %v6673 = vmul.f32 %v6597, 0.044715
      %v6674 = vmul.f32 %v6600, 0.044715
      %v6675 = vmul.f32 %v6639, %v6461
      %v6676 = vmul.f32 %v6640, %v6464
      %v6677 = vmul.f32 %v6641, %v6469
      %v6678 = vmul.f32 %v6642, %v6472
      %v6679 = vmul.f32 %v6643, %v6477
      %v6680 = vmul.f32 %v6644, %v6480
      %v6681 = vmul.f32 %v6645, %v6485
      %v6682 = vmul.f32 %v6646, %v6488
      %v6683 = vmul.f32 %v6647, %v6493
      %v6684 = vmul.f32 %v6648, %v6496
      %v6685 = vmul.f32 %v6649, %v6501
      %v6686 = vmul.f32 %v6650, %v6504
      %v6687 = vmul.f32 %v6651, %v6509
      %v6688 = vmul.f32 %v6652, %v6512
      %v6689 = vmul.f32 %v6653, %v6517
      %v6690 = vmul.f32 %v6654, %v6520
      %v6691 = vmul.f32 %v6655, %v6525
      %v6692 = vmul.f32 %v6656, %v6528
      %v6693 = vmul.f32 %v6657, %v6533
      %v6694 = vmul.f32 %v6658, %v6536
      %v6695 = vmul.f32 %v6659, %v6541
      %v6696 = vmul.f32 %v6660, %v6544
      %v6697 = vmul.f32 %v6661, %v6549
      %v6698 = vmul.f32 %v6662, %v6552
      %v6699 = vmul.f32 %v6663, %v6557
      %v6700 = vmul.f32 %v6664, %v6560
      %v6701 = vmul.f32 %v6665, %v6565
      %v6702 = vmul.f32 %v6666, %v6568
      %v6703 = vmul.f32 %v6667, %v6573
      %v6704 = vmul.f32 %v6668, %v6576
      %v6705 = vmul.f32 %v6669, %v6581
      %v6706 = vmul.f32 %v6670, %v6584
      %v6707 = vmul.f32 %v6671, %v6589
      %v6708 = vmul.f32 %v6672, %v6592
      %v6709 = vmul.f32 %v6673, %v6597
      %v6710 = vmul.f32 %v6674, %v6600
      %v6711 = vmul.f32 %v6675, %v6461
      %v6712 = vmul.f32 %v6676, %v6464
      %v6713 = vmul.f32 %v6677, %v6469
      %v6714 = vmul.f32 %v6678, %v6472
      %v6715 = vmul.f32 %v6679, %v6477
      %v6716 = vmul.f32 %v6680, %v6480
      %v6717 = vmul.f32 %v6681, %v6485
      %v6718 = vmul.f32 %v6682, %v6488
      %v6719 = vmul.f32 %v6683, %v6493
      %v6720 = vmul.f32 %v6684, %v6496
      %v6721 = vmul.f32 %v6685, %v6501
      %v6722 = vmul.f32 %v6686, %v6504
      %v6723 = vmul.f32 %v6687, %v6509
      %v6724 = vmul.f32 %v6688, %v6512
      %v6725 = vmul.f32 %v6689, %v6517
      %v6726 = vmul.f32 %v6690, %v6520
      %v6727 = vmul.f32 %v6691, %v6525
      %v6728 = vmul.f32 %v6692, %v6528
      %v6729 = vmul.f32 %v6693, %v6533
      %v6730 = vmul.f32 %v6694, %v6536
      %v6731 = vmul.f32 %v6695, %v6541
      %v6732 = vmul.f32 %v6696, %v6544
      %v6733 = vmul.f32 %v6697, %v6549
      %v6734 = vmul.f32 %v6698, %v6552
      %v6735 = vmul.f32 %v6699, %v6557
      %v6736 = vmul.f32 %v6700, %v6560
      %v6737 = vmul.f32 %v6701, %v6565
      %v6738 = vmul.f32 %v6702, %v6568
      %v6739 = vmul.f32 %v6703, %v6573
      %v6740 = vmul.f32 %v6704, %v6576
      %v6741 = vmul.f32 %v6705, %v6581
      %v6742 = vmul.f32 %v6706, %v6584
      %v6743 = vmul.f32 %v6707, %v6589
      %v6744 = vmul.f32 %v6708, %v6592
      %v6745 = vmul.f32 %v6709, %v6597
      %v6746 = vmul.f32 %v6710, %v6600
      %v6747 = vadd.f32 %v6461, %v6711
      %v6748 = vadd.f32 %v6464, %v6712
      %v6749 = vadd.f32 %v6469, %v6713
      %v6750 = vadd.f32 %v6472, %v6714
      %v6751 = vadd.f32 %v6477, %v6715
      %v6752 = vadd.f32 %v6480, %v6716
      %v6753 = vadd.f32 %v6485, %v6717
      %v6754 = vadd.f32 %v6488, %v6718
      %v6755 = vadd.f32 %v6493, %v6719
      %v6756 = vadd.f32 %v6496, %v6720
      %v6757 = vadd.f32 %v6501, %v6721
      %v6758 = vadd.f32 %v6504, %v6722
      %v6759 = vadd.f32 %v6509, %v6723
      %v6760 = vadd.f32 %v6512, %v6724
      %v6761 = vadd.f32 %v6517, %v6725
      %v6762 = vadd.f32 %v6520, %v6726
      %v6763 = vadd.f32 %v6525, %v6727
      %v6764 = vadd.f32 %v6528, %v6728
      %v6765 = vadd.f32 %v6533, %v6729
      %v6766 = vadd.f32 %v6536, %v6730
      %v6767 = vadd.f32 %v6541, %v6731
      %v6768 = vadd.f32 %v6544, %v6732
      %v6769 = vadd.f32 %v6549, %v6733
      %v6770 = vadd.f32 %v6552, %v6734
      %v6771 = vadd.f32 %v6557, %v6735
      %v6772 = vadd.f32 %v6560, %v6736
      %v6773 = vadd.f32 %v6565, %v6737
      %v6774 = vadd.f32 %v6568, %v6738
      %v6775 = vadd.f32 %v6573, %v6739
      %v6776 = vadd.f32 %v6576, %v6740
      %v6777 = vadd.f32 %v6581, %v6741
      %v6778 = vadd.f32 %v6584, %v6742
      %v6779 = vadd.f32 %v6589, %v6743
      %v6780 = vadd.f32 %v6592, %v6744
      %v6781 = vadd.f32 %v6597, %v6745
      %v6782 = vadd.f32 %v6600, %v6746
      %v6783 = vmul.f32 %v6747, 0.7978846
      %v6784 = vmul.f32 %v6748, 0.7978846
      %v6785 = vmul.f32 %v6749, 0.7978846
      %v6786 = vmul.f32 %v6750, 0.7978846
      %v6787 = vmul.f32 %v6751, 0.7978846
      %v6788 = vmul.f32 %v6752, 0.7978846
      %v6789 = vmul.f32 %v6753, 0.7978846
      %v6790 = vmul.f32 %v6754, 0.7978846
      %v6791 = vmul.f32 %v6755, 0.7978846
      %v6792 = vmul.f32 %v6756, 0.7978846
      %v6793 = vmul.f32 %v6757, 0.7978846
      %v6794 = vmul.f32 %v6758, 0.7978846
      %v6795 = vmul.f32 %v6759, 0.7978846
      %v6796 = vmul.f32 %v6760, 0.7978846
      %v6797 = vmul.f32 %v6761, 0.7978846
      %v6798 = vmul.f32 %v6762, 0.7978846
      %v6799 = vmul.f32 %v6763, 0.7978846
      %v6800 = vmul.f32 %v6764, 0.7978846
      %v6801 = vmul.f32 %v6765, 0.7978846
      %v6802 = vmul.f32 %v6766, 0.7978846
      %v6803 = vmul.f32 %v6767, 0.7978846
      %v6804 = vmul.f32 %v6768, 0.7978846
      %v6805 = vmul.f32 %v6769, 0.7978846
      %v6806 = vmul.f32 %v6770, 0.7978846
      %v6807 = vmul.f32 %v6771, 0.7978846
      %v6808 = vmul.f32 %v6772, 0.7978846
      %v6809 = vmul.f32 %v6773, 0.7978846
      %v6810 = vmul.f32 %v6774, 0.7978846
      %v6811 = vmul.f32 %v6775, 0.7978846
      %v6812 = vmul.f32 %v6776, 0.7978846
      %v6813 = vmul.f32 %v6777, 0.7978846
      %v6814 = vmul.f32 %v6778, 0.7978846
      %v6815 = vmul.f32 %v6779, 0.7978846
      %v6816 = vmul.f32 %v6780, 0.7978846
      %v6817 = vmul.f32 %v6781, 0.7978846
      %v6818 = vmul.f32 %v6782, 0.7978846
      %v6819 = vtanh.pop %v6783
      %v6820 = vtanh.pop %v6784
      %v6821 = vtanh.pop %v6785
      %v6822 = vtanh.pop %v6786
      %v6823 = vtanh.pop %v6787
      %v6824 = vtanh.pop %v6788
      %v6825 = vtanh.pop %v6789
      %v6826 = vtanh.pop %v6790
      %v6827 = vtanh.pop %v6791
      %v6828 = vtanh.pop %v6792
      %v6829 = vtanh.pop %v6793
      %v6830 = vtanh.pop %v6794
      %v6831 = vtanh.pop %v6795
      %v6832 = vtanh.pop %v6796
      %v6833 = vtanh.pop %v6797
      %v6834 = vtanh.pop %v6798
      %v6835 = vtanh.pop %v6799
      %v6836 = vtanh.pop %v6800
      %v6837 = vtanh.pop %v6801
      %v6838 = vtanh.pop %v6802
      %v6839 = vtanh.pop %v6803
      %v6840 = vtanh.pop %v6804
      %v6841 = vtanh.pop %v6805
      %v6842 = vtanh.pop %v6806
      %v6843 = vtanh.pop %v6807
      %v6844 = vtanh.pop %v6808
      %v6845 = vtanh.pop %v6809
      %v6846 = vtanh.pop %v6810
      %v6847 = vtanh.pop %v6811
      %v6848 = vtanh.pop %v6812
      %v6849 = vtanh.pop %v6813
      %v6850 = vtanh.pop %v6814
      %v6851 = vtanh.pop %v6815
      %v6852 = vtanh.pop %v6816
      %v6853 = vtanh.pop %v6817
      %v6854 = vtanh.pop %v6818
      %v6855 = vadd.f32 %v6819, 1.0
      %v6856 = vadd.f32 %v6820, 1.0
      %v6857 = vadd.f32 %v6821, 1.0
      %v6858 = vadd.f32 %v6822, 1.0
      %v6859 = vadd.f32 %v6823, 1.0
      %v6860 = vadd.f32 %v6824, 1.0
      %v6861 = vadd.f32 %v6825, 1.0
      %v6862 = vadd.f32 %v6826, 1.0
      %v6863 = vadd.f32 %v6827, 1.0
      %v6864 = vadd.f32 %v6828, 1.0
      %v6865 = vadd.f32 %v6829, 1.0
      %v6866 = vadd.f32 %v6830, 1.0
      %v6867 = vadd.f32 %v6831, 1.0
      %v6868 = vadd.f32 %v6832, 1.0
      %v6869 = vadd.f32 %v6833, 1.0
      %v6870 = vadd.f32 %v6834, 1.0
      %v6871 = vadd.f32 %v6835, 1.0
      %v6872 = vadd.f32 %v6836, 1.0
      %v6873 = vadd.f32 %v6837, 1.0
      %v6874 = vadd.f32 %v6838, 1.0
      %v6875 = vadd.f32 %v6839, 1.0
      %v6876 = vadd.f32 %v6840, 1.0
      %v6877 = vadd.f32 %v6841, 1.0
      %v6878 = vadd.f32 %v6842, 1.0
      %v6879 = vadd.f32 %v6843, 1.0
      %v6880 = vadd.f32 %v6844, 1.0
      %v6881 = vadd.f32 %v6845, 1.0
      %v6882 = vadd.f32 %v6846, 1.0
      %v6883 = vadd.f32 %v6847, 1.0
      %v6884 = vadd.f32 %v6848, 1.0
      %v6885 = vadd.f32 %v6849, 1.0
      %v6886 = vadd.f32 %v6850, 1.0
      %v6887 = vadd.f32 %v6851, 1.0
      %v6888 = vadd.f32 %v6852, 1.0
      %v6889 = vadd.f32 %v6853, 1.0
      %v6890 = vadd.f32 %v6854, 1.0
      %v6891 = vmul.f32 %v6603, %v6855
      %v6892 = vmul.f32 %v6604, %v6856
      %v6893 = vmul.f32 %v6605, %v6857
      %v6894 = vmul.f32 %v6606, %v6858
      %v6895 = vmul.f32 %v6607, %v6859
      %v6896 = vmul.f32 %v6608, %v6860
      %v6897 = vmul.f32 %v6609, %v6861
      %v6898 = vmul.f32 %v6610, %v6862
      %v6899 = vmul.f32 %v6611, %v6863
      %v6900 = vmul.f32 %v6612, %v6864
      %v6901 = vmul.f32 %v6613, %v6865
      %v6902 = vmul.f32 %v6614, %v6866
      %v6903 = vmul.f32 %v6615, %v6867
      %v6904 = vmul.f32 %v6616, %v6868
      %v6905 = vmul.f32 %v6617, %v6869
      %v6906 = vmul.f32 %v6618, %v6870
      %v6907 = vmul.f32 %v6619, %v6871
      %v6908 = vmul.f32 %v6620, %v6872
      %v6909 = vmul.f32 %v6621, %v6873
      %v6910 = vmul.f32 %v6622, %v6874
      %v6911 = vmul.f32 %v6623, %v6875
      %v6912 = vmul.f32 %v6624, %v6876
      %v6913 = vmul.f32 %v6625, %v6877
      %v6914 = vmul.f32 %v6626, %v6878
      %v6915 = vmul.f32 %v6627, %v6879
      %v6916 = vmul.f32 %v6628, %v6880
      %v6917 = vmul.f32 %v6629, %v6881
      %v6918 = vmul.f32 %v6630, %v6882
      %v6919 = vmul.f32 %v6631, %v6883
      %v6920 = vmul.f32 %v6632, %v6884
      %v6921 = vmul.f32 %v6633, %v6885
      %v6922 = vmul.f32 %v6634, %v6886
      %v6923 = vmul.f32 %v6635, %v6887
      %v6924 = vmul.f32 %v6636, %v6888
      %v6925 = vmul.f32 %v6637, %v6889
      %v6926 = vmul.f32 %v6638, %v6890
      %v6927 = vpack.c.bf16 %v6892, %v6891
      %v6928 = vpack.c.bf16 %v6894, %v6893
      %v6929 = vpack.c.bf16 %v6896, %v6895
      %v6930 = vpack.c.bf16 %v6898, %v6897
      %v6931 = vpack.c.bf16 %v6900, %v6899
      %v6932 = vpack.c.bf16 %v6902, %v6901
      %v6933 = vpack.c.bf16 %v6904, %v6903
      %v6934 = vpack.c.bf16 %v6906, %v6905
      %v6935 = vpack.c.bf16 %v6908, %v6907
      %v6936 = vpack.c.bf16 %v6910, %v6909
      %v6937 = vpack.c.bf16 %v6912, %v6911
      %v6938 = vpack.c.bf16 %v6914, %v6913
      %v6939 = vpack.c.bf16 %v6916, %v6915
      %v6940 = vpack.c.bf16 %v6918, %v6917
      %v6941 = vpack.c.bf16 %v6920, %v6919
      %v6942 = vpack.c.bf16 %v6922, %v6921
      %v6943 = vpack.c.bf16 %v6924, %v6923
      %v6944 = vpack.c.bf16 %v6926, %v6925
      %s6945 = scalar_lea.vmem %s12, 32
      %v6946 = vld [vmem:[%s6945] sm:$0xf]
      %v6947 = vld [vmem:[%s6945 + $0x4] sm:$0xf]
      %v6948 = vld [vmem:[%s6945 + $0x8] sm:$0xf]
      %v6949 = vld [vmem:[%s6945 + $0xc] sm:$0xf]
      %v6950 = vld [vmem:[%s6945 + $0x10] sm:$0xf]
      %v6951 = vld [vmem:[%s6945 + $0x14] sm:$0xf]
      %v6952 = vld [vmem:[%s6945 + $0x18] sm:$0xf]
      %v6953 = vld [vmem:[%s6945 + $0x1c] sm:$0xf]
      %s6954 = scalar_lea.vmem %s13, 1
      %v6955 = vld [vmem:[%s6954] sm:$0x1]
      %v6957 = vlaneseq
      %v6958 = vshrl.u32 %v6957, 7
      %v6959 = vsub.s32 0, %v6958
      %v6960 = vrot.slane %v6955, %v6959
      %v6970 = vunpack.c.l.b16 %v6946
      %v6971 = vunpack.c.l.b16 %v6947
      %v6972 = vunpack.c.l.b16 %v6948
      %v6973 = vunpack.c.l.b16 %v6949
      %v6974 = vunpack.c.l.b16 %v6950
      %v6975 = vunpack.c.l.b16 %v6951
      %v6976 = vunpack.c.l.b16 %v6952
      %v6977 = vunpack.c.l.b16 %v6953
      %v6978 = vpack.c.b16 %v6971, %v6970
      %v6979 = vpack.c.b16 %v6973, %v6972
      %v6980 = vpack.c.b16 %v6975, %v6974
      %v6981 = vpack.c.b16 %v6977, %v6976
      %v6987 = vsel %vm1007, %v6927, 0
      %v6990 = vsel %vm1007, %v6928, 0
      %v6993 = vsel %vm1007, %v6929, 0
      %v6996 = vsel %vm1007, %v6930, 0
      %v6999 = vsel %vm1007, %v6931, 0
      %v7002 = vsel %vm1007, %v6932, 0
      %v7005 = vsel %vm1007, %v6933, 0
      %v7008 = vsel %vm1007, %v6934, 0
      %v7011 = vsel %vm1007, %v6935, 0
      %v7014 = vsel %vm1007, %v6936, 0
      %v7017 = vsel %vm1007, %v6937, 0
      %v7020 = vsel %vm1007, %v6938, 0
      %v7023 = vsel %vm1007, %v6939, 0
      %v7026 = vsel %vm1007, %v6940, 0
      %v7029 = vsel %vm1007, %v6941, 0
      %v7032 = vsel %vm1007, %v6942, 0
      %v7035 = vsel %vm1007, %v6943, 0
      %v7038 = vsel %vm1007, %v6944, 0
      %7040 = vmatprep.subr.bf16.mxu0 0
      %7041 = vmatpush1.bf16.msra.mxu0 %v6978
      %7042 = vmatprep.subr.bf16.mxu0 0
      %7043 = vmatpush1.bf16.msra.mxu0 %v6979
      %7044 = vmatprep.subr.bf16.mxu0 0
      %7045 = vmatpush1.bf16.msra.mxu0 %v6980
      %7046 = vmatprep.subr.bf16.mxu0 0
      %7047 = vmatpush1.bf16.msra.mxu0 %v6981
      %7048 = vmatprep.subr.bf16.mxu0 0
      %7049 = vmatpush1.bf16.msra.mxu0 0
      %7050 = vmatprep.subr.bf16.mxu0 0
      %7051 = vmatpush1.bf16.msra.mxu0 0
      %7052 = vmatprep.subr.bf16.mxu0 0
      %7053 = vmatpush1.bf16.msra.mxu0 0
      %7054 = vmatprep.subr.bf16.mxu0 0
      %7055 = vmatpush1.bf16.msra.mxu0 0
      %7056 = vmatprep.subr.bf16.mxu0 0
      %7057 = vmatpush1.bf16.msra.mxu0 0
      %7058 = vmatprep.subr.bf16.mxu0 0
      %7059 = vmatpush1.bf16.msra.mxu0 0
      %7060 = vmatprep.subr.bf16.mxu0 0
      %7061 = vmatpush1.bf16.msra.mxu0 0
      %7062 = vmatprep.subr.bf16.mxu0 0
      %7063 = vmatpush1.bf16.msra.mxu0 0
      %7064 = vmatprep.subr.bf16.mxu0 0
      %7065 = vmatpush1.bf16.msra.mxu0 0
      %7066 = vmatprep.subr.bf16.mxu0 0
      %7067 = vmatpush1.bf16.msra.mxu0 0
      %7068 = vmatprep.subr.bf16.mxu0 0
      %7069 = vmatpush1.bf16.msra.mxu0 0
      %7070 = vmatprep.subr.bf16.mxu0 0
      %7071 = vmatpush1.bf16.msra.mxu0 0
      %7072 = vmatprep.mubr.bf16.mxu0 0
      %7073 = vmatmul.mubr.bf16.gmra.mrb[0].mxu0 %v6987
      %v7074 = vpop.f32.mrb[0].mxu0
      %v7075 = vadd.f32 %v6960, %v7074
      %v7076 = vpop.f32.mrb[0].mxu0
      %v7077 = vpop.f32.mrb[0].mxu0
      %v7078 = vadd.f32 %v6960, %v7077
      %v7079 = vpop.f32.mrb[0].mxu0
      %7080 = vmatprep.mubr.bf16.mxu0 0
      %7081 = vmatmul.mubr.bf16.gmra.mrb[0].mxu0 %v6990
      %v7082 = vpop.f32.mrb[0].mxu0
      %v7083 = vadd.f32 %v6960, %v7082
      %v7084 = vpop.f32.mrb[0].mxu0
      %v7085 = vpop.f32.mrb[0].mxu0
      %v7086 = vadd.f32 %v6960, %v7085
      %v7087 = vpop.f32.mrb[0].mxu0
      %7088 = vmatprep.mubr.bf16.mxu0 0
      %7089 = vmatmul.mubr.bf16.gmra.mrb[0].mxu0 %v6993
      %v7090 = vpop.f32.mrb[0].mxu0
      %v7091 = vadd.f32 %v6960, %v7090
      %v7092 = vpop.f32.mrb[0].mxu0
      %v7093 = vpop.f32.mrb[0].mxu0
      %v7094 = vadd.f32 %v6960, %v7093
      %v7095 = vpop.f32.mrb[0].mxu0
      %7096 = vmatprep.mubr.bf16.mxu0 0
      %7097 = vmatmul.mubr.bf16.gmra.mrb[0].mxu0 %v6996
      %v7098 = vpop.f32.mrb[0].mxu0
      %v7099 = vadd.f32 %v6960, %v7098
      %v7100 = vpop.f32.mrb[0].mxu0
      %v7101 = vpop.f32.mrb[0].mxu0
      %v7102 = vadd.f32 %v6960, %v7101
      %v7103 = vpop.f32.mrb[0].mxu0
      %7104 = vmatprep.mubr.bf16.mxu0 0
      %7105 = vmatmul.mubr.bf16.gmra.mrb[0].mxu0 %v6999
      %v7106 = vpop.f32.mrb[0].mxu0
      %v7107 = vadd.f32 %v6960, %v7106
      %v7108 = vpop.f32.mrb[0].mxu0
      %v7109 = vpop.f32.mrb[0].mxu0
      %v7110 = vadd.f32 %v6960, %v7109
      %v7111 = vpop.f32.mrb[0].mxu0
      %7112 = vmatprep.mubr.bf16.mxu0 0
      %7113 = vmatmul.mubr.bf16.gmra.mrb[0].mxu0 %v7002
      %v7114 = vpop.f32.mrb[0].mxu0
      %v7115 = vadd.f32 %v6960, %v7114
      %v7116 = vpop.f32.mrb[0].mxu0
      %v7117 = vpop.f32.mrb[0].mxu0
      %v7118 = vadd.f32 %v6960, %v7117
      %v7119 = vpop.f32.mrb[0].mxu0
      %7120 = vmatprep.mubr.bf16.mxu0 0
      %7121 = vmatmul.mubr.bf16.gmra.mrb[0].mxu0 %v7005
      %v7122 = vpop.f32.mrb[0].mxu0
      %v7123 = vadd.f32 %v6960, %v7122
      %v7124 = vpop.f32.mrb[0].mxu0
      %v7125 = vpop.f32.mrb[0].mxu0
      %v7126 = vadd.f32 %v6960, %v7125
      %v7127 = vpop.f32.mrb[0].mxu0
      %7128 = vmatprep.mubr.bf16.mxu0 0
      %7129 = vmatmul.mubr.bf16.gmra.mrb[0].mxu0 %v7008
      %v7130 = vpop.f32.mrb[0].mxu0
      %v7131 = vadd.f32 %v6960, %v7130
      %v7132 = vpop.f32.mrb[0].mxu0
      %v7133 = vpop.f32.mrb[0].mxu0
      %v7134 = vadd.f32 %v6960, %v7133
      %v7135 = vpop.f32.mrb[0].mxu0
      %7136 = vmatprep.mubr.bf16.mxu0 0
      %7137 = vmatmul.mubr.bf16.gmra.mrb[0].mxu0 %v7011
      %v7138 = vpop.f32.mrb[0].mxu0
      %v7139 = vadd.f32 %v6960, %v7138
      %v7140 = vpop.f32.mrb[0].mxu0
      %v7141 = vpop.f32.mrb[0].mxu0
      %v7142 = vadd.f32 %v6960, %v7141
      %v7143 = vpop.f32.mrb[0].mxu0
      %7144 = vmatprep.mubr.bf16.mxu0 0
      %7145 = vmatmul.mubr.bf16.gmra.mrb[0].mxu0 %v7014
      %v7146 = vpop.f32.mrb[0].mxu0
      %v7147 = vadd.f32 %v6960, %v7146
      %v7148 = vpop.f32.mrb[0].mxu0
      %v7149 = vpop.f32.mrb[0].mxu0
      %v7150 = vadd.f32 %v6960, %v7149
      %v7151 = vpop.f32.mrb[0].mxu0
      %7152 = vmatprep.mubr.bf16.mxu0 0
      %7153 = vmatmul.mubr.bf16.gmra.mrb[0].mxu0 %v7017
      %v7154 = vpop.f32.mrb[0].mxu0
      %v7155 = vadd.f32 %v6960, %v7154
      %v7156 = vpop.f32.mrb[0].mxu0
      %v7157 = vpop.f32.mrb[0].mxu0
      %v7158 = vadd.f32 %v6960, %v7157
      %v7159 = vpop.f32.mrb[0].mxu0
      %7160 = vmatprep.mubr.bf16.mxu0 0
      %7161 = vmatmul.mubr.bf16.gmra.mrb[0].mxu0 %v7020
      %v7162 = vpop.f32.mrb[0].mxu0
      %v7163 = vadd.f32 %v6960, %v7162
      %v7164 = vpop.f32.mrb[0].mxu0
      %v7165 = vpop.f32.mrb[0].mxu0
      %v7166 = vadd.f32 %v6960, %v7165
      %v7167 = vpop.f32.mrb[0].mxu0
      %7168 = vmatprep.mubr.bf16.mxu0 0
      %7169 = vmatmul.mubr.bf16.gmra.mrb[0].mxu0 %v7023
      %v7170 = vpop.f32.mrb[0].mxu0
      %v7171 = vadd.f32 %v6960, %v7170
      %v7172 = vpop.f32.mrb[0].mxu0
      %v7173 = vpop.f32.mrb[0].mxu0
      %v7174 = vadd.f32 %v6960, %v7173
      %v7175 = vpop.f32.mrb[0].mxu0
      %7176 = vmatprep.mubr.bf16.mxu0 0
      %7177 = vmatmul.mubr.bf16.gmra.mrb[0].mxu0 %v7026
      %v7178 = vpop.f32.mrb[0].mxu0
      %v7179 = vadd.f32 %v6960, %v7178
      %v7180 = vpop.f32.mrb[0].mxu0
      %v7181 = vpop.f32.mrb[0].mxu0
      %v7182 = vadd.f32 %v6960, %v7181
      %v7183 = vpop.f32.mrb[0].mxu0
      %7184 = vmatprep.mubr.bf16.mxu0 0
      %7185 = vmatmul.mubr.bf16.gmra.mrb[0].mxu0 %v7029
      %v7186 = vpop.f32.mrb[0].mxu0
      %v7187 = vadd.f32 %v6960, %v7186
      %v7188 = vpop.f32.mrb[0].mxu0
      %v7189 = vpop.f32.mrb[0].mxu0
      %v7190 = vadd.f32 %v6960, %v7189
      %v7191 = vpop.f32.mrb[0].mxu0
      %7192 = vmatprep.mubr.bf16.mxu0 0
      %7193 = vmatmul.mubr.bf16.gmra.mrb[0].mxu0 %v7032
      %v7194 = vpop.f32.mrb[0].mxu0
      %v7195 = vadd.f32 %v6960, %v7194
      %v7196 = vpop.f32.mrb[0].mxu0
      %v7197 = vpop.f32.mrb[0].mxu0
      %v7198 = vadd.f32 %v6960, %v7197
      %v7199 = vpop.f32.mrb[0].mxu0
      %7200 = vmatprep.mubr.bf16.mxu0 0
      %7201 = vmatmul.mubr.bf16.gmra.mrb[0].mxu0 %v7035
      %v7202 = vpop.f32.mrb[0].mxu0
      %v7203 = vadd.f32 %v6960, %v7202
      %v7204 = vpop.f32.mrb[0].mxu0
      %v7205 = vpop.f32.mrb[0].mxu0
      %v7206 = vadd.f32 %v6960, %v7205
      %v7207 = vpop.f32.mrb[0].mxu0
      %7208 = vmatprep.mubr.bf16.mxu0 0
      %7209 = vmatmul.mubr.bf16.gmra.mrb[0].mxu0 %v7038
      %v7210 = vpop.f32.mrb[0].mxu0
      %v7211 = vadd.f32 %v6960, %v7210
      %v7212 = vpop.f32.mrb[0].mxu0
      %v7213 = vpop.f32.mrb[0].mxu0
      %v7214 = vadd.f32 %v6960, %v7213
      %v7215 = vpop.f32.mrb[0].mxu0
      %7216 = vdwg.mxu0
      %v7217 = vadd.f32 %v4541, %v7075
      %v7218 = vadd.f32 %v4542, %v7078
      %v7219 = vadd.f32 %v4543, %v7083
      %v7220 = vadd.f32 %v4544, %v7086
      %v7221 = vadd.f32 %v4545, %v7091
      %v7222 = vadd.f32 %v4546, %v7094
      %v7223 = vadd.f32 %v4547, %v7099
      %v7224 = vadd.f32 %v4548, %v7102
      %v7225 = vadd.f32 %v4549, %v7107
      %v7226 = vadd.f32 %v4550, %v7110
      %v7227 = vadd.f32 %v4551, %v7115
      %v7228 = vadd.f32 %v4552, %v7118
      %v7229 = vadd.f32 %v4553, %v7123
      %v7230 = vadd.f32 %v4554, %v7126
      %v7231 = vadd.f32 %v4555, %v7131
      %v7232 = vadd.f32 %v4556, %v7134
      %v7233 = vadd.f32 %v4557, %v7139
      %v7234 = vadd.f32 %v4558, %v7142
      %v7235 = vadd.f32 %v4559, %v7147
      %v7236 = vadd.f32 %v4560, %v7150
      %v7237 = vadd.f32 %v4561, %v7155
      %v7238 = vadd.f32 %v4562, %v7158
      %v7239 = vadd.f32 %v4563, %v7163
      %v7240 = vadd.f32 %v4564, %v7166
      %v7241 = vadd.f32 %v4565, %v7171
      %v7242 = vadd.f32 %v4566, %v7174
      %v7243 = vadd.f32 %v4567, %v7179
      %v7244 = vadd.f32 %v4568, %v7182
      %v7245 = vadd.f32 %v4569, %v7187
      %v7246 = vadd.f32 %v4570, %v7190
      %v7247 = vadd.f32 %v4571, %v7195
      %v7248 = vadd.f32 %v4572, %v7198
      %v7249 = vadd.f32 %v4573, %v7203
      %v7250 = vadd.f32 %v4574, %v7206
      %v7251 = vadd.f32 %v4575, %v7211
      %v7252 = vadd.f32 %v4576, %v7214
      // Predicated region
      $region109: #{tpu_custom_call.1} parent=91 // pred_check
        %p7253 = pneg %p949
      $region110: #{tpu_custom_call.1} parent=91 // pred_check_branch
        %7255 = sbr.rel (%p7253) target = $region112
      $region111: #{tpu_custom_call.1} parent=91 // pred_region
        %v7256 = vmul.f32 %v7217, %v908
        %v7257 = vmul.f32 %v7218, %v909
        %v7258 = vmul.f32 %v7219, %v910
        %v7259 = vmul.f32 %v7220, %v911
        %v7260 = vmul.f32 %v7221, %v912
        %v7261 = vmul.f32 %v7222, %v913
        %v7262 = vmul.f32 %v7223, %v914
        %v7263 = vmul.f32 %v7224, %v915
        %v7264 = vmul.f32 %v7225, %v916
        %v7265 = vmul.f32 %v7226, %v917
        %v7266 = vmul.f32 %v7227, %v918
        %v7267 = vmul.f32 %v7228, %v919
        %v7268 = vmul.f32 %v7229, %v920
        %v7269 = vmul.f32 %v7230, %v921
        %v7270 = vmul.f32 %v7231, %v922
        %v7271 = vmul.f32 %v7232, %v923
        %v7272 = vmul.f32 %v7233, %v924
        %v7273 = vmul.f32 %v7234, %v925
        %v7274 = vmul.f32 %v7235, %v926
        %v7275 = vmul.f32 %v7236, %v927
        %v7276 = vmul.f32 %v7237, %v928
        %v7277 = vmul.f32 %v7238, %v929
        %v7278 = vmul.f32 %v7239, %v930
        %v7279 = vmul.f32 %v7240, %v931
        %v7280 = vmul.f32 %v7241, %v932
        %v7281 = vmul.f32 %v7242, %v933
        %v7282 = vmul.f32 %v7243, %v934
        %v7283 = vmul.f32 %v7244, %v935
        %v7284 = vmul.f32 %v7245, %v936
        %v7285 = vmul.f32 %v7246, %v937
        %v7286 = vmul.f32 %v7247, %v938
        %v7287 = vmul.f32 %v7248, %v939
        %v7288 = vmul.f32 %v7249, %v940
        %v7289 = vmul.f32 %v7250, %v941
        %v7290 = vmul.f32 %v7251, %v942
        %v7291 = vmul.f32 %v7252, %v943
      $region112: #{tpu_custom_call.1} parent=91 // pred_fallthru
        %v7292 = vphi 0, %v7256
        %v7293 = vphi 0, %v7257
        %v7294 = vphi 0, %v7258
        %v7295 = vphi 0, %v7259
        %v7296 = vphi 0, %v7260
        %v7297 = vphi 0, %v7261
        %v7298 = vphi 0, %v7262
        %v7299 = vphi 0, %v7263
        %v7300 = vphi 0, %v7264
        %v7301 = vphi 0, %v7265
        %v7302 = vphi 0, %v7266
        %v7303 = vphi 0, %v7267
        %v7304 = vphi 0, %v7268
        %v7305 = vphi 0, %v7269
        %v7306 = vphi 0, %v7270
        %v7307 = vphi 0, %v7271
        %v7308 = vphi 0, %v7272
        %v7309 = vphi 0, %v7273
        %v7310 = vphi 0, %v7274
        %v7311 = vphi 0, %v7275
        %v7312 = vphi 0, %v7276
        %v7313 = vphi 0, %v7277
        %v7314 = vphi 0, %v7278
        %v7315 = vphi 0, %v7279
        %v7316 = vphi 0, %v7280
        %v7317 = vphi 0, %v7281
        %v7318 = vphi 0, %v7282
        %v7319 = vphi 0, %v7283
        %v7320 = vphi 0, %v7284
        %v7321 = vphi 0, %v7285
        %v7322 = vphi 0, %v7286
        %v7323 = vphi 0, %v7287
        %v7324 = vphi 0, %v7288
        %v7325 = vphi 0, %v7289
        %v7326 = vphi 0, %v7290
        %v7327 = vphi 0, %v7291
      %p7328 = pneg %p949
      // Predicated region
      $region113: #{tpu_custom_call.1} parent=91 // pred_check
        _
      $region114: #{tpu_custom_call.1} parent=91 // pred_check_branch
        %7330 = sbr.rel (%p949) target = $region116
      $region115: #{tpu_custom_call.1} parent=91 // pred_region
        _
      $region116: #{tpu_custom_call.1} parent=91 // pred_fallthru
        %v7331 = vphi %v7292, %v7217
        %v7332 = vphi %v7293, %v7218
        %v7333 = vphi %v7294, %v7219
        %v7334 = vphi %v7295, %v7220
        %v7335 = vphi %v7296, %v7221
        %v7336 = vphi %v7297, %v7222
        %v7337 = vphi %v7298, %v7223
        %v7338 = vphi %v7299, %v7224
        %v7339 = vphi %v7300, %v7225
        %v7340 = vphi %v7301, %v7226
        %v7341 = vphi %v7302, %v7227
        %v7342 = vphi %v7303, %v7228
        %v7343 = vphi %v7304, %v7229
        %v7344 = vphi %v7305, %v7230
        %v7345 = vphi %v7306, %v7231
        %v7346 = vphi %v7307, %v7232
        %v7347 = vphi %v7308, %v7233
        %v7348 = vphi %v7309, %v7234
        %v7349 = vphi %v7310, %v7235
        %v7350 = vphi %v7311, %v7236
        %v7351 = vphi %v7312, %v7237
        %v7352 = vphi %v7313, %v7238
        %v7353 = vphi %v7314, %v7239
        %v7354 = vphi %v7315, %v7240
        %v7355 = vphi %v7316, %v7241
        %v7356 = vphi %v7317, %v7242
        %v7357 = vphi %v7318, %v7243
        %v7358 = vphi %v7319, %v7244
        %v7359 = vphi %v7320, %v7245
        %v7360 = vphi %v7321, %v7246
        %v7361 = vphi %v7322, %v7247
        %v7362 = vphi %v7323, %v7248
        %v7363 = vphi %v7324, %v7249
        %v7364 = vphi %v7325, %v7250
        %v7365 = vphi %v7326, %v7251
        %v7366 = vphi %v7327, %v7252
      %s7367 = scalar_lea.vmem %s6, 16
      %v7368 = vld [vmem:[%s7367] sm:$0x7f]
      %v7369 = vlaneseq
      %v7370 = vshrl.u32 %v7369, 7
      %v7371 = vsub.s32 3, %v7370
      %v7372 = vrot.slane %v7368, %v7371
      %v7373 = vmul.f32 %v7331, %v7372
      %v7374 = vmul.f32 %v7332, %v7372
      %v7375 = vmul.f32 %v7333, %v7372
      %v7376 = vmul.f32 %v7334, %v7372
      %v7377 = vmul.f32 %v7335, %v7372
      %v7378 = vmul.f32 %v7336, %v7372
      %v7379 = vmul.f32 %v7337, %v7372
      %v7380 = vmul.f32 %v7338, %v7372
      %v7381 = vmul.f32 %v7339, %v7372
      %v7382 = vmul.f32 %v7340, %v7372
      %v7383 = vmul.f32 %v7341, %v7372
      %v7384 = vmul.f32 %v7342, %v7372
      %v7385 = vmul.f32 %v7343, %v7372
      %v7386 = vmul.f32 %v7344, %v7372
      %v7387 = vmul.f32 %v7345, %v7372
      %v7388 = vmul.f32 %v7346, %v7372
      %v7389 = vmul.f32 %v7347, %v7372
      %v7390 = vmul.f32 %v7348, %v7372
      %v7391 = vmul.f32 %v7349, %v7372
      %v7392 = vmul.f32 %v7350, %v7372
      %v7393 = vmul.f32 %v7351, %v7372
      %v7394 = vmul.f32 %v7352, %v7372
      %v7395 = vmul.f32 %v7353, %v7372
      %v7396 = vmul.f32 %v7354, %v7372
      %v7397 = vmul.f32 %v7355, %v7372
      %v7398 = vmul.f32 %v7356, %v7372
      %v7399 = vmul.f32 %v7357, %v7372
      %v7400 = vmul.f32 %v7358, %v7372
      %v7401 = vmul.f32 %v7359, %v7372
      %v7402 = vmul.f32 %v7360, %v7372
      %v7403 = vmul.f32 %v7361, %v7372
      %v7404 = vmul.f32 %v7362, %v7372
      %v7405 = vmul.f32 %v7363, %v7372
      %v7406 = vmul.f32 %v7364, %v7372
      %v7407 = vmul.f32 %v7365, %v7372
      %v7408 = vmul.f32 %v7366, %v7372
      %v7409 = vrot.slane %v7331, 5
      %v7410 = vrot.slane %v7332, 5
      %v7411 = vrot.slane %v7333, 5
      %v7412 = vrot.slane %v7334, 5
      %v7413 = vrot.slane %v7335, 5
      %v7414 = vrot.slane %v7336, 5
      %v7415 = vrot.slane %v7337, 5
      %v7416 = vrot.slane %v7338, 5
      %v7417 = vrot.slane %v7339, 5
      %v7418 = vrot.slane %v7340, 5
      %v7419 = vrot.slane %v7341, 5
      %v7420 = vrot.slane %v7342, 5
      %v7421 = vrot.slane %v7343, 5
      %v7422 = vrot.slane %v7344, 5
      %v7423 = vrot.slane %v7345, 5
      %v7424 = vrot.slane %v7346, 5
      %v7425 = vrot.slane %v7347, 5
      %v7426 = vrot.slane %v7348, 5
      %v7427 = vrot.slane %v7349, 5
      %v7428 = vrot.slane %v7350, 5
      %v7429 = vrot.slane %v7351, 5
      %v7430 = vrot.slane %v7352, 5
      %v7431 = vrot.slane %v7353, 5
      %v7432 = vrot.slane %v7354, 5
      %v7433 = vrot.slane %v7355, 5
      %v7434 = vrot.slane %v7356, 5
      %v7435 = vrot.slane %v7357, 5
      %v7436 = vrot.slane %v7358, 5
      %v7437 = vrot.slane %v7359, 5
      %v7438 = vrot.slane %v7360, 5
      %v7439 = vrot.slane %v7361, 5
      %v7440 = vrot.slane %v7362, 5
      %v7441 = vrot.slane %v7363, 5
      %v7442 = vrot.slane %v7364, 5
      %v7443 = vrot.slane %v7365, 5
      %v7444 = vrot.slane %v7366, 5
      %v7445 = vsel %vm2094, %v7443, %v7444
      %v7446 = vsel %vm2094, %v7442, %v7443
      %v7447 = vsel %vm2094, %v7441, %v7442
      %v7448 = vsel %vm2094, %v7440, %v7441
      %v7449 = vsel %vm2094, %v7439, %v7440
      %v7450 = vsel %vm2094, %v7438, %v7439
      %v7451 = vsel %vm2094, %v7437, %v7438
      %v7452 = vsel %vm2094, %v7436, %v7437
      %v7453 = vsel %vm2094, %v7435, %v7436
      %v7454 = vsel %vm2094, %v7434, %v7435
      %v7455 = vsel %vm2094, %v7433, %v7434
      %v7456 = vsel %vm2094, %v7432, %v7433
      %v7457 = vsel %vm2094, %v7431, %v7432
      %v7458 = vsel %vm2094, %v7430, %v7431
      %v7459 = vsel %vm2094, %v7429, %v7430
      %v7460 = vsel %vm2094, %v7428, %v7429
      %v7461 = vsel %vm2094, %v7427, %v7428
      %v7462 = vsel %vm2094, %v7426, %v7427
      %v7463 = vsel %vm2094, %v7425, %v7426
      %v7464 = vsel %vm2094, %v7424, %v7425
      %v7465 = vsel %vm2094, %v7423, %v7424
      %v7466 = vsel %vm2094, %v7422, %v7423
      %v7467 = vsel %vm2094, %v7421, %v7422
      %v7468 = vsel %vm2094, %v7420, %v7421
      %v7469 = vsel %vm2094, %v7419, %v7420
      %v7470 = vsel %vm2094, %v7418, %v7419
      %v7471 = vsel %vm2094, %v7417, %v7418
      %v7472 = vsel %vm2094, %v7416, %v7417
      %v7473 = vsel %vm2094, %v7415, %v7416
      %v7474 = vsel %vm2094, %v7414, %v7415
      %v7475 = vsel %vm2094, %v7413, %v7414
      %v7476 = vsel %vm2094, %v7412, %v7413
      %v7477 = vsel %vm2094, %v7411, %v7412
      %v7478 = vsel %vm2094, %v7410, %v7411
      %v7479 = vsel %vm2094, %v7409, %v7410
      %v7480 = vsel %vm2094, %v7444, %v7409
      %v7481 = vlaneseq
      %v7482 = vshrl.u32 %v7481, 7
      %v7483 = vsub.s32 0, %v7482
      %v7484 = vrot.slane %v7368, %v7483
      %v7485 = vmul.f32 %v7480, %v7484
      %v7486 = vmul.f32 %v7479, %v7484
      %v7487 = vmul.f32 %v7478, %v7484
      %v7488 = vmul.f32 %v7477, %v7484
      %v7489 = vmul.f32 %v7476, %v7484
      %v7490 = vmul.f32 %v7475, %v7484
      %v7491 = vmul.f32 %v7474, %v7484
      %v7492 = vmul.f32 %v7473, %v7484
      %v7493 = vmul.f32 %v7472, %v7484
      %v7494 = vmul.f32 %v7471, %v7484
      %v7495 = vmul.f32 %v7470, %v7484
      %v7496 = vmul.f32 %v7469, %v7484
      %v7497 = vmul.f32 %v7468, %v7484
      %v7498 = vmul.f32 %v7467, %v7484
      %v7499 = vmul.f32 %v7466, %v7484
      %v7500 = vmul.f32 %v7465, %v7484
      %v7501 = vmul.f32 %v7464, %v7484
      %v7502 = vmul.f32 %v7463, %v7484
      %v7503 = vmul.f32 %v7462, %v7484
      %v7504 = vmul.f32 %v7461, %v7484
      %v7505 = vmul.f32 %v7460, %v7484
      %v7506 = vmul.f32 %v7459, %v7484
      %v7507 = vmul.f32 %v7458, %v7484
      %v7508 = vmul.f32 %v7457, %v7484
      %v7509 = vmul.f32 %v7456, %v7484
      %v7510 = vmul.f32 %v7455, %v7484
      %v7511 = vmul.f32 %v7454, %v7484
      %v7512 = vmul.f32 %v7453, %v7484
      %v7513 = vmul.f32 %v7452, %v7484
      %v7514 = vmul.f32 %v7451, %v7484
      %v7515 = vmul.f32 %v7450, %v7484
      %v7516 = vmul.f32 %v7449, %v7484
      %v7517 = vmul.f32 %v7448, %v7484
      %v7518 = vmul.f32 %v7447, %v7484
      %v7519 = vmul.f32 %v7446, %v7484
      %v7520 = vmul.f32 %v7445, %v7484
      %v7521 = vadd.f32 %v7373, %v7485
      %v7522 = vadd.f32 %v7374, %v7486
      %v7523 = vadd.f32 %v7375, %v7487
      %v7524 = vadd.f32 %v7376, %v7488
      %v7525 = vadd.f32 %v7377, %v7489
      %v7526 = vadd.f32 %v7378, %v7490
      %v7527 = vadd.f32 %v7379, %v7491
      %v7528 = vadd.f32 %v7380, %v7492
      %v7529 = vadd.f32 %v7381, %v7493
      %v7530 = vadd.f32 %v7382, %v7494
      %v7531 = vadd.f32 %v7383, %v7495
      %v7532 = vadd.f32 %v7384, %v7496
      %v7533 = vadd.f32 %v7385, %v7497
      %v7534 = vadd.f32 %v7386, %v7498
      %v7535 = vadd.f32 %v7387, %v7499
      %v7536 = vadd.f32 %v7388, %v7500
      %v7537 = vadd.f32 %v7389, %v7501
      %v7538 = vadd.f32 %v7390, %v7502
      %v7539 = vadd.f32 %v7391, %v7503
      %v7540 = vadd.f32 %v7392, %v7504
      %v7541 = vadd.f32 %v7393, %v7505
      %v7542 = vadd.f32 %v7394, %v7506
      %v7543 = vadd.f32 %v7395, %v7507
      %v7544 = vadd.f32 %v7396, %v7508
      %v7545 = vadd.f32 %v7397, %v7509
      %v7546 = vadd.f32 %v7398, %v7510
      %v7547 = vadd.f32 %v7399, %v7511
      %v7548 = vadd.f32 %v7400, %v7512
      %v7549 = vadd.f32 %v7401, %v7513
      %v7550 = vadd.f32 %v7402, %v7514
      %v7551 = vadd.f32 %v7403, %v7515
      %v7552 = vadd.f32 %v7404, %v7516
      %v7553 = vadd.f32 %v7405, %v7517
      %v7554 = vadd.f32 %v7406, %v7518
      %v7555 = vadd.f32 %v7407, %v7519
      %v7556 = vadd.f32 %v7408, %v7520
      %v7557 = vrot.slane %v7331, 6
      %v7558 = vrot.slane %v7332, 6
      %v7559 = vrot.slane %v7333, 6
      %v7560 = vrot.slane %v7334, 6
      %v7561 = vrot.slane %v7335, 6
      %v7562 = vrot.slane %v7336, 6
      %v7563 = vrot.slane %v7337, 6
      %v7564 = vrot.slane %v7338, 6
      %v7565 = vrot.slane %v7339, 6
      %v7566 = vrot.slane %v7340, 6
      %v7567 = vrot.slane %v7341, 6
      %v7568 = vrot.slane %v7342, 6
      %v7569 = vrot.slane %v7343, 6
      %v7570 = vrot.slane %v7344, 6
      %v7571 = vrot.slane %v7345, 6
      %v7572 = vrot.slane %v7346, 6
      %v7573 = vrot.slane %v7347, 6
      %v7574 = vrot.slane %v7348, 6
      %v7575 = vrot.slane %v7349, 6
      %v7576 = vrot.slane %v7350, 6
      %v7577 = vrot.slane %v7351, 6
      %v7578 = vrot.slane %v7352, 6
      %v7579 = vrot.slane %v7353, 6
      %v7580 = vrot.slane %v7354, 6
      %v7581 = vrot.slane %v7355, 6
      %v7582 = vrot.slane %v7356, 6
      %v7583 = vrot.slane %v7357, 6
      %v7584 = vrot.slane %v7358, 6
      %v7585 = vrot.slane %v7359, 6
      %v7586 = vrot.slane %v7360, 6
      %v7587 = vrot.slane %v7361, 6
      %v7588 = vrot.slane %v7362, 6
      %v7589 = vrot.slane %v7363, 6
      %v7590 = vrot.slane %v7364, 6
      %v7591 = vrot.slane %v7365, 6
      %v7592 = vrot.slane %v7366, 6
      %v7593 = vsel %vm2243, %v7591, %v7592
      %v7594 = vsel %vm2243, %v7590, %v7591
      %v7595 = vsel %vm2243, %v7589, %v7590
      %v7596 = vsel %vm2243, %v7588, %v7589
      %v7597 = vsel %vm2243, %v7587, %v7588
      %v7598 = vsel %vm2243, %v7586, %v7587
      %v7599 = vsel %vm2243, %v7585, %v7586
      %v7600 = vsel %vm2243, %v7584, %v7585
      %v7601 = vsel %vm2243, %v7583, %v7584
      %v7602 = vsel %vm2243, %v7582, %v7583
      %v7603 = vsel %vm2243, %v7581, %v7582
      %v7604 = vsel %vm2243, %v7580, %v7581
      %v7605 = vsel %vm2243, %v7579, %v7580
      %v7606 = vsel %vm2243, %v7578, %v7579
      %v7607 = vsel %vm2243, %v7577, %v7578
      %v7608 = vsel %vm2243, %v7576, %v7577
      %v7609 = vsel %vm2243, %v7575, %v7576
      %v7610 = vsel %vm2243, %v7574, %v7575
      %v7611 = vsel %vm2243, %v7573, %v7574
      %v7612 = vsel %vm2243, %v7572, %v7573
      %v7613 = vsel %vm2243, %v7571, %v7572
      %v7614 = vsel %vm2243, %v7570, %v7571
      %v7615 = vsel %vm2243, %v7569, %v7570
      %v7616 = vsel %vm2243, %v7568, %v7569
      %v7617 = vsel %vm2243, %v7567, %v7568
      %v7618 = vsel %vm2243, %v7566, %v7567
      %v7619 = vsel %vm2243, %v7565, %v7566
      %v7620 = vsel %vm2243, %v7564, %v7565
      %v7621 = vsel %vm2243, %v7563, %v7564
      %v7622 = vsel %vm2243, %v7562, %v7563
      %v7623 = vsel %vm2243, %v7561, %v7562
      %v7624 = vsel %vm2243, %v7560, %v7561
      %v7625 = vsel %vm2243, %v7559, %v7560
      %v7626 = vsel %vm2243, %v7558, %v7559
      %v7627 = vsel %vm2243, %v7557, %v7558
      %v7628 = vsel %vm2243, %v7592, %v7557
      %v7629 = vlaneseq
      %v7630 = vshrl.u32 %v7629, 7
      %v7631 = vsub.s32 1, %v7630
      %v7632 = vrot.slane %v7368, %v7631
      %v7633 = vmul.f32 %v7628, %v7632
      %v7634 = vmul.f32 %v7627, %v7632
      %v7635 = vmul.f32 %v7626, %v7632
      %v7636 = vmul.f32 %v7625, %v7632
      %v7637 = vmul.f32 %v7624, %v7632
      %v7638 = vmul.f32 %v7623, %v7632
      %v7639 = vmul.f32 %v7622, %v7632
      %v7640 = vmul.f32 %v7621, %v7632
      %v7641 = vmul.f32 %v7620, %v7632
      %v7642 = vmul.f32 %v7619, %v7632
      %v7643 = vmul.f32 %v7618, %v7632
      %v7644 = vmul.f32 %v7617, %v7632
      %v7645 = vmul.f32 %v7616, %v7632
      %v7646 = vmul.f32 %v7615, %v7632
      %v7647 = vmul.f32 %v7614, %v7632
      %v7648 = vmul.f32 %v7613, %v7632
      %v7649 = vmul.f32 %v7612, %v7632
      %v7650 = vmul.f32 %v7611, %v7632
      %v7651 = vmul.f32 %v7610, %v7632
      %v7652 = vmul.f32 %v7609, %v7632
      %v7653 = vmul.f32 %v7608, %v7632
      %v7654 = vmul.f32 %v7607, %v7632
      %v7655 = vmul.f32 %v7606, %v7632
      %v7656 = vmul.f32 %v7605, %v7632
      %v7657 = vmul.f32 %v7604, %v7632
      %v7658 = vmul.f32 %v7603, %v7632
      %v7659 = vmul.f32 %v7602, %v7632
      %v7660 = vmul.f32 %v7601, %v7632
      %v7661 = vmul.f32 %v7600, %v7632
      %v7662 = vmul.f32 %v7599, %v7632
      %v7663 = vmul.f32 %v7598, %v7632
      %v7664 = vmul.f32 %v7597, %v7632
      %v7665 = vmul.f32 %v7596, %v7632
      %v7666 = vmul.f32 %v7595, %v7632
      %v7667 = vmul.f32 %v7594, %v7632
      %v7668 = vmul.f32 %v7593, %v7632
      %v7669 = vadd.f32 %v7521, %v7633
      %v7670 = vadd.f32 %v7522, %v7634
      %v7671 = vadd.f32 %v7523, %v7635
      %v7672 = vadd.f32 %v7524, %v7636
      %v7673 = vadd.f32 %v7525, %v7637
      %v7674 = vadd.f32 %v7526, %v7638
      %v7675 = vadd.f32 %v7527, %v7639
      %v7676 = vadd.f32 %v7528, %v7640
      %v7677 = vadd.f32 %v7529, %v7641
      %v7678 = vadd.f32 %v7530, %v7642
      %v7679 = vadd.f32 %v7531, %v7643
      %v7680 = vadd.f32 %v7532, %v7644
      %v7681 = vadd.f32 %v7533, %v7645
      %v7682 = vadd.f32 %v7534, %v7646
      %v7683 = vadd.f32 %v7535, %v7647
      %v7684 = vadd.f32 %v7536, %v7648
      %v7685 = vadd.f32 %v7537, %v7649
      %v7686 = vadd.f32 %v7538, %v7650
      %v7687 = vadd.f32 %v7539, %v7651
      %v7688 = vadd.f32 %v7540, %v7652
      %v7689 = vadd.f32 %v7541, %v7653
      %v7690 = vadd.f32 %v7542, %v7654
      %v7691 = vadd.f32 %v7543, %v7655
      %v7692 = vadd.f32 %v7544, %v7656
      %v7693 = vadd.f32 %v7545, %v7657
      %v7694 = vadd.f32 %v7546, %v7658
      %v7695 = vadd.f32 %v7547, %v7659
      %v7696 = vadd.f32 %v7548, %v7660
      %v7697 = vadd.f32 %v7549, %v7661
      %v7698 = vadd.f32 %v7550, %v7662
      %v7699 = vadd.f32 %v7551, %v7663
      %v7700 = vadd.f32 %v7552, %v7664
      %v7701 = vadd.f32 %v7553, %v7665
      %v7702 = vadd.f32 %v7554, %v7666
      %v7703 = vadd.f32 %v7555, %v7667
      %v7704 = vadd.f32 %v7556, %v7668
      %v7705 = vrot.slane %v7331, 7
      %v7706 = vrot.slane %v7332, 7
      %v7707 = vrot.slane %v7333, 7
      %v7708 = vrot.slane %v7334, 7
      %v7709 = vrot.slane %v7335, 7
      %v7710 = vrot.slane %v7336, 7
      %v7711 = vrot.slane %v7337, 7
      %v7712 = vrot.slane %v7338, 7
      %v7713 = vrot.slane %v7339, 7
      %v7714 = vrot.slane %v7340, 7
      %v7715 = vrot.slane %v7341, 7
      %v7716 = vrot.slane %v7342, 7
      %v7717 = vrot.slane %v7343, 7
      %v7718 = vrot.slane %v7344, 7
      %v7719 = vrot.slane %v7345, 7
      %v7720 = vrot.slane %v7346, 7
      %v7721 = vrot.slane %v7347, 7
      %v7722 = vrot.slane %v7348, 7
      %v7723 = vrot.slane %v7349, 7
      %v7724 = vrot.slane %v7350, 7
      %v7725 = vrot.slane %v7351, 7
      %v7726 = vrot.slane %v7352, 7
      %v7727 = vrot.slane %v7353, 7
      %v7728 = vrot.slane %v7354, 7
      %v7729 = vrot.slane %v7355, 7
      %v7730 = vrot.slane %v7356, 7
      %v7731 = vrot.slane %v7357, 7
      %v7732 = vrot.slane %v7358, 7
      %v7733 = vrot.slane %v7359, 7
      %v7734 = vrot.slane %v7360, 7
      %v7735 = vrot.slane %v7361, 7
      %v7736 = vrot.slane %v7362, 7
      %v7737 = vrot.slane %v7363, 7
      %v7738 = vrot.slane %v7364, 7
      %v7739 = vrot.slane %v7365, 7
      %v7740 = vrot.slane %v7366, 7
      %v7741 = vsel %vm2392, %v7739, %v7740
      %v7742 = vsel %vm2392, %v7738, %v7739
      %v7743 = vsel %vm2392, %v7737, %v7738
      %v7744 = vsel %vm2392, %v7736, %v7737
      %v7745 = vsel %vm2392, %v7735, %v7736
      %v7746 = vsel %vm2392, %v7734, %v7735
      %v7747 = vsel %vm2392, %v7733, %v7734
      %v7748 = vsel %vm2392, %v7732, %v7733
      %v7749 = vsel %vm2392, %v7731, %v7732
      %v7750 = vsel %vm2392, %v7730, %v7731
      %v7751 = vsel %vm2392, %v7729, %v7730
      %v7752 = vsel %vm2392, %v7728, %v7729
      %v7753 = vsel %vm2392, %v7727, %v7728
      %v7754 = vsel %vm2392, %v7726, %v7727
      %v7755 = vsel %vm2392, %v7725, %v7726
      %v7756 = vsel %vm2392, %v7724, %v7725
      %v7757 = vsel %vm2392, %v7723, %v7724
      %v7758 = vsel %vm2392, %v7722, %v7723
      %v7759 = vsel %vm2392, %v7721, %v7722
      %v7760 = vsel %vm2392, %v7720, %v7721
      %v7761 = vsel %vm2392, %v7719, %v7720
      %v7762 = vsel %vm2392, %v7718, %v7719
      %v7763 = vsel %vm2392, %v7717, %v7718
      %v7764 = vsel %vm2392, %v7716, %v7717
      %v7765 = vsel %vm2392, %v7715, %v7716
      %v7766 = vsel %vm2392, %v7714, %v7715
      %v7767 = vsel %vm2392, %v7713, %v7714
      %v7768 = vsel %vm2392, %v7712, %v7713
      %v7769 = vsel %vm2392, %v7711, %v7712
      %v7770 = vsel %vm2392, %v7710, %v7711
      %v7771 = vsel %vm2392, %v7709, %v7710
      %v7772 = vsel %vm2392, %v7708, %v7709
      %v7773 = vsel %vm2392, %v7707, %v7708
      %v7774 = vsel %vm2392, %v7706, %v7707
      %v7775 = vsel %vm2392, %v7705, %v7706
      %v7776 = vsel %vm2392, %v7740, %v7705
      %v7777 = vlaneseq
      %v7778 = vshrl.u32 %v7777, 7
      %v7779 = vsub.s32 2, %v7778
      %v7780 = vrot.slane %v7368, %v7779
      %v7781 = vmul.f32 %v7776, %v7780
      %v7782 = vmul.f32 %v7775, %v7780
      %v7783 = vmul.f32 %v7774, %v7780
      %v7784 = vmul.f32 %v7773, %v7780
      %v7785 = vmul.f32 %v7772, %v7780
      %v7786 = vmul.f32 %v7771, %v7780
      %v7787 = vmul.f32 %v7770, %v7780
      %v7788 = vmul.f32 %v7769, %v7780
      %v7789 = vmul.f32 %v7768, %v7780
      %v7790 = vmul.f32 %v7767, %v7780
      %v7791 = vmul.f32 %v7766, %v7780
      %v7792 = vmul.f32 %v7765, %v7780
      %v7793 = vmul.f32 %v7764, %v7780
      %v7794 = vmul.f32 %v7763, %v7780
      %v7795 = vmul.f32 %v7762, %v7780
      %v7796 = vmul.f32 %v7761, %v7780
      %v7797 = vmul.f32 %v7760, %v7780
      %v7798 = vmul.f32 %v7759, %v7780
      %v7799 = vmul.f32 %v7758, %v7780
      %v7800 = vmul.f32 %v7757, %v7780
      %v7801 = vmul.f32 %v7756, %v7780
      %v7802 = vmul.f32 %v7755, %v7780
      %v7803 = vmul.f32 %v7754, %v7780
      %v7804 = vmul.f32 %v7753, %v7780
      %v7805 = vmul.f32 %v7752, %v7780
      %v7806 = vmul.f32 %v7751, %v7780
      %v7807 = vmul.f32 %v7750, %v7780
      %v7808 = vmul.f32 %v7749, %v7780
      %v7809 = vmul.f32 %v7748, %v7780
      %v7810 = vmul.f32 %v7747, %v7780
      %v7811 = vmul.f32 %v7746, %v7780
      %v7812 = vmul.f32 %v7745, %v7780
      %v7813 = vmul.f32 %v7744, %v7780
      %v7814 = vmul.f32 %v7743, %v7780
      %v7815 = vmul.f32 %v7742, %v7780
      %v7816 = vmul.f32 %v7741, %v7780
      %v7817 = vadd.f32 %v7669, %v7781
      %v7818 = vadd.f32 %v7670, %v7782
      %v7819 = vadd.f32 %v7671, %v7783
      %v7820 = vadd.f32 %v7672, %v7784
      %v7821 = vadd.f32 %v7673, %v7785
      %v7822 = vadd.f32 %v7674, %v7786
      %v7823 = vadd.f32 %v7675, %v7787
      %v7824 = vadd.f32 %v7676, %v7788
      %v7825 = vadd.f32 %v7677, %v7789
      %v7826 = vadd.f32 %v7678, %v7790
      %v7827 = vadd.f32 %v7679, %v7791
      %v7828 = vadd.f32 %v7680, %v7792
      %v7829 = vadd.f32 %v7681, %v7793
      %v7830 = vadd.f32 %v7682, %v7794
      %v7831 = vadd.f32 %v7683, %v7795
      %v7832 = vadd.f32 %v7684, %v7796
      %v7833 = vadd.f32 %v7685, %v7797
      %v7834 = vadd.f32 %v7686, %v7798
      %v7835 = vadd.f32 %v7687, %v7799
      %v7836 = vadd.f32 %v7688, %v7800
      %v7837 = vadd.f32 %v7689, %v7801
      %v7838 = vadd.f32 %v7690, %v7802
      %v7839 = vadd.f32 %v7691, %v7803
      %v7840 = vadd.f32 %v7692, %v7804
      %v7841 = vadd.f32 %v7693, %v7805
      %v7842 = vadd.f32 %v7694, %v7806
      %v7843 = vadd.f32 %v7695, %v7807
      %v7844 = vadd.f32 %v7696, %v7808
      %v7845 = vadd.f32 %v7697, %v7809
      %v7846 = vadd.f32 %v7698, %v7810
      %v7847 = vadd.f32 %v7699, %v7811
      %v7848 = vadd.f32 %v7700, %v7812
      %v7849 = vadd.f32 %v7701, %v7813
      %v7850 = vadd.f32 %v7702, %v7814
      %v7851 = vadd.f32 %v7703, %v7815
      %v7852 = vadd.f32 %v7704, %v7816
      %v7853 = vrot.slane %v7331, 1
      %v7854 = vrot.slane %v7332, 1
      %v7855 = vrot.slane %v7333, 1
      %v7856 = vrot.slane %v7334, 1
      %v7857 = vrot.slane %v7335, 1
      %v7858 = vrot.slane %v7336, 1
      %v7859 = vrot.slane %v7337, 1
      %v7860 = vrot.slane %v7338, 1
      %v7861 = vrot.slane %v7339, 1
      %v7862 = vrot.slane %v7340, 1
      %v7863 = vrot.slane %v7341, 1
      %v7864 = vrot.slane %v7342, 1
      %v7865 = vrot.slane %v7343, 1
      %v7866 = vrot.slane %v7344, 1
      %v7867 = vrot.slane %v7345, 1
      %v7868 = vrot.slane %v7346, 1
      %v7869 = vrot.slane %v7347, 1
      %v7870 = vrot.slane %v7348, 1
      %v7871 = vrot.slane %v7349, 1
      %v7872 = vrot.slane %v7350, 1
      %v7873 = vrot.slane %v7351, 1
      %v7874 = vrot.slane %v7352, 1
      %v7875 = vrot.slane %v7353, 1
      %v7876 = vrot.slane %v7354, 1
      %v7877 = vrot.slane %v7355, 1
      %v7878 = vrot.slane %v7356, 1
      %v7879 = vrot.slane %v7357, 1
      %v7880 = vrot.slane %v7358, 1
      %v7881 = vrot.slane %v7359, 1
      %v7882 = vrot.slane %v7360, 1
      %v7883 = vrot.slane %v7361, 1
      %v7884 = vrot.slane %v7362, 1
      %v7885 = vrot.slane %v7363, 1
      %v7886 = vrot.slane %v7364, 1
      %v7887 = vrot.slane %v7365, 1
      %v7888 = vrot.slane %v7366, 1
      %v7889 = vsel %vm2541, %v7887, %v7888
      %v7890 = vsel %vm2541, %v7886, %v7887
      %v7891 = vsel %vm2541, %v7885, %v7886
      %v7892 = vsel %vm2541, %v7884, %v7885
      %v7893 = vsel %vm2541, %v7883, %v7884
      %v7894 = vsel %vm2541, %v7882, %v7883
      %v7895 = vsel %vm2541, %v7881, %v7882
      %v7896 = vsel %vm2541, %v7880, %v7881
      %v7897 = vsel %vm2541, %v7879, %v7880
      %v7898 = vsel %vm2541, %v7878, %v7879
      %v7899 = vsel %vm2541, %v7877, %v7878
      %v7900 = vsel %vm2541, %v7876, %v7877
      %v7901 = vsel %vm2541, %v7875, %v7876
      %v7902 = vsel %vm2541, %v7874, %v7875
      %v7903 = vsel %vm2541, %v7873, %v7874
      %v7904 = vsel %vm2541, %v7872, %v7873
      %v7905 = vsel %vm2541, %v7871, %v7872
      %v7906 = vsel %vm2541, %v7870, %v7871
      %v7907 = vsel %vm2541, %v7869, %v7870
      %v7908 = vsel %vm2541, %v7868, %v7869
      %v7909 = vsel %vm2541, %v7867, %v7868
      %v7910 = vsel %vm2541, %v7866, %v7867
      %v7911 = vsel %vm2541, %v7865, %v7866
      %v7912 = vsel %vm2541, %v7864, %v7865
      %v7913 = vsel %vm2541, %v7863, %v7864
      %v7914 = vsel %vm2541, %v7862, %v7863
      %v7915 = vsel %vm2541, %v7861, %v7862
      %v7916 = vsel %vm2541, %v7860, %v7861
      %v7917 = vsel %vm2541, %v7859, %v7860
      %v7918 = vsel %vm2541, %v7858, %v7859
      %v7919 = vsel %vm2541, %v7857, %v7858
      %v7920 = vsel %vm2541, %v7856, %v7857
      %v7921 = vsel %vm2541, %v7855, %v7856
      %v7922 = vsel %vm2541, %v7854, %v7855
      %v7923 = vsel %vm2541, %v7853, %v7854
      %v7924 = vsel %vm2541, %v7888, %v7853
      %v7925 = vlaneseq
      %v7926 = vshrl.u32 %v7925, 7
      %v7927 = vsub.s32 4, %v7926
      %v7928 = vrot.slane %v7368, %v7927
      %v7929 = vmul.f32 %v7923, %v7928
      %v7930 = vmul.f32 %v7922, %v7928
      %v7931 = vmul.f32 %v7921, %v7928
      %v7932 = vmul.f32 %v7920, %v7928
      %v7933 = vmul.f32 %v7919, %v7928
      %v7934 = vmul.f32 %v7918, %v7928
      %v7935 = vmul.f32 %v7917, %v7928
      %v7936 = vmul.f32 %v7916, %v7928
      %v7937 = vmul.f32 %v7915, %v7928
      %v7938 = vmul.f32 %v7914, %v7928
      %v7939 = vmul.f32 %v7913, %v7928
      %v7940 = vmul.f32 %v7912, %v7928
      %v7941 = vmul.f32 %v7911, %v7928
      %v7942 = vmul.f32 %v7910, %v7928
      %v7943 = vmul.f32 %v7909, %v7928
      %v7944 = vmul.f32 %v7908, %v7928
      %v7945 = vmul.f32 %v7907, %v7928
      %v7946 = vmul.f32 %v7906, %v7928
      %v7947 = vmul.f32 %v7905, %v7928
      %v7948 = vmul.f32 %v7904, %v7928
      %v7949 = vmul.f32 %v7903, %v7928
      %v7950 = vmul.f32 %v7902, %v7928
      %v7951 = vmul.f32 %v7901, %v7928
      %v7952 = vmul.f32 %v7900, %v7928
      %v7953 = vmul.f32 %v7899, %v7928
      %v7954 = vmul.f32 %v7898, %v7928
      %v7955 = vmul.f32 %v7897, %v7928
      %v7956 = vmul.f32 %v7896, %v7928
      %v7957 = vmul.f32 %v7895, %v7928
      %v7958 = vmul.f32 %v7894, %v7928
      %v7959 = vmul.f32 %v7893, %v7928
      %v7960 = vmul.f32 %v7892, %v7928
      %v7961 = vmul.f32 %v7891, %v7928
      %v7962 = vmul.f32 %v7890, %v7928
      %v7963 = vmul.f32 %v7889, %v7928
      %v7964 = vmul.f32 %v7924, %v7928
      %v7965 = vadd.f32 %v7817, %v7929
      %v7966 = vadd.f32 %v7818, %v7930
      %v7967 = vadd.f32 %v7819, %v7931
      %v7968 = vadd.f32 %v7820, %v7932
      %v7969 = vadd.f32 %v7821, %v7933
      %v7970 = vadd.f32 %v7822, %v7934
      %v7971 = vadd.f32 %v7823, %v7935
      %v7972 = vadd.f32 %v7824, %v7936
      %v7973 = vadd.f32 %v7825, %v7937
      %v7974 = vadd.f32 %v7826, %v7938
      %v7975 = vadd.f32 %v7827, %v7939
      %v7976 = vadd.f32 %v7828, %v7940
      %v7977 = vadd.f32 %v7829, %v7941
      %v7978 = vadd.f32 %v7830, %v7942
      %v7979 = vadd.f32 %v7831, %v7943
      %v7980 = vadd.f32 %v7832, %v7944
      %v7981 = vadd.f32 %v7833, %v7945
      %v7982 = vadd.f32 %v7834, %v7946
      %v7983 = vadd.f32 %v7835, %v7947
      %v7984 = vadd.f32 %v7836, %v7948
      %v7985 = vadd.f32 %v7837, %v7949
      %v7986 = vadd.f32 %v7838, %v7950
      %v7987 = vadd.f32 %v7839, %v7951
      %v7988 = vadd.f32 %v7840, %v7952
      %v7989 = vadd.f32 %v7841, %v7953
      %v7990 = vadd.f32 %v7842, %v7954
      %v7991 = vadd.f32 %v7843, %v7955
      %v7992 = vadd.f32 %v7844, %v7956
      %v7993 = vadd.f32 %v7845, %v7957
      %v7994 = vadd.f32 %v7846, %v7958
      %v7995 = vadd.f32 %v7847, %v7959
      %v7996 = vadd.f32 %v7848, %v7960
      %v7997 = vadd.f32 %v7849, %v7961
      %v7998 = vadd.f32 %v7850, %v7962
      %v7999 = vadd.f32 %v7851, %v7963
      %v8000 = vadd.f32 %v7852, %v7964
      %v8001 = vrot.slane %v7331, 2
      %v8002 = vrot.slane %v7332, 2
      %v8003 = vrot.slane %v7333, 2
      %v8004 = vrot.slane %v7334, 2
      %v8005 = vrot.slane %v7335, 2
      %v8006 = vrot.slane %v7336, 2
      %v8007 = vrot.slane %v7337, 2
      %v8008 = vrot.slane %v7338, 2
      %v8009 = vrot.slane %v7339, 2
      %v8010 = vrot.slane %v7340, 2
      %v8011 = vrot.slane %v7341, 2
      %v8012 = vrot.slane %v7342, 2
      %v8013 = vrot.slane %v7343, 2
      %v8014 = vrot.slane %v7344, 2
      %v8015 = vrot.slane %v7345, 2
      %v8016 = vrot.slane %v7346, 2
      %v8017 = vrot.slane %v7347, 2
      %v8018 = vrot.slane %v7348, 2
      %v8019 = vrot.slane %v7349, 2
      %v8020 = vrot.slane %v7350, 2
      %v8021 = vrot.slane %v7351, 2
      %v8022 = vrot.slane %v7352, 2
      %v8023 = vrot.slane %v7353, 2
      %v8024 = vrot.slane %v7354, 2
      %v8025 = vrot.slane %v7355, 2
      %v8026 = vrot.slane %v7356, 2
      %v8027 = vrot.slane %v7357, 2
      %v8028 = vrot.slane %v7358, 2
      %v8029 = vrot.slane %v7359, 2
      %v8030 = vrot.slane %v7360, 2
      %v8031 = vrot.slane %v7361, 2
      %v8032 = vrot.slane %v7362, 2
      %v8033 = vrot.slane %v7363, 2
      %v8034 = vrot.slane %v7364, 2
      %v8035 = vrot.slane %v7365, 2
      %v8036 = vrot.slane %v7366, 2
      %v8037 = vsel %vm2690, %v8035, %v8036
      %v8038 = vsel %vm2690, %v8034, %v8035
      %v8039 = vsel %vm2690, %v8033, %v8034
      %v8040 = vsel %vm2690, %v8032, %v8033
      %v8041 = vsel %vm2690, %v8031, %v8032
      %v8042 = vsel %vm2690, %v8030, %v8031
      %v8043 = vsel %vm2690, %v8029, %v8030
      %v8044 = vsel %vm2690, %v8028, %v8029
      %v8045 = vsel %vm2690, %v8027, %v8028
      %v8046 = vsel %vm2690, %v8026, %v8027
      %v8047 = vsel %vm2690, %v8025, %v8026
      %v8048 = vsel %vm2690, %v8024, %v8025
      %v8049 = vsel %vm2690, %v8023, %v8024
      %v8050 = vsel %vm2690, %v8022, %v8023
      %v8051 = vsel %vm2690, %v8021, %v8022
      %v8052 = vsel %vm2690, %v8020, %v8021
      %v8053 = vsel %vm2690, %v8019, %v8020
      %v8054 = vsel %vm2690, %v8018, %v8019
      %v8055 = vsel %vm2690, %v8017, %v8018
      %v8056 = vsel %vm2690, %v8016, %v8017
      %v8057 = vsel %vm2690, %v8015, %v8016
      %v8058 = vsel %vm2690, %v8014, %v8015
      %v8059 = vsel %vm2690, %v8013, %v8014
      %v8060 = vsel %vm2690, %v8012, %v8013
      %v8061 = vsel %vm2690, %v8011, %v8012
      %v8062 = vsel %vm2690, %v8010, %v8011
      %v8063 = vsel %vm2690, %v8009, %v8010
      %v8064 = vsel %vm2690, %v8008, %v8009
      %v8065 = vsel %vm2690, %v8007, %v8008
      %v8066 = vsel %vm2690, %v8006, %v8007
      %v8067 = vsel %vm2690, %v8005, %v8006
      %v8068 = vsel %vm2690, %v8004, %v8005
      %v8069 = vsel %vm2690, %v8003, %v8004
      %v8070 = vsel %vm2690, %v8002, %v8003
      %v8071 = vsel %vm2690, %v8001, %v8002
      %v8072 = vsel %vm2690, %v8036, %v8001
      %v8073 = vlaneseq
      %v8074 = vshrl.u32 %v8073, 7
      %v8075 = vsub.s32 5, %v8074
      %v8076 = vrot.slane %v7368, %v8075
      %v8077 = vmul.f32 %v8071, %v8076
      %v8078 = vmul.f32 %v8070, %v8076
      %v8079 = vmul.f32 %v8069, %v8076
      %v8080 = vmul.f32 %v8068, %v8076
      %v8081 = vmul.f32 %v8067, %v8076
      %v8082 = vmul.f32 %v8066, %v8076
      %v8083 = vmul.f32 %v8065, %v8076
      %v8084 = vmul.f32 %v8064, %v8076
      %v8085 = vmul.f32 %v8063, %v8076
      %v8086 = vmul.f32 %v8062, %v8076
      %v8087 = vmul.f32 %v8061, %v8076
      %v8088 = vmul.f32 %v8060, %v8076
      %v8089 = vmul.f32 %v8059, %v8076
      %v8090 = vmul.f32 %v8058, %v8076
      %v8091 = vmul.f32 %v8057, %v8076
      %v8092 = vmul.f32 %v8056, %v8076
      %v8093 = vmul.f32 %v8055, %v8076
      %v8094 = vmul.f32 %v8054, %v8076
      %v8095 = vmul.f32 %v8053, %v8076
      %v8096 = vmul.f32 %v8052, %v8076
      %v8097 = vmul.f32 %v8051, %v8076
      %v8098 = vmul.f32 %v8050, %v8076
      %v8099 = vmul.f32 %v8049, %v8076
      %v8100 = vmul.f32 %v8048, %v8076
      %v8101 = vmul.f32 %v8047, %v8076
      %v8102 = vmul.f32 %v8046, %v8076
      %v8103 = vmul.f32 %v8045, %v8076
      %v8104 = vmul.f32 %v8044, %v8076
      %v8105 = vmul.f32 %v8043, %v8076
      %v8106 = vmul.f32 %v8042, %v8076
      %v8107 = vmul.f32 %v8041, %v8076
      %v8108 = vmul.f32 %v8040, %v8076
      %v8109 = vmul.f32 %v8039, %v8076
      %v8110 = vmul.f32 %v8038, %v8076
      %v8111 = vmul.f32 %v8037, %v8076
      %v8112 = vmul.f32 %v8072, %v8076
      %v8113 = vadd.f32 %v7965, %v8077
      %v8114 = vadd.f32 %v7966, %v8078
      %v8115 = vadd.f32 %v7967, %v8079
      %v8116 = vadd.f32 %v7968, %v8080
      %v8117 = vadd.f32 %v7969, %v8081
      %v8118 = vadd.f32 %v7970, %v8082
      %v8119 = vadd.f32 %v7971, %v8083
      %v8120 = vadd.f32 %v7972, %v8084
      %v8121 = vadd.f32 %v7973, %v8085
      %v8122 = vadd.f32 %v7974, %v8086
      %v8123 = vadd.f32 %v7975, %v8087
      %v8124 = vadd.f32 %v7976, %v8088
      %v8125 = vadd.f32 %v7977, %v8089
      %v8126 = vadd.f32 %v7978, %v8090
      %v8127 = vadd.f32 %v7979, %v8091
      %v8128 = vadd.f32 %v7980, %v8092
      %v8129 = vadd.f32 %v7981, %v8093
      %v8130 = vadd.f32 %v7982, %v8094
      %v8131 = vadd.f32 %v7983, %v8095
      %v8132 = vadd.f32 %v7984, %v8096
      %v8133 = vadd.f32 %v7985, %v8097
      %v8134 = vadd.f32 %v7986, %v8098
      %v8135 = vadd.f32 %v7987, %v8099
      %v8136 = vadd.f32 %v7988, %v8100
      %v8137 = vadd.f32 %v7989, %v8101
      %v8138 = vadd.f32 %v7990, %v8102
      %v8139 = vadd.f32 %v7991, %v8103
      %v8140 = vadd.f32 %v7992, %v8104
      %v8141 = vadd.f32 %v7993, %v8105
      %v8142 = vadd.f32 %v7994, %v8106
      %v8143 = vadd.f32 %v7995, %v8107
      %v8144 = vadd.f32 %v7996, %v8108
      %v8145 = vadd.f32 %v7997, %v8109
      %v8146 = vadd.f32 %v7998, %v8110
      %v8147 = vadd.f32 %v7999, %v8111
      %v8148 = vadd.f32 %v8000, %v8112
      %v8149 = vrot.slane %v7331, 3
      %v8150 = vrot.slane %v7332, 3
      %v8151 = vrot.slane %v7333, 3
      %v8152 = vrot.slane %v7334, 3
      %v8153 = vrot.slane %v7335, 3
      %v8154 = vrot.slane %v7336, 3
      %v8155 = vrot.slane %v7337, 3
      %v8156 = vrot.slane %v7338, 3
      %v8157 = vrot.slane %v7339, 3
      %v8158 = vrot.slane %v7340, 3
      %v8159 = vrot.slane %v7341, 3
      %v8160 = vrot.slane %v7342, 3
      %v8161 = vrot.slane %v7343, 3
      %v8162 = vrot.slane %v7344, 3
      %v8163 = vrot.slane %v7345, 3
      %v8164 = vrot.slane %v7346, 3
      %v8165 = vrot.slane %v7347, 3
      %v8166 = vrot.slane %v7348, 3
      %v8167 = vrot.slane %v7349, 3
      %v8168 = vrot.slane %v7350, 3
      %v8169 = vrot.slane %v7351, 3
      %v8170 = vrot.slane %v7352, 3
      %v8171 = vrot.slane %v7353, 3
      %v8172 = vrot.slane %v7354, 3
      %v8173 = vrot.slane %v7355, 3
      %v8174 = vrot.slane %v7356, 3
      %v8175 = vrot.slane %v7357, 3
      %v8176 = vrot.slane %v7358, 3
      %v8177 = vrot.slane %v7359, 3
      %v8178 = vrot.slane %v7360, 3
      %v8179 = vrot.slane %v7361, 3
      %v8180 = vrot.slane %v7362, 3
      %v8181 = vrot.slane %v7363, 3
      %v8182 = vrot.slane %v7364, 3
      %v8183 = vrot.slane %v7365, 3
      %v8184 = vrot.slane %v7366, 3
      %v8185 = vsel %vm2839, %v8183, %v8184
      %v8186 = vsel %vm2839, %v8182, %v8183
      %v8187 = vsel %vm2839, %v8181, %v8182
      %v8188 = vsel %vm2839, %v8180, %v8181
      %v8189 = vsel %vm2839, %v8179, %v8180
      %v8190 = vsel %vm2839, %v8178, %v8179
      %v8191 = vsel %vm2839, %v8177, %v8178
      %v8192 = vsel %vm2839, %v8176, %v8177
      %v8193 = vsel %vm2839, %v8175, %v8176
      %v8194 = vsel %vm2839, %v8174, %v8175
      %v8195 = vsel %vm2839, %v8173, %v8174
      %v8196 = vsel %vm2839, %v8172, %v8173
      %v8197 = vsel %vm2839, %v8171, %v8172
      %v8198 = vsel %vm2839, %v8170, %v8171
      %v8199 = vsel %vm2839, %v8169, %v8170
      %v8200 = vsel %vm2839, %v8168, %v8169
      %v8201 = vsel %vm2839, %v8167, %v8168
      %v8202 = vsel %vm2839, %v8166, %v8167
      %v8203 = vsel %vm2839, %v8165, %v8166
      %v8204 = vsel %vm2839, %v8164, %v8165
      %v8205 = vsel %vm2839, %v8163, %v8164
      %v8206 = vsel %vm2839, %v8162, %v8163
      %v8207 = vsel %vm2839, %v8161, %v8162
      %v8208 = vsel %vm2839, %v8160, %v8161
      %v8209 = vsel %vm2839, %v8159, %v8160
      %v8210 = vsel %vm2839, %v8158, %v8159
      %v8211 = vsel %vm2839, %v8157, %v8158
      %v8212 = vsel %vm2839, %v8156, %v8157
      %v8213 = vsel %vm2839, %v8155, %v8156
      %v8214 = vsel %vm2839, %v8154, %v8155
      %v8215 = vsel %vm2839, %v8153, %v8154
      %v8216 = vsel %vm2839, %v8152, %v8153
      %v8217 = vsel %vm2839, %v8151, %v8152
      %v8218 = vsel %vm2839, %v8150, %v8151
      %v8219 = vsel %vm2839, %v8149, %v8150
      %v8220 = vsel %vm2839, %v8184, %v8149
      %v8221 = vlaneseq
      %v8222 = vshrl.u32 %v8221, 7
      %v8223 = vsub.s32 6, %v8222
      %v8224 = vrot.slane %v7368, %v8223
      %v8225 = vmul.f32 %v8219, %v8224
      %v8226 = vmul.f32 %v8218, %v8224
      %v8227 = vmul.f32 %v8217, %v8224
      %v8228 = vmul.f32 %v8216, %v8224
      %v8229 = vmul.f32 %v8215, %v8224
      %v8230 = vmul.f32 %v8214, %v8224
      %v8231 = vmul.f32 %v8213, %v8224
      %v8232 = vmul.f32 %v8212, %v8224
      %v8233 = vmul.f32 %v8211, %v8224
      %v8234 = vmul.f32 %v8210, %v8224
      %v8235 = vmul.f32 %v8209, %v8224
      %v8236 = vmul.f32 %v8208, %v8224
      %v8237 = vmul.f32 %v8207, %v8224
      %v8238 = vmul.f32 %v8206, %v8224
      %v8239 = vmul.f32 %v8205, %v8224
      %v8240 = vmul.f32 %v8204, %v8224
      %v8241 = vmul.f32 %v8203, %v8224
      %v8242 = vmul.f32 %v8202, %v8224
      %v8243 = vmul.f32 %v8201, %v8224
      %v8244 = vmul.f32 %v8200, %v8224
      %v8245 = vmul.f32 %v8199, %v8224
      %v8246 = vmul.f32 %v8198, %v8224
      %v8247 = vmul.f32 %v8197, %v8224
      %v8248 = vmul.f32 %v8196, %v8224
      %v8249 = vmul.f32 %v8195, %v8224
      %v8250 = vmul.f32 %v8194, %v8224
      %v8251 = vmul.f32 %v8193, %v8224
      %v8252 = vmul.f32 %v8192, %v8224
      %v8253 = vmul.f32 %v8191, %v8224
      %v8254 = vmul.f32 %v8190, %v8224
      %v8255 = vmul.f32 %v8189, %v8224
      %v8256 = vmul.f32 %v8188, %v8224
      %v8257 = vmul.f32 %v8187, %v8224
      %v8258 = vmul.f32 %v8186, %v8224
      %v8259 = vmul.f32 %v8185, %v8224
      %v8260 = vmul.f32 %v8220, %v8224
      %v8261 = vadd.f32 %v8113, %v8225
      %v8262 = vadd.f32 %v8114, %v8226
      %v8263 = vadd.f32 %v8115, %v8227
      %v8264 = vadd.f32 %v8116, %v8228
      %v8265 = vadd.f32 %v8117, %v8229
      %v8266 = vadd.f32 %v8118, %v8230
      %v8267 = vadd.f32 %v8119, %v8231
      %v8268 = vadd.f32 %v8120, %v8232
      %v8269 = vadd.f32 %v8121, %v8233
      %v8270 = vadd.f32 %v8122, %v8234
      %v8271 = vadd.f32 %v8123, %v8235
      %v8272 = vadd.f32 %v8124, %v8236
      %v8273 = vadd.f32 %v8125, %v8237
      %v8274 = vadd.f32 %v8126, %v8238
      %v8275 = vadd.f32 %v8127, %v8239
      %v8276 = vadd.f32 %v8128, %v8240
      %v8277 = vadd.f32 %v8129, %v8241
      %v8278 = vadd.f32 %v8130, %v8242
      %v8279 = vadd.f32 %v8131, %v8243
      %v8280 = vadd.f32 %v8132, %v8244
      %v8281 = vadd.f32 %v8133, %v8245
      %v8282 = vadd.f32 %v8134, %v8246
      %v8283 = vadd.f32 %v8135, %v8247
      %v8284 = vadd.f32 %v8136, %v8248
      %v8285 = vadd.f32 %v8137, %v8249
      %v8286 = vadd.f32 %v8138, %v8250
      %v8287 = vadd.f32 %v8139, %v8251
      %v8288 = vadd.f32 %v8140, %v8252
      %v8289 = vadd.f32 %v8141, %v8253
      %v8290 = vadd.f32 %v8142, %v8254
      %v8291 = vadd.f32 %v8143, %v8255
      %v8292 = vadd.f32 %v8144, %v8256
      %v8293 = vadd.f32 %v8145, %v8257
      %v8294 = vadd.f32 %v8146, %v8258
      %v8295 = vadd.f32 %v8147, %v8259
      %v8296 = vadd.f32 %v8148, %v8260
      %s8297 = scalar_lea.vmem %s7, 2
      %v8298 = vld [vmem:[%s8297] sm:$0x1]
      %v8300 = vlaneseq
      %v8301 = vshrl.u32 %v8300, 7
      %v8302 = vsub.s32 0, %v8301
      %v8303 = vrot.slane %v8298, %v8302
      %v8305 = vadd.f32 %v8261, %v8303
      %v8306 = vadd.f32 %v8262, %v8303
      %v8307 = vadd.f32 %v8263, %v8303
      %v8308 = vadd.f32 %v8264, %v8303
      %v8309 = vadd.f32 %v8265, %v8303
      %v8310 = vadd.f32 %v8266, %v8303
      %v8311 = vadd.f32 %v8267, %v8303
      %v8312 = vadd.f32 %v8268, %v8303
      %v8313 = vadd.f32 %v8269, %v8303
      %v8314 = vadd.f32 %v8270, %v8303
      %v8315 = vadd.f32 %v8271, %v8303
      %v8316 = vadd.f32 %v8272, %v8303
      %v8317 = vadd.f32 %v8273, %v8303
      %v8318 = vadd.f32 %v8274, %v8303
      %v8319 = vadd.f32 %v8275, %v8303
      %v8320 = vadd.f32 %v8276, %v8303
      %v8321 = vadd.f32 %v8277, %v8303
      %v8322 = vadd.f32 %v8278, %v8303
      %v8323 = vadd.f32 %v8279, %v8303
      %v8324 = vadd.f32 %v8280, %v8303
      %v8325 = vadd.f32 %v8281, %v8303
      %v8326 = vadd.f32 %v8282, %v8303
      %v8327 = vadd.f32 %v8283, %v8303
      %v8328 = vadd.f32 %v8284, %v8303
      %v8329 = vadd.f32 %v8285, %v8303
      %v8330 = vadd.f32 %v8286, %v8303
      %v8331 = vadd.f32 %v8287, %v8303
      %v8332 = vadd.f32 %v8288, %v8303
      %v8333 = vadd.f32 %v8289, %v8303
      %v8334 = vadd.f32 %v8290, %v8303
      %v8335 = vadd.f32 %v8291, %v8303
      %v8336 = vadd.f32 %v8292, %v8303
      %v8337 = vadd.f32 %v8293, %v8303
      %v8338 = vadd.f32 %v8294, %v8303
      %v8339 = vadd.f32 %v8295, %v8303
      %v8340 = vadd.f32 %v8296, %v8303
      %s8341 = scalar_lea.vmem %s8, 2
      %v8342 = vld [vmem:[%s8341] sm:$0x1]
      %s8343 = scalar_lea.vmem %s9, 2
      %v8344 = vld [vmem:[%s8343] sm:$0x1]
      %v8345 = vsel %vm1241, %v8305, 0.0
      %8346 = vadd.xlane.f32.xlu0 %v8345
      %v8347 = vpop.xlane.xlu0 %8346
      %v8348 = vsel %vm1241, %v8306, 0.0
      %8349 = vadd.xlane.f32.xlu0 %v8348
      %v8350 = vpop.xlane.xlu0 %8349
      %v8351 = vsel %vm1241, %v8307, 0.0
      %8352 = vadd.xlane.f32.xlu0 %v8351
      %v8353 = vpop.xlane.xlu0 %8352
      %v8354 = vsel %vm1241, %v8308, 0.0
      %8355 = vadd.xlane.f32.xlu0 %v8354
      %v8356 = vpop.xlane.xlu0 %8355
      %v8357 = vsel %vm1241, %v8309, 0.0
      %8358 = vadd.xlane.f32.xlu0 %v8357
      %v8359 = vpop.xlane.xlu0 %8358
      %v8360 = vsel %vm1241, %v8310, 0.0
      %8361 = vadd.xlane.f32.xlu0 %v8360
      %v8362 = vpop.xlane.xlu0 %8361
      %v8363 = vsel %vm1241, %v8311, 0.0
      %8364 = vadd.xlane.f32.xlu0 %v8363
      %v8365 = vpop.xlane.xlu0 %8364
      %v8366 = vsel %vm1241, %v8312, 0.0
      %8367 = vadd.xlane.f32.xlu0 %v8366
      %v8368 = vpop.xlane.xlu0 %8367
      %v8369 = vsel %vm1241, %v8313, 0.0
      %8370 = vadd.xlane.f32.xlu0 %v8369
      %v8371 = vpop.xlane.xlu0 %8370
      %v8372 = vsel %vm1241, %v8314, 0.0
      %8373 = vadd.xlane.f32.xlu0 %v8372
      %v8374 = vpop.xlane.xlu0 %8373
      %v8375 = vsel %vm1241, %v8315, 0.0
      %8376 = vadd.xlane.f32.xlu0 %v8375
      %v8377 = vpop.xlane.xlu0 %8376
      %v8378 = vsel %vm1241, %v8316, 0.0
      %8379 = vadd.xlane.f32.xlu0 %v8378
      %v8380 = vpop.xlane.xlu0 %8379
      %v8381 = vsel %vm1241, %v8317, 0.0
      %8382 = vadd.xlane.f32.xlu0 %v8381
      %v8383 = vpop.xlane.xlu0 %8382
      %v8384 = vsel %vm1241, %v8318, 0.0
      %8385 = vadd.xlane.f32.xlu0 %v8384
      %v8386 = vpop.xlane.xlu0 %8385
      %v8387 = vsel %vm1241, %v8319, 0.0
      %8388 = vadd.xlane.f32.xlu0 %v8387
      %v8389 = vpop.xlane.xlu0 %8388
      %v8390 = vsel %vm1241, %v8320, 0.0
      %8391 = vadd.xlane.f32.xlu0 %v8390
      %v8392 = vpop.xlane.xlu0 %8391
      %v8393 = vsel %vm1241, %v8321, 0.0
      %8394 = vadd.xlane.f32.xlu0 %v8393
      %v8395 = vpop.xlane.xlu0 %8394
      %v8396 = vsel %vm1241, %v8322, 0.0
      %8397 = vadd.xlane.f32.xlu0 %v8396
      %v8398 = vpop.xlane.xlu0 %8397
      %v8399 = vsel %vm1241, %v8323, 0.0
      %8400 = vadd.xlane.f32.xlu0 %v8399
      %v8401 = vpop.xlane.xlu0 %8400
      %v8402 = vsel %vm1241, %v8324, 0.0
      %8403 = vadd.xlane.f32.xlu0 %v8402
      %v8404 = vpop.xlane.xlu0 %8403
      %v8405 = vsel %vm1241, %v8325, 0.0
      %8406 = vadd.xlane.f32.xlu0 %v8405
      %v8407 = vpop.xlane.xlu0 %8406
      %v8408 = vsel %vm1241, %v8326, 0.0
      %8409 = vadd.xlane.f32.xlu0 %v8408
      %v8410 = vpop.xlane.xlu0 %8409
      %v8411 = vsel %vm1241, %v8327, 0.0
      %8412 = vadd.xlane.f32.xlu0 %v8411
      %v8413 = vpop.xlane.xlu0 %8412
      %v8414 = vsel %vm1241, %v8328, 0.0
      %8415 = vadd.xlane.f32.xlu0 %v8414
      %v8416 = vpop.xlane.xlu0 %8415
      %v8417 = vsel %vm1241, %v8329, 0.0
      %8418 = vadd.xlane.f32.xlu0 %v8417
      %v8419 = vpop.xlane.xlu0 %8418
      %v8420 = vsel %vm1241, %v8330, 0.0
      %8421 = vadd.xlane.f32.xlu0 %v8420
      %v8422 = vpop.xlane.xlu0 %8421
      %v8423 = vsel %vm1241, %v8331, 0.0
      %8424 = vadd.xlane.f32.xlu0 %v8423
      %v8425 = vpop.xlane.xlu0 %8424
      %v8426 = vsel %vm1241, %v8332, 0.0
      %8427 = vadd.xlane.f32.xlu0 %v8426
      %v8428 = vpop.xlane.xlu0 %8427
      %v8429 = vsel %vm1241, %v8333, 0.0
      %8430 = vadd.xlane.f32.xlu0 %v8429
      %v8431 = vpop.xlane.xlu0 %8430
      %v8432 = vsel %vm1241, %v8334, 0.0
      %8433 = vadd.xlane.f32.xlu0 %v8432
      %v8434 = vpop.xlane.xlu0 %8433
      %v8435 = vsel %vm1241, %v8335, 0.0
      %8436 = vadd.xlane.f32.xlu0 %v8435
      %v8437 = vpop.xlane.xlu0 %8436
      %v8438 = vsel %vm1241, %v8336, 0.0
      %8439 = vadd.xlane.f32.xlu0 %v8438
      %v8440 = vpop.xlane.xlu0 %8439
      %v8441 = vsel %vm1241, %v8337, 0.0
      %8442 = vadd.xlane.f32.xlu0 %v8441
      %v8443 = vpop.xlane.xlu0 %8442
      %v8444 = vsel %vm1241, %v8338, 0.0
      %8445 = vadd.xlane.f32.xlu0 %v8444
      %v8446 = vpop.xlane.xlu0 %8445
      %v8447 = vsel %vm1241, %v8339, 0.0
      %8448 = vadd.xlane.f32.xlu0 %v8447
      %v8449 = vpop.xlane.xlu0 %8448
      %v8450 = vsel %vm1241, %v8340, 0.0
      %8451 = vadd.xlane.f32.xlu0 %v8450
      %v8452 = vpop.xlane.xlu0 %8451
      %v8453 = vmul.f32 %v8347, %v1350
      %v8454 = vmul.f32 %v8350, %v1350
      %v8455 = vmul.f32 %v8353, %v1350
      %v8456 = vmul.f32 %v8356, %v1350
      %v8457 = vmul.f32 %v8359, %v1350
      %v8458 = vmul.f32 %v8362, %v1350
      %v8459 = vmul.f32 %v8365, %v1350
      %v8460 = vmul.f32 %v8368, %v1350
      %v8461 = vmul.f32 %v8371, %v1350
      %v8462 = vmul.f32 %v8374, %v1350
      %v8463 = vmul.f32 %v8377, %v1350
      %v8464 = vmul.f32 %v8380, %v1350
      %v8465 = vmul.f32 %v8383, %v1350
      %v8466 = vmul.f32 %v8386, %v1350
      %v8467 = vmul.f32 %v8389, %v1350
      %v8468 = vmul.f32 %v8392, %v1350
      %v8469 = vmul.f32 %v8395, %v1350
      %v8470 = vmul.f32 %v8398, %v1350
      %v8471 = vmul.f32 %v8401, %v1350
      %v8472 = vmul.f32 %v8404, %v1350
      %v8473 = vmul.f32 %v8407, %v1350
      %v8474 = vmul.f32 %v8410, %v1350
      %v8475 = vmul.f32 %v8413, %v1350
      %v8476 = vmul.f32 %v8416, %v1350
      %v8477 = vmul.f32 %v8419, %v1350
      %v8478 = vmul.f32 %v8422, %v1350
      %v8479 = vmul.f32 %v8425, %v1350
      %v8480 = vmul.f32 %v8428, %v1350
      %v8481 = vmul.f32 %v8431, %v1350
      %v8482 = vmul.f32 %v8434, %v1350
      %v8483 = vmul.f32 %v8437, %v1350
      %v8484 = vmul.f32 %v8440, %v1350
      %v8485 = vmul.f32 %v8443, %v1350
      %v8486 = vmul.f32 %v8446, %v1350
      %v8487 = vmul.f32 %v8449, %v1350
      %v8488 = vmul.f32 %v8452, %v1350
      %v8489 = vmul.f32 %v8305, %v8305
      %v8490 = vmul.f32 %v8306, %v8306
      %v8491 = vmul.f32 %v8307, %v8307
      %v8492 = vmul.f32 %v8308, %v8308
      %v8493 = vmul.f32 %v8309, %v8309
      %v8494 = vmul.f32 %v8310, %v8310
      %v8495 = vmul.f32 %v8311, %v8311
      %v8496 = vmul.f32 %v8312, %v8312
      %v8497 = vmul.f32 %v8313, %v8313
      %v8498 = vmul.f32 %v8314, %v8314
      %v8499 = vmul.f32 %v8315, %v8315
      %v8500 = vmul.f32 %v8316, %v8316
      %v8501 = vmul.f32 %v8317, %v8317
      %v8502 = vmul.f32 %v8318, %v8318
      %v8503 = vmul.f32 %v8319, %v8319
      %v8504 = vmul.f32 %v8320, %v8320
      %v8505 = vmul.f32 %v8321, %v8321
      %v8506 = vmul.f32 %v8322, %v8322
      %v8507 = vmul.f32 %v8323, %v8323
      %v8508 = vmul.f32 %v8324, %v8324
      %v8509 = vmul.f32 %v8325, %v8325
      %v8510 = vmul.f32 %v8326, %v8326
      %v8511 = vmul.f32 %v8327, %v8327
      %v8512 = vmul.f32 %v8328, %v8328
      %v8513 = vmul.f32 %v8329, %v8329
      %v8514 = vmul.f32 %v8330, %v8330
      %v8515 = vmul.f32 %v8331, %v8331
      %v8516 = vmul.f32 %v8332, %v8332
      %v8517 = vmul.f32 %v8333, %v8333
      %v8518 = vmul.f32 %v8334, %v8334
      %v8519 = vmul.f32 %v8335, %v8335
      %v8520 = vmul.f32 %v8336, %v8336
      %v8521 = vmul.f32 %v8337, %v8337
      %v8522 = vmul.f32 %v8338, %v8338
      %v8523 = vmul.f32 %v8339, %v8339
      %v8524 = vmul.f32 %v8340, %v8340
      %v8525 = vsel %vm1241, %v8489, 0.0
      %8526 = vadd.xlane.f32.xlu0 %v8525
      %v8527 = vpop.xlane.xlu0 %8526
      %v8528 = vsel %vm1241, %v8490, 0.0
      %8529 = vadd.xlane.f32.xlu0 %v8528
      %v8530 = vpop.xlane.xlu0 %8529
      %v8531 = vsel %vm1241, %v8491, 0.0
      %8532 = vadd.xlane.f32.xlu0 %v8531
      %v8533 = vpop.xlane.xlu0 %8532
      %v8534 = vsel %vm1241, %v8492, 0.0
      %8535 = vadd.xlane.f32.xlu0 %v8534
      %v8536 = vpop.xlane.xlu0 %8535
      %v8537 = vsel %vm1241, %v8493, 0.0
      %8538 = vadd.xlane.f32.xlu0 %v8537
      %v8539 = vpop.xlane.xlu0 %8538
      %v8540 = vsel %vm1241, %v8494, 0.0
      %8541 = vadd.xlane.f32.xlu0 %v8540
      %v8542 = vpop.xlane.xlu0 %8541
      %v8543 = vsel %vm1241, %v8495, 0.0
      %8544 = vadd.xlane.f32.xlu0 %v8543
      %v8545 = vpop.xlane.xlu0 %8544
      %v8546 = vsel %vm1241, %v8496, 0.0
      %8547 = vadd.xlane.f32.xlu0 %v8546
      %v8548 = vpop.xlane.xlu0 %8547
      %v8549 = vsel %vm1241, %v8497, 0.0
      %8550 = vadd.xlane.f32.xlu0 %v8549
      %v8551 = vpop.xlane.xlu0 %8550
      %v8552 = vsel %vm1241, %v8498, 0.0
      %8553 = vadd.xlane.f32.xlu0 %v8552
      %v8554 = vpop.xlane.xlu0 %8553
      %v8555 = vsel %vm1241, %v8499, 0.0
      %8556 = vadd.xlane.f32.xlu0 %v8555
      %v8557 = vpop.xlane.xlu0 %8556
      %v8558 = vsel %vm1241, %v8500, 0.0
      %8559 = vadd.xlane.f32.xlu0 %v8558
      %v8560 = vpop.xlane.xlu0 %8559
      %v8561 = vsel %vm1241, %v8501, 0.0
      %8562 = vadd.xlane.f32.xlu0 %v8561
      %v8563 = vpop.xlane.xlu0 %8562
      %v8564 = vsel %vm1241, %v8502, 0.0
      %8565 = vadd.xlane.f32.xlu0 %v8564
      %v8566 = vpop.xlane.xlu0 %8565
      %v8567 = vsel %vm1241, %v8503, 0.0
      %8568 = vadd.xlane.f32.xlu0 %v8567
      %v8569 = vpop.xlane.xlu0 %8568
      %v8570 = vsel %vm1241, %v8504, 0.0
      %8571 = vadd.xlane.f32.xlu0 %v8570
      %v8572 = vpop.xlane.xlu0 %8571
      %v8573 = vsel %vm1241, %v8505, 0.0
      %8574 = vadd.xlane.f32.xlu0 %v8573
      %v8575 = vpop.xlane.xlu0 %8574
      %v8576 = vsel %vm1241, %v8506, 0.0
      %8577 = vadd.xlane.f32.xlu0 %v8576
      %v8578 = vpop.xlane.xlu0 %8577
      %v8579 = vsel %vm1241, %v8507, 0.0
      %8580 = vadd.xlane.f32.xlu0 %v8579
      %v8581 = vpop.xlane.xlu0 %8580
      %v8582 = vsel %vm1241, %v8508, 0.0
      %8583 = vadd.xlane.f32.xlu0 %v8582
      %v8584 = vpop.xlane.xlu0 %8583
      %v8585 = vsel %vm1241, %v8509, 0.0
      %8586 = vadd.xlane.f32.xlu0 %v8585
      %v8587 = vpop.xlane.xlu0 %8586
      %v8588 = vsel %vm1241, %v8510, 0.0
      %8589 = vadd.xlane.f32.xlu0 %v8588
      %v8590 = vpop.xlane.xlu0 %8589
      %v8591 = vsel %vm1241, %v8511, 0.0
      %8592 = vadd.xlane.f32.xlu0 %v8591
      %v8593 = vpop.xlane.xlu0 %8592
      %v8594 = vsel %vm1241, %v8512, 0.0
      %8595 = vadd.xlane.f32.xlu0 %v8594
      %v8596 = vpop.xlane.xlu0 %8595
      %v8597 = vsel %vm1241, %v8513, 0.0
      %8598 = vadd.xlane.f32.xlu0 %v8597
      %v8599 = vpop.xlane.xlu0 %8598
      %v8600 = vsel %vm1241, %v8514, 0.0
      %8601 = vadd.xlane.f32.xlu0 %v8600
      %v8602 = vpop.xlane.xlu0 %8601
      %v8603 = vsel %vm1241, %v8515, 0.0
      %8604 = vadd.xlane.f32.xlu0 %v8603
      %v8605 = vpop.xlane.xlu0 %8604
      %v8606 = vsel %vm1241, %v8516, 0.0
      %8607 = vadd.xlane.f32.xlu0 %v8606
      %v8608 = vpop.xlane.xlu0 %8607
      %v8609 = vsel %vm1241, %v8517, 0.0
      %8610 = vadd.xlane.f32.xlu0 %v8609
      %v8611 = vpop.xlane.xlu0 %8610
      %v8612 = vsel %vm1241, %v8518, 0.0
      %8613 = vadd.xlane.f32.xlu0 %v8612
      %v8614 = vpop.xlane.xlu0 %8613
      %v8615 = vsel %vm1241, %v8519, 0.0
      %8616 = vadd.xlane.f32.xlu0 %v8615
      %v8617 = vpop.xlane.xlu0 %8616
      %v8618 = vsel %vm1241, %v8520, 0.0
      %8619 = vadd.xlane.f32.xlu0 %v8618
      %v8620 = vpop.xlane.xlu0 %8619
      %v8621 = vsel %vm1241, %v8521, 0.0
      %8622 = vadd.xlane.f32.xlu0 %v8621
      %v8623 = vpop.xlane.xlu0 %8622
      %v8624 = vsel %vm1241, %v8522, 0.0
      %8625 = vadd.xlane.f32.xlu0 %v8624
      %v8626 = vpop.xlane.xlu0 %8625
      %v8627 = vsel %vm1241, %v8523, 0.0
      %8628 = vadd.xlane.f32.xlu0 %v8627
      %v8629 = vpop.xlane.xlu0 %8628
      %v8630 = vsel %vm1241, %v8524, 0.0
      %8631 = vadd.xlane.f32.xlu0 %v8630
      %v8632 = vpop.xlane.xlu0 %8631
      %v8633 = vmul.f32 %v8527, %v1350
      %v8634 = vmul.f32 %v8530, %v1350
      %v8635 = vmul.f32 %v8533, %v1350
      %v8636 = vmul.f32 %v8536, %v1350
      %v8637 = vmul.f32 %v8539, %v1350
      %v8638 = vmul.f32 %v8542, %v1350
      %v8639 = vmul.f32 %v8545, %v1350
      %v8640 = vmul.f32 %v8548, %v1350
      %v8641 = vmul.f32 %v8551, %v1350
      %v8642 = vmul.f32 %v8554, %v1350
      %v8643 = vmul.f32 %v8557, %v1350
      %v8644 = vmul.f32 %v8560, %v1350
      %v8645 = vmul.f32 %v8563, %v1350
      %v8646 = vmul.f32 %v8566, %v1350
      %v8647 = vmul.f32 %v8569, %v1350
      %v8648 = vmul.f32 %v8572, %v1350
      %v8649 = vmul.f32 %v8575, %v1350
      %v8650 = vmul.f32 %v8578, %v1350
      %v8651 = vmul.f32 %v8581, %v1350
      %v8652 = vmul.f32 %v8584, %v1350
      %v8653 = vmul.f32 %v8587, %v1350
      %v8654 = vmul.f32 %v8590, %v1350
      %v8655 = vmul.f32 %v8593, %v1350
      %v8656 = vmul.f32 %v8596, %v1350
      %v8657 = vmul.f32 %v8599, %v1350
      %v8658 = vmul.f32 %v8602, %v1350
      %v8659 = vmul.f32 %v8605, %v1350
      %v8660 = vmul.f32 %v8608, %v1350
      %v8661 = vmul.f32 %v8611, %v1350
      %v8662 = vmul.f32 %v8614, %v1350
      %v8663 = vmul.f32 %v8617, %v1350
      %v8664 = vmul.f32 %v8620, %v1350
      %v8665 = vmul.f32 %v8623, %v1350
      %v8666 = vmul.f32 %v8626, %v1350
      %v8667 = vmul.f32 %v8629, %v1350
      %v8668 = vmul.f32 %v8632, %v1350
      %v8669 = vmul.f32 %v8453, %v8453
      %v8670 = vmul.f32 %v8454, %v8454
      %v8671 = vmul.f32 %v8455, %v8455
      %v8672 = vmul.f32 %v8456, %v8456
      %v8673 = vmul.f32 %v8457, %v8457
      %v8674 = vmul.f32 %v8458, %v8458
      %v8675 = vmul.f32 %v8459, %v8459
      %v8676 = vmul.f32 %v8460, %v8460
      %v8677 = vmul.f32 %v8461, %v8461
      %v8678 = vmul.f32 %v8462, %v8462
      %v8679 = vmul.f32 %v8463, %v8463
      %v8680 = vmul.f32 %v8464, %v8464
      %v8681 = vmul.f32 %v8465, %v8465
      %v8682 = vmul.f32 %v8466, %v8466
      %v8683 = vmul.f32 %v8467, %v8467
      %v8684 = vmul.f32 %v8468, %v8468
      %v8685 = vmul.f32 %v8469, %v8469
      %v8686 = vmul.f32 %v8470, %v8470
      %v8687 = vmul.f32 %v8471, %v8471
      %v8688 = vmul.f32 %v8472, %v8472
      %v8689 = vmul.f32 %v8473, %v8473
      %v8690 = vmul.f32 %v8474, %v8474
      %v8691 = vmul.f32 %v8475, %v8475
      %v8692 = vmul.f32 %v8476, %v8476
      %v8693 = vmul.f32 %v8477, %v8477
      %v8694 = vmul.f32 %v8478, %v8478
      %v8695 = vmul.f32 %v8479, %v8479
      %v8696 = vmul.f32 %v8480, %v8480
      %v8697 = vmul.f32 %v8481, %v8481
      %v8698 = vmul.f32 %v8482, %v8482
      %v8699 = vmul.f32 %v8483, %v8483
      %v8700 = vmul.f32 %v8484, %v8484
      %v8701 = vmul.f32 %v8485, %v8485
      %v8702 = vmul.f32 %v8486, %v8486
      %v8703 = vmul.f32 %v8487, %v8487
      %v8704 = vmul.f32 %v8488, %v8488
      %v8705 = vsub.f32 %v8633, %v8669
      %v8706 = vsub.f32 %v8634, %v8670
      %v8707 = vsub.f32 %v8635, %v8671
      %v8708 = vsub.f32 %v8636, %v8672
      %v8709 = vsub.f32 %v8637, %v8673
      %v8710 = vsub.f32 %v8638, %v8674
      %v8711 = vsub.f32 %v8639, %v8675
      %v8712 = vsub.f32 %v8640, %v8676
      %v8713 = vsub.f32 %v8641, %v8677
      %v8714 = vsub.f32 %v8642, %v8678
      %v8715 = vsub.f32 %v8643, %v8679
      %v8716 = vsub.f32 %v8644, %v8680
      %v8717 = vsub.f32 %v8645, %v8681
      %v8718 = vsub.f32 %v8646, %v8682
      %v8719 = vsub.f32 %v8647, %v8683
      %v8720 = vsub.f32 %v8648, %v8684
      %v8721 = vsub.f32 %v8649, %v8685
      %v8722 = vsub.f32 %v8650, %v8686
      %v8723 = vsub.f32 %v8651, %v8687
      %v8724 = vsub.f32 %v8652, %v8688
      %v8725 = vsub.f32 %v8653, %v8689
      %v8726 = vsub.f32 %v8654, %v8690
      %v8727 = vsub.f32 %v8655, %v8691
      %v8728 = vsub.f32 %v8656, %v8692
      %v8729 = vsub.f32 %v8657, %v8693
      %v8730 = vsub.f32 %v8658, %v8694
      %v8731 = vsub.f32 %v8659, %v8695
      %v8732 = vsub.f32 %v8660, %v8696
      %v8733 = vsub.f32 %v8661, %v8697
      %v8734 = vsub.f32 %v8662, %v8698
      %v8735 = vsub.f32 %v8663, %v8699
      %v8736 = vsub.f32 %v8664, %v8700
      %v8737 = vsub.f32 %v8665, %v8701
      %v8738 = vsub.f32 %v8666, %v8702
      %v8739 = vsub.f32 %v8667, %v8703
      %v8740 = vsub.f32 %v8668, %v8704
      %v8741 = vmax.f32 %v8705, 0.0
      %v8742 = vmax.f32 %v8706, 0.0
      %v8743 = vmax.f32 %v8707, 0.0
      %v8744 = vmax.f32 %v8708, 0.0
      %v8745 = vmax.f32 %v8709, 0.0
      %v8746 = vmax.f32 %v8710, 0.0
      %v8747 = vmax.f32 %v8711, 0.0
      %v8748 = vmax.f32 %v8712, 0.0
      %v8749 = vmax.f32 %v8713, 0.0
      %v8750 = vmax.f32 %v8714, 0.0
      %v8751 = vmax.f32 %v8715, 0.0
      %v8752 = vmax.f32 %v8716, 0.0
      %v8753 = vmax.f32 %v8717, 0.0
      %v8754 = vmax.f32 %v8718, 0.0
      %v8755 = vmax.f32 %v8719, 0.0
      %v8756 = vmax.f32 %v8720, 0.0
      %v8757 = vmax.f32 %v8721, 0.0
      %v8758 = vmax.f32 %v8722, 0.0
      %v8759 = vmax.f32 %v8723, 0.0
      %v8760 = vmax.f32 %v8724, 0.0
      %v8761 = vmax.f32 %v8725, 0.0
      %v8762 = vmax.f32 %v8726, 0.0
      %v8763 = vmax.f32 %v8727, 0.0
      %v8764 = vmax.f32 %v8728, 0.0
      %v8765 = vmax.f32 %v8729, 0.0
      %v8766 = vmax.f32 %v8730, 0.0
      %v8767 = vmax.f32 %v8731, 0.0
      %v8768 = vmax.f32 %v8732, 0.0
      %v8769 = vmax.f32 %v8733, 0.0
      %v8770 = vmax.f32 %v8734, 0.0
      %v8771 = vmax.f32 %v8735, 0.0
      %v8772 = vmax.f32 %v8736, 0.0
      %v8773 = vmax.f32 %v8737, 0.0
      %v8774 = vmax.f32 %v8738, 0.0
      %v8775 = vmax.f32 %v8739, 0.0
      %v8776 = vmax.f32 %v8740, 0.0
      %v8777 = vsub.f32 %v8305, %v8453
      %v8778 = vsub.f32 %v8306, %v8454
      %v8779 = vsub.f32 %v8307, %v8455
      %v8780 = vsub.f32 %v8308, %v8456
      %v8781 = vsub.f32 %v8309, %v8457
      %v8782 = vsub.f32 %v8310, %v8458
      %v8783 = vsub.f32 %v8311, %v8459
      %v8784 = vsub.f32 %v8312, %v8460
      %v8785 = vsub.f32 %v8313, %v8461
      %v8786 = vsub.f32 %v8314, %v8462
      %v8787 = vsub.f32 %v8315, %v8463
      %v8788 = vsub.f32 %v8316, %v8464
      %v8789 = vsub.f32 %v8317, %v8465
      %v8790 = vsub.f32 %v8318, %v8466
      %v8791 = vsub.f32 %v8319, %v8467
      %v8792 = vsub.f32 %v8320, %v8468
      %v8793 = vsub.f32 %v8321, %v8469
      %v8794 = vsub.f32 %v8322, %v8470
      %v8795 = vsub.f32 %v8323, %v8471
      %v8796 = vsub.f32 %v8324, %v8472
      %v8797 = vsub.f32 %v8325, %v8473
      %v8798 = vsub.f32 %v8326, %v8474
      %v8799 = vsub.f32 %v8327, %v8475
      %v8800 = vsub.f32 %v8328, %v8476
      %v8801 = vsub.f32 %v8329, %v8477
      %v8802 = vsub.f32 %v8330, %v8478
      %v8803 = vsub.f32 %v8331, %v8479
      %v8804 = vsub.f32 %v8332, %v8480
      %v8805 = vsub.f32 %v8333, %v8481
      %v8806 = vsub.f32 %v8334, %v8482
      %v8807 = vsub.f32 %v8335, %v8483
      %v8808 = vsub.f32 %v8336, %v8484
      %v8809 = vsub.f32 %v8337, %v8485
      %v8810 = vsub.f32 %v8338, %v8486
      %v8811 = vsub.f32 %v8339, %v8487
      %v8812 = vsub.f32 %v8340, %v8488
      %v8813 = vadd.f32 %v8741, 1e-05
      %v8814 = vadd.f32 %v8742, 1e-05
      %v8815 = vadd.f32 %v8743, 1e-05
      %v8816 = vadd.f32 %v8744, 1e-05
      %v8817 = vadd.f32 %v8745, 1e-05
      %v8818 = vadd.f32 %v8746, 1e-05
      %v8819 = vadd.f32 %v8747, 1e-05
      %v8820 = vadd.f32 %v8748, 1e-05
      %v8821 = vadd.f32 %v8749, 1e-05
      %v8822 = vadd.f32 %v8750, 1e-05
      %v8823 = vadd.f32 %v8751, 1e-05
      %v8824 = vadd.f32 %v8752, 1e-05
      %v8825 = vadd.f32 %v8753, 1e-05
      %v8826 = vadd.f32 %v8754, 1e-05
      %v8827 = vadd.f32 %v8755, 1e-05
      %v8828 = vadd.f32 %v8756, 1e-05
      %v8829 = vadd.f32 %v8757, 1e-05
      %v8830 = vadd.f32 %v8758, 1e-05
      %v8831 = vadd.f32 %v8759, 1e-05
      %v8832 = vadd.f32 %v8760, 1e-05
      %v8833 = vadd.f32 %v8761, 1e-05
      %v8834 = vadd.f32 %v8762, 1e-05
      %v8835 = vadd.f32 %v8763, 1e-05
      %v8836 = vadd.f32 %v8764, 1e-05
      %v8837 = vadd.f32 %v8765, 1e-05
      %v8838 = vadd.f32 %v8766, 1e-05
      %v8839 = vadd.f32 %v8767, 1e-05
      %v8840 = vadd.f32 %v8768, 1e-05
      %v8841 = vadd.f32 %v8769, 1e-05
      %v8842 = vadd.f32 %v8770, 1e-05
      %v8843 = vadd.f32 %v8771, 1e-05
      %v8844 = vadd.f32 %v8772, 1e-05
      %v8845 = vadd.f32 %v8773, 1e-05
      %v8846 = vadd.f32 %v8774, 1e-05
      %v8847 = vadd.f32 %v8775, 1e-05
      %v8848 = vadd.f32 %v8776, 1e-05
      %v8849 = vrsqrt.pop %v8813
      %v8850 = vrsqrt.pop %v8814
      %v8851 = vrsqrt.pop %v8815
      %v8852 = vrsqrt.pop %v8816
      %v8853 = vrsqrt.pop %v8817
      %v8854 = vrsqrt.pop %v8818
      %v8855 = vrsqrt.pop %v8819
      %v8856 = vrsqrt.pop %v8820
      %v8857 = vrsqrt.pop %v8821
      %v8858 = vrsqrt.pop %v8822
      %v8859 = vrsqrt.pop %v8823
      %v8860 = vrsqrt.pop %v8824
      %v8861 = vrsqrt.pop %v8825
      %v8862 = vrsqrt.pop %v8826
      %v8863 = vrsqrt.pop %v8827
      %v8864 = vrsqrt.pop %v8828
      %v8865 = vrsqrt.pop %v8829
      %v8866 = vrsqrt.pop %v8830
      %v8867 = vrsqrt.pop %v8831
      %v8868 = vrsqrt.pop %v8832
      %v8869 = vrsqrt.pop %v8833
      %v8870 = vrsqrt.pop %v8834
      %v8871 = vrsqrt.pop %v8835
      %v8872 = vrsqrt.pop %v8836
      %v8873 = vrsqrt.pop %v8837
      %v8874 = vrsqrt.pop %v8838
      %v8875 = vrsqrt.pop %v8839
      %v8876 = vrsqrt.pop %v8840
      %v8877 = vrsqrt.pop %v8841
      %v8878 = vrsqrt.pop %v8842
      %v8879 = vrsqrt.pop %v8843
      %v8880 = vrsqrt.pop %v8844
      %v8881 = vrsqrt.pop %v8845
      %v8882 = vrsqrt.pop %v8846
      %v8883 = vrsqrt.pop %v8847
      %v8884 = vrsqrt.pop %v8848
      %v8885 = vmul.f32 %v8777, %v8849
      %v8886 = vmul.f32 %v8778, %v8850
      %v8887 = vmul.f32 %v8779, %v8851
      %v8888 = vmul.f32 %v8780, %v8852
      %v8889 = vmul.f32 %v8781, %v8853
      %v8890 = vmul.f32 %v8782, %v8854
      %v8891 = vmul.f32 %v8783, %v8855
      %v8892 = vmul.f32 %v8784, %v8856
      %v8893 = vmul.f32 %v8785, %v8857
      %v8894 = vmul.f32 %v8786, %v8858
      %v8895 = vmul.f32 %v8787, %v8859
      %v8896 = vmul.f32 %v8788, %v8860
      %v8897 = vmul.f32 %v8789, %v8861
      %v8898 = vmul.f32 %v8790, %v8862
      %v8899 = vmul.f32 %v8791, %v8863
      %v8900 = vmul.f32 %v8792, %v8864
      %v8901 = vmul.f32 %v8793, %v8865
      %v8902 = vmul.f32 %v8794, %v8866
      %v8903 = vmul.f32 %v8795, %v8867
      %v8904 = vmul.f32 %v8796, %v8868
      %v8905 = vmul.f32 %v8797, %v8869
      %v8906 = vmul.f32 %v8798, %v8870
      %v8907 = vmul.f32 %v8799, %v8871
      %v8908 = vmul.f32 %v8800, %v8872
      %v8909 = vmul.f32 %v8801, %v8873
      %v8910 = vmul.f32 %v8802, %v8874
      %v8911 = vmul.f32 %v8803, %v8875
      %v8912 = vmul.f32 %v8804, %v8876
      %v8913 = vmul.f32 %v8805, %v8877
      %v8914 = vmul.f32 %v8806, %v8878
      %v8915 = vmul.f32 %v8807, %v8879
      %v8916 = vmul.f32 %v8808, %v8880
      %v8917 = vmul.f32 %v8809, %v8881
      %v8918 = vmul.f32 %v8810, %v8882
      %v8919 = vmul.f32 %v8811, %v8883
      %v8920 = vmul.f32 %v8812, %v8884
      %v8922 = vlaneseq
      %v8923 = vshrl.u32 %v8922, 7
      %v8924 = vsub.s32 0, %v8923
      %v8925 = vrot.slane %v8342, %v8924
      %v8927 = vmul.f32 %v8885, %v8925
      %v8928 = vmul.f32 %v8886, %v8925
      %v8929 = vmul.f32 %v8887, %v8925
      %v8930 = vmul.f32 %v8888, %v8925
      %v8931 = vmul.f32 %v8889, %v8925
      %v8932 = vmul.f32 %v8890, %v8925
      %v8933 = vmul.f32 %v8891, %v8925
      %v8934 = vmul.f32 %v8892, %v8925
      %v8935 = vmul.f32 %v8893, %v8925
      %v8936 = vmul.f32 %v8894, %v8925
      %v8937 = vmul.f32 %v8895, %v8925
      %v8938 = vmul.f32 %v8896, %v8925
      %v8939 = vmul.f32 %v8897, %v8925
      %v8940 = vmul.f32 %v8898, %v8925
      %v8941 = vmul.f32 %v8899, %v8925
      %v8942 = vmul.f32 %v8900, %v8925
      %v8943 = vmul.f32 %v8901, %v8925
      %v8944 = vmul.f32 %v8902, %v8925
      %v8945 = vmul.f32 %v8903, %v8925
      %v8946 = vmul.f32 %v8904, %v8925
      %v8947 = vmul.f32 %v8905, %v8925
      %v8948 = vmul.f32 %v8906, %v8925
      %v8949 = vmul.f32 %v8907, %v8925
      %v8950 = vmul.f32 %v8908, %v8925
      %v8951 = vmul.f32 %v8909, %v8925
      %v8952 = vmul.f32 %v8910, %v8925
      %v8953 = vmul.f32 %v8911, %v8925
      %v8954 = vmul.f32 %v8912, %v8925
      %v8955 = vmul.f32 %v8913, %v8925
      %v8956 = vmul.f32 %v8914, %v8925
      %v8957 = vmul.f32 %v8915, %v8925
      %v8958 = vmul.f32 %v8916, %v8925
      %v8959 = vmul.f32 %v8917, %v8925
      %v8960 = vmul.f32 %v8918, %v8925
      %v8961 = vmul.f32 %v8919, %v8925
      %v8962 = vmul.f32 %v8920, %v8925
      %v8964 = vlaneseq
      %v8965 = vshrl.u32 %v8964, 7
      %v8966 = vsub.s32 0, %v8965
      %v8967 = vrot.slane %v8344, %v8966
      %v8969 = vadd.f32 %v8927, %v8967
      %v8970 = vadd.f32 %v8928, %v8967
      %v8971 = vadd.f32 %v8929, %v8967
      %v8972 = vadd.f32 %v8930, %v8967
      %v8973 = vadd.f32 %v8931, %v8967
      %v8974 = vadd.f32 %v8932, %v8967
      %v8975 = vadd.f32 %v8933, %v8967
      %v8976 = vadd.f32 %v8934, %v8967
      %v8977 = vadd.f32 %v8935, %v8967
      %v8978 = vadd.f32 %v8936, %v8967
      %v8979 = vadd.f32 %v8937, %v8967
      %v8980 = vadd.f32 %v8938, %v8967
      %v8981 = vadd.f32 %v8939, %v8967
      %v8982 = vadd.f32 %v8940, %v8967
      %v8983 = vadd.f32 %v8941, %v8967
      %v8984 = vadd.f32 %v8942, %v8967
      %v8985 = vadd.f32 %v8943, %v8967
      %v8986 = vadd.f32 %v8944, %v8967
      %v8987 = vadd.f32 %v8945, %v8967
      %v8988 = vadd.f32 %v8946, %v8967
      %v8989 = vadd.f32 %v8947, %v8967
      %v8990 = vadd.f32 %v8948, %v8967
      %v8991 = vadd.f32 %v8949, %v8967
      %v8992 = vadd.f32 %v8950, %v8967
      %v8993 = vadd.f32 %v8951, %v8967
      %v8994 = vadd.f32 %v8952, %v8967
      %v8995 = vadd.f32 %v8953, %v8967
      %v8996 = vadd.f32 %v8954, %v8967
      %v8997 = vadd.f32 %v8955, %v8967
      %v8998 = vadd.f32 %v8956, %v8967
      %v8999 = vadd.f32 %v8957, %v8967
      %v9000 = vadd.f32 %v8958, %v8967
      %v9001 = vadd.f32 %v8959, %v8967
      %v9002 = vadd.f32 %v8960, %v8967
      %v9003 = vadd.f32 %v8961, %v8967
      %v9004 = vadd.f32 %v8962, %v8967
      %v9005 = vpack.c.bf16 %v8970, %v8969
      %v9006 = vpack.c.bf16 %v8972, %v8971
      %v9007 = vpack.c.bf16 %v8974, %v8973
      %v9008 = vpack.c.bf16 %v8976, %v8975
      %v9009 = vpack.c.bf16 %v8978, %v8977
      %v9010 = vpack.c.bf16 %v8980, %v8979
      %v9011 = vpack.c.bf16 %v8982, %v8981
      %v9012 = vpack.c.bf16 %v8984, %v8983
      %v9013 = vpack.c.bf16 %v8986, %v8985
      %v9014 = vpack.c.bf16 %v8988, %v8987
      %v9015 = vpack.c.bf16 %v8990, %v8989
      %v9016 = vpack.c.bf16 %v8992, %v8991
      %v9017 = vpack.c.bf16 %v8994, %v8993
      %v9018 = vpack.c.bf16 %v8996, %v8995
      %v9019 = vpack.c.bf16 %v8998, %v8997
      %v9020 = vpack.c.bf16 %v9000, %v8999
      %v9021 = vpack.c.bf16 %v9002, %v9001
      %v9022 = vpack.c.bf16 %v9004, %v9003
      %s9023 = scalar_lea.vmem %s10, 32
      %v9024 = vld [vmem:[%s9023] sm:$0xf]
      %v9025 = vld [vmem:[%s9023 + $0x4] sm:$0xf]
      %v9026 = vld [vmem:[%s9023 + $0x8] sm:$0xf]
      %v9027 = vld [vmem:[%s9023 + $0xc] sm:$0xf]
      %s9028 = scalar_lea.vmem %s11, 2
      %v9029 = vld [vmem:[%s9028] sm:$0x1]
      %v9031 = vlaneseq
      %v9032 = vshrl.u32 %v9031, 7
      %v9033 = vsub.s32 0, %v9032
      %v9034 = vrot.slane %v9029, %v9033
      %v9040 = vunpack.c.l.b16 %v9024
      %v9041 = vunpack.c.l.b16 %v9025
      %v9042 = vunpack.c.l.b16 %v9026
      %v9043 = vunpack.c.l.b16 %v9027
      %v9044 = vpack.c.b16 %v9041, %v9040
      %v9045 = vpack.c.b16 %v9043, %v9042
      %v9049 = vsel %vm1241, %v9005, 0
      %v9052 = vsel %vm1241, %v9006, 0
      %v9055 = vsel %vm1241, %v9007, 0
      %v9058 = vsel %vm1241, %v9008, 0
      %v9061 = vsel %vm1241, %v9009, 0
      %v9064 = vsel %vm1241, %v9010, 0
      %v9067 = vsel %vm1241, %v9011, 0
      %v9070 = vsel %vm1241, %v9012, 0
      %v9073 = vsel %vm1241, %v9013, 0
      %v9076 = vsel %vm1241, %v9014, 0
      %v9079 = vsel %vm1241, %v9015, 0
      %v9082 = vsel %vm1241, %v9016, 0
      %v9085 = vsel %vm1241, %v9017, 0
      %v9088 = vsel %vm1241, %v9018, 0
      %v9091 = vsel %vm1241, %v9019, 0
      %v9094 = vsel %vm1241, %v9020, 0
      %v9097 = vsel %vm1241, %v9021, 0
      %v9100 = vsel %vm1241, %v9022, 0
      %9102 = vmatprep.subr.bf16.mxu0 0
      %9103 = vmatpush1.bf16.msra.mxu0 %v9044
      %9104 = vmatprep.subr.bf16.mxu0 0
      %9105 = vmatpush1.bf16.msra.mxu0 %v9045
      %9106 = vmatprep.subr.bf16.mxu0 0
      %9107 = vmatpush1.bf16.msra.mxu0 0
      %9108 = vmatprep.subr.bf16.mxu0 0
      %9109 = vmatpush1.bf16.msra.mxu0 0
      %9110 = vmatprep.subr.bf16.mxu0 0
      %9111 = vmatpush1.bf16.msra.mxu0 0
      %9112 = vmatprep.subr.bf16.mxu0 0
      %9113 = vmatpush1.bf16.msra.mxu0 0
      %9114 = vmatprep.subr.bf16.mxu0 0
      %9115 = vmatpush1.bf16.msra.mxu0 0
      %9116 = vmatprep.subr.bf16.mxu0 0
      %9117 = vmatpush1.bf16.msra.mxu0 0
      %9118 = vmatprep.subr.bf16.mxu0 0
      %9119 = vmatpush1.bf16.msra.mxu0 0
      %9120 = vmatprep.subr.bf16.mxu0 0
      %9121 = vmatpush1.bf16.msra.mxu0 0
      %9122 = vmatprep.subr.bf16.mxu0 0
      %9123 = vmatpush1.bf16.msra.mxu0 0
      %9124 = vmatprep.subr.bf16.mxu0 0
      %9125 = vmatpush1.bf16.msra.mxu0 0
      %9126 = vmatprep.subr.bf16.mxu0 0
      %9127 = vmatpush1.bf16.msra.mxu0 0
      %9128 = vmatprep.subr.bf16.mxu0 0
      %9129 = vmatpush1.bf16.msra.mxu0 0
      %9130 = vmatprep.subr.bf16.mxu0 0
      %9131 = vmatpush1.bf16.msra.mxu0 0
      %9132 = vmatprep.subr.bf16.mxu0 0
      %9133 = vmatpush1.bf16.msra.mxu0 0
      %9134 = vmatprep.mubr.bf16.mxu0 0
      %9135 = vmatmul.mubr.bf16.gmra.mrb[0].mxu0 %v9049
      %v9136 = vpop.f32.mrb[0].mxu0
      %v9137 = vadd.f32 %v9034, %v9136
      %v9138 = vpop.f32.mrb[0].mxu0
      %v9139 = vpop.f32.mrb[0].mxu0
      %v9140 = vadd.f32 %v9034, %v9139
      %v9141 = vpop.f32.mrb[0].mxu0
      %9142 = vmatprep.mubr.bf16.mxu0 0
      %9143 = vmatmul.mubr.bf16.gmra.mrb[0].mxu0 %v9052
      %v9144 = vpop.f32.mrb[0].mxu0
      %v9145 = vadd.f32 %v9034, %v9144
      %v9146 = vpop.f32.mrb[0].mxu0
      %v9147 = vpop.f32.mrb[0].mxu0
      %v9148 = vadd.f32 %v9034, %v9147
      %v9149 = vpop.f32.mrb[0].mxu0
      %9150 = vmatprep.mubr.bf16.mxu0 0
      %9151 = vmatmul.mubr.bf16.gmra.mrb[0].mxu0 %v9055
      %v9152 = vpop.f32.mrb[0].mxu0
      %v9153 = vadd.f32 %v9034, %v9152
      %v9154 = vpop.f32.mrb[0].mxu0
      %v9155 = vpop.f32.mrb[0].mxu0
      %v9156 = vadd.f32 %v9034, %v9155
      %v9157 = vpop.f32.mrb[0].mxu0
      %9158 = vmatprep.mubr.bf16.mxu0 0
      %9159 = vmatmul.mubr.bf16.gmra.mrb[0].mxu0 %v9058
      %v9160 = vpop.f32.mrb[0].mxu0
      %v9161 = vadd.f32 %v9034, %v9160
      %v9162 = vpop.f32.mrb[0].mxu0
      %v9163 = vpop.f32.mrb[0].mxu0
      %v9164 = vadd.f32 %v9034, %v9163
      %v9165 = vpop.f32.mrb[0].mxu0
      %9166 = vmatprep.mubr.bf16.mxu0 0
      %9167 = vmatmul.mubr.bf16.gmra.mrb[0].mxu0 %v9061
      %v9168 = vpop.f32.mrb[0].mxu0
      %v9169 = vadd.f32 %v9034, %v9168
      %v9170 = vpop.f32.mrb[0].mxu0
      %v9171 = vpop.f32.mrb[0].mxu0
      %v9172 = vadd.f32 %v9034, %v9171
      %v9173 = vpop.f32.mrb[0].mxu0
      %9174 = vmatprep.mubr.bf16.mxu0 0
      %9175 = vmatmul.mubr.bf16.gmra.mrb[0].mxu0 %v9064
      %v9176 = vpop.f32.mrb[0].mxu0
      %v9177 = vadd.f32 %v9034, %v9176
      %v9178 = vpop.f32.mrb[0].mxu0
      %v9179 = vpop.f32.mrb[0].mxu0
      %v9180 = vadd.f32 %v9034, %v9179
      %v9181 = vpop.f32.mrb[0].mxu0
      %9182 = vmatprep.mubr.bf16.mxu0 0
      %9183 = vmatmul.mubr.bf16.gmra.mrb[0].mxu0 %v9067
      %v9184 = vpop.f32.mrb[0].mxu0
      %v9185 = vadd.f32 %v9034, %v9184
      %v9186 = vpop.f32.mrb[0].mxu0
      %v9187 = vpop.f32.mrb[0].mxu0
      %v9188 = vadd.f32 %v9034, %v9187
      %v9189 = vpop.f32.mrb[0].mxu0
      %9190 = vmatprep.mubr.bf16.mxu0 0
      %9191 = vmatmul.mubr.bf16.gmra.mrb[0].mxu0 %v9070
      %v9192 = vpop.f32.mrb[0].mxu0
      %v9193 = vadd.f32 %v9034, %v9192
      %v9194 = vpop.f32.mrb[0].mxu0
      %v9195 = vpop.f32.mrb[0].mxu0
      %v9196 = vadd.f32 %v9034, %v9195
      %v9197 = vpop.f32.mrb[0].mxu0
      %9198 = vmatprep.mubr.bf16.mxu0 0
      %9199 = vmatmul.mubr.bf16.gmra.mrb[0].mxu0 %v9073
      %v9200 = vpop.f32.mrb[0].mxu0
      %v9201 = vadd.f32 %v9034, %v9200
      %v9202 = vpop.f32.mrb[0].mxu0
      %v9203 = vpop.f32.mrb[0].mxu0
      %v9204 = vadd.f32 %v9034, %v9203
      %v9205 = vpop.f32.mrb[0].mxu0
      %9206 = vmatprep.mubr.bf16.mxu0 0
      %9207 = vmatmul.mubr.bf16.gmra.mrb[0].mxu0 %v9076
      %v9208 = vpop.f32.mrb[0].mxu0
      %v9209 = vadd.f32 %v9034, %v9208
      %v9210 = vpop.f32.mrb[0].mxu0
      %v9211 = vpop.f32.mrb[0].mxu0
      %v9212 = vadd.f32 %v9034, %v9211
      %v9213 = vpop.f32.mrb[0].mxu0
      %9214 = vmatprep.mubr.bf16.mxu0 0
      %9215 = vmatmul.mubr.bf16.gmra.mrb[0].mxu0 %v9079
      %v9216 = vpop.f32.mrb[0].mxu0
      %v9217 = vadd.f32 %v9034, %v9216
      %v9218 = vpop.f32.mrb[0].mxu0
      %v9219 = vpop.f32.mrb[0].mxu0
      %v9220 = vadd.f32 %v9034, %v9219
      %v9221 = vpop.f32.mrb[0].mxu0
      %9222 = vmatprep.mubr.bf16.mxu0 0
      %9223 = vmatmul.mubr.bf16.gmra.mrb[0].mxu0 %v9082
      %v9224 = vpop.f32.mrb[0].mxu0
      %v9225 = vadd.f32 %v9034, %v9224
      %v9226 = vpop.f32.mrb[0].mxu0
      %v9227 = vpop.f32.mrb[0].mxu0
      %v9228 = vadd.f32 %v9034, %v9227
      %v9229 = vpop.f32.mrb[0].mxu0
      %9230 = vmatprep.mubr.bf16.mxu0 0
      %9231 = vmatmul.mubr.bf16.gmra.mrb[0].mxu0 %v9085
      %v9232 = vpop.f32.mrb[0].mxu0
      %v9233 = vadd.f32 %v9034, %v9232
      %v9234 = vpop.f32.mrb[0].mxu0
      %v9235 = vpop.f32.mrb[0].mxu0
      %v9236 = vadd.f32 %v9034, %v9235
      %v9237 = vpop.f32.mrb[0].mxu0
      %9238 = vmatprep.mubr.bf16.mxu0 0
      %9239 = vmatmul.mubr.bf16.gmra.mrb[0].mxu0 %v9088
      %v9240 = vpop.f32.mrb[0].mxu0
      %v9241 = vadd.f32 %v9034, %v9240
      %v9242 = vpop.f32.mrb[0].mxu0
      %v9243 = vpop.f32.mrb[0].mxu0
      %v9244 = vadd.f32 %v9034, %v9243
      %v9245 = vpop.f32.mrb[0].mxu0
      %9246 = vmatprep.mubr.bf16.mxu0 0
      %9247 = vmatmul.mubr.bf16.gmra.mrb[0].mxu0 %v9091
      %v9248 = vpop.f32.mrb[0].mxu0
      %v9249 = vadd.f32 %v9034, %v9248
      %v9250 = vpop.f32.mrb[0].mxu0
      %v9251 = vpop.f32.mrb[0].mxu0
      %v9252 = vadd.f32 %v9034, %v9251
      %v9253 = vpop.f32.mrb[0].mxu0
      %9254 = vmatprep.mubr.bf16.mxu0 0
      %9255 = vmatmul.mubr.bf16.gmra.mrb[0].mxu0 %v9094
      %v9256 = vpop.f32.mrb[0].mxu0
      %v9257 = vadd.f32 %v9034, %v9256
      %v9258 = vpop.f32.mrb[0].mxu0
      %v9259 = vpop.f32.mrb[0].mxu0
      %v9260 = vadd.f32 %v9034, %v9259
      %v9261 = vpop.f32.mrb[0].mxu0
      %9262 = vmatprep.mubr.bf16.mxu0 0
      %9263 = vmatmul.mubr.bf16.gmra.mrb[0].mxu0 %v9097
      %v9264 = vpop.f32.mrb[0].mxu0
      %v9265 = vadd.f32 %v9034, %v9264
      %v9266 = vpop.f32.mrb[0].mxu0
      %v9267 = vpop.f32.mrb[0].mxu0
      %v9268 = vadd.f32 %v9034, %v9267
      %v9269 = vpop.f32.mrb[0].mxu0
      %9270 = vmatprep.mubr.bf16.mxu0 0
      %9271 = vmatmul.mubr.bf16.gmra.mrb[0].mxu0 %v9100
      %v9272 = vpop.f32.mrb[0].mxu0
      %v9273 = vadd.f32 %v9034, %v9272
      %v9274 = vpop.f32.mrb[0].mxu0
      %v9275 = vpop.f32.mrb[0].mxu0
      %v9276 = vadd.f32 %v9034, %v9275
      %v9277 = vpop.f32.mrb[0].mxu0
      %9278 = vdwg.mxu0
      %v9279 = vmul.f32 %v9137, 0.5
      %v9280 = vmul.f32 %v9140, 0.5
      %v9281 = vmul.f32 %v9145, 0.5
      %v9282 = vmul.f32 %v9148, 0.5
      %v9283 = vmul.f32 %v9153, 0.5
      %v9284 = vmul.f32 %v9156, 0.5
      %v9285 = vmul.f32 %v9161, 0.5
      %v9286 = vmul.f32 %v9164, 0.5
      %v9287 = vmul.f32 %v9169, 0.5
      %v9288 = vmul.f32 %v9172, 0.5
      %v9289 = vmul.f32 %v9177, 0.5
      %v9290 = vmul.f32 %v9180, 0.5
      %v9291 = vmul.f32 %v9185, 0.5
      %v9292 = vmul.f32 %v9188, 0.5
      %v9293 = vmul.f32 %v9193, 0.5
      %v9294 = vmul.f32 %v9196, 0.5
      %v9295 = vmul.f32 %v9201, 0.5
      %v9296 = vmul.f32 %v9204, 0.5
      %v9297 = vmul.f32 %v9209, 0.5
      %v9298 = vmul.f32 %v9212, 0.5
      %v9299 = vmul.f32 %v9217, 0.5
      %v9300 = vmul.f32 %v9220, 0.5
      %v9301 = vmul.f32 %v9225, 0.5
      %v9302 = vmul.f32 %v9228, 0.5
      %v9303 = vmul.f32 %v9233, 0.5
      %v9304 = vmul.f32 %v9236, 0.5
      %v9305 = vmul.f32 %v9241, 0.5
      %v9306 = vmul.f32 %v9244, 0.5
      %v9307 = vmul.f32 %v9249, 0.5
      %v9308 = vmul.f32 %v9252, 0.5
      %v9309 = vmul.f32 %v9257, 0.5
      %v9310 = vmul.f32 %v9260, 0.5
      %v9311 = vmul.f32 %v9265, 0.5
      %v9312 = vmul.f32 %v9268, 0.5
      %v9313 = vmul.f32 %v9273, 0.5
      %v9314 = vmul.f32 %v9276, 0.5
      %v9315 = vmul.f32 %v9137, 0.044715
      %v9316 = vmul.f32 %v9140, 0.044715
      %v9317 = vmul.f32 %v9145, 0.044715
      %v9318 = vmul.f32 %v9148, 0.044715
      %v9319 = vmul.f32 %v9153, 0.044715
      %v9320 = vmul.f32 %v9156, 0.044715
      %v9321 = vmul.f32 %v9161, 0.044715
      %v9322 = vmul.f32 %v9164, 0.044715
      %v9323 = vmul.f32 %v9169, 0.044715
      %v9324 = vmul.f32 %v9172, 0.044715
      %v9325 = vmul.f32 %v9177, 0.044715
      %v9326 = vmul.f32 %v9180, 0.044715
      %v9327 = vmul.f32 %v9185, 0.044715
      %v9328 = vmul.f32 %v9188, 0.044715
      %v9329 = vmul.f32 %v9193, 0.044715
      %v9330 = vmul.f32 %v9196, 0.044715
      %v9331 = vmul.f32 %v9201, 0.044715
      %v9332 = vmul.f32 %v9204, 0.044715
      %v9333 = vmul.f32 %v9209, 0.044715
      %v9334 = vmul.f32 %v9212, 0.044715
      %v9335 = vmul.f32 %v9217, 0.044715
      %v9336 = vmul.f32 %v9220, 0.044715
      %v9337 = vmul.f32 %v9225, 0.044715
      %v9338 = vmul.f32 %v9228, 0.044715
      %v9339 = vmul.f32 %v9233, 0.044715
      %v9340 = vmul.f32 %v9236, 0.044715
      %v9341 = vmul.f32 %v9241, 0.044715
      %v9342 = vmul.f32 %v9244, 0.044715
      %v9343 = vmul.f32 %v9249, 0.044715
      %v9344 = vmul.f32 %v9252, 0.044715
      %v9345 = vmul.f32 %v9257, 0.044715
      %v9346 = vmul.f32 %v9260, 0.044715
      %v9347 = vmul.f32 %v9265, 0.044715
      %v9348 = vmul.f32 %v9268, 0.044715
      %v9349 = vmul.f32 %v9273, 0.044715
      %v9350 = vmul.f32 %v9276, 0.044715
      %v9351 = vmul.f32 %v9315, %v9137
      %v9352 = vmul.f32 %v9316, %v9140
      %v9353 = vmul.f32 %v9317, %v9145
      %v9354 = vmul.f32 %v9318, %v9148
      %v9355 = vmul.f32 %v9319, %v9153
      %v9356 = vmul.f32 %v9320, %v9156
      %v9357 = vmul.f32 %v9321, %v9161
      %v9358 = vmul.f32 %v9322, %v9164
      %v9359 = vmul.f32 %v9323, %v9169
      %v9360 = vmul.f32 %v9324, %v9172
      %v9361 = vmul.f32 %v9325, %v9177
      %v9362 = vmul.f32 %v9326, %v9180
      %v9363 = vmul.f32 %v9327, %v9185
      %v9364 = vmul.f32 %v9328, %v9188
      %v9365 = vmul.f32 %v9329, %v9193
      %v9366 = vmul.f32 %v9330, %v9196
      %v9367 = vmul.f32 %v9331, %v9201
      %v9368 = vmul.f32 %v9332, %v9204
      %v9369 = vmul.f32 %v9333, %v9209
      %v9370 = vmul.f32 %v9334, %v9212
      %v9371 = vmul.f32 %v9335, %v9217
      %v9372 = vmul.f32 %v9336, %v9220
      %v9373 = vmul.f32 %v9337, %v9225
      %v9374 = vmul.f32 %v9338, %v9228
      %v9375 = vmul.f32 %v9339, %v9233
      %v9376 = vmul.f32 %v9340, %v9236
      %v9377 = vmul.f32 %v9341, %v9241
      %v9378 = vmul.f32 %v9342, %v9244
      %v9379 = vmul.f32 %v9343, %v9249
      %v9380 = vmul.f32 %v9344, %v9252
      %v9381 = vmul.f32 %v9345, %v9257
      %v9382 = vmul.f32 %v9346, %v9260
      %v9383 = vmul.f32 %v9347, %v9265
      %v9384 = vmul.f32 %v9348, %v9268
      %v9385 = vmul.f32 %v9349, %v9273
      %v9386 = vmul.f32 %v9350, %v9276
      %v9387 = vmul.f32 %v9351, %v9137
      %v9388 = vmul.f32 %v9352, %v9140
      %v9389 = vmul.f32 %v9353, %v9145
      %v9390 = vmul.f32 %v9354, %v9148
      %v9391 = vmul.f32 %v9355, %v9153
      %v9392 = vmul.f32 %v9356, %v9156
      %v9393 = vmul.f32 %v9357, %v9161
      %v9394 = vmul.f32 %v9358, %v9164
      %v9395 = vmul.f32 %v9359, %v9169
      %v9396 = vmul.f32 %v9360, %v9172
      %v9397 = vmul.f32 %v9361, %v9177
      %v9398 = vmul.f32 %v9362, %v9180
      %v9399 = vmul.f32 %v9363, %v9185
      %v9400 = vmul.f32 %v9364, %v9188
      %v9401 = vmul.f32 %v9365, %v9193
      %v9402 = vmul.f32 %v9366, %v9196
      %v9403 = vmul.f32 %v9367, %v9201
      %v9404 = vmul.f32 %v9368, %v9204
      %v9405 = vmul.f32 %v9369, %v9209
      %v9406 = vmul.f32 %v9370, %v9212
      %v9407 = vmul.f32 %v9371, %v9217
      %v9408 = vmul.f32 %v9372, %v9220
      %v9409 = vmul.f32 %v9373, %v9225
      %v9410 = vmul.f32 %v9374, %v9228
      %v9411 = vmul.f32 %v9375, %v9233
      %v9412 = vmul.f32 %v9376, %v9236
      %v9413 = vmul.f32 %v9377, %v9241
      %v9414 = vmul.f32 %v9378, %v9244
      %v9415 = vmul.f32 %v9379, %v9249
      %v9416 = vmul.f32 %v9380, %v9252
      %v9417 = vmul.f32 %v9381, %v9257
      %v9418 = vmul.f32 %v9382, %v9260
      %v9419 = vmul.f32 %v9383, %v9265
      %v9420 = vmul.f32 %v9384, %v9268
      %v9421 = vmul.f32 %v9385, %v9273
      %v9422 = vmul.f32 %v9386, %v9276
      %v9423 = vadd.f32 %v9137, %v9387
      %v9424 = vadd.f32 %v9140, %v9388
      %v9425 = vadd.f32 %v9145, %v9389
      %v9426 = vadd.f32 %v9148, %v9390
      %v9427 = vadd.f32 %v9153, %v9391
      %v9428 = vadd.f32 %v9156, %v9392
      %v9429 = vadd.f32 %v9161, %v9393
      %v9430 = vadd.f32 %v9164, %v9394
      %v9431 = vadd.f32 %v9169, %v9395
      %v9432 = vadd.f32 %v9172, %v9396
      %v9433 = vadd.f32 %v9177, %v9397
      %v9434 = vadd.f32 %v9180, %v9398
      %v9435 = vadd.f32 %v9185, %v9399
      %v9436 = vadd.f32 %v9188, %v9400
      %v9437 = vadd.f32 %v9193, %v9401
      %v9438 = vadd.f32 %v9196, %v9402
      %v9439 = vadd.f32 %v9201, %v9403
      %v9440 = vadd.f32 %v9204, %v9404
      %v9441 = vadd.f32 %v9209, %v9405
      %v9442 = vadd.f32 %v9212, %v9406
      %v9443 = vadd.f32 %v9217, %v9407
      %v9444 = vadd.f32 %v9220, %v9408
      %v9445 = vadd.f32 %v9225, %v9409
      %v9446 = vadd.f32 %v9228, %v9410
      %v9447 = vadd.f32 %v9233, %v9411
      %v9448 = vadd.f32 %v9236, %v9412
      %v9449 = vadd.f32 %v9241, %v9413
      %v9450 = vadd.f32 %v9244, %v9414
      %v9451 = vadd.f32 %v9249, %v9415
      %v9452 = vadd.f32 %v9252, %v9416
      %v9453 = vadd.f32 %v9257, %v9417
      %v9454 = vadd.f32 %v9260, %v9418
      %v9455 = vadd.f32 %v9265, %v9419
      %v9456 = vadd.f32 %v9268, %v9420
      %v9457 = vadd.f32 %v9273, %v9421
      %v9458 = vadd.f32 %v9276, %v9422
      %v9459 = vmul.f32 %v9423, 0.7978846
      %v9460 = vmul.f32 %v9424, 0.7978846
      %v9461 = vmul.f32 %v9425, 0.7978846
      %v9462 = vmul.f32 %v9426, 0.7978846
      %v9463 = vmul.f32 %v9427, 0.7978846
      %v9464 = vmul.f32 %v9428, 0.7978846
      %v9465 = vmul.f32 %v9429, 0.7978846
      %v9466 = vmul.f32 %v9430, 0.7978846
      %v9467 = vmul.f32 %v9431, 0.7978846
      %v9468 = vmul.f32 %v9432, 0.7978846
      %v9469 = vmul.f32 %v9433, 0.7978846
      %v9470 = vmul.f32 %v9434, 0.7978846
      %v9471 = vmul.f32 %v9435, 0.7978846
      %v9472 = vmul.f32 %v9436, 0.7978846
      %v9473 = vmul.f32 %v9437, 0.7978846
      %v9474 = vmul.f32 %v9438, 0.7978846
      %v9475 = vmul.f32 %v9439, 0.7978846
      %v9476 = vmul.f32 %v9440, 0.7978846
      %v9477 = vmul.f32 %v9441, 0.7978846
      %v9478 = vmul.f32 %v9442, 0.7978846
      %v9479 = vmul.f32 %v9443, 0.7978846
      %v9480 = vmul.f32 %v9444, 0.7978846
      %v9481 = vmul.f32 %v9445, 0.7978846
      %v9482 = vmul.f32 %v9446, 0.7978846
      %v9483 = vmul.f32 %v9447, 0.7978846
      %v9484 = vmul.f32 %v9448, 0.7978846
      %v9485 = vmul.f32 %v9449, 0.7978846
      %v9486 = vmul.f32 %v9450, 0.7978846
      %v9487 = vmul.f32 %v9451, 0.7978846
      %v9488 = vmul.f32 %v9452, 0.7978846
      %v9489 = vmul.f32 %v9453, 0.7978846
      %v9490 = vmul.f32 %v9454, 0.7978846
      %v9491 = vmul.f32 %v9455, 0.7978846
      %v9492 = vmul.f32 %v9456, 0.7978846
      %v9493 = vmul.f32 %v9457, 0.7978846
      %v9494 = vmul.f32 %v9458, 0.7978846
      %v9495 = vtanh.pop %v9459
      %v9496 = vtanh.pop %v9460
      %v9497 = vtanh.pop %v9461
      %v9498 = vtanh.pop %v9462
      %v9499 = vtanh.pop %v9463
      %v9500 = vtanh.pop %v9464
      %v9501 = vtanh.pop %v9465
      %v9502 = vtanh.pop %v9466
      %v9503 = vtanh.pop %v9467
      %v9504 = vtanh.pop %v9468
      %v9505 = vtanh.pop %v9469
      %v9506 = vtanh.pop %v9470
      %v9507 = vtanh.pop %v9471
      %v9508 = vtanh.pop %v9472
      %v9509 = vtanh.pop %v9473
      %v9510 = vtanh.pop %v9474
      %v9511 = vtanh.pop %v9475
      %v9512 = vtanh.pop %v9476
      %v9513 = vtanh.pop %v9477
      %v9514 = vtanh.pop %v9478
      %v9515 = vtanh.pop %v9479
      %v9516 = vtanh.pop %v9480
      %v9517 = vtanh.pop %v9481
      %v9518 = vtanh.pop %v9482
      %v9519 = vtanh.pop %v9483
      %v9520 = vtanh.pop %v9484
      %v9521 = vtanh.pop %v9485
      %v9522 = vtanh.pop %v9486
      %v9523 = vtanh.pop %v9487
      %v9524 = vtanh.pop %v9488
      %v9525 = vtanh.pop %v9489
      %v9526 = vtanh.pop %v9490
      %v9527 = vtanh.pop %v9491
      %v9528 = vtanh.pop %v9492
      %v9529 = vtanh.pop %v9493
      %v9530 = vtanh.pop %v9494
      %v9531 = vadd.f32 %v9495, 1.0
      %v9532 = vadd.f32 %v9496, 1.0
      %v9533 = vadd.f32 %v9497, 1.0
      %v9534 = vadd.f32 %v9498, 1.0
      %v9535 = vadd.f32 %v9499, 1.0
      %v9536 = vadd.f32 %v9500, 1.0
      %v9537 = vadd.f32 %v9501, 1.0
      %v9538 = vadd.f32 %v9502, 1.0
      %v9539 = vadd.f32 %v9503, 1.0
      %v9540 = vadd.f32 %v9504, 1.0
      %v9541 = vadd.f32 %v9505, 1.0
      %v9542 = vadd.f32 %v9506, 1.0
      %v9543 = vadd.f32 %v9507, 1.0
      %v9544 = vadd.f32 %v9508, 1.0
      %v9545 = vadd.f32 %v9509, 1.0
      %v9546 = vadd.f32 %v9510, 1.0
      %v9547 = vadd.f32 %v9511, 1.0
      %v9548 = vadd.f32 %v9512, 1.0
      %v9549 = vadd.f32 %v9513, 1.0
      %v9550 = vadd.f32 %v9514, 1.0
      %v9551 = vadd.f32 %v9515, 1.0
      %v9552 = vadd.f32 %v9516, 1.0
      %v9553 = vadd.f32 %v9517, 1.0
      %v9554 = vadd.f32 %v9518, 1.0
      %v9555 = vadd.f32 %v9519, 1.0
      %v9556 = vadd.f32 %v9520, 1.0
      %v9557 = vadd.f32 %v9521, 1.0
      %v9558 = vadd.f32 %v9522, 1.0
      %v9559 = vadd.f32 %v9523, 1.0
      %v9560 = vadd.f32 %v9524, 1.0
      %v9561 = vadd.f32 %v9525, 1.0
      %v9562 = vadd.f32 %v9526, 1.0
      %v9563 = vadd.f32 %v9527, 1.0
      %v9564 = vadd.f32 %v9528, 1.0
      %v9565 = vadd.f32 %v9529, 1.0
      %v9566 = vadd.f32 %v9530, 1.0
      %v9567 = vmul.f32 %v9279, %v9531
      %v9568 = vmul.f32 %v9280, %v9532
      %v9569 = vmul.f32 %v9281, %v9533
      %v9570 = vmul.f32 %v9282, %v9534
      %v9571 = vmul.f32 %v9283, %v9535
      %v9572 = vmul.f32 %v9284, %v9536
      %v9573 = vmul.f32 %v9285, %v9537
      %v9574 = vmul.f32 %v9286, %v9538
      %v9575 = vmul.f32 %v9287, %v9539
      %v9576 = vmul.f32 %v9288, %v9540
      %v9577 = vmul.f32 %v9289, %v9541
      %v9578 = vmul.f32 %v9290, %v9542
      %v9579 = vmul.f32 %v9291, %v9543
      %v9580 = vmul.f32 %v9292, %v9544
      %v9581 = vmul.f32 %v9293, %v9545
      %v9582 = vmul.f32 %v9294, %v9546
      %v9583 = vmul.f32 %v9295, %v9547
      %v9584 = vmul.f32 %v9296, %v9548
      %v9585 = vmul.f32 %v9297, %v9549
      %v9586 = vmul.f32 %v9298, %v9550
      %v9587 = vmul.f32 %v9299, %v9551
      %v9588 = vmul.f32 %v9300, %v9552
      %v9589 = vmul.f32 %v9301, %v9553
      %v9590 = vmul.f32 %v9302, %v9554
      %v9591 = vmul.f32 %v9303, %v9555
      %v9592 = vmul.f32 %v9304, %v9556
      %v9593 = vmul.f32 %v9305, %v9557
      %v9594 = vmul.f32 %v9306, %v9558
      %v9595 = vmul.f32 %v9307, %v9559
      %v9596 = vmul.f32 %v9308, %v9560
      %v9597 = vmul.f32 %v9309, %v9561
      %v9598 = vmul.f32 %v9310, %v9562
      %v9599 = vmul.f32 %v9311, %v9563
      %v9600 = vmul.f32 %v9312, %v9564
      %v9601 = vmul.f32 %v9313, %v9565
      %v9602 = vmul.f32 %v9314, %v9566
      %v9603 = vpack.c.bf16 %v9568, %v9567
      %v9604 = vpack.c.bf16 %v9570, %v9569
      %v9605 = vpack.c.bf16 %v9572, %v9571
      %v9606 = vpack.c.bf16 %v9574, %v9573
      %v9607 = vpack.c.bf16 %v9576, %v9575
      %v9608 = vpack.c.bf16 %v9578, %v9577
      %v9609 = vpack.c.bf16 %v9580, %v9579
      %v9610 = vpack.c.bf16 %v9582, %v9581
      %v9611 = vpack.c.bf16 %v9584, %v9583
      %v9612 = vpack.c.bf16 %v9586, %v9585
      %v9613 = vpack.c.bf16 %v9588, %v9587
      %v9614 = vpack.c.bf16 %v9590, %v9589
      %v9615 = vpack.c.bf16 %v9592, %v9591
      %v9616 = vpack.c.bf16 %v9594, %v9593
      %v9617 = vpack.c.bf16 %v9596, %v9595
      %v9618 = vpack.c.bf16 %v9598, %v9597
      %v9619 = vpack.c.bf16 %v9600, %v9599
      %v9620 = vpack.c.bf16 %v9602, %v9601
      %s9621 = scalar_lea.vmem %s12, 64
      %v9622 = vld [vmem:[%s9621] sm:$0xf]
      %v9623 = vld [vmem:[%s9621 + $0x4] sm:$0xf]
      %v9624 = vld [vmem:[%s9621 + $0x8] sm:$0xf]
      %v9625 = vld [vmem:[%s9621 + $0xc] sm:$0xf]
      %v9626 = vld [vmem:[%s9621 + $0x10] sm:$0xf]
      %v9627 = vld [vmem:[%s9621 + $0x14] sm:$0xf]
      %v9628 = vld [vmem:[%s9621 + $0x18] sm:$0xf]
      %v9629 = vld [vmem:[%s9621 + $0x1c] sm:$0xf]
      %s9630 = scalar_lea.vmem %s13, 2
      %v9631 = vld [vmem:[%s9630] sm:$0x1]
      %v9633 = vlaneseq
      %v9634 = vshrl.u32 %v9633, 7
      %v9635 = vsub.s32 0, %v9634
      %v9636 = vrot.slane %v9631, %v9635
      %v9646 = vunpack.c.l.b16 %v9622
      %v9647 = vunpack.c.l.b16 %v9623
      %v9648 = vunpack.c.l.b16 %v9624
      %v9649 = vunpack.c.l.b16 %v9625
      %v9650 = vunpack.c.l.b16 %v9626
      %v9651 = vunpack.c.l.b16 %v9627
      %v9652 = vunpack.c.l.b16 %v9628
      %v9653 = vunpack.c.l.b16 %v9629
      %v9654 = vpack.c.b16 %v9647, %v9646
      %v9655 = vpack.c.b16 %v9649, %v9648
      %v9656 = vpack.c.b16 %v9651, %v9650
      %v9657 = vpack.c.b16 %v9653, %v9652
      %v9663 = vsel %vm1007, %v9603, 0
      %v9666 = vsel %vm1007, %v9604, 0
      %v9669 = vsel %vm1007, %v9605, 0
      %v9672 = vsel %vm1007, %v9606, 0
      %v9675 = vsel %vm1007, %v9607, 0
      %v9678 = vsel %vm1007, %v9608, 0
      %v9681 = vsel %vm1007, %v9609, 0
      %v9684 = vsel %vm1007, %v9610, 0
      %v9687 = vsel %vm1007, %v9611, 0
      %v9690 = vsel %vm1007, %v9612, 0
      %v9693 = vsel %vm1007, %v9613, 0
      %v9696 = vsel %vm1007, %v9614, 0
      %v9699 = vsel %vm1007, %v9615, 0
      %v9702 = vsel %vm1007, %v9616, 0
      %v9705 = vsel %vm1007, %v9617, 0
      %v9708 = vsel %vm1007, %v9618, 0
      %v9711 = vsel %vm1007, %v9619, 0
      %v9714 = vsel %vm1007, %v9620, 0
      %9716 = vmatprep.subr.bf16.mxu0 0
      %9717 = vmatpush1.bf16.msra.mxu0 %v9654
      %9718 = vmatprep.subr.bf16.mxu0 0
      %9719 = vmatpush1.bf16.msra.mxu0 %v9655
      %9720 = vmatprep.subr.bf16.mxu0 0
      %9721 = vmatpush1.bf16.msra.mxu0 %v9656
      %9722 = vmatprep.subr.bf16.mxu0 0
      %9723 = vmatpush1.bf16.msra.mxu0 %v9657
      %9724 = vmatprep.subr.bf16.mxu0 0
      %9725 = vmatpush1.bf16.msra.mxu0 0
      %9726 = vmatprep.subr.bf16.mxu0 0
      %9727 = vmatpush1.bf16.msra.mxu0 0
      %9728 = vmatprep.subr.bf16.mxu0 0
      %9729 = vmatpush1.bf16.msra.mxu0 0
      %9730 = vmatprep.subr.bf16.mxu0 0
      %9731 = vmatpush1.bf16.msra.mxu0 0
      %9732 = vmatprep.subr.bf16.mxu0 0
      %9733 = vmatpush1.bf16.msra.mxu0 0
      %9734 = vmatprep.subr.bf16.mxu0 0
      %9735 = vmatpush1.bf16.msra.mxu0 0
      %9736 = vmatprep.subr.bf16.mxu0 0
      %9737 = vmatpush1.bf16.msra.mxu0 0
      %9738 = vmatprep.subr.bf16.mxu0 0
      %9739 = vmatpush1.bf16.msra.mxu0 0
      %9740 = vmatprep.subr.bf16.mxu0 0
      %9741 = vmatpush1.bf16.msra.mxu0 0
      %9742 = vmatprep.subr.bf16.mxu0 0
      %9743 = vmatpush1.bf16.msra.mxu0 0
      %9744 = vmatprep.subr.bf16.mxu0 0
      %9745 = vmatpush1.bf16.msra.mxu0 0
      %9746 = vmatprep.subr.bf16.mxu0 0
      %9747 = vmatpush1.bf16.msra.mxu0 0
      %9748 = vmatprep.mubr.bf16.mxu0 0
      %9749 = vmatmul.mubr.bf16.gmra.mrb[0].mxu0 %v9663
      %v9750 = vpop.f32.mrb[0].mxu0
      %v9751 = vpop.f32.mrb[0].mxu0
      %v9752 = vpop.f32.mrb[0].mxu0
      %v9753 = vpop.f32.mrb[0].mxu0
      %9754 = vmatprep.mubr.bf16.mxu0 0
      %9755 = vmatmul.mubr.bf16.gmra.mrb[0].mxu0 %v9666
      %v9756 = vpop.f32.mrb[0].mxu0
      %v9757 = vadd.f32 %v9636, %v9756
      %v9758 = vpop.f32.mrb[0].mxu0
      %v9759 = vpop.f32.mrb[0].mxu0
      %v9760 = vadd.f32 %v9636, %v9759
      %v9761 = vpop.f32.mrb[0].mxu0
      %9762 = vmatprep.mubr.bf16.mxu0 0
      %9763 = vmatmul.mubr.bf16.gmra.mrb[0].mxu0 %v9669
      %v9764 = vpop.f32.mrb[0].mxu0
      %v9765 = vadd.f32 %v9636, %v9764
      %v9766 = vpop.f32.mrb[0].mxu0
      %v9767 = vpop.f32.mrb[0].mxu0
      %v9768 = vadd.f32 %v9636, %v9767
      %v9769 = vpop.f32.mrb[0].mxu0
      %9770 = vmatprep.mubr.bf16.mxu0 0
      %9771 = vmatmul.mubr.bf16.gmra.mrb[0].mxu0 %v9672
      %v9772 = vpop.f32.mrb[0].mxu0
      %v9773 = vadd.f32 %v9636, %v9772
      %v9774 = vpop.f32.mrb[0].mxu0
      %v9775 = vpop.f32.mrb[0].mxu0
      %v9776 = vadd.f32 %v9636, %v9775
      %v9777 = vpop.f32.mrb[0].mxu0
      %9778 = vmatprep.mubr.bf16.mxu0 0
      %9779 = vmatmul.mubr.bf16.gmra.mrb[0].mxu0 %v9675
      %v9780 = vpop.f32.mrb[0].mxu0
      %v9781 = vadd.f32 %v9636, %v9780
      %v9782 = vpop.f32.mrb[0].mxu0
      %v9783 = vpop.f32.mrb[0].mxu0
      %v9784 = vadd.f32 %v9636, %v9783
      %v9785 = vpop.f32.mrb[0].mxu0
      %9786 = vmatprep.mubr.bf16.mxu0 0
      %9787 = vmatmul.mubr.bf16.gmra.mrb[0].mxu0 %v9678
      %v9788 = vpop.f32.mrb[0].mxu0
      %v9789 = vadd.f32 %v9636, %v9788
      %v9790 = vpop.f32.mrb[0].mxu0
      %v9791 = vpop.f32.mrb[0].mxu0
      %v9792 = vadd.f32 %v9636, %v9791
      %v9793 = vpop.f32.mrb[0].mxu0
      %9794 = vmatprep.mubr.bf16.mxu0 0
      %9795 = vmatmul.mubr.bf16.gmra.mrb[0].mxu0 %v9681
      %v9796 = vpop.f32.mrb[0].mxu0
      %v9797 = vadd.f32 %v9636, %v9796
      %v9798 = vpop.f32.mrb[0].mxu0
      %v9799 = vpop.f32.mrb[0].mxu0
      %v9800 = vadd.f32 %v9636, %v9799
      %v9801 = vpop.f32.mrb[0].mxu0
      %9802 = vmatprep.mubr.bf16.mxu0 0
      %9803 = vmatmul.mubr.bf16.gmra.mrb[0].mxu0 %v9684
      %v9804 = vpop.f32.mrb[0].mxu0
      %v9805 = vadd.f32 %v9636, %v9804
      %v9806 = vpop.f32.mrb[0].mxu0
      %v9807 = vpop.f32.mrb[0].mxu0
      %v9808 = vadd.f32 %v9636, %v9807
      %v9809 = vpop.f32.mrb[0].mxu0
      %9810 = vmatprep.mubr.bf16.mxu0 0
      %9811 = vmatmul.mubr.bf16.gmra.mrb[0].mxu0 %v9687
      %v9812 = vpop.f32.mrb[0].mxu0
      %v9813 = vadd.f32 %v9636, %v9812
      %v9814 = vpop.f32.mrb[0].mxu0
      %v9815 = vpop.f32.mrb[0].mxu0
      %v9816 = vadd.f32 %v9636, %v9815
      %v9817 = vpop.f32.mrb[0].mxu0
      %9818 = vmatprep.mubr.bf16.mxu0 0
      %9819 = vmatmul.mubr.bf16.gmra.mrb[0].mxu0 %v9690
      %v9820 = vpop.f32.mrb[0].mxu0
      %v9821 = vadd.f32 %v9636, %v9820
      %v9822 = vpop.f32.mrb[0].mxu0
      %v9823 = vpop.f32.mrb[0].mxu0
      %v9824 = vadd.f32 %v9636, %v9823
      %v9825 = vpop.f32.mrb[0].mxu0
      %9826 = vmatprep.mubr.bf16.mxu0 0
      %9827 = vmatmul.mubr.bf16.gmra.mrb[0].mxu0 %v9693
      %v9828 = vpop.f32.mrb[0].mxu0
      %v9829 = vadd.f32 %v9636, %v9828
      %v9830 = vpop.f32.mrb[0].mxu0
      %v9831 = vpop.f32.mrb[0].mxu0
      %v9832 = vadd.f32 %v9636, %v9831
      %v9833 = vpop.f32.mrb[0].mxu0
      %9834 = vmatprep.mubr.bf16.mxu0 0
      %9835 = vmatmul.mubr.bf16.gmra.mrb[0].mxu0 %v9696
      %v9836 = vpop.f32.mrb[0].mxu0
      %v9837 = vadd.f32 %v9636, %v9836
      %v9838 = vpop.f32.mrb[0].mxu0
      %v9839 = vpop.f32.mrb[0].mxu0
      %v9840 = vadd.f32 %v9636, %v9839
      %v9841 = vpop.f32.mrb[0].mxu0
      %9842 = vmatprep.mubr.bf16.mxu0 0
      %9843 = vmatmul.mubr.bf16.gmra.mrb[0].mxu0 %v9699
      %v9844 = vpop.f32.mrb[0].mxu0
      %v9845 = vadd.f32 %v9636, %v9844
      %v9846 = vpop.f32.mrb[0].mxu0
      %v9847 = vpop.f32.mrb[0].mxu0
      %v9848 = vadd.f32 %v9636, %v9847
      %v9849 = vpop.f32.mrb[0].mxu0
      %9850 = vmatprep.mubr.bf16.mxu0 0
      %9851 = vmatmul.mubr.bf16.gmra.mrb[0].mxu0 %v9702
      %v9852 = vpop.f32.mrb[0].mxu0
      %v9853 = vadd.f32 %v9636, %v9852
      %v9854 = vpop.f32.mrb[0].mxu0
      %v9855 = vpop.f32.mrb[0].mxu0
      %v9856 = vadd.f32 %v9636, %v9855
      %v9857 = vpop.f32.mrb[0].mxu0
      %9858 = vmatprep.mubr.bf16.mxu0 0
      %9859 = vmatmul.mubr.bf16.gmra.mrb[0].mxu0 %v9705
      %v9860 = vpop.f32.mrb[0].mxu0
      %v9861 = vadd.f32 %v9636, %v9860
      %v9862 = vpop.f32.mrb[0].mxu0
      %v9863 = vpop.f32.mrb[0].mxu0
      %v9864 = vadd.f32 %v9636, %v9863
      %v9865 = vpop.f32.mrb[0].mxu0
      %9866 = vmatprep.mubr.bf16.mxu0 0
      %9867 = vmatmul.mubr.bf16.gmra.mrb[0].mxu0 %v9708
      %v9868 = vpop.f32.mrb[0].mxu0
      %v9869 = vadd.f32 %v9636, %v9868
      %v9870 = vpop.f32.mrb[0].mxu0
      %v9871 = vpop.f32.mrb[0].mxu0
      %v9872 = vadd.f32 %v9636, %v9871
      %v9873 = vpop.f32.mrb[0].mxu0
      %9874 = vmatprep.mubr.bf16.mxu0 0
      %9875 = vmatmul.mubr.bf16.gmra.mrb[0].mxu0 %v9711
      %v9876 = vpop.f32.mrb[0].mxu0
      %v9877 = vadd.f32 %v9636, %v9876
      %v9878 = vpop.f32.mrb[0].mxu0
      %v9879 = vpop.f32.mrb[0].mxu0
      %v9880 = vadd.f32 %v9636, %v9879
      %v9881 = vpop.f32.mrb[0].mxu0
      %9882 = vmatprep.mubr.bf16.mxu0 0
      %9883 = vmatmul.mubr.bf16.gmra.mrb[0].mxu0 %v9714
      %v9884 = vpop.f32.mrb[0].mxu0
      %v9885 = vpop.f32.mrb[0].mxu0
      %v9886 = vpop.f32.mrb[0].mxu0
      %v9887 = vpop.f32.mrb[0].mxu0
      %9888 = vdwg.mxu0
      %v9889 = vadd.f32 %v7219, %v9757
      %v9890 = vadd.f32 %v7220, %v9760
      %v9891 = vadd.f32 %v7221, %v9765
      %v9892 = vadd.f32 %v7222, %v9768
      %v9893 = vadd.f32 %v7223, %v9773
      %v9894 = vadd.f32 %v7224, %v9776
      %v9895 = vadd.f32 %v7225, %v9781
      %v9896 = vadd.f32 %v7226, %v9784
      %v9897 = vadd.f32 %v7227, %v9789
      %v9898 = vadd.f32 %v7228, %v9792
      %v9899 = vadd.f32 %v7229, %v9797
      %v9900 = vadd.f32 %v7230, %v9800
      %v9901 = vadd.f32 %v7231, %v9805
      %v9902 = vadd.f32 %v7232, %v9808
      %v9903 = vadd.f32 %v7233, %v9813
      %v9904 = vadd.f32 %v7234, %v9816
      %v9905 = vadd.f32 %v7235, %v9821
      %v9906 = vadd.f32 %v7236, %v9824
      %v9907 = vadd.f32 %v7237, %v9829
      %v9908 = vadd.f32 %v7238, %v9832
      %v9909 = vadd.f32 %v7239, %v9837
      %v9910 = vadd.f32 %v7240, %v9840
      %v9911 = vadd.f32 %v7241, %v9845
      %v9912 = vadd.f32 %v7242, %v9848
      %v9913 = vadd.f32 %v7243, %v9853
      %v9914 = vadd.f32 %v7244, %v9856
      %v9915 = vadd.f32 %v7245, %v9861
      %v9916 = vadd.f32 %v7246, %v9864
      %v9917 = vadd.f32 %v7247, %v9869
      %v9918 = vadd.f32 %v7248, %v9872
      %v9919 = vadd.f32 %v7249, %v9877
      %v9920 = vadd.f32 %v7250, %v9880
      %v9921 = vld [vmem:[%s639] sm:$0xff]
      %v9922 = vld [vmem:[%s639 + $0x8] sm:$0xff]
      %v9923 = vld [vmem:[%s639 + $0x10] sm:$0xff]
      %v9924 = vld [vmem:[%s639 + $0x18] sm:$0xff]
      %v9925 = vld [vmem:[%s639 + $0x20] sm:$0xff]
      %v9926 = vld [vmem:[%s639 + $0x28] sm:$0xff]
      %v9927 = vld [vmem:[%s639 + $0x30] sm:$0xff]
      %v9928 = vld [vmem:[%s639 + $0x38] sm:$0xff]
      %v9929 = vld [vmem:[%s639 + $0x40] sm:$0xff]
      %v9930 = vld [vmem:[%s639 + $0x48] sm:$0xff]
      %v9931 = vld [vmem:[%s639 + $0x50] sm:$0xff]
      %v9932 = vld [vmem:[%s639 + $0x58] sm:$0xff]
      %v9933 = vld [vmem:[%s639 + $0x60] sm:$0xff]
      %v9934 = vld [vmem:[%s639 + $0x68] sm:$0xff]
      %v9935 = vld [vmem:[%s639 + $0x70] sm:$0xff]
      %v9936 = vld [vmem:[%s639 + $0x78] sm:$0xff]
      %v9937 = vld [vmem:[%s639 + $0x80] sm:$0xff]
      %v9938 = vld [vmem:[%s639 + $0x88] sm:$0xff]
      %v9939 = vld [vmem:[%s639 + $0x90] sm:$0xff]
      %v9940 = vld [vmem:[%s639 + $0x98] sm:$0xff]
      %v9941 = vld [vmem:[%s639 + $0xa0] sm:$0xff]
      %v9942 = vld [vmem:[%s639 + $0xa8] sm:$0xff]
      %v9943 = vld [vmem:[%s639 + $0xb0] sm:$0xff]
      %v9944 = vld [vmem:[%s639 + $0xb8] sm:$0xff]
      %v9945 = vld [vmem:[%s639 + $0xc0] sm:$0xff]
      %v9946 = vld [vmem:[%s639 + $0xc8] sm:$0xff]
      %v9947 = vld [vmem:[%s639 + $0xd0] sm:$0xff]
      %v9948 = vld [vmem:[%s639 + $0xd8] sm:$0xff]
      %v9949 = vld [vmem:[%s639 + $0xe0] sm:$0xff]
      %v9950 = vld [vmem:[%s639 + $0xe8] sm:$0xff]
      %v9951 = vld [vmem:[%s639 + $0xf0] sm:$0xff]
      %v9952 = vld [vmem:[%s639 + $0xf8] sm:$0xff]
      %9954 = vset.pattern.permute.xlu0 0
      %9955 = vperm.xlu0 %9954, %v9921
      %v9956 = vpop.permute.xlu0 %9955
      %9959 = vset.pattern.permute.xlu0 0
      %9960 = vperm.xlu0 %9959, %v9922
      %v9961 = vpop.permute.xlu0 %9960
      %9964 = vset.pattern.permute.xlu0 0
      %9965 = vperm.xlu0 %9964, %v9923
      %v9966 = vpop.permute.xlu0 %9965
      %9969 = vset.pattern.permute.xlu0 0
      %9970 = vperm.xlu0 %9969, %v9924
      %v9971 = vpop.permute.xlu0 %9970
      %9974 = vset.pattern.permute.xlu0 0
      %9975 = vperm.xlu0 %9974, %v9925
      %v9976 = vpop.permute.xlu0 %9975
      %9979 = vset.pattern.permute.xlu0 0
      %9980 = vperm.xlu0 %9979, %v9926
      %v9981 = vpop.permute.xlu0 %9980
      %9984 = vset.pattern.permute.xlu0 0
      %9985 = vperm.xlu0 %9984, %v9927
      %v9986 = vpop.permute.xlu0 %9985
      %9989 = vset.pattern.permute.xlu0 0
      %9990 = vperm.xlu0 %9989, %v9928
      %v9991 = vpop.permute.xlu0 %9990
      %9994 = vset.pattern.permute.xlu0 0
      %9995 = vperm.xlu0 %9994, %v9929
      %v9996 = vpop.permute.xlu0 %9995
      %9999 = vset.pattern.permute.xlu0 0
      %10000 = vperm.xlu0 %9999, %v9930
      %v10001 = vpop.permute.xlu0 %10000
      %10004 = vset.pattern.permute.xlu0 0
      %10005 = vperm.xlu0 %10004, %v9931
      %v10006 = vpop.permute.xlu0 %10005
      %10009 = vset.pattern.permute.xlu0 0
      %10010 = vperm.xlu0 %10009, %v9932
      %v10011 = vpop.permute.xlu0 %10010
      %10014 = vset.pattern.permute.xlu0 0
      %10015 = vperm.xlu0 %10014, %v9933
      %v10016 = vpop.permute.xlu0 %10015
      %10019 = vset.pattern.permute.xlu0 0
      %10020 = vperm.xlu0 %10019, %v9934
      %v10021 = vpop.permute.xlu0 %10020
      %10024 = vset.pattern.permute.xlu0 0
      %10025 = vperm.xlu0 %10024, %v9935
      %v10026 = vpop.permute.xlu0 %10025
      %10029 = vset.pattern.permute.xlu0 0
      %10030 = vperm.xlu0 %10029, %v9936
      %v10031 = vpop.permute.xlu0 %10030
      %10034 = vset.pattern.permute.xlu0 0
      %10035 = vperm.xlu0 %10034, %v9937
      %v10036 = vpop.permute.xlu0 %10035
      %10039 = vset.pattern.permute.xlu0 0
      %10040 = vperm.xlu0 %10039, %v9938
      %v10041 = vpop.permute.xlu0 %10040
      %10044 = vset.pattern.permute.xlu0 0
      %10045 = vperm.xlu0 %10044, %v9939
      %v10046 = vpop.permute.xlu0 %10045
      %10049 = vset.pattern.permute.xlu0 0
      %10050 = vperm.xlu0 %10049, %v9940
      %v10051 = vpop.permute.xlu0 %10050
      %10054 = vset.pattern.permute.xlu0 0
      %10055 = vperm.xlu0 %10054, %v9941
      %v10056 = vpop.permute.xlu0 %10055
      %10059 = vset.pattern.permute.xlu0 0
      %10060 = vperm.xlu0 %10059, %v9942
      %v10061 = vpop.permute.xlu0 %10060
      %10064 = vset.pattern.permute.xlu0 0
      %10065 = vperm.xlu0 %10064, %v9943
      %v10066 = vpop.permute.xlu0 %10065
      %10069 = vset.pattern.permute.xlu0 0
      %10070 = vperm.xlu0 %10069, %v9944
      %v10071 = vpop.permute.xlu0 %10070
      %10074 = vset.pattern.permute.xlu0 0
      %10075 = vperm.xlu0 %10074, %v9945
      %v10076 = vpop.permute.xlu0 %10075
      %10079 = vset.pattern.permute.xlu0 0
      %10080 = vperm.xlu0 %10079, %v9946
      %v10081 = vpop.permute.xlu0 %10080
      %10084 = vset.pattern.permute.xlu0 0
      %10085 = vperm.xlu0 %10084, %v9947
      %v10086 = vpop.permute.xlu0 %10085
      %10089 = vset.pattern.permute.xlu0 0
      %10090 = vperm.xlu0 %10089, %v9948
      %v10091 = vpop.permute.xlu0 %10090
      %10094 = vset.pattern.permute.xlu0 0
      %10095 = vperm.xlu0 %10094, %v9949
      %v10096 = vpop.permute.xlu0 %10095
      %10099 = vset.pattern.permute.xlu0 0
      %10100 = vperm.xlu0 %10099, %v9950
      %v10101 = vpop.permute.xlu0 %10100
      %10104 = vset.pattern.permute.xlu0 0
      %10105 = vperm.xlu0 %10104, %v9951
      %v10106 = vpop.permute.xlu0 %10105
      %10109 = vset.pattern.permute.xlu0 0
      %10110 = vperm.xlu0 %10109, %v9952
      %v10111 = vpop.permute.xlu0 %10110
      %v10113 = vmul.f32 %v9889, %v9956
      %v10114 = vmul.f32 %v9890, %v9961
      %v10115 = vmul.f32 %v9891, %v9966
      %v10116 = vmul.f32 %v9892, %v9971
      %v10117 = vmul.f32 %v9893, %v9976
      %v10118 = vmul.f32 %v9894, %v9981
      %v10119 = vmul.f32 %v9895, %v9986
      %v10120 = vmul.f32 %v9896, %v9991
      %v10121 = vmul.f32 %v9897, %v9996
      %v10122 = vmul.f32 %v9898, %v10001
      %v10123 = vmul.f32 %v9899, %v10006
      %v10124 = vmul.f32 %v9900, %v10011
      %v10125 = vmul.f32 %v9901, %v10016
      %v10126 = vmul.f32 %v9902, %v10021
      %v10127 = vmul.f32 %v9903, %v10026
      %v10128 = vmul.f32 %v9904, %v10031
      %v10129 = vmul.f32 %v9905, %v10036
      %v10130 = vmul.f32 %v9906, %v10041
      %v10131 = vmul.f32 %v9907, %v10046
      %v10132 = vmul.f32 %v9908, %v10051
      %v10133 = vmul.f32 %v9909, %v10056
      %v10134 = vmul.f32 %v9910, %v10061
      %v10135 = vmul.f32 %v9911, %v10066
      %v10136 = vmul.f32 %v9912, %v10071
      %v10137 = vmul.f32 %v9913, %v10076
      %v10138 = vmul.f32 %v9914, %v10081
      %v10139 = vmul.f32 %v9915, %v10086
      %v10140 = vmul.f32 %v9916, %v10091
      %v10141 = vmul.f32 %v9917, %v10096
      %v10142 = vmul.f32 %v9918, %v10101
      %v10143 = vmul.f32 %v9919, %v10106
      %v10144 = vmul.f32 %v9920, %v10111
      %v10145 = vld [vmem:[%s14] sm:$0x1]
      %v10146 = vld [vmem:[%s15] sm:$0x1]
      %v10147 = vsel %vm1241, %v10113, 0.0
      %10148 = vadd.xlane.f32.xlu0 %v10147
      %v10149 = vpop.xlane.xlu0 %10148
      %v10150 = vsel %vm1241, %v10114, 0.0
      %10151 = vadd.xlane.f32.xlu0 %v10150
      %v10152 = vpop.xlane.xlu0 %10151
      %v10153 = vsel %vm1241, %v10115, 0.0
      %10154 = vadd.xlane.f32.xlu0 %v10153
      %v10155 = vpop.xlane.xlu0 %10154
      %v10156 = vsel %vm1241, %v10116, 0.0
      %10157 = vadd.xlane.f32.xlu0 %v10156
      %v10158 = vpop.xlane.xlu0 %10157
      %v10159 = vsel %vm1241, %v10117, 0.0
      %10160 = vadd.xlane.f32.xlu0 %v10159
      %v10161 = vpop.xlane.xlu0 %10160
      %v10162 = vsel %vm1241, %v10118, 0.0
      %10163 = vadd.xlane.f32.xlu0 %v10162
      %v10164 = vpop.xlane.xlu0 %10163
      %v10165 = vsel %vm1241, %v10119, 0.0
      %10166 = vadd.xlane.f32.xlu0 %v10165
      %v10167 = vpop.xlane.xlu0 %10166
      %v10168 = vsel %vm1241, %v10120, 0.0
      %10169 = vadd.xlane.f32.xlu0 %v10168
      %v10170 = vpop.xlane.xlu0 %10169
      %v10171 = vsel %vm1241, %v10121, 0.0
      %10172 = vadd.xlane.f32.xlu0 %v10171
      %v10173 = vpop.xlane.xlu0 %10172
      %v10174 = vsel %vm1241, %v10122, 0.0
      %10175 = vadd.xlane.f32.xlu0 %v10174
      %v10176 = vpop.xlane.xlu0 %10175
      %v10177 = vsel %vm1241, %v10123, 0.0
      %10178 = vadd.xlane.f32.xlu0 %v10177
      %v10179 = vpop.xlane.xlu0 %10178
      %v10180 = vsel %vm1241, %v10124, 0.0
      %10181 = vadd.xlane.f32.xlu0 %v10180
      %v10182 = vpop.xlane.xlu0 %10181
      %v10183 = vsel %vm1241, %v10125, 0.0
      %10184 = vadd.xlane.f32.xlu0 %v10183
      %v10185 = vpop.xlane.xlu0 %10184
      %v10186 = vsel %vm1241, %v10126, 0.0
      %10187 = vadd.xlane.f32.xlu0 %v10186
      %v10188 = vpop.xlane.xlu0 %10187
      %v10189 = vsel %vm1241, %v10127, 0.0
      %10190 = vadd.xlane.f32.xlu0 %v10189
      %v10191 = vpop.xlane.xlu0 %10190
      %v10192 = vsel %vm1241, %v10128, 0.0
      %10193 = vadd.xlane.f32.xlu0 %v10192
      %v10194 = vpop.xlane.xlu0 %10193
      %v10195 = vsel %vm1241, %v10129, 0.0
      %10196 = vadd.xlane.f32.xlu0 %v10195
      %v10197 = vpop.xlane.xlu0 %10196
      %v10198 = vsel %vm1241, %v10130, 0.0
      %10199 = vadd.xlane.f32.xlu0 %v10198
      %v10200 = vpop.xlane.xlu0 %10199
      %v10201 = vsel %vm1241, %v10131, 0.0
      %10202 = vadd.xlane.f32.xlu0 %v10201
      %v10203 = vpop.xlane.xlu0 %10202
      %v10204 = vsel %vm1241, %v10132, 0.0
      %10205 = vadd.xlane.f32.xlu0 %v10204
      %v10206 = vpop.xlane.xlu0 %10205
      %v10207 = vsel %vm1241, %v10133, 0.0
      %10208 = vadd.xlane.f32.xlu0 %v10207
      %v10209 = vpop.xlane.xlu0 %10208
      %v10210 = vsel %vm1241, %v10134, 0.0
      %10211 = vadd.xlane.f32.xlu0 %v10210
      %v10212 = vpop.xlane.xlu0 %10211
      %v10213 = vsel %vm1241, %v10135, 0.0
      %10214 = vadd.xlane.f32.xlu0 %v10213
      %v10215 = vpop.xlane.xlu0 %10214
      %v10216 = vsel %vm1241, %v10136, 0.0
      %10217 = vadd.xlane.f32.xlu0 %v10216
      %v10218 = vpop.xlane.xlu0 %10217
      %v10219 = vsel %vm1241, %v10137, 0.0
      %10220 = vadd.xlane.f32.xlu0 %v10219
      %v10221 = vpop.xlane.xlu0 %10220
      %v10222 = vsel %vm1241, %v10138, 0.0
      %10223 = vadd.xlane.f32.xlu0 %v10222
      %v10224 = vpop.xlane.xlu0 %10223
      %v10225 = vsel %vm1241, %v10139, 0.0
      %10226 = vadd.xlane.f32.xlu0 %v10225
      %v10227 = vpop.xlane.xlu0 %10226
      %v10228 = vsel %vm1241, %v10140, 0.0
      %10229 = vadd.xlane.f32.xlu0 %v10228
      %v10230 = vpop.xlane.xlu0 %10229
      %v10231 = vsel %vm1241, %v10141, 0.0
      %10232 = vadd.xlane.f32.xlu0 %v10231
      %v10233 = vpop.xlane.xlu0 %10232
      %v10234 = vsel %vm1241, %v10142, 0.0
      %10235 = vadd.xlane.f32.xlu0 %v10234
      %v10236 = vpop.xlane.xlu0 %10235
      %v10237 = vsel %vm1241, %v10143, 0.0
      %10238 = vadd.xlane.f32.xlu0 %v10237
      %v10239 = vpop.xlane.xlu0 %10238
      %v10240 = vsel %vm1241, %v10144, 0.0
      %10241 = vadd.xlane.f32.xlu0 %v10240
      %v10242 = vpop.xlane.xlu0 %10241
      %v10243 = vmul.f32 %v10149, %v1350
      %v10244 = vmul.f32 %v10152, %v1350
      %v10245 = vmul.f32 %v10155, %v1350
      %v10246 = vmul.f32 %v10158, %v1350
      %v10247 = vmul.f32 %v10161, %v1350
      %v10248 = vmul.f32 %v10164, %v1350
      %v10249 = vmul.f32 %v10167, %v1350
      %v10250 = vmul.f32 %v10170, %v1350
      %v10251 = vmul.f32 %v10173, %v1350
      %v10252 = vmul.f32 %v10176, %v1350
      %v10253 = vmul.f32 %v10179, %v1350
      %v10254 = vmul.f32 %v10182, %v1350
      %v10255 = vmul.f32 %v10185, %v1350
      %v10256 = vmul.f32 %v10188, %v1350
      %v10257 = vmul.f32 %v10191, %v1350
      %v10258 = vmul.f32 %v10194, %v1350
      %v10259 = vmul.f32 %v10197, %v1350
      %v10260 = vmul.f32 %v10200, %v1350
      %v10261 = vmul.f32 %v10203, %v1350
      %v10262 = vmul.f32 %v10206, %v1350
      %v10263 = vmul.f32 %v10209, %v1350
      %v10264 = vmul.f32 %v10212, %v1350
      %v10265 = vmul.f32 %v10215, %v1350
      %v10266 = vmul.f32 %v10218, %v1350
      %v10267 = vmul.f32 %v10221, %v1350
      %v10268 = vmul.f32 %v10224, %v1350
      %v10269 = vmul.f32 %v10227, %v1350
      %v10270 = vmul.f32 %v10230, %v1350
      %v10271 = vmul.f32 %v10233, %v1350
      %v10272 = vmul.f32 %v10236, %v1350
      %v10273 = vmul.f32 %v10239, %v1350
      %v10274 = vmul.f32 %v10242, %v1350
      %v10275 = vmul.f32 %v10113, %v10113
      %v10276 = vmul.f32 %v10114, %v10114
      %v10277 = vmul.f32 %v10115, %v10115
      %v10278 = vmul.f32 %v10116, %v10116
      %v10279 = vmul.f32 %v10117, %v10117
      %v10280 = vmul.f32 %v10118, %v10118
      %v10281 = vmul.f32 %v10119, %v10119
      %v10282 = vmul.f32 %v10120, %v10120
      %v10283 = vmul.f32 %v10121, %v10121
      %v10284 = vmul.f32 %v10122, %v10122
      %v10285 = vmul.f32 %v10123, %v10123
      %v10286 = vmul.f32 %v10124, %v10124
      %v10287 = vmul.f32 %v10125, %v10125
      %v10288 = vmul.f32 %v10126, %v10126
      %v10289 = vmul.f32 %v10127, %v10127
      %v10290 = vmul.f32 %v10128, %v10128
      %v10291 = vmul.f32 %v10129, %v10129
      %v10292 = vmul.f32 %v10130, %v10130
      %v10293 = vmul.f32 %v10131, %v10131
      %v10294 = vmul.f32 %v10132, %v10132
      %v10295 = vmul.f32 %v10133, %v10133
      %v10296 = vmul.f32 %v10134, %v10134
      %v10297 = vmul.f32 %v10135, %v10135
      %v10298 = vmul.f32 %v10136, %v10136
      %v10299 = vmul.f32 %v10137, %v10137
      %v10300 = vmul.f32 %v10138, %v10138
      %v10301 = vmul.f32 %v10139, %v10139
      %v10302 = vmul.f32 %v10140, %v10140
      %v10303 = vmul.f32 %v10141, %v10141
      %v10304 = vmul.f32 %v10142, %v10142
      %v10305 = vmul.f32 %v10143, %v10143
      %v10306 = vmul.f32 %v10144, %v10144
      %v10307 = vsel %vm1241, %v10275, 0.0
      %10308 = vadd.xlane.f32.xlu0 %v10307
      %v10309 = vpop.xlane.xlu0 %10308
      %v10310 = vsel %vm1241, %v10276, 0.0
      %10311 = vadd.xlane.f32.xlu0 %v10310
      %v10312 = vpop.xlane.xlu0 %10311
      %v10313 = vsel %vm1241, %v10277, 0.0
      %10314 = vadd.xlane.f32.xlu0 %v10313
      %v10315 = vpop.xlane.xlu0 %10314
      %v10316 = vsel %vm1241, %v10278, 0.0
      %10317 = vadd.xlane.f32.xlu0 %v10316
      %v10318 = vpop.xlane.xlu0 %10317
      %v10319 = vsel %vm1241, %v10279, 0.0
      %10320 = vadd.xlane.f32.xlu0 %v10319
      %v10321 = vpop.xlane.xlu0 %10320
      %v10322 = vsel %vm1241, %v10280, 0.0
      %10323 = vadd.xlane.f32.xlu0 %v10322
      %v10324 = vpop.xlane.xlu0 %10323
      %v10325 = vsel %vm1241, %v10281, 0.0
      %10326 = vadd.xlane.f32.xlu0 %v10325
      %v10327 = vpop.xlane.xlu0 %10326
      %v10328 = vsel %vm1241, %v10282, 0.0
      %10329 = vadd.xlane.f32.xlu0 %v10328
      %v10330 = vpop.xlane.xlu0 %10329
      %v10331 = vsel %vm1241, %v10283, 0.0
      %10332 = vadd.xlane.f32.xlu0 %v10331
      %v10333 = vpop.xlane.xlu0 %10332
      %v10334 = vsel %vm1241, %v10284, 0.0
      %10335 = vadd.xlane.f32.xlu0 %v10334
      %v10336 = vpop.xlane.xlu0 %10335
      %v10337 = vsel %vm1241, %v10285, 0.0
      %10338 = vadd.xlane.f32.xlu0 %v10337
      %v10339 = vpop.xlane.xlu0 %10338
      %v10340 = vsel %vm1241, %v10286, 0.0
      %10341 = vadd.xlane.f32.xlu0 %v10340
      %v10342 = vpop.xlane.xlu0 %10341
      %v10343 = vsel %vm1241, %v10287, 0.0
      %10344 = vadd.xlane.f32.xlu0 %v10343
      %v10345 = vpop.xlane.xlu0 %10344
      %v10346 = vsel %vm1241, %v10288, 0.0
      %10347 = vadd.xlane.f32.xlu0 %v10346
      %v10348 = vpop.xlane.xlu0 %10347
      %v10349 = vsel %vm1241, %v10289, 0.0
      %10350 = vadd.xlane.f32.xlu0 %v10349
      %v10351 = vpop.xlane.xlu0 %10350
      %v10352 = vsel %vm1241, %v10290, 0.0
      %10353 = vadd.xlane.f32.xlu0 %v10352
      %v10354 = vpop.xlane.xlu0 %10353
      %v10355 = vsel %vm1241, %v10291, 0.0
      %10356 = vadd.xlane.f32.xlu0 %v10355
      %v10357 = vpop.xlane.xlu0 %10356
      %v10358 = vsel %vm1241, %v10292, 0.0
      %10359 = vadd.xlane.f32.xlu0 %v10358
      %v10360 = vpop.xlane.xlu0 %10359
      %v10361 = vsel %vm1241, %v10293, 0.0
      %10362 = vadd.xlane.f32.xlu0 %v10361
      %v10363 = vpop.xlane.xlu0 %10362
      %v10364 = vsel %vm1241, %v10294, 0.0
      %10365 = vadd.xlane.f32.xlu0 %v10364
      %v10366 = vpop.xlane.xlu0 %10365
      %v10367 = vsel %vm1241, %v10295, 0.0
      %10368 = vadd.xlane.f32.xlu0 %v10367
      %v10369 = vpop.xlane.xlu0 %10368
      %v10370 = vsel %vm1241, %v10296, 0.0
      %10371 = vadd.xlane.f32.xlu0 %v10370
      %v10372 = vpop.xlane.xlu0 %10371
      %v10373 = vsel %vm1241, %v10297, 0.0
      %10374 = vadd.xlane.f32.xlu0 %v10373
      %v10375 = vpop.xlane.xlu0 %10374
      %v10376 = vsel %vm1241, %v10298, 0.0
      %10377 = vadd.xlane.f32.xlu0 %v10376
      %v10378 = vpop.xlane.xlu0 %10377
      %v10379 = vsel %vm1241, %v10299, 0.0
      %10380 = vadd.xlane.f32.xlu0 %v10379
      %v10381 = vpop.xlane.xlu0 %10380
      %v10382 = vsel %vm1241, %v10300, 0.0
      %10383 = vadd.xlane.f32.xlu0 %v10382
      %v10384 = vpop.xlane.xlu0 %10383
      %v10385 = vsel %vm1241, %v10301, 0.0
      %10386 = vadd.xlane.f32.xlu0 %v10385
      %v10387 = vpop.xlane.xlu0 %10386
      %v10388 = vsel %vm1241, %v10302, 0.0
      %10389 = vadd.xlane.f32.xlu0 %v10388
      %v10390 = vpop.xlane.xlu0 %10389
      %v10391 = vsel %vm1241, %v10303, 0.0
      %10392 = vadd.xlane.f32.xlu0 %v10391
      %v10393 = vpop.xlane.xlu0 %10392
      %v10394 = vsel %vm1241, %v10304, 0.0
      %10395 = vadd.xlane.f32.xlu0 %v10394
      %v10396 = vpop.xlane.xlu0 %10395
      %v10397 = vsel %vm1241, %v10305, 0.0
      %10398 = vadd.xlane.f32.xlu0 %v10397
      %v10399 = vpop.xlane.xlu0 %10398
      %v10400 = vsel %vm1241, %v10306, 0.0
      %10401 = vadd.xlane.f32.xlu0 %v10400
      %v10402 = vpop.xlane.xlu0 %10401
      %v10403 = vmul.f32 %v10309, %v1350
      %v10404 = vmul.f32 %v10312, %v1350
      %v10405 = vmul.f32 %v10315, %v1350
      %v10406 = vmul.f32 %v10318, %v1350
      %v10407 = vmul.f32 %v10321, %v1350
      %v10408 = vmul.f32 %v10324, %v1350
      %v10409 = vmul.f32 %v10327, %v1350
      %v10410 = vmul.f32 %v10330, %v1350
      %v10411 = vmul.f32 %v10333, %v1350
      %v10412 = vmul.f32 %v10336, %v1350
      %v10413 = vmul.f32 %v10339, %v1350
      %v10414 = vmul.f32 %v10342, %v1350
      %v10415 = vmul.f32 %v10345, %v1350
      %v10416 = vmul.f32 %v10348, %v1350
      %v10417 = vmul.f32 %v10351, %v1350
      %v10418 = vmul.f32 %v10354, %v1350
      %v10419 = vmul.f32 %v10357, %v1350
      %v10420 = vmul.f32 %v10360, %v1350
      %v10421 = vmul.f32 %v10363, %v1350
      %v10422 = vmul.f32 %v10366, %v1350
      %v10423 = vmul.f32 %v10369, %v1350
      %v10424 = vmul.f32 %v10372, %v1350
      %v10425 = vmul.f32 %v10375, %v1350
      %v10426 = vmul.f32 %v10378, %v1350
      %v10427 = vmul.f32 %v10381, %v1350
      %v10428 = vmul.f32 %v10384, %v1350
      %v10429 = vmul.f32 %v10387, %v1350
      %v10430 = vmul.f32 %v10390, %v1350
      %v10431 = vmul.f32 %v10393, %v1350
      %v10432 = vmul.f32 %v10396, %v1350
      %v10433 = vmul.f32 %v10399, %v1350
      %v10434 = vmul.f32 %v10402, %v1350
      %v10435 = vmul.f32 %v10243, %v10243
      %v10436 = vmul.f32 %v10244, %v10244
      %v10437 = vmul.f32 %v10245, %v10245
      %v10438 = vmul.f32 %v10246, %v10246
      %v10439 = vmul.f32 %v10247, %v10247
      %v10440 = vmul.f32 %v10248, %v10248
      %v10441 = vmul.f32 %v10249, %v10249
      %v10442 = vmul.f32 %v10250, %v10250
      %v10443 = vmul.f32 %v10251, %v10251
      %v10444 = vmul.f32 %v10252, %v10252
      %v10445 = vmul.f32 %v10253, %v10253
      %v10446 = vmul.f32 %v10254, %v10254
      %v10447 = vmul.f32 %v10255, %v10255
      %v10448 = vmul.f32 %v10256, %v10256
      %v10449 = vmul.f32 %v10257, %v10257
      %v10450 = vmul.f32 %v10258, %v10258
      %v10451 = vmul.f32 %v10259, %v10259
      %v10452 = vmul.f32 %v10260, %v10260
      %v10453 = vmul.f32 %v10261, %v10261
      %v10454 = vmul.f32 %v10262, %v10262
      %v10455 = vmul.f32 %v10263, %v10263
      %v10456 = vmul.f32 %v10264, %v10264
      %v10457 = vmul.f32 %v10265, %v10265
      %v10458 = vmul.f32 %v10266, %v10266
      %v10459 = vmul.f32 %v10267, %v10267
      %v10460 = vmul.f32 %v10268, %v10268
      %v10461 = vmul.f32 %v10269, %v10269
      %v10462 = vmul.f32 %v10270, %v10270
      %v10463 = vmul.f32 %v10271, %v10271
      %v10464 = vmul.f32 %v10272, %v10272
      %v10465 = vmul.f32 %v10273, %v10273
      %v10466 = vmul.f32 %v10274, %v10274
      %v10467 = vsub.f32 %v10403, %v10435
      %v10468 = vsub.f32 %v10404, %v10436
      %v10469 = vsub.f32 %v10405, %v10437
      %v10470 = vsub.f32 %v10406, %v10438
      %v10471 = vsub.f32 %v10407, %v10439
      %v10472 = vsub.f32 %v10408, %v10440
      %v10473 = vsub.f32 %v10409, %v10441
      %v10474 = vsub.f32 %v10410, %v10442
      %v10475 = vsub.f32 %v10411, %v10443
      %v10476 = vsub.f32 %v10412, %v10444
      %v10477 = vsub.f32 %v10413, %v10445
      %v10478 = vsub.f32 %v10414, %v10446
      %v10479 = vsub.f32 %v10415, %v10447
      %v10480 = vsub.f32 %v10416, %v10448
      %v10481 = vsub.f32 %v10417, %v10449
      %v10482 = vsub.f32 %v10418, %v10450
      %v10483 = vsub.f32 %v10419, %v10451
      %v10484 = vsub.f32 %v10420, %v10452
      %v10485 = vsub.f32 %v10421, %v10453
      %v10486 = vsub.f32 %v10422, %v10454
      %v10487 = vsub.f32 %v10423, %v10455
      %v10488 = vsub.f32 %v10424, %v10456
      %v10489 = vsub.f32 %v10425, %v10457
      %v10490 = vsub.f32 %v10426, %v10458
      %v10491 = vsub.f32 %v10427, %v10459
      %v10492 = vsub.f32 %v10428, %v10460
      %v10493 = vsub.f32 %v10429, %v10461
      %v10494 = vsub.f32 %v10430, %v10462
      %v10495 = vsub.f32 %v10431, %v10463
      %v10496 = vsub.f32 %v10432, %v10464
      %v10497 = vsub.f32 %v10433, %v10465
      %v10498 = vsub.f32 %v10434, %v10466
      %v10499 = vmax.f32 %v10467, 0.0
      %v10500 = vmax.f32 %v10468, 0.0
      %v10501 = vmax.f32 %v10469, 0.0
      %v10502 = vmax.f32 %v10470, 0.0
      %v10503 = vmax.f32 %v10471, 0.0
      %v10504 = vmax.f32 %v10472, 0.0
      %v10505 = vmax.f32 %v10473, 0.0
      %v10506 = vmax.f32 %v10474, 0.0
      %v10507 = vmax.f32 %v10475, 0.0
      %v10508 = vmax.f32 %v10476, 0.0
      %v10509 = vmax.f32 %v10477, 0.0
      %v10510 = vmax.f32 %v10478, 0.0
      %v10511 = vmax.f32 %v10479, 0.0
      %v10512 = vmax.f32 %v10480, 0.0
      %v10513 = vmax.f32 %v10481, 0.0
      %v10514 = vmax.f32 %v10482, 0.0
      %v10515 = vmax.f32 %v10483, 0.0
      %v10516 = vmax.f32 %v10484, 0.0
      %v10517 = vmax.f32 %v10485, 0.0
      %v10518 = vmax.f32 %v10486, 0.0
      %v10519 = vmax.f32 %v10487, 0.0
      %v10520 = vmax.f32 %v10488, 0.0
      %v10521 = vmax.f32 %v10489, 0.0
      %v10522 = vmax.f32 %v10490, 0.0
      %v10523 = vmax.f32 %v10491, 0.0
      %v10524 = vmax.f32 %v10492, 0.0
      %v10525 = vmax.f32 %v10493, 0.0
      %v10526 = vmax.f32 %v10494, 0.0
      %v10527 = vmax.f32 %v10495, 0.0
      %v10528 = vmax.f32 %v10496, 0.0
      %v10529 = vmax.f32 %v10497, 0.0
      %v10530 = vmax.f32 %v10498, 0.0
      %v10531 = vsub.f32 %v10113, %v10243
      %v10532 = vsub.f32 %v10114, %v10244
      %v10533 = vsub.f32 %v10115, %v10245
      %v10534 = vsub.f32 %v10116, %v10246
      %v10535 = vsub.f32 %v10117, %v10247
      %v10536 = vsub.f32 %v10118, %v10248
      %v10537 = vsub.f32 %v10119, %v10249
      %v10538 = vsub.f32 %v10120, %v10250
      %v10539 = vsub.f32 %v10121, %v10251
      %v10540 = vsub.f32 %v10122, %v10252
      %v10541 = vsub.f32 %v10123, %v10253
      %v10542 = vsub.f32 %v10124, %v10254
      %v10543 = vsub.f32 %v10125, %v10255
      %v10544 = vsub.f32 %v10126, %v10256
      %v10545 = vsub.f32 %v10127, %v10257
      %v10546 = vsub.f32 %v10128, %v10258
      %v10547 = vsub.f32 %v10129, %v10259
      %v10548 = vsub.f32 %v10130, %v10260
      %v10549 = vsub.f32 %v10131, %v10261
      %v10550 = vsub.f32 %v10132, %v10262
      %v10551 = vsub.f32 %v10133, %v10263
      %v10552 = vsub.f32 %v10134, %v10264
      %v10553 = vsub.f32 %v10135, %v10265
      %v10554 = vsub.f32 %v10136, %v10266
      %v10555 = vsub.f32 %v10137, %v10267
      %v10556 = vsub.f32 %v10138, %v10268
      %v10557 = vsub.f32 %v10139, %v10269
      %v10558 = vsub.f32 %v10140, %v10270
      %v10559 = vsub.f32 %v10141, %v10271
      %v10560 = vsub.f32 %v10142, %v10272
      %v10561 = vsub.f32 %v10143, %v10273
      %v10562 = vsub.f32 %v10144, %v10274
      %v10563 = vadd.f32 %v10499, 1e-05
      %v10564 = vadd.f32 %v10500, 1e-05
      %v10565 = vadd.f32 %v10501, 1e-05
      %v10566 = vadd.f32 %v10502, 1e-05
      %v10567 = vadd.f32 %v10503, 1e-05
      %v10568 = vadd.f32 %v10504, 1e-05
      %v10569 = vadd.f32 %v10505, 1e-05
      %v10570 = vadd.f32 %v10506, 1e-05
      %v10571 = vadd.f32 %v10507, 1e-05
      %v10572 = vadd.f32 %v10508, 1e-05
      %v10573 = vadd.f32 %v10509, 1e-05
      %v10574 = vadd.f32 %v10510, 1e-05
      %v10575 = vadd.f32 %v10511, 1e-05
      %v10576 = vadd.f32 %v10512, 1e-05
      %v10577 = vadd.f32 %v10513, 1e-05
      %v10578 = vadd.f32 %v10514, 1e-05
      %v10579 = vadd.f32 %v10515, 1e-05
      %v10580 = vadd.f32 %v10516, 1e-05
      %v10581 = vadd.f32 %v10517, 1e-05
      %v10582 = vadd.f32 %v10518, 1e-05
      %v10583 = vadd.f32 %v10519, 1e-05
      %v10584 = vadd.f32 %v10520, 1e-05
      %v10585 = vadd.f32 %v10521, 1e-05
      %v10586 = vadd.f32 %v10522, 1e-05
      %v10587 = vadd.f32 %v10523, 1e-05
      %v10588 = vadd.f32 %v10524, 1e-05
      %v10589 = vadd.f32 %v10525, 1e-05
      %v10590 = vadd.f32 %v10526, 1e-05
      %v10591 = vadd.f32 %v10527, 1e-05
      %v10592 = vadd.f32 %v10528, 1e-05
      %v10593 = vadd.f32 %v10529, 1e-05
      %v10594 = vadd.f32 %v10530, 1e-05
      %v10595 = vrsqrt.pop %v10563
      %v10596 = vrsqrt.pop %v10564
      %v10597 = vrsqrt.pop %v10565
      %v10598 = vrsqrt.pop %v10566
      %v10599 = vrsqrt.pop %v10567
      %v10600 = vrsqrt.pop %v10568
      %v10601 = vrsqrt.pop %v10569
      %v10602 = vrsqrt.pop %v10570
      %v10603 = vrsqrt.pop %v10571
      %v10604 = vrsqrt.pop %v10572
      %v10605 = vrsqrt.pop %v10573
      %v10606 = vrsqrt.pop %v10574
      %v10607 = vrsqrt.pop %v10575
      %v10608 = vrsqrt.pop %v10576
      %v10609 = vrsqrt.pop %v10577
      %v10610 = vrsqrt.pop %v10578
      %v10611 = vrsqrt.pop %v10579
      %v10612 = vrsqrt.pop %v10580
      %v10613 = vrsqrt.pop %v10581
      %v10614 = vrsqrt.pop %v10582
      %v10615 = vrsqrt.pop %v10583
      %v10616 = vrsqrt.pop %v10584
      %v10617 = vrsqrt.pop %v10585
      %v10618 = vrsqrt.pop %v10586
      %v10619 = vrsqrt.pop %v10587
      %v10620 = vrsqrt.pop %v10588
      %v10621 = vrsqrt.pop %v10589
      %v10622 = vrsqrt.pop %v10590
      %v10623 = vrsqrt.pop %v10591
      %v10624 = vrsqrt.pop %v10592
      %v10625 = vrsqrt.pop %v10593
      %v10626 = vrsqrt.pop %v10594
      %v10627 = vmul.f32 %v10531, %v10595
      %v10628 = vmul.f32 %v10532, %v10596
      %v10629 = vmul.f32 %v10533, %v10597
      %v10630 = vmul.f32 %v10534, %v10598
      %v10631 = vmul.f32 %v10535, %v10599
      %v10632 = vmul.f32 %v10536, %v10600
      %v10633 = vmul.f32 %v10537, %v10601
      %v10634 = vmul.f32 %v10538, %v10602
      %v10635 = vmul.f32 %v10539, %v10603
      %v10636 = vmul.f32 %v10540, %v10604
      %v10637 = vmul.f32 %v10541, %v10605
      %v10638 = vmul.f32 %v10542, %v10606
      %v10639 = vmul.f32 %v10543, %v10607
      %v10640 = vmul.f32 %v10544, %v10608
      %v10641 = vmul.f32 %v10545, %v10609
      %v10642 = vmul.f32 %v10546, %v10610
      %v10643 = vmul.f32 %v10547, %v10611
      %v10644 = vmul.f32 %v10548, %v10612
      %v10645 = vmul.f32 %v10549, %v10613
      %v10646 = vmul.f32 %v10550, %v10614
      %v10647 = vmul.f32 %v10551, %v10615
      %v10648 = vmul.f32 %v10552, %v10616
      %v10649 = vmul.f32 %v10553, %v10617
      %v10650 = vmul.f32 %v10554, %v10618
      %v10651 = vmul.f32 %v10555, %v10619
      %v10652 = vmul.f32 %v10556, %v10620
      %v10653 = vmul.f32 %v10557, %v10621
      %v10654 = vmul.f32 %v10558, %v10622
      %v10655 = vmul.f32 %v10559, %v10623
      %v10656 = vmul.f32 %v10560, %v10624
      %v10657 = vmul.f32 %v10561, %v10625
      %v10658 = vmul.f32 %v10562, %v10626
      %v10660 = vlaneseq
      %v10661 = vshrl.u32 %v10660, 7
      %v10662 = vsub.s32 0, %v10661
      %v10663 = vrot.slane %v10145, %v10662
      %v10665 = vmul.f32 %v10627, %v10663
      %v10666 = vmul.f32 %v10628, %v10663
      %v10667 = vmul.f32 %v10629, %v10663
      %v10668 = vmul.f32 %v10630, %v10663
      %v10669 = vmul.f32 %v10631, %v10663
      %v10670 = vmul.f32 %v10632, %v10663
      %v10671 = vmul.f32 %v10633, %v10663
      %v10672 = vmul.f32 %v10634, %v10663
      %v10673 = vmul.f32 %v10635, %v10663
      %v10674 = vmul.f32 %v10636, %v10663
      %v10675 = vmul.f32 %v10637, %v10663
      %v10676 = vmul.f32 %v10638, %v10663
      %v10677 = vmul.f32 %v10639, %v10663
      %v10678 = vmul.f32 %v10640, %v10663
      %v10679 = vmul.f32 %v10641, %v10663
      %v10680 = vmul.f32 %v10642, %v10663
      %v10681 = vmul.f32 %v10643, %v10663
      %v10682 = vmul.f32 %v10644, %v10663
      %v10683 = vmul.f32 %v10645, %v10663
      %v10684 = vmul.f32 %v10646, %v10663
      %v10685 = vmul.f32 %v10647, %v10663
      %v10686 = vmul.f32 %v10648, %v10663
      %v10687 = vmul.f32 %v10649, %v10663
      %v10688 = vmul.f32 %v10650, %v10663
      %v10689 = vmul.f32 %v10651, %v10663
      %v10690 = vmul.f32 %v10652, %v10663
      %v10691 = vmul.f32 %v10653, %v10663
      %v10692 = vmul.f32 %v10654, %v10663
      %v10693 = vmul.f32 %v10655, %v10663
      %v10694 = vmul.f32 %v10656, %v10663
      %v10695 = vmul.f32 %v10657, %v10663
      %v10696 = vmul.f32 %v10658, %v10663
      %v10698 = vlaneseq
      %v10699 = vshrl.u32 %v10698, 7
      %v10700 = vsub.s32 0, %v10699
      %v10701 = vrot.slane %v10146, %v10700
      %v10703 = vadd.f32 %v10665, %v10701
      %v10704 = vadd.f32 %v10666, %v10701
      %v10705 = vadd.f32 %v10667, %v10701
      %v10706 = vadd.f32 %v10668, %v10701
      %v10707 = vadd.f32 %v10669, %v10701
      %v10708 = vadd.f32 %v10670, %v10701
      %v10709 = vadd.f32 %v10671, %v10701
      %v10710 = vadd.f32 %v10672, %v10701
      %v10711 = vadd.f32 %v10673, %v10701
      %v10712 = vadd.f32 %v10674, %v10701
      %v10713 = vadd.f32 %v10675, %v10701
      %v10714 = vadd.f32 %v10676, %v10701
      %v10715 = vadd.f32 %v10677, %v10701
      %v10716 = vadd.f32 %v10678, %v10701
      %v10717 = vadd.f32 %v10679, %v10701
      %v10718 = vadd.f32 %v10680, %v10701
      %v10719 = vadd.f32 %v10681, %v10701
      %v10720 = vadd.f32 %v10682, %v10701
      %v10721 = vadd.f32 %v10683, %v10701
      %v10722 = vadd.f32 %v10684, %v10701
      %v10723 = vadd.f32 %v10685, %v10701
      %v10724 = vadd.f32 %v10686, %v10701
      %v10725 = vadd.f32 %v10687, %v10701
      %v10726 = vadd.f32 %v10688, %v10701
      %v10727 = vadd.f32 %v10689, %v10701
      %v10728 = vadd.f32 %v10690, %v10701
      %v10729 = vadd.f32 %v10691, %v10701
      %v10730 = vadd.f32 %v10692, %v10701
      %v10731 = vadd.f32 %v10693, %v10701
      %v10732 = vadd.f32 %v10694, %v10701
      %v10733 = vadd.f32 %v10695, %v10701
      %v10734 = vadd.f32 %v10696, %v10701
      %v10735 = vld [vmem:[%s16] sm:$0x1]
      %v10737 = vlaneseq
      %v10738 = vshrl.u32 %v10737, 7
      %v10739 = vsub.s32 0, %v10738
      %v10740 = vrot.slane %v10735, %v10739
      %v10742 = vmul.f32 %v10703, %v10740
      %v10743 = vmul.f32 %v10704, %v10740
      %v10744 = vmul.f32 %v10705, %v10740
      %v10745 = vmul.f32 %v10706, %v10740
      %v10746 = vmul.f32 %v10707, %v10740
      %v10747 = vmul.f32 %v10708, %v10740
      %v10748 = vmul.f32 %v10709, %v10740
      %v10749 = vmul.f32 %v10710, %v10740
      %v10750 = vmul.f32 %v10711, %v10740
      %v10751 = vmul.f32 %v10712, %v10740
      %v10752 = vmul.f32 %v10713, %v10740
      %v10753 = vmul.f32 %v10714, %v10740
      %v10754 = vmul.f32 %v10715, %v10740
      %v10755 = vmul.f32 %v10716, %v10740
      %v10756 = vmul.f32 %v10717, %v10740
      %v10757 = vmul.f32 %v10718, %v10740
      %v10758 = vmul.f32 %v10719, %v10740
      %v10759 = vmul.f32 %v10720, %v10740
      %v10760 = vmul.f32 %v10721, %v10740
      %v10761 = vmul.f32 %v10722, %v10740
      %v10762 = vmul.f32 %v10723, %v10740
      %v10763 = vmul.f32 %v10724, %v10740
      %v10764 = vmul.f32 %v10725, %v10740
      %v10765 = vmul.f32 %v10726, %v10740
      %v10766 = vmul.f32 %v10727, %v10740
      %v10767 = vmul.f32 %v10728, %v10740
      %v10768 = vmul.f32 %v10729, %v10740
      %v10769 = vmul.f32 %v10730, %v10740
      %v10770 = vmul.f32 %v10731, %v10740
      %v10771 = vmul.f32 %v10732, %v10740
      %v10772 = vmul.f32 %v10733, %v10740
      %v10773 = vmul.f32 %v10734, %v10740
      %v10774 = vsel %vm1241, %v10742, 0.0
      %10775 = vadd.xlane.f32.xlu0 %v10774
      %v10776 = vpop.xlane.xlu0 %10775
      %v10777 = vsel %vm1241, %v10743, 0.0
      %10778 = vadd.xlane.f32.xlu0 %v10777
      %v10779 = vpop.xlane.xlu0 %10778
      %v10780 = vsel %vm1241, %v10744, 0.0
      %10781 = vadd.xlane.f32.xlu0 %v10780
      %v10782 = vpop.xlane.xlu0 %10781
      %v10783 = vsel %vm1241, %v10745, 0.0
      %10784 = vadd.xlane.f32.xlu0 %v10783
      %v10785 = vpop.xlane.xlu0 %10784
      %v10786 = vsel %vm1241, %v10746, 0.0
      %10787 = vadd.xlane.f32.xlu0 %v10786
      %v10788 = vpop.xlane.xlu0 %10787
      %v10789 = vsel %vm1241, %v10747, 0.0
      %10790 = vadd.xlane.f32.xlu0 %v10789
      %v10791 = vpop.xlane.xlu0 %10790
      %v10792 = vsel %vm1241, %v10748, 0.0
      %10793 = vadd.xlane.f32.xlu0 %v10792
      %v10794 = vpop.xlane.xlu0 %10793
      %v10795 = vsel %vm1241, %v10749, 0.0
      %10796 = vadd.xlane.f32.xlu0 %v10795
      %v10797 = vpop.xlane.xlu0 %10796
      %v10798 = vsel %vm1241, %v10750, 0.0
      %10799 = vadd.xlane.f32.xlu0 %v10798
      %v10800 = vpop.xlane.xlu0 %10799
      %v10801 = vsel %vm1241, %v10751, 0.0
      %10802 = vadd.xlane.f32.xlu0 %v10801
      %v10803 = vpop.xlane.xlu0 %10802
      %v10804 = vsel %vm1241, %v10752, 0.0
      %10805 = vadd.xlane.f32.xlu0 %v10804
      %v10806 = vpop.xlane.xlu0 %10805
      %v10807 = vsel %vm1241, %v10753, 0.0
      %10808 = vadd.xlane.f32.xlu0 %v10807
      %v10809 = vpop.xlane.xlu0 %10808
      %v10810 = vsel %vm1241, %v10754, 0.0
      %10811 = vadd.xlane.f32.xlu0 %v10810
      %v10812 = vpop.xlane.xlu0 %10811
      %v10813 = vsel %vm1241, %v10755, 0.0
      %10814 = vadd.xlane.f32.xlu0 %v10813
      %v10815 = vpop.xlane.xlu0 %10814
      %v10816 = vsel %vm1241, %v10756, 0.0
      %10817 = vadd.xlane.f32.xlu0 %v10816
      %v10818 = vpop.xlane.xlu0 %10817
      %v10819 = vsel %vm1241, %v10757, 0.0
      %10820 = vadd.xlane.f32.xlu0 %v10819
      %v10821 = vpop.xlane.xlu0 %10820
      %v10822 = vsel %vm1241, %v10758, 0.0
      %10823 = vadd.xlane.f32.xlu0 %v10822
      %v10824 = vpop.xlane.xlu0 %10823
      %v10825 = vsel %vm1241, %v10759, 0.0
      %10826 = vadd.xlane.f32.xlu0 %v10825
      %v10827 = vpop.xlane.xlu0 %10826
      %v10828 = vsel %vm1241, %v10760, 0.0
      %10829 = vadd.xlane.f32.xlu0 %v10828
      %v10830 = vpop.xlane.xlu0 %10829
      %v10831 = vsel %vm1241, %v10761, 0.0
      %10832 = vadd.xlane.f32.xlu0 %v10831
      %v10833 = vpop.xlane.xlu0 %10832
      %v10834 = vsel %vm1241, %v10762, 0.0
      %10835 = vadd.xlane.f32.xlu0 %v10834
      %v10836 = vpop.xlane.xlu0 %10835
      %v10837 = vsel %vm1241, %v10763, 0.0
      %10838 = vadd.xlane.f32.xlu0 %v10837
      %v10839 = vpop.xlane.xlu0 %10838
      %v10840 = vsel %vm1241, %v10764, 0.0
      %10841 = vadd.xlane.f32.xlu0 %v10840
      %v10842 = vpop.xlane.xlu0 %10841
      %v10843 = vsel %vm1241, %v10765, 0.0
      %10844 = vadd.xlane.f32.xlu0 %v10843
      %v10845 = vpop.xlane.xlu0 %10844
      %v10846 = vsel %vm1241, %v10766, 0.0
      %10847 = vadd.xlane.f32.xlu0 %v10846
      %v10848 = vpop.xlane.xlu0 %10847
      %v10849 = vsel %vm1241, %v10767, 0.0
      %10850 = vadd.xlane.f32.xlu0 %v10849
      %v10851 = vpop.xlane.xlu0 %10850
      %v10852 = vsel %vm1241, %v10768, 0.0
      %10853 = vadd.xlane.f32.xlu0 %v10852
      %v10854 = vpop.xlane.xlu0 %10853
      %v10855 = vsel %vm1241, %v10769, 0.0
      %10856 = vadd.xlane.f32.xlu0 %v10855
      %v10857 = vpop.xlane.xlu0 %10856
      %v10858 = vsel %vm1241, %v10770, 0.0
      %10859 = vadd.xlane.f32.xlu0 %v10858
      %v10860 = vpop.xlane.xlu0 %10859
      %v10861 = vsel %vm1241, %v10771, 0.0
      %10862 = vadd.xlane.f32.xlu0 %v10861
      %v10863 = vpop.xlane.xlu0 %10862
      %v10864 = vsel %vm1241, %v10772, 0.0
      %10865 = vadd.xlane.f32.xlu0 %v10864
      %v10866 = vpop.xlane.xlu0 %10865
      %v10867 = vsel %vm1241, %v10773, 0.0
      %10868 = vadd.xlane.f32.xlu0 %v10867
      %v10869 = vpop.xlane.xlu0 %10868
      %v10870 = vld [vmem:[#allocation2] sm:$0x1]
      %v10872 = vlaneseq
      %v10873 = vshrl.u32 %v10872, 7
      %v10874 = vsub.s32 0, %v10873
      %v10875 = vrot.slane %v10870, %v10874
      %v10877 = vadd.f32 %v10776, %v10875
      %v10878 = vadd.f32 %v10779, %v10875
      %v10879 = vadd.f32 %v10782, %v10875
      %v10880 = vadd.f32 %v10785, %v10875
      %v10881 = vadd.f32 %v10788, %v10875
      %v10882 = vadd.f32 %v10791, %v10875
      %v10883 = vadd.f32 %v10794, %v10875
      %v10884 = vadd.f32 %v10797, %v10875
      %v10885 = vadd.f32 %v10800, %v10875
      %v10886 = vadd.f32 %v10803, %v10875
      %v10887 = vadd.f32 %v10806, %v10875
      %v10888 = vadd.f32 %v10809, %v10875
      %v10889 = vadd.f32 %v10812, %v10875
      %v10890 = vadd.f32 %v10815, %v10875
      %v10891 = vadd.f32 %v10818, %v10875
      %v10892 = vadd.f32 %v10821, %v10875
      %v10893 = vadd.f32 %v10824, %v10875
      %v10894 = vadd.f32 %v10827, %v10875
      %v10895 = vadd.f32 %v10830, %v10875
      %v10896 = vadd.f32 %v10833, %v10875
      %v10897 = vadd.f32 %v10836, %v10875
      %v10898 = vadd.f32 %v10839, %v10875
      %v10899 = vadd.f32 %v10842, %v10875
      %v10900 = vadd.f32 %v10845, %v10875
      %v10901 = vadd.f32 %v10848, %v10875
      %v10902 = vadd.f32 %v10851, %v10875
      %v10903 = vadd.f32 %v10854, %v10875
      %v10904 = vadd.f32 %v10857, %v10875
      %v10905 = vadd.f32 %v10860, %v10875
      %v10906 = vadd.f32 %v10863, %v10875
      %v10907 = vadd.f32 %v10866, %v10875
      %v10908 = vadd.f32 %v10869, %v10875
      %v10909 = vmul.f32 %v10877, %v9921
      %v10910 = vmul.f32 %v10878, %v9922
      %v10911 = vmul.f32 %v10879, %v9923
      %v10912 = vmul.f32 %v10880, %v9924
      %v10913 = vmul.f32 %v10881, %v9925
      %v10914 = vmul.f32 %v10882, %v9926
      %v10915 = vmul.f32 %v10883, %v9927
      %v10916 = vmul.f32 %v10884, %v9928
      %v10917 = vmul.f32 %v10885, %v9929
      %v10918 = vmul.f32 %v10886, %v9930
      %v10919 = vmul.f32 %v10887, %v9931
      %v10920 = vmul.f32 %v10888, %v9932
      %v10921 = vmul.f32 %v10889, %v9933
      %v10922 = vmul.f32 %v10890, %v9934
      %v10923 = vmul.f32 %v10891, %v9935
      %v10924 = vmul.f32 %v10892, %v9936
      %v10925 = vmul.f32 %v10893, %v9937
      %v10926 = vmul.f32 %v10894, %v9938
      %v10927 = vmul.f32 %v10895, %v9939
      %v10928 = vmul.f32 %v10896, %v9940
      %v10929 = vmul.f32 %v10897, %v9941
      %v10930 = vmul.f32 %v10898, %v9942
      %v10931 = vmul.f32 %v10899, %v9943
      %v10932 = vmul.f32 %v10900, %v9944
      %v10933 = vmul.f32 %v10901, %v9945
      %v10934 = vmul.f32 %v10902, %v9946
      %v10935 = vmul.f32 %v10903, %v9947
      %v10936 = vmul.f32 %v10904, %v9948
      %v10937 = vmul.f32 %v10905, %v9949
      %v10938 = vmul.f32 %v10906, %v9950
      %v10939 = vmul.f32 %v10907, %v9951
      %v10940 = vmul.f32 %v10908, %v9952
      %vm10941 = vcmask 7168
      %10942 = vst.msk [vmem:[%s649] sm:$0xff] %vm10941, %v10909
      %10943 = vst.msk [vmem:[%s649 + $0x8] sm:$0xff] %vm10941, %v10910
      %10944 = vst.msk [vmem:[%s649 + $0x10] sm:$0xff] %vm10941, %v10911
      %10945 = vst.msk [vmem:[%s649 + $0x18] sm:$0xff] %vm10941, %v10912
      %10946 = vst.msk [vmem:[%s649 + $0x20] sm:$0xff] %vm10941, %v10913
      %10947 = vst.msk [vmem:[%s649 + $0x28] sm:$0xff] %vm10941, %v10914
      %10948 = vst.msk [vmem:[%s649 + $0x30] sm:$0xff] %vm10941, %v10915
      %10949 = vst.msk [vmem:[%s649 + $0x38] sm:$0xff] %vm10941, %v10916
      %10950 = vst.msk [vmem:[%s649 + $0x40] sm:$0xff] %vm10941, %v10917
      %10951 = vst.msk [vmem:[%s649 + $0x48] sm:$0xff] %vm10941, %v10918
      %10952 = vst.msk [vmem:[%s649 + $0x50] sm:$0xff] %vm10941, %v10919
      %10953 = vst.msk [vmem:[%s649 + $0x58] sm:$0xff] %vm10941, %v10920
      %10954 = vst.msk [vmem:[%s649 + $0x60] sm:$0xff] %vm10941, %v10921
      %10955 = vst.msk [vmem:[%s649 + $0x68] sm:$0xff] %vm10941, %v10922
      %10956 = vst.msk [vmem:[%s649 + $0x70] sm:$0xff] %vm10941, %v10923
      %10957 = vst.msk [vmem:[%s649 + $0x78] sm:$0xff] %vm10941, %v10924
      %10958 = vst.msk [vmem:[%s649 + $0x80] sm:$0xff] %vm10941, %v10925
      %10959 = vst.msk [vmem:[%s649 + $0x88] sm:$0xff] %vm10941, %v10926
      %10960 = vst.msk [vmem:[%s649 + $0x90] sm:$0xff] %vm10941, %v10927
      %10961 = vst.msk [vmem:[%s649 + $0x98] sm:$0xff] %vm10941, %v10928
      %10962 = vst.msk [vmem:[%s649 + $0xa0] sm:$0xff] %vm10941, %v10929
      %10963 = vst.msk [vmem:[%s649 + $0xa8] sm:$0xff] %vm10941, %v10930
      %10964 = vst.msk [vmem:[%s649 + $0xb0] sm:$0xff] %vm10941, %v10931
      %10965 = vst.msk [vmem:[%s649 + $0xb8] sm:$0xff] %vm10941, %v10932
      %10966 = vst.msk [vmem:[%s649 + $0xc0] sm:$0xff] %vm10941, %v10933
      %10967 = vst.msk [vmem:[%s649 + $0xc8] sm:$0xff] %vm10941, %v10934
      %10968 = vst.msk [vmem:[%s649 + $0xd0] sm:$0xff] %vm10941, %v10935
      %10969 = vst.msk [vmem:[%s649 + $0xd8] sm:$0xff] %vm10941, %v10936
      %10970 = vst.msk [vmem:[%s649 + $0xe0] sm:$0xff] %vm10941, %v10937
      %10971 = vst.msk [vmem:[%s649 + $0xe8] sm:$0xff] %vm10941, %v10938
      %10972 = vst.msk [vmem:[%s649 + $0xf0] sm:$0xff] %vm10941, %v10939
      %10973 = vst.msk [vmem:[%s649 + $0xf8] sm:$0xff] %vm10941, %v10940
      %s10974 = smul.u32 32, %s36
      %p10975 = scmp.lt.s32.totalorder %s35, 1
      %s10976 = scalar_select %p10975, %s35, 1
      %p10977 = scmp.lt.s32.totalorder %s10974, 63
      %s10978 = scalar_select %p10977, %s10974, 63
      %s10979 = smul.addr %s10976, 64
      %s10980 = sadd.s32 %s10978, %s10979
      %s10981 = smul.addr %s10980, 8
      %s10982 = scalar_lea.vmem %s18, %s10981
      // Predicated region
      $region117: #{tpu_custom_call.1} parent=91 // pred_check
        %p10983 = pneg %p455
      $region118: #{tpu_custom_call.1} parent=91 // pred_check_branch
        %10985 = sbr.rel (%p10983) target = $region120
      $region119: #{tpu_custom_call.1} parent=91 // pred_region
        %s10986 = smul.u32 32, %s36
      $region120: #{tpu_custom_call.1} parent=91 // pred_fallthru
        _
    $region92: #{tpu_custom_call.1} parent=5 // pred_fallthru
      _
    %p10987 = scmp.le.s32.totalorder 2, %s26
    // Predicated region
    $region121: #{tpu_custom_call.1} parent=5 // pred_check
      %p10988 = pneg %p10987
    $region122: #{tpu_custom_call.1} parent=5 // pred_check_branch
      %10990 = sbr.rel (%p10988) target = $region124
    $region123: #{tpu_custom_call.1} parent=5 // pred_region
      %s10991 = ssub.s32 %s26, 2
      // Predicated region
      $region125: #{tpu_custom_call.1} parent=123 // pred_check
        %p10992 = pneg %p461
      $region126: #{tpu_custom_call.1} parent=123 // pred_check_branch
        %10994 = sbr.rel (%p10992) target = $region128
      $region127: #{tpu_custom_call.1} parent=123 // pred_region
        %s10995 = smul.u32 32, %s38
        %p10996 = scmp.lt.s32.totalorder %s37, 1
        %s10997 = scalar_select %p10996, %s37, 1
        %p10998 = scmp.lt.s32.totalorder %s10995, 63
        %s10999 = scalar_select %p10998, %s10995, 63
        %s11000 = smul.addr %s10997, 64
        %s11001 = sadd.s32 %s10999, %s11000
        %s11002 = smul.addr %s11001, 8
        %s11003 = scalar_lea.vmem %s18, %s11002
      $region128: #{tpu_custom_call.1} parent=123 // pred_fallthru
        _
    $region124: #{tpu_custom_call.1} parent=5 // pred_fallthru
      _
  $region6: #{tpu_custom_call.1} parent=0 // loop_footer
    %s30 = sadd.s32 1, %s26
  $region7: #{tpu_custom_call.1} parent=0 // loop_footer_branch
    %25 = sbr.rel target = $region3
  $region8: #{tpu_custom_call.1} parent=0 // loop_exit
    _

</llo_original>
